<compile_context>
chip_gen: v6e
topology: v6e:2x2x1
jax: 0.10.0
libtpu: 0.0.40
codegen_flags: <defaults>
</compile_context>

<pallas_src>
import functools

import jax
import jax.numpy as jnp
from jax.experimental import pallas as pl
from jax.experimental.pallas import tpu as pltpu

_BN_EPS = 1e-5


def _round_up(x, m):
    return (x + m - 1) // m * m


# --------------------------------------------------------------------------- Pallas kernel
def _mm_scale_shift_kernel(a_ref, b_ref, s_ref, t_ref, o_ref, *, relu):
    """o = (relu?)((a @ b) * s + t)  — per-column scale/shift fused into the matmul epilogue."""
    acc = jnp.dot(a_ref[...], b_ref[...], preferred_element_type=jnp.float32)
    y = acc * s_ref[...] + t_ref[...]
    if relu:
        y = jnp.maximum(y, 0.0)
    o_ref[...] = y


def fused_matmul(a, b, scale=None, shift=None, relu=False,
                 in_dtype=jnp.float32, tm_max=512):
    """(M,K) @ (K,N) with fused per-column scale/shift(+ReLU).  K and N are kept full-extent
    (all K,N in this model are small); only M is tiled / padded."""
    M, K = a.shape
    K2, N = b.shape
    assert K == K2
    scale = jnp.ones((N,), jnp.float32) if scale is None else scale
    shift = jnp.zeros((N,), jnp.float32) if shift is None else shift
    a = a.astype(in_dtype)
    b = b.astype(in_dtype)
    tm = min(tm_max, _round_up(M, 8))
    Mp = _round_up(M, tm)
    if Mp != M:
        a = jnp.zeros((Mp, K), in_dtype).at[:M].set(a)
    s = scale.reshape(1, N).astype(jnp.float32)
    t = shift.reshape(1, N).astype(jnp.float32)
    out = pl.pallas_call(
        functools.partial(_mm_scale_shift_kernel, relu=relu),
        out_shape=jax.ShapeDtypeStruct((Mp, N), jnp.float32),
        grid=(Mp // tm,),
        in_specs=[pl.BlockSpec((tm, K), lambda i: (i, 0)),
                  pl.BlockSpec((K, N), lambda i: (0, 0)),
                  pl.BlockSpec((1, N), lambda i: (0, 0)),
                  pl.BlockSpec((1, N), lambda i: (0, 0))],
        out_specs=pl.BlockSpec((tm, N), lambda i: (i, 0)),
        compiler_params=pltpu.CompilerParams(dimension_semantics=("parallel",)),
    )(a, b, s, t)
    return out if Mp == M else out[:M]


# --------------------------------------------------------------------------- deconv (sub-pixel)
# ConvTranspose2d(k=4, stride=2, padding=1): output row 2m+py uses input rows listed in _OFF[py]
# (offsets into the 1-padded input) with the 4x4-kernel row indices _KID[py]; same along x.
_OFF = ((0, 1), (1, 2))
_KID = ((3, 1), (2, 0))


def make_deconv_wmat(w_t):
    """PyTorch ConvTranspose2d weight (Cin, Cout, 4, 4) -> (9*Cin, 4*Cout) sub-pixel matrix.

    Column group p = 2*py+px produces output parity (py, px); rows are a 3x3 im2col of the
    1-padded input (taps not used by a parity are structurally zero)."""
    Cin, Cout = int(w_t.shape[0]), int(w_t.shape[1])
    wmat = jnp.zeros((9 * Cin, 4 * Cout), jnp.float32)
    for py in range(2):
        for px in range(2):
            p = 2 * py + px
            for a in range(2):
                for b_ in range(2):
                    dy, dx = _OFF[py][a], _OFF[px][b_]
                    ky, kx = _KID[py][a], _KID[px][b_]
                    tap = dy * 3 + dx
                    wmat = wmat.at[tap * Cin:(tap + 1) * Cin,
                                   p * Cout:(p + 1) * Cout].set(w_t[:, :, ky, kx])
    return wmat


def deconv_s2_k4_p1(x, wmat, scale4, shift4, relu):
    """ConvTranspose2d(k=4, s=2, p=1) on NHWC x, fused with per-channel scale/shift(+ReLU)."""
    B, H, W, Cin = x.shape
    Cout = wmat.shape[1] // 4
    xp = jnp.pad(x, ((0, 0), (1, 1), (1, 1), (0, 0))).astype(jnp.bfloat16)
    patches = jnp.stack([xp[:, dy:dy + H, dx:dx + W, :]
                         for dy in range(3) for dx in range(3)], axis=3)     # (B,H,W,9,Cin)
    patches = patches.reshape(B * H * W, 9 * Cin)
    out = fused_matmul(patches, wmat, scale4, shift4, relu, in_dtype=jnp.bfloat16)
    out = out.reshape(B, H, W, 2, 2, Cout).transpose(0, 1, 3, 2, 4, 5)       # (B,H,py,W,px,C)
    return out.reshape(B, 2 * H, 2 * W, Cout)


# --------------------------------------------------------------------------- glue
def bn_fold(conv_bias, bn):
    scale = bn['gamma'] / jnp.sqrt(bn['var'] + _BN_EPS)
    shift = bn['beta'] + (conv_bias - bn['mean']) * scale
    return scale, shift


def bilinear_matrix(out_size, in_size):
    """Row-interpolation matrix matching F.interpolate(mode='bilinear', align_corners=False)."""
    i = jnp.arange(out_size, dtype=jnp.float32)
    src = (i + 0.5) * (in_size / out_size) - 0.5
    src = jnp.maximum(src, 0.0)
    i0 = jnp.clip(jnp.floor(src).astype(jnp.int32), 0, in_size - 1)
    i1 = jnp.minimum(i0 + 1, in_size - 1)
    w1 = src - i0.astype(jnp.float32)
    w0 = 1.0 - w1
    R = jnp.zeros((out_size, in_size), jnp.float32)
    R = R.at[jnp.arange(out_size), i0].add(w0)
    R = R.at[jnp.arange(out_size), i1].add(w1)
    return R


def prepare_params(raw, pframe):
    """One-time parameter prep: fold BatchNorm into scale/shift, build sub-pixel deconv weight
    matrices (bf16), transpose the linear weight, build the bilinear resize matrix."""
    p = {}
    p['d1_wT'] = raw['d1_w'].T.astype(jnp.float32)                # (dhid, 3136)
    p['d1_b'] = raw['d1_b'].astype(jnp.float32)
    s3, t3 = bn_fold(raw['dconv3_b'], raw['bn2'])
    p['w3'] = make_deconv_wmat(raw['dconv3_w']).astype(jnp.bfloat16)
    p['s3'], p['t3'] = jnp.tile(s3, 4), jnp.tile(t3, 4)
    s2, t2 = bn_fold(raw['dconv2_b'], raw['bn1'])
    p['w2'] = make_deconv_wmat(raw['dconv2_w']).astype(jnp.bfloat16)
    p['s2'], p['t2'] = jnp.tile(s2, 4), jnp.tile(t2, 4)
    p['w1'] = make_deconv_wmat(raw['dconv1_w']).astype(jnp.bfloat16)
    p['s1'] = jnp.ones((4,), jnp.float32)
    p['t1'] = jnp.tile(raw['dconv1_b'].astype(jnp.float32), 4)
    p['R_T'] = bilinear_matrix(pframe, 224).T                      # (224, pframe)
    return p


def mask_decoder_forward(p, x):
    """x: (B, dhid) -> (B, 1, pframe, pframe)."""
    B = x.shape[0]
    pframe = p['R_T'].shape[1]
    # d1 Linear + ReLU (bias fused in epilogue)
    h = fused_matmul(x, p['d1_wT'], shift=p['d1_b'], relu=True)    # (B, 3136)
    h = h.reshape(B, 64, 7, 7).transpose(0, 2, 3, 1)               # NCHW view order -> NHWC
    # nearest x2 upsample, dconv3 + BN2 + ReLU
    h = jnp.repeat(jnp.repeat(h, 2, axis=1), 2, axis=2)            # (B,14,14,64)
    h = deconv_s2_k4_p1(h, p['w3'], p['s3'], p['t3'], relu=True)   # (B,28,28,32)
    # nearest x2 upsample, dconv2 + BN1 + ReLU
    h = jnp.repeat(jnp.repeat(h, 2, axis=1), 2, axis=2)            # (B,56,56,32)
    h = deconv_s2_k4_p1(h, p['w2'], p['s2'], p['t2'], relu=True)   # (B,112,112,16)
    # dconv1 (bias only, no BN / ReLU)
    h = deconv_s2_k4_p1(h, p['w1'], p['s1'], p['t1'], relu=False)  # (B,224,224,1)
    img = h[..., 0]                                                # (B,224,224)
    # bilinear resize to (pframe, pframe): two matmuls with the interpolation matrix
    R_T = p['R_T']
    t1 = fused_matmul(img.reshape(B * 224, 224), R_T).reshape(B, 224, pframe)
    t2 = jnp.transpose(t1, (0, 2, 1)).reshape(B * pframe, 224)
    out = fused_matmul(t2, R_T).reshape(B, pframe, pframe)
    out = jnp.transpose(out, (0, 2, 1))
    return out[:, None, :, :]


# --------------------------------------------------------------------------- init
def init_raw_params(key, dhid):
    keys = iter(jax.random.split(key, 32))

    def nrm(shape, scale=0.05):
        return (scale * jax.random.normal(next(keys), shape)).astype(jnp.float32)

    def bn_init(n):
        return {'gamma': 1.0 + nrm((n,), 0.02), 'beta': nrm((n,), 0.02),
                'mean': nrm((n,), 0.02), 'var': 1.0 + jnp.abs(nrm((n,), 0.1))}

    return {
        'd1_w': nrm((64 * 7 * 7, dhid)), 'd1_b': nrm((64 * 7 * 7,)),
        'dconv3_w': nrm((64, 32, 4, 4)), 'dconv3_b': nrm((32,)),
        'dconv2_w': nrm((32, 16, 4, 4)), 'dconv2_b': nrm((16,)),
        'dconv1_w': nrm((16, 1, 4, 4)), 'dconv1_b': nrm((1,)),
        'bn2': bn_init(32), 'bn1': bn_init(16),
    }


# --------------------------------------------------------------------------- main
if __name__ == "__main__":
    key = jax.random.PRNGKey(0)
    kp, kx = jax.random.split(key, 2)

    B, dhid, pframe = 2, 32, 64

    raw = init_raw_params(kp, dhid=dhid)
    params = prepare_params(raw, pframe=pframe)
    x = jax.random.normal(kx, (B, dhid), jnp.float32)

    fwd = jax.jit(mask_decoder_forward)
    out = fwd(params, x)
    jax.block_until_ready(out)

    assert out.shape == (B, 1, pframe, pframe)
    assert out.dtype == jnp.float32

    print("KERNEL_OK")
</pallas_src>

<mosaic_0001>
module attributes {stable_mosaic.version = 11 : i64} {
  func.func @_mm_scale_shift_kernel(%arg0: i32, %arg1: memref<8x32xf32, #tpu.memory_space<vmem>>, %arg2: memref<32x3136xf32, #tpu.memory_space<vmem>>, %arg3: memref<1x3136xf32, #tpu.memory_space<vmem>>, %arg4: memref<1x3136xf32, #tpu.memory_space<vmem>>, %arg5: memref<8x3136xf32, #tpu.memory_space<vmem>>) attributes {dimension_semantics = [#tpu.dimension_semantics<parallel>], iteration_bounds = array<i64: 1>, scalar_prefetch = 0 : i64, scratch_operands = 0 : i64, tpu.core_type = #tpu.core_type<tc>, window_params = [{transform_indices = @transform_0, window_bounds = array<i64: 8, 32>}, {pipeline_mode = #tpu.pipeline_mode<synchronous>, transform_indices = @transform_1, window_bounds = array<i64: 32, 3136>}, {pipeline_mode = #tpu.pipeline_mode<synchronous>, transform_indices = @transform_2, window_bounds = array<i64: 1, 3136>}, {pipeline_mode = #tpu.pipeline_mode<synchronous>, transform_indices = @transform_3, window_bounds = array<i64: 1, 3136>}, {transform_indices = @transform_4, window_bounds = array<i64: 8, 3136>}]} {
    %c0 = arith.constant 0 : index
    %c0_0 = arith.constant 0 : index
    %0 = vector.load %arg1[%c0, %c0_0] : memref<8x32xf32, #tpu.memory_space<vmem>>, vector<8x32xf32>
    %c0_1 = arith.constant 0 : index
    %c0_2 = arith.constant 0 : index
    %1 = vector.load %arg2[%c0_1, %c0_2] : memref<32x3136xf32, #tpu.memory_space<vmem>>, vector<32x3136xf32>
    %cst = arith.constant dense<0.000000e+00> : vector<8x3136xf32>
    %2 = tpu.matmul %0, %1, %cst {dimension_numbers = #tpu.dot_dimension_numbers<[1], [0], [0], [1], [0, 0, 1, 1], [], []>} : vector<8x32xf32>, vector<32x3136xf32>, vector<8x3136xf32> -> vector<8x3136xf32>
    %c0_3 = arith.constant 0 : index
    %c0_4 = arith.constant 0 : index
    %3 = vector.load %arg3[%c0_3, %c0_4] : memref<1x3136xf32, #tpu.memory_space<vmem>>, vector<1x3136xf32>
    %4 = vector.broadcast %3 : vector<1x3136xf32> to vector<8x3136xf32>
    %5 = arith.mulf %2, %4 : vector<8x3136xf32>
    %c0_5 = arith.constant 0 : index
    %c0_6 = arith.constant 0 : index
    %6 = vector.load %arg4[%c0_5, %c0_6] : memref<1x3136xf32, #tpu.memory_space<vmem>>, vector<1x3136xf32>
    %7 = vector.broadcast %6 : vector<1x3136xf32> to vector<8x3136xf32>
    %8 = arith.addf %5, %7 : vector<8x3136xf32>
    %cst_7 = arith.constant 0.000000e+00 : f32
    %9 = vector.broadcast %cst_7 : f32 to vector<8x3136xf32>
    %10 = arith.maximumf %8, %9 : vector<8x3136xf32>
    %c0_8 = arith.constant 0 : index
    %c0_9 = arith.constant 0 : index
    %11 = vector.load %arg5[%c0_8, %c0_9] : memref<8x3136xf32, #tpu.memory_space<vmem>>, vector<8x3136xf32>
    tpu.vector_store %arg5[%c0_8, %c0_9], %10 {strides = array<i32>} : memref<8x3136xf32, #tpu.memory_space<vmem>>, vector<8x3136xf32>,
    return
  }
  func.func @transform_0(%arg0: i32) -> (i32, i32) {
    %c0_i32 = arith.constant 0 : i32
    %c0_i32_0 = arith.constant 0 : i32
    return %arg0, %c0_i32 : i32, i32
  }
  func.func @transform_1(%arg0: i32) -> (i32, i32) {
    %c0_i32 = arith.constant 0 : i32
    %c0_i32_0 = arith.constant 0 : i32
    %c0_i32_1 = arith.constant 0 : i32
    return %c0_i32, %c0_i32_0 : i32, i32
  }
  func.func @transform_2(%arg0: i32) -> (i32, i32) {
    %c0_i32 = arith.constant 0 : i32
    %c0_i32_0 = arith.constant 0 : i32
    %c0_i32_1 = arith.constant 0 : i32
    return %c0_i32, %c0_i32_0 : i32, i32
  }
  func.func @transform_3(%arg0: i32) -> (i32, i32) {
    %c0_i32 = arith.constant 0 : i32
    %c0_i32_0 = arith.constant 0 : i32
    %c0_i32_1 = arith.constant 0 : i32
    return %c0_i32, %c0_i32_0 : i32, i32
  }
  func.func @transform_4(%arg0: i32) -> (i32, i32) {
    %c0_i32 = arith.constant 0 : i32
    %c0_i32_0 = arith.constant 0 : i32
    return %arg0, %c0_i32 : i32, i32
  }
}

module attributes {stable_mosaic.version = 11 : i64} {
  func.func @_mm_scale_shift_kernel(%arg0: i32, %arg1: memref<392x576xbf16, #tpu.memory_space<vmem>>, %arg2: memref<576x128xbf16, #tpu.memory_space<vmem>>, %arg3: memref<1x128xf32, #tpu.memory_space<vmem>>, %arg4: memref<1x128xf32, #tpu.memory_space<vmem>>, %arg5: memref<392x128xf32, #tpu.memory_space<vmem>>) attributes {dimension_semantics = [#tpu.dimension_semantics<parallel>], iteration_bounds = array<i64: 1>, scalar_prefetch = 0 : i64, scratch_operands = 0 : i64, tpu.core_type = #tpu.core_type<tc>, window_params = [{transform_indices = @transform_0, window_bounds = array<i64: 392, 576>}, {pipeline_mode = #tpu.pipeline_mode<synchronous>, transform_indices = @transform_1, window_bounds = array<i64: 576, 128>}, {pipeline_mode = #tpu.pipeline_mode<synchronous>, transform_indices = @transform_2, window_bounds = array<i64: 1, 128>}, {pipeline_mode = #tpu.pipeline_mode<synchronous>, transform_indices = @transform_3, window_bounds = array<i64: 1, 128>}, {transform_indices = @transform_4, window_bounds = array<i64: 392, 128>}]} {
    %c0 = arith.constant 0 : index
    %c0_0 = arith.constant 0 : index
    %0 = vector.load %arg1[%c0, %c0_0] : memref<392x576xbf16, #tpu.memory_space<vmem>>, vector<392x576xbf16>
    %c0_1 = arith.constant 0 : index
    %c0_2 = arith.constant 0 : index
    %1 = vector.load %arg2[%c0_1, %c0_2] : memref<576x128xbf16, #tpu.memory_space<vmem>>, vector<576x128xbf16>
    %cst = arith.constant dense<0.000000e+00> : vector<392x128xf32>
    %2 = tpu.matmul %0, %1, %cst {dimension_numbers = #tpu.dot_dimension_numbers<[1], [0], [0], [1], [0, 0, 1, 1], [], []>} : vector<392x576xbf16>, vector<576x128xbf16>, vector<392x128xf32> -> vector<392x128xf32>
    %c0_3 = arith.constant 0 : index
    %c0_4 = arith.constant 0 : index
    %3 = vector.load %arg3[%c0_3, %c0_4] : memref<1x128xf32, #tpu.memory_space<vmem>>, vector<1x128xf32>
    %4 = vector.broadcast %3 : vector<1x128xf32> to vector<392x128xf32>
    %5 = arith.mulf %2, %4 : vector<392x128xf32>
    %c0_5 = arith.constant 0 : index
    %c0_6 = arith.constant 0 : index
    %6 = vector.load %arg4[%c0_5, %c0_6] : memref<1x128xf32, #tpu.memory_space<vmem>>, vector<1x128xf32>
    %7 = vector.broadcast %6 : vector<1x128xf32> to vector<392x128xf32>
    %8 = arith.addf %5, %7 : vector<392x128xf32>
    %cst_7 = arith.constant 0.000000e+00 : f32
    %9 = vector.broadcast %cst_7 : f32 to vector<392x128xf32>
    %10 = arith.maximumf %8, %9 : vector<392x128xf32>
    %c0_8 = arith.constant 0 : index
    %c0_9 = arith.constant 0 : index
    %11 = vector.load %arg5[%c0_8, %c0_9] : memref<392x128xf32, #tpu.memory_space<vmem>>, vector<392x128xf32>
    tpu.vector_store %arg5[%c0_8, %c0_9], %10 {strides = array<i32>} : memref<392x128xf32, #tpu.memory_space<vmem>>, vector<392x128xf32>,
    return
  }
  func.func @transform_0(%arg0: i32) -> (i32, i32) {
    %c0_i32 = arith.constant 0 : i32
    %c0_i32_0 = arith.constant 0 : i32
    return %arg0, %c0_i32 : i32, i32
  }
  func.func @transform_1(%arg0: i32) -> (i32, i32) {
    %c0_i32 = arith.constant 0 : i32
    %c0_i32_0 = arith.constant 0 : i32
    %c0_i32_1 = arith.constant 0 : i32
    return %c0_i32, %c0_i32_0 : i32, i32
  }
  func.func @transform_2(%arg0: i32) -> (i32, i32) {
    %c0_i32 = arith.constant 0 : i32
    %c0_i32_0 = arith.constant 0 : i32
    %c0_i32_1 = arith.constant 0 : i32
    return %c0_i32, %c0_i32_0 : i32, i32
  }
  func.func @transform_3(%arg0: i32) -> (i32, i32) {
    %c0_i32 = arith.constant 0 : i32
    %c0_i32_0 = arith.constant 0 : i32
    %c0_i32_1 = arith.constant 0 : i32
    return %c0_i32, %c0_i32_0 : i32, i32
  }
  func.func @transform_4(%arg0: i32) -> (i32, i32) {
    %c0_i32 = arith.constant 0 : i32
    %c0_i32_0 = arith.constant 0 : i32
    return %arg0, %c0_i32 : i32, i32
  }
}

module attributes {stable_mosaic.version = 11 : i64} {
  func.func @_mm_scale_shift_kernel(%arg0: i32, %arg1: memref<512x288xbf16, #tpu.memory_space<vmem>>, %arg2: memref<288x64xbf16, #tpu.memory_space<vmem>>, %arg3: memref<1x64xf32, #tpu.memory_space<vmem>>, %arg4: memref<1x64xf32, #tpu.memory_space<vmem>>, %arg5: memref<512x64xf32, #tpu.memory_space<vmem>>) attributes {dimension_semantics = [#tpu.dimension_semantics<parallel>], iteration_bounds = array<i64: 13>, scalar_prefetch = 0 : i64, scratch_operands = 0 : i64, tpu.core_type = #tpu.core_type<tc>, window_params = [{transform_indices = @transform_0, window_bounds = array<i64: 512, 288>}, {pipeline_mode = #tpu.pipeline_mode<synchronous>, transform_indices = @transform_1, window_bounds = array<i64: 288, 64>}, {pipeline_mode = #tpu.pipeline_mode<synchronous>, transform_indices = @transform_2, window_bounds = array<i64: 1, 64>}, {pipeline_mode = #tpu.pipeline_mode<synchronous>, transform_indices = @transform_3, window_bounds = array<i64: 1, 64>}, {transform_indices = @transform_4, window_bounds = array<i64: 512, 64>}]} {
    %c0 = arith.constant 0 : index
    %c0_0 = arith.constant 0 : index
    %0 = vector.load %arg1[%c0, %c0_0] : memref<512x288xbf16, #tpu.memory_space<vmem>>, vector<512x288xbf16>
    %c0_1 = arith.constant 0 : index
    %c0_2 = arith.constant 0 : index
    %1 = vector.load %arg2[%c0_1, %c0_2] : memref<288x64xbf16, #tpu.memory_space<vmem>>, vector<288x64xbf16>
    %cst = arith.constant dense<0.000000e+00> : vector<512x64xf32>
    %2 = tpu.matmul %0, %1, %cst {dimension_numbers = #tpu.dot_dimension_numbers<[1], [0], [0], [1], [0, 0, 1, 1], [], []>} : vector<512x288xbf16>, vector<288x64xbf16>, vector<512x64xf32> -> vector<512x64xf32>
    %c0_3 = arith.constant 0 : index
    %c0_4 = arith.constant 0 : index
    %3 = vector.load %arg3[%c0_3, %c0_4] : memref<1x64xf32, #tpu.memory_space<vmem>>, vector<1x64xf32>
    %4 = vector.broadcast %3 : vector<1x64xf32> to vector<512x64xf32>
    %5 = arith.mulf %2, %4 : vector<512x64xf32>
    %c0_5 = arith.constant 0 : index
    %c0_6 = arith.constant 0 : index
    %6 = vector.load %arg4[%c0_5, %c0_6] : memref<1x64xf32, #tpu.memory_space<vmem>>, vector<1x64xf32>
    %7 = vector.broadcast %6 : vector<1x64xf32> to vector<512x64xf32>
    %8 = arith.addf %5, %7 : vector<512x64xf32>
    %cst_7 = arith.constant 0.000000e+00 : f32
    %9 = vector.broadcast %cst_7 : f32 to vector<512x64xf32>
    %10 = arith.maximumf %8, %9 : vector<512x64xf32>
    %c0_8 = arith.constant 0 : index
    %c0_9 = arith.constant 0 : index
    %11 = vector.load %arg5[%c0_8, %c0_9] : memref<512x64xf32, #tpu.memory_space<vmem>>, vector<512x64xf32>
    tpu.vector_store %arg5[%c0_8, %c0_9], %10 {strides = array<i32>} : memref<512x64xf32, #tpu.memory_space<vmem>>, vector<512x64xf32>,
    return
  }
  func.func @transform_0(%arg0: i32) -> (i32, i32) {
    %c0_i32 = arith.constant 0 : i32
    %c0_i32_0 = arith.constant 0 : i32
    return %arg0, %c0_i32 : i32, i32
  }
  func.func @transform_1(%arg0: i32) -> (i32, i32) {
    %c0_i32 = arith.constant 0 : i32
    %c0_i32_0 = arith.constant 0 : i32
    %c0_i32_1 = arith.constant 0 : i32
    return %c0_i32, %c0_i32_0 : i32, i32
  }
  func.func @transform_2(%arg0: i32) -> (i32, i32) {
    %c0_i32 = arith.constant 0 : i32
    %c0_i32_0 = arith.constant 0 : i32
    %c0_i32_1 = arith.constant 0 : i32
    return %c0_i32, %c0_i32_0 : i32, i32
  }
  func.func @transform_3(%arg0: i32) -> (i32, i32) {
    %c0_i32 = arith.constant 0 : i32
    %c0_i32_0 = arith.constant 0 : i32
    %c0_i32_1 = arith.constant 0 : i32
    return %c0_i32, %c0_i32_0 : i32, i32
  }
  func.func @transform_4(%arg0: i32) -> (i32, i32) {
    %c0_i32 = arith.constant 0 : i32
    %c0_i32_0 = arith.constant 0 : i32
    return %arg0, %c0_i32 : i32, i32
  }
}

module attributes {stable_mosaic.version = 11 : i64} {
  func.func @_mm_scale_shift_kernel(%arg0: i32, %arg1: memref<512x144xbf16, #tpu.memory_space<vmem>>, %arg2: memref<144x4xbf16, #tpu.memory_space<vmem>>, %arg3: memref<1x4xf32, #tpu.memory_space<vmem>>, %arg4: memref<1x4xf32, #tpu.memory_space<vmem>>, %arg5: memref<512x4xf32, #tpu.memory_space<vmem>>) attributes {dimension_semantics = [#tpu.dimension_semantics<parallel>], iteration_bounds = array<i64: 49>, scalar_prefetch = 0 : i64, scratch_operands = 0 : i64, tpu.core_type = #tpu.core_type<tc>, window_params = [{transform_indices = @transform_0, window_bounds = array<i64: 512, 144>}, {pipeline_mode = #tpu.pipeline_mode<synchronous>, transform_indices = @transform_1, window_bounds = array<i64: 144, 4>}, {pipeline_mode = #tpu.pipeline_mode<synchronous>, transform_indices = @transform_2, window_bounds = array<i64: 1, 4>}, {pipeline_mode = #tpu.pipeline_mode<synchronous>, transform_indices = @transform_3, window_bounds = array<i64: 1, 4>}, {transform_indices = @transform_4, window_bounds = array<i64: 512, 4>}]} {
    %c0 = arith.constant 0 : index
    %c0_0 = arith.constant 0 : index
    %0 = vector.load %arg1[%c0, %c0_0] : memref<512x144xbf16, #tpu.memory_space<vmem>>, vector<512x144xbf16>
    %c0_1 = arith.constant 0 : index
    %c0_2 = arith.constant 0 : index
    %1 = vector.load %arg2[%c0_1, %c0_2] : memref<144x4xbf16, #tpu.memory_space<vmem>>, vector<144x4xbf16>
    %cst = arith.constant dense<0.000000e+00> : vector<512x4xf32>
    %2 = tpu.matmul %0, %1, %cst {dimension_numbers = #tpu.dot_dimension_numbers<[1], [0], [0], [1], [0, 0, 1, 1], [], []>} : vector<512x144xbf16>, vector<144x4xbf16>, vector<512x4xf32> -> vector<512x4xf32>
    %c0_3 = arith.constant 0 : index
    %c0_4 = arith.constant 0 : index
    %3 = vector.load %arg3[%c0_3, %c0_4] : memref<1x4xf32, #tpu.memory_space<vmem>>, vector<1x4xf32>
    %4 = vector.broadcast %3 : vector<1x4xf32> to vector<512x4xf32>
    %5 = arith.mulf %2, %4 : vector<512x4xf32>
    %c0_5 = arith.constant 0 : index
    %c0_6 = arith.constant 0 : index
    %6 = vector.load %arg4[%c0_5, %c0_6] : memref<1x4xf32, #tpu.memory_space<vmem>>, vector<1x4xf32>
    %7 = vector.broadcast %6 : vector<1x4xf32> to vector<512x4xf32>
    %8 = arith.addf %5, %7 : vector<512x4xf32>
    %c0_7 = arith.constant 0 : index
    %c0_8 = arith.constant 0 : index
    %9 = vector.load %arg5[%c0_7, %c0_8] : memref<512x4xf32, #tpu.memory_space<vmem>>, vector<512x4xf32>
    tpu.vector_store %arg5[%c0_7, %c0_8], %8 {strides = array<i32>} : memref<512x4xf32, #tpu.memory_space<vmem>>, vector<512x4xf32>,
    return
  }
  func.func @transform_0(%arg0: i32) -> (i32, i32) {
    %c0_i32 = arith.constant 0 : i32
    %c0_i32_0 = arith.constant 0 : i32
    return %arg0, %c0_i32 : i32, i32
  }
  func.func @transform_1(%arg0: i32) -> (i32, i32) {
    %c0_i32 = arith.constant 0 : i32
    %c0_i32_0 = arith.constant 0 : i32
    %c0_i32_1 = arith.constant 0 : i32
    return %c0_i32, %c0_i32_0 : i32, i32
  }
  func.func @transform_2(%arg0: i32) -> (i32, i32) {
    %c0_i32 = arith.constant 0 : i32
    %c0_i32_0 = arith.constant 0 : i32
    %c0_i32_1 = arith.constant 0 : i32
    return %c0_i32, %c0_i32_0 : i32, i32
  }
  func.func @transform_3(%arg0: i32) -> (i32, i32) {
    %c0_i32 = arith.constant 0 : i32
    %c0_i32_0 = arith.constant 0 : i32
    %c0_i32_1 = arith.constant 0 : i32
    return %c0_i32, %c0_i32_0 : i32, i32
  }
  func.func @transform_4(%arg0: i32) -> (i32, i32) {
    %c0_i32 = arith.constant 0 : i32
    %c0_i32_0 = arith.constant 0 : i32
    return %arg0, %c0_i32 : i32, i32
  }
}

module attributes {stable_mosaic.version = 11 : i64} {
  func.func @_mm_scale_shift_kernel(%arg0: i32, %arg1: memref<448x224xf32, #tpu.memory_space<vmem>>, %arg2: memref<224x64xf32, #tpu.memory_space<vmem>>, %arg3: memref<1x64xf32, #tpu.memory_space<vmem>>, %arg4: memref<1x64xf32, #tpu.memory_space<vmem>>, %arg5: memref<448x64xf32, #tpu.memory_space<vmem>>) attributes {dimension_semantics = [#tpu.dimension_semantics<parallel>], iteration_bounds = array<i64: 1>, scalar_prefetch = 0 : i64, scratch_operands = 0 : i64, tpu.core_type = #tpu.core_type<tc>, window_params = [{transform_indices = @transform_0, window_bounds = array<i64: 448, 224>}, {pipeline_mode = #tpu.pipeline_mode<synchronous>, transform_indices = @transform_1, window_bounds = array<i64: 224, 64>}, {pipeline_mode = #tpu.pipeline_mode<synchronous>, transform_indices = @transform_2, window_bounds = array<i64: 1, 64>}, {pipeline_mode = #tpu.pipeline_mode<synchronous>, transform_indices = @transform_3, window_bounds = array<i64: 1, 64>}, {transform_indices = @transform_4, window_bounds = array<i64: 448, 64>}]} {
    %c0 = arith.constant 0 : index
    %c0_0 = arith.constant 0 : index
    %0 = vector.load %arg1[%c0, %c0_0] : memref<448x224xf32, #tpu.memory_space<vmem>>, vector<448x224xf32>
    %c0_1 = arith.constant 0 : index
    %c0_2 = arith.constant 0 : index
    %1 = vector.load %arg2[%c0_1, %c0_2] : memref<224x64xf32, #tpu.memory_space<vmem>>, vector<224x64xf32>
    %cst = arith.constant dense<0.000000e+00> : vector<448x64xf32>
    %2 = tpu.matmul %0, %1, %cst {dimension_numbers = #tpu.dot_dimension_numbers<[1], [0], [0], [1], [0, 0, 1, 1], [], []>} : vector<448x224xf32>, vector<224x64xf32>, vector<448x64xf32> -> vector<448x64xf32>
    %c0_3 = arith.constant 0 : index
    %c0_4 = arith.constant 0 : index
    %3 = vector.load %arg3[%c0_3, %c0_4] : memref<1x64xf32, #tpu.memory_space<vmem>>, vector<1x64xf32>
    %4 = vector.broadcast %3 : vector<1x64xf32> to vector<448x64xf32>
    %5 = arith.mulf %2, %4 : vector<448x64xf32>
    %c0_5 = arith.constant 0 : index
    %c0_6 = arith.constant 0 : index
    %6 = vector.load %arg4[%c0_5, %c0_6] : memref<1x64xf32, #tpu.memory_space<vmem>>, vector<1x64xf32>
    %7 = vector.broadcast %6 : vector<1x64xf32> to vector<448x64xf32>
    %8 = arith.addf %5, %7 : vector<448x64xf32>
    %c0_7 = arith.constant 0 : index
    %c0_8 = arith.constant 0 : index
    %9 = vector.load %arg5[%c0_7, %c0_8] : memref<448x64xf32, #tpu.memory_space<vmem>>, vector<448x64xf32>
    tpu.vector_store %arg5[%c0_7, %c0_8], %8 {strides = array<i32>} : memref<448x64xf32, #tpu.memory_space<vmem>>, vector<448x64xf32>,
    return
  }
  func.func @transform_0(%arg0: i32) -> (i32, i32) {
    %c0_i32 = arith.constant 0 : i32
    %c0_i32_0 = arith.constant 0 : i32
    return %arg0, %c0_i32 : i32, i32
  }
  func.func @transform_1(%arg0: i32) -> (i32, i32) {
    %c0_i32 = arith.constant 0 : i32
    %c0_i32_0 = arith.constant 0 : i32
    %c0_i32_1 = arith.constant 0 : i32
    return %c0_i32, %c0_i32_0 : i32, i32
  }
  func.func @transform_2(%arg0: i32) -> (i32, i32) {
    %c0_i32 = arith.constant 0 : i32
    %c0_i32_0 = arith.constant 0 : i32
    %c0_i32_1 = arith.constant 0 : i32
    return %c0_i32, %c0_i32_0 : i32, i32
  }
  func.func @transform_3(%arg0: i32) -> (i32, i32) {
    %c0_i32 = arith.constant 0 : i32
    %c0_i32_0 = arith.constant 0 : i32
    %c0_i32_1 = arith.constant 0 : i32
    return %c0_i32, %c0_i32_0 : i32, i32
  }
  func.func @transform_4(%arg0: i32) -> (i32, i32) {
    %c0_i32 = arith.constant 0 : i32
    %c0_i32_0 = arith.constant 0 : i32
    return %arg0, %c0_i32 : i32, i32
  }
}

module attributes {stable_mosaic.version = 11 : i64} {
  func.func @_mm_scale_shift_kernel(%arg0: i32, %arg1: memref<128x224xf32, #tpu.memory_space<vmem>>, %arg2: memref<224x64xf32, #tpu.memory_space<vmem>>, %arg3: memref<1x64xf32, #tpu.memory_space<vmem>>, %arg4: memref<1x64xf32, #tpu.memory_space<vmem>>, %arg5: memref<128x64xf32, #tpu.memory_space<vmem>>) attributes {dimension_semantics = [#tpu.dimension_semantics<parallel>], iteration_bounds = array<i64: 1>, scalar_prefetch = 0 : i64, scratch_operands = 0 : i64, tpu.core_type = #tpu.core_type<tc>, window_params = [{transform_indices = @transform_0, window_bounds = array<i64: 128, 224>}, {pipeline_mode = #tpu.pipeline_mode<synchronous>, transform_indices = @transform_1, window_bounds = array<i64: 224, 64>}, {pipeline_mode = #tpu.pipeline_mode<synchronous>, transform_indices = @transform_2, window_bounds = array<i64: 1, 64>}, {pipeline_mode = #tpu.pipeline_mode<synchronous>, transform_indices = @transform_3, window_bounds = array<i64: 1, 64>}, {transform_indices = @transform_4, window_bounds = array<i64: 128, 64>}]} {
    %c0 = arith.constant 0 : index
    %c0_0 = arith.constant 0 : index
    %0 = vector.load %arg1[%c0, %c0_0] : memref<128x224xf32, #tpu.memory_space<vmem>>, vector<128x224xf32>
    %c0_1 = arith.constant 0 : index
    %c0_2 = arith.constant 0 : index
    %1 = vector.load %arg2[%c0_1, %c0_2] : memref<224x64xf32, #tpu.memory_space<vmem>>, vector<224x64xf32>
    %cst = arith.constant dense<0.000000e+00> : vector<128x64xf32>
    %2 = tpu.matmul %0, %1, %cst {dimension_numbers = #tpu.dot_dimension_numbers<[1], [0], [0], [1], [0, 0, 1, 1], [], []>} : vector<128x224xf32>, vector<224x64xf32>, vector<128x64xf32> -> vector<128x64xf32>
    %c0_3 = arith.constant 0 : index
    %c0_4 = arith.constant 0 : index
    %3 = vector.load %arg3[%c0_3, %c0_4] : memref<1x64xf32, #tpu.memory_space<vmem>>, vector<1x64xf32>
    %4 = vector.broadcast %3 : vector<1x64xf32> to vector<128x64xf32>
    %5 = arith.mulf %2, %4 : vector<128x64xf32>
    %c0_5 = arith.constant 0 : index
    %c0_6 = arith.constant 0 : index
    %6 = vector.load %arg4[%c0_5, %c0_6] : memref<1x64xf32, #tpu.memory_space<vmem>>, vector<1x64xf32>
    %7 = vector.broadcast %6 : vector<1x64xf32> to vector<128x64xf32>
    %8 = arith.addf %5, %7 : vector<128x64xf32>
    %c0_7 = arith.constant 0 : index
    %c0_8 = arith.constant 0 : index
    %9 = vector.load %arg5[%c0_7, %c0_8] : memref<128x64xf32, #tpu.memory_space<vmem>>, vector<128x64xf32>
    tpu.vector_store %arg5[%c0_7, %c0_8], %8 {strides = array<i32>} : memref<128x64xf32, #tpu.memory_space<vmem>>, vector<128x64xf32>,
    return
  }
  func.func @transform_0(%arg0: i32) -> (i32, i32) {
    %c0_i32 = arith.constant 0 : i32
    %c0_i32_0 = arith.constant 0 : i32
    return %arg0, %c0_i32 : i32, i32
  }
  func.func @transform_1(%arg0: i32) -> (i32, i32) {
    %c0_i32 = arith.constant 0 : i32
    %c0_i32_0 = arith.constant 0 : i32
    %c0_i32_1 = arith.constant 0 : i32
    return %c0_i32, %c0_i32_0 : i32, i32
  }
  func.func @transform_2(%arg0: i32) -> (i32, i32) {
    %c0_i32 = arith.constant 0 : i32
    %c0_i32_0 = arith.constant 0 : i32
    %c0_i32_1 = arith.constant 0 : i32
    return %c0_i32, %c0_i32_0 : i32, i32
  }
  func.func @transform_3(%arg0: i32) -> (i32, i32) {
    %c0_i32 = arith.constant 0 : i32
    %c0_i32_0 = arith.constant 0 : i32
    %c0_i32_1 = arith.constant 0 : i32
    return %c0_i32, %c0_i32_0 : i32, i32
  }
  func.func @transform_4(%arg0: i32) -> (i32, i32) {
    %c0_i32 = arith.constant 0 : i32
    %c0_i32_0 = arith.constant 0 : i32
    return %arg0, %c0_i32 : i32, i32
  }
}

</mosaic_0001>

<llo_original>
// kernel: mask_decoder_forward.6
$region0: #{mask_decoder_forward.6}
  #allocation0 [shape = 'u32[]', space=smem, size = 0x4, offset = 0x4, fixed_abs, tag = 'smem constant byte address 0x4 - core index']
  #allocation1 [shape = 'u32[144,128]{1,0:T(1,128)}', space=vmem, size = 0x12000, scoped, tag = 'internal scratch']
  %s0 = inlined_call_operand.vmem [shape: f32[8,32], index: 0, kind: input, shape index: {}]
  %s1 = inlined_call_operand.hbm [shape: f32[32,3136], index: 1, kind: input, shape index: {}]
  %s2 = inlined_call_operand.vmem [shape: f32[1,3136], index: 2, kind: input, shape index: {}]
  %s3 = inlined_call_operand.vmem [shape: f32[1,3136], index: 3, kind: input, shape index: {}]
  %s4 = inlined_call_operand.vmem [shape: f32[8,3136], index: 4, kind: output, shape index: {}]
  %s5 = sld [smem:[#allocation0]]
  $region30: #{mask_decoder_forward.6} parent=0
    _
  %s7 = ssub.s32 1, %s5
  %s8 = scalar_select 0, %s7, %s5
  $region1: #{mask_decoder_forward.6} parent=0
    #allocation2 [shape = 'u8[409600]{0}', space=vmem, size = 0x64000, scoped, tag = 'input window, operand 1, single buffered']
    #allocation3 [shape = 's32[1]{0}', space=sflag, size = 0x4, scoped, tag = 'scoped memory for mask_decoder_forward.6']
    %9 = vsyncpa [#allocation3], 0
    // Predicated region
    $region2: #{mask_decoder_forward.6} parent=1 // pred_check
      _
    $region3: #{mask_decoder_forward.6} parent=1 // pred_check_branch
      %11 = sbr.rel (0) target = $region5
    $region4: #{mask_decoder_forward.6} parent=1 // pred_region
      _
    $region5: #{mask_decoder_forward.6} parent=1 // pred_fallthru
      _
    // Predicated region
    $region6: #{mask_decoder_forward.6} parent=1 // pred_check
      _
    $region7: #{mask_decoder_forward.6} parent=1 // pred_check_branch
      %13 = sbr.rel (0) target = $region9
    $region8: #{mask_decoder_forward.6} parent=1 // pred_region
      %s15 = ssub.s32 12800, 12800
      %16 = vsyncadd [#allocation3], %s15
      %s17 = sshll.u32 [#allocation2], 4
      %s18 = int_to_ptr.vmem [resolvable:$true] %s17
      %23 = dma.hbm_to_vmem [thread:$0]  %s1, 12800, %s18, [#allocation3], 3200, 3200, 200
    $region9: #{mask_decoder_forward.6} parent=1 // pred_fallthru
      _
    // Predicated region
    $region10: #{mask_decoder_forward.6} parent=1 // pred_check
      _
    $region11: #{mask_decoder_forward.6} parent=1 // pred_check_branch
      %25 = sbr.rel (0) target = $region13
    $region12: #{mask_decoder_forward.6} parent=1 // pred_region
      _
    $region13: #{mask_decoder_forward.6} parent=1 // pred_fallthru
      _
    // Predicated region
    $region14: #{mask_decoder_forward.6} parent=1 // pred_check
      _
    $region15: #{mask_decoder_forward.6} parent=1 // pred_check_branch
      %27 = sbr.rel (0) target = $region17
    $region16: #{mask_decoder_forward.6} parent=1 // pred_region
      _
    $region17: #{mask_decoder_forward.6} parent=1 // pred_fallthru
      _
    // Predicated region
    $region18: #{mask_decoder_forward.6} parent=1 // pred_check
      _
    $region19: #{mask_decoder_forward.6} parent=1 // pred_check_branch
      %29 = sbr.rel (0) target = $region21
    $region20: #{mask_decoder_forward.6} parent=1 // pred_region
      %30 = dma.done [#allocation3], 12800
    $region21: #{mask_decoder_forward.6} parent=1 // pred_fallthru
      _
    %v31 = vld [vmem:[%s0] sm:$0xff]
    %v32 = vld [vmem:[#allocation2] sm:$0xff]
    %v33 = vld [vmem:[#allocation2 + $0x8] sm:$0xff]
    %v34 = vld [vmem:[#allocation2 + $0x10] sm:$0xff]
    %v35 = vld [vmem:[#allocation2 + $0x18] sm:$0xff]
    %v36 = vld [vmem:[#allocation2 + $0x20] sm:$0xff]
    %v37 = vld [vmem:[#allocation2 + $0x28] sm:$0xff]
    %v38 = vld [vmem:[#allocation2 + $0x30] sm:$0xff]
    %v39 = vld [vmem:[#allocation2 + $0x38] sm:$0xff]
    %v40 = vld [vmem:[#allocation2 + $0x40] sm:$0xff]
    %v41 = vld [vmem:[#allocation2 + $0x48] sm:$0xff]
    %v42 = vld [vmem:[#allocation2 + $0x50] sm:$0xff]
    %v43 = vld [vmem:[#allocation2 + $0x58] sm:$0xff]
    %v44 = vld [vmem:[#allocation2 + $0x60] sm:$0xff]
    %v45 = vld [vmem:[#allocation2 + $0x68] sm:$0xff]
    %v46 = vld [vmem:[#allocation2 + $0x70] sm:$0xff]
    %v47 = vld [vmem:[#allocation2 + $0x78] sm:$0xff]
    %v48 = vld [vmem:[#allocation2 + $0x80] sm:$0xff]
    %v49 = vld [vmem:[#allocation2 + $0x88] sm:$0xff]
    %v50 = vld [vmem:[#allocation2 + $0x90] sm:$0xff]
    %v51 = vld [vmem:[#allocation2 + $0x98] sm:$0xff]
    %v52 = vld [vmem:[#allocation2 + $0xa0] sm:$0xff]
    %v53 = vld [vmem:[#allocation2 + $0xa8] sm:$0xff]
    %v54 = vld [vmem:[#allocation2 + $0xb0] sm:$0xff]
    %v55 = vld [vmem:[#allocation2 + $0xb8] sm:$0xff]
    %v56 = vld [vmem:[#allocation2 + $0xc0] sm:$0xff]
    %v57 = vld [vmem:[#allocation2 + $0xc8] sm:$0xff]
    %v58 = vld [vmem:[#allocation2 + $0xd0] sm:$0xff]
    %v59 = vld [vmem:[#allocation2 + $0xd8] sm:$0xff]
    %v60 = vld [vmem:[#allocation2 + $0xe0] sm:$0xff]
    %v61 = vld [vmem:[#allocation2 + $0xe8] sm:$0xff]
    %v62 = vld [vmem:[#allocation2 + $0xf0] sm:$0xff]
    %v63 = vld [vmem:[#allocation2 + $0xf8] sm:$0xff]
    %v64 = vld [vmem:[#allocation2 + $0x100] sm:$0xff]
    %v65 = vld [vmem:[#allocation2 + $0x108] sm:$0xff]
    %v66 = vld [vmem:[#allocation2 + $0x110] sm:$0xff]
    %v67 = vld [vmem:[#allocation2 + $0x118] sm:$0xff]
    %v68 = vld [vmem:[#allocation2 + $0x120] sm:$0xff]
    %v69 = vld [vmem:[#allocation2 + $0x128] sm:$0xff]
    %v70 = vld [vmem:[#allocation2 + $0x130] sm:$0xff]
    %v71 = vld [vmem:[#allocation2 + $0x138] sm:$0xff]
    %v72 = vld [vmem:[#allocation2 + $0x140] sm:$0xff]
    %v73 = vld [vmem:[#allocation2 + $0x148] sm:$0xff]
    %v74 = vld [vmem:[#allocation2 + $0x150] sm:$0xff]
    %v75 = vld [vmem:[#allocation2 + $0x158] sm:$0xff]
    %v76 = vld [vmem:[#allocation2 + $0x160] sm:$0xff]
    %v77 = vld [vmem:[#allocation2 + $0x168] sm:$0xff]
    %v78 = vld [vmem:[#allocation2 + $0x170] sm:$0xff]
    %v79 = vld [vmem:[#allocation2 + $0x178] sm:$0xff]
    %v80 = vld [vmem:[#allocation2 + $0x180] sm:$0xff]
    %v81 = vld [vmem:[#allocation2 + $0x188] sm:$0xff]
    %v82 = vld [vmem:[#allocation2 + $0x190] sm:$0xff]
    %v83 = vld [vmem:[#allocation2 + $0x198] sm:$0xff]
    %v84 = vld [vmem:[#allocation2 + $0x1a0] sm:$0xff]
    %v85 = vld [vmem:[#allocation2 + $0x1a8] sm:$0xff]
    %v86 = vld [vmem:[#allocation2 + $0x1b0] sm:$0xff]
    %v87 = vld [vmem:[#allocation2 + $0x1b8] sm:$0xff]
    %v88 = vld [vmem:[#allocation2 + $0x1c0] sm:$0xff]
    %v89 = vld [vmem:[#allocation2 + $0x1c8] sm:$0xff]
    %v90 = vld [vmem:[#allocation2 + $0x1d0] sm:$0xff]
    %v91 = vld [vmem:[#allocation2 + $0x1d8] sm:$0xff]
    %v92 = vld [vmem:[#allocation2 + $0x1e0] sm:$0xff]
    %v93 = vld [vmem:[#allocation2 + $0x1e8] sm:$0xff]
    %v94 = vld [vmem:[#allocation2 + $0x1f0] sm:$0xff]
    %v95 = vld [vmem:[#allocation2 + $0x1f8] sm:$0xff]
    %v96 = vld [vmem:[#allocation2 + $0x200] sm:$0xff]
    %v97 = vld [vmem:[#allocation2 + $0x208] sm:$0xff]
    %v98 = vld [vmem:[#allocation2 + $0x210] sm:$0xff]
    %v99 = vld [vmem:[#allocation2 + $0x218] sm:$0xff]
    %v100 = vld [vmem:[#allocation2 + $0x220] sm:$0xff]
    %v101 = vld [vmem:[#allocation2 + $0x228] sm:$0xff]
    %v102 = vld [vmem:[#allocation2 + $0x230] sm:$0xff]
    %v103 = vld [vmem:[#allocation2 + $0x238] sm:$0xff]
    %v104 = vld [vmem:[#allocation2 + $0x240] sm:$0xff]
    %v105 = vld [vmem:[#allocation2 + $0x248] sm:$0xff]
    %v106 = vld [vmem:[#allocation2 + $0x250] sm:$0xff]
    %v107 = vld [vmem:[#allocation2 + $0x258] sm:$0xff]
    %v108 = vld [vmem:[#allocation2 + $0x260] sm:$0xff]
    %v109 = vld [vmem:[#allocation2 + $0x268] sm:$0xff]
    %v110 = vld [vmem:[#allocation2 + $0x270] sm:$0xff]
    %v111 = vld [vmem:[#allocation2 + $0x278] sm:$0xff]
    %v112 = vld [vmem:[#allocation2 + $0x280] sm:$0xff]
    %v113 = vld [vmem:[#allocation2 + $0x288] sm:$0xff]
    %v114 = vld [vmem:[#allocation2 + $0x290] sm:$0xff]
    %v115 = vld [vmem:[#allocation2 + $0x298] sm:$0xff]
    %v116 = vld [vmem:[#allocation2 + $0x2a0] sm:$0xff]
    %v117 = vld [vmem:[#allocation2 + $0x2a8] sm:$0xff]
    %v118 = vld [vmem:[#allocation2 + $0x2b0] sm:$0xff]
    %v119 = vld [vmem:[#allocation2 + $0x2b8] sm:$0xff]
    %v120 = vld [vmem:[#allocation2 + $0x2c0] sm:$0xff]
    %v121 = vld [vmem:[#allocation2 + $0x2c8] sm:$0xff]
    %v122 = vld [vmem:[#allocation2 + $0x2d0] sm:$0xff]
    %v123 = vld [vmem:[#allocation2 + $0x2d8] sm:$0xff]
    %v124 = vld [vmem:[#allocation2 + $0x2e0] sm:$0xff]
    %v125 = vld [vmem:[#allocation2 + $0x2e8] sm:$0xff]
    %v126 = vld [vmem:[#allocation2 + $0x2f0] sm:$0xff]
    %v127 = vld [vmem:[#allocation2 + $0x2f8] sm:$0xff]
    %v128 = vld [vmem:[#allocation2 + $0x300] sm:$0xff]
    %v129 = vld [vmem:[#allocation2 + $0x308] sm:$0xff]
    %v130 = vld [vmem:[#allocation2 + $0x310] sm:$0xff]
    %v131 = vld [vmem:[#allocation2 + $0x318] sm:$0xff]
    %vm132 = vcmask 261120
    %v134 = vsel %vm132, %v31, 0
    %136 = vmatprep.subr.mxu0 0.0
    %137 = vmatpush1.msra.mxu0 0.0
    %138 = vmatprep.subr.mxu0 0.0
    %139 = vmatpush1.msra.mxu0 0.0
    %140 = vmatprep.subr.mxu0 0.0
    %141 = vmatpush1.msra.mxu0 0.0
    %142 = vmatprep.subr.mxu0 0.0
    %143 = vmatpush1.msra.mxu0 0.0
    %144 = vmatprep.subr.mxu0 0.0
    %145 = vmatpush1.msra.mxu0 0.0
    %146 = vmatprep.subr.mxu0 0.0
    %147 = vmatpush1.msra.mxu0 0.0
    %148 = vmatprep.subr.mxu0 0.0
    %149 = vmatpush1.msra.mxu0 0.0
    %150 = vmatprep.subr.mxu0 0.0
    %151 = vmatpush1.msra.mxu0 0.0
    %152 = vmatprep.subr.mxu0 0.0
    %153 = vmatpush1.msra.mxu0 0.0
    %154 = vmatprep.subr.mxu0 0.0
    %155 = vmatpush1.msra.mxu0 0.0
    %156 = vmatprep.subr.mxu0 0.0
    %157 = vmatpush1.msra.mxu0 0.0
    %158 = vmatprep.subr.mxu0 0.0
    %159 = vmatpush1.msra.mxu0 0.0
    %160 = vmatprep.subr.mxu0 %v108
    %161 = vmatpush1.msra.mxu0 %v107
    %162 = vmatprep.subr.mxu0 %v83
    %163 = vmatpush1.msra.mxu0 %v82
    %164 = vmatprep.subr.mxu0 %v58
    %165 = vmatpush1.msra.mxu0 %v57
    %166 = vmatprep.subr.mxu0 %v33
    %167 = vmatpush1.msra.mxu0 %v32
    %168 = vmatprep.subr.mxu0 0.0
    %169 = vmatpush2.msra.mxu0 0.0
    %170 = vmatprep.subr.mxu0 0.0
    %171 = vmatpush2.msra.mxu0 0.0
    %172 = vmatprep.subr.mxu0 0.0
    %173 = vmatpush2.msra.mxu0 0.0
    %174 = vmatprep.subr.mxu0 0.0
    %175 = vmatpush2.msra.mxu0 0.0
    %176 = vmatprep.subr.mxu0 0.0
    %177 = vmatpush2.msra.mxu0 0.0
    %178 = vmatprep.subr.mxu0 0.0
    %179 = vmatpush2.msra.mxu0 0.0
    %180 = vmatprep.subr.mxu0 0.0
    %181 = vmatpush2.msra.mxu0 0.0
    %182 = vmatprep.subr.mxu0 0.0
    %183 = vmatpush2.msra.mxu0 0.0
    %184 = vmatprep.subr.mxu0 0.0
    %185 = vmatpush2.msra.mxu0 0.0
    %186 = vmatprep.subr.mxu0 0.0
    %187 = vmatpush2.msra.mxu0 0.0
    %188 = vmatprep.subr.mxu0 0.0
    %189 = vmatpush2.msra.mxu0 0.0
    %190 = vmatprep.subr.mxu0 0.0
    %191 = vmatpush2.msra.mxu0 0.0
    %192 = vmatprep.subr.mxu0 0.0
    %193 = vmatpush2.msra.mxu0 0.0
    %194 = vmatprep.subr.mxu0 0.0
    %195 = vmatpush2.msra.mxu0 0.0
    %196 = vmatprep.subr.mxu0 0.0
    %197 = vmatpush2.msra.mxu0 0.0
    %198 = vmatprep.subr.mxu0 0.0
    %199 = vmatpush2.msra.mxu0 0.0
    %200 = vmatprep.mubr.f32.mxu0 0.0
    %201 = vmatmul.mubr.f32.gmra.mxu0 %v134
    %v202 = vpop.f32.mrf.mxu0
    %v203 = vadd.f32 0.0, %v202
    %v204 = vpop.f32.mrf.mxu0
    %v205 = vadd.f32 0.0, %v204
    %206 = vdwg.mxu0
    %207 = vmatprep.subr.mxu0 0.0
    %208 = vmatpush1.msra.mxu0 0.0
    %209 = vmatprep.subr.mxu0 0.0
    %210 = vmatpush1.msra.mxu0 0.0
    %211 = vmatprep.subr.mxu0 0.0
    %212 = vmatpush1.msra.mxu0 0.0
    %213 = vmatprep.subr.mxu0 0.0
    %214 = vmatpush1.msra.mxu0 0.0
    %215 = vmatprep.subr.mxu0 0.0
    %216 = vmatpush1.msra.mxu0 0.0
    %217 = vmatprep.subr.mxu0 0.0
    %218 = vmatpush1.msra.mxu0 0.0
    %219 = vmatprep.subr.mxu0 0.0
    %220 = vmatpush1.msra.mxu0 0.0
    %221 = vmatprep.subr.mxu0 0.0
    %222 = vmatpush1.msra.mxu0 0.0
    %223 = vmatprep.subr.mxu0 0.0
    %224 = vmatpush1.msra.mxu0 0.0
    %225 = vmatprep.subr.mxu0 0.0
    %226 = vmatpush1.msra.mxu0 0.0
    %227 = vmatprep.subr.mxu0 0.0
    %228 = vmatpush1.msra.mxu0 0.0
    %229 = vmatprep.subr.mxu0 0.0
    %230 = vmatpush1.msra.mxu0 0.0
    %231 = vmatprep.subr.mxu0 %v110
    %232 = vmatpush1.msra.mxu0 %v109
    %233 = vmatprep.subr.mxu0 %v85
    %234 = vmatpush1.msra.mxu0 %v84
    %235 = vmatprep.subr.mxu0 %v60
    %236 = vmatpush1.msra.mxu0 %v59
    %237 = vmatprep.subr.mxu0 %v35
    %238 = vmatpush1.msra.mxu0 %v34
    %239 = vmatprep.subr.mxu0 0.0
    %240 = vmatpush2.msra.mxu0 0.0
    %241 = vmatprep.subr.mxu0 0.0
    %242 = vmatpush2.msra.mxu0 0.0
    %243 = vmatprep.subr.mxu0 0.0
    %244 = vmatpush2.msra.mxu0 0.0
    %245 = vmatprep.subr.mxu0 0.0
    %246 = vmatpush2.msra.mxu0 0.0
    %247 = vmatprep.subr.mxu0 0.0
    %248 = vmatpush2.msra.mxu0 0.0
    %249 = vmatprep.subr.mxu0 0.0
    %250 = vmatpush2.msra.mxu0 0.0
    %251 = vmatprep.subr.mxu0 0.0
    %252 = vmatpush2.msra.mxu0 0.0
    %253 = vmatprep.subr.mxu0 0.0
    %254 = vmatpush2.msra.mxu0 0.0
    %255 = vmatprep.subr.mxu0 0.0
    %256 = vmatpush2.msra.mxu0 0.0
    %257 = vmatprep.subr.mxu0 0.0
    %258 = vmatpush2.msra.mxu0 0.0
    %259 = vmatprep.subr.mxu0 0.0
    %260 = vmatpush2.msra.mxu0 0.0
    %261 = vmatprep.subr.mxu0 0.0
    %262 = vmatpush2.msra.mxu0 0.0
    %263 = vmatprep.subr.mxu0 0.0
    %264 = vmatpush2.msra.mxu0 0.0
    %265 = vmatprep.subr.mxu0 0.0
    %266 = vmatpush2.msra.mxu0 0.0
    %267 = vmatprep.subr.mxu0 0.0
    %268 = vmatpush2.msra.mxu0 0.0
    %269 = vmatprep.subr.mxu0 0.0
    %270 = vmatpush2.msra.mxu0 0.0
    %271 = vmatprep.mubr.f32.mxu0 0.0
    %272 = vmatmul.mubr.f32.gmra.mxu0 %v134
    %v273 = vpop.f32.mrf.mxu0
    %v274 = vadd.f32 0.0, %v273
    %v275 = vpop.f32.mrf.mxu0
    %v276 = vadd.f32 0.0, %v275
    %277 = vdwg.mxu0
    %278 = vmatprep.subr.mxu0 0.0
    %279 = vmatpush1.msra.mxu0 0.0
    %280 = vmatprep.subr.mxu0 0.0
    %281 = vmatpush1.msra.mxu0 0.0
    %282 = vmatprep.subr.mxu0 0.0
    %283 = vmatpush1.msra.mxu0 0.0
    %284 = vmatprep.subr.mxu0 0.0
    %285 = vmatpush1.msra.mxu0 0.0
    %286 = vmatprep.subr.mxu0 0.0
    %287 = vmatpush1.msra.mxu0 0.0
    %288 = vmatprep.subr.mxu0 0.0
    %289 = vmatpush1.msra.mxu0 0.0
    %290 = vmatprep.subr.mxu0 0.0
    %291 = vmatpush1.msra.mxu0 0.0
    %292 = vmatprep.subr.mxu0 0.0
    %293 = vmatpush1.msra.mxu0 0.0
    %294 = vmatprep.subr.mxu0 0.0
    %295 = vmatpush1.msra.mxu0 0.0
    %296 = vmatprep.subr.mxu0 0.0
    %297 = vmatpush1.msra.mxu0 0.0
    %298 = vmatprep.subr.mxu0 0.0
    %299 = vmatpush1.msra.mxu0 0.0
    %300 = vmatprep.subr.mxu0 0.0
    %301 = vmatpush1.msra.mxu0 0.0
    %302 = vmatprep.subr.mxu0 %v112
    %303 = vmatpush1.msra.mxu0 %v111
    %304 = vmatprep.subr.mxu0 %v87
    %305 = vmatpush1.msra.mxu0 %v86
    %306 = vmatprep.subr.mxu0 %v62
    %307 = vmatpush1.msra.mxu0 %v61
    %308 = vmatprep.subr.mxu0 %v37
    %309 = vmatpush1.msra.mxu0 %v36
    %310 = vmatprep.subr.mxu0 0.0
    %311 = vmatpush2.msra.mxu0 0.0
    %312 = vmatprep.subr.mxu0 0.0
    %313 = vmatpush2.msra.mxu0 0.0
    %314 = vmatprep.subr.mxu0 0.0
    %315 = vmatpush2.msra.mxu0 0.0
    %316 = vmatprep.subr.mxu0 0.0
    %317 = vmatpush2.msra.mxu0 0.0
    %318 = vmatprep.subr.mxu0 0.0
    %319 = vmatpush2.msra.mxu0 0.0
    %320 = vmatprep.subr.mxu0 0.0
    %321 = vmatpush2.msra.mxu0 0.0
    %322 = vmatprep.subr.mxu0 0.0
    %323 = vmatpush2.msra.mxu0 0.0
    %324 = vmatprep.subr.mxu0 0.0
    %325 = vmatpush2.msra.mxu0 0.0
    %326 = vmatprep.subr.mxu0 0.0
    %327 = vmatpush2.msra.mxu0 0.0
    %328 = vmatprep.subr.mxu0 0.0
    %329 = vmatpush2.msra.mxu0 0.0
    %330 = vmatprep.subr.mxu0 0.0
    %331 = vmatpush2.msra.mxu0 0.0
    %332 = vmatprep.subr.mxu0 0.0
    %333 = vmatpush2.msra.mxu0 0.0
    %334 = vmatprep.subr.mxu0 0.0
    %335 = vmatpush2.msra.mxu0 0.0
    %336 = vmatprep.subr.mxu0 0.0
    %337 = vmatpush2.msra.mxu0 0.0
    %338 = vmatprep.subr.mxu0 0.0
    %339 = vmatpush2.msra.mxu0 0.0
    %340 = vmatprep.subr.mxu0 0.0
    %341 = vmatpush2.msra.mxu0 0.0
    %342 = vmatprep.mubr.f32.mxu0 0.0
    %343 = vmatmul.mubr.f32.gmra.mxu0 %v134
    %v344 = vpop.f32.mrf.mxu0
    %v345 = vadd.f32 0.0, %v344
    %v346 = vpop.f32.mrf.mxu0
    %v347 = vadd.f32 0.0, %v346
    %348 = vdwg.mxu0
    %349 = vmatprep.subr.mxu0 0.0
    %350 = vmatpush1.msra.mxu0 0.0
    %351 = vmatprep.subr.mxu0 0.0
    %352 = vmatpush1.msra.mxu0 0.0
    %353 = vmatprep.subr.mxu0 0.0
    %354 = vmatpush1.msra.mxu0 0.0
    %355 = vmatprep.subr.mxu0 0.0
    %356 = vmatpush1.msra.mxu0 0.0
    %357 = vmatprep.subr.mxu0 0.0
    %358 = vmatpush1.msra.mxu0 0.0
    %359 = vmatprep.subr.mxu0 0.0
    %360 = vmatpush1.msra.mxu0 0.0
    %361 = vmatprep.subr.mxu0 0.0
    %362 = vmatpush1.msra.mxu0 0.0
    %363 = vmatprep.subr.mxu0 0.0
    %364 = vmatpush1.msra.mxu0 0.0
    %365 = vmatprep.subr.mxu0 0.0
    %366 = vmatpush1.msra.mxu0 0.0
    %367 = vmatprep.subr.mxu0 0.0
    %368 = vmatpush1.msra.mxu0 0.0
    %369 = vmatprep.subr.mxu0 0.0
    %370 = vmatpush1.msra.mxu0 0.0
    %371 = vmatprep.subr.mxu0 0.0
    %372 = vmatpush1.msra.mxu0 0.0
    %373 = vmatprep.subr.mxu0 %v114
    %374 = vmatpush1.msra.mxu0 %v113
    %375 = vmatprep.subr.mxu0 %v89
    %376 = vmatpush1.msra.mxu0 %v88
    %377 = vmatprep.subr.mxu0 %v64
    %378 = vmatpush1.msra.mxu0 %v63
    %379 = vmatprep.subr.mxu0 %v39
    %380 = vmatpush1.msra.mxu0 %v38
    %381 = vmatprep.subr.mxu0 0.0
    %382 = vmatpush2.msra.mxu0 0.0
    %383 = vmatprep.subr.mxu0 0.0
    %384 = vmatpush2.msra.mxu0 0.0
    %385 = vmatprep.subr.mxu0 0.0
    %386 = vmatpush2.msra.mxu0 0.0
    %387 = vmatprep.subr.mxu0 0.0
    %388 = vmatpush2.msra.mxu0 0.0
    %389 = vmatprep.subr.mxu0 0.0
    %390 = vmatpush2.msra.mxu0 0.0
    %391 = vmatprep.subr.mxu0 0.0
    %392 = vmatpush2.msra.mxu0 0.0
    %393 = vmatprep.subr.mxu0 0.0
    %394 = vmatpush2.msra.mxu0 0.0
    %395 = vmatprep.subr.mxu0 0.0
    %396 = vmatpush2.msra.mxu0 0.0
    %397 = vmatprep.subr.mxu0 0.0
    %398 = vmatpush2.msra.mxu0 0.0
    %399 = vmatprep.subr.mxu0 0.0
    %400 = vmatpush2.msra.mxu0 0.0
    %401 = vmatprep.subr.mxu0 0.0
    %402 = vmatpush2.msra.mxu0 0.0
    %403 = vmatprep.subr.mxu0 0.0
    %404 = vmatpush2.msra.mxu0 0.0
    %405 = vmatprep.subr.mxu0 0.0
    %406 = vmatpush2.msra.mxu0 0.0
    %407 = vmatprep.subr.mxu0 0.0
    %408 = vmatpush2.msra.mxu0 0.0
    %409 = vmatprep.subr.mxu0 0.0
    %410 = vmatpush2.msra.mxu0 0.0
    %411 = vmatprep.subr.mxu0 0.0
    %412 = vmatpush2.msra.mxu0 0.0
    %413 = vmatprep.mubr.f32.mxu0 0.0
    %414 = vmatmul.mubr.f32.gmra.mxu0 %v134
    %v415 = vpop.f32.mrf.mxu0
    %v416 = vadd.f32 0.0, %v415
    %v417 = vpop.f32.mrf.mxu0
    %v418 = vadd.f32 0.0, %v417
    %419 = vdwg.mxu0
    %420 = vmatprep.subr.mxu0 0.0
    %421 = vmatpush1.msra.mxu0 0.0
    %422 = vmatprep.subr.mxu0 0.0
    %423 = vmatpush1.msra.mxu0 0.0
    %424 = vmatprep.subr.mxu0 0.0
    %425 = vmatpush1.msra.mxu0 0.0
    %426 = vmatprep.subr.mxu0 0.0
    %427 = vmatpush1.msra.mxu0 0.0
    %428 = vmatprep.subr.mxu0 0.0
    %429 = vmatpush1.msra.mxu0 0.0
    %430 = vmatprep.subr.mxu0 0.0
    %431 = vmatpush1.msra.mxu0 0.0
    %432 = vmatprep.subr.mxu0 0.0
    %433 = vmatpush1.msra.mxu0 0.0
    %434 = vmatprep.subr.mxu0 0.0
    %435 = vmatpush1.msra.mxu0 0.0
    %436 = vmatprep.subr.mxu0 0.0
    %437 = vmatpush1.msra.mxu0 0.0
    %438 = vmatprep.subr.mxu0 0.0
    %439 = vmatpush1.msra.mxu0 0.0
    %440 = vmatprep.subr.mxu0 0.0
    %441 = vmatpush1.msra.mxu0 0.0
    %442 = vmatprep.subr.mxu0 0.0
    %443 = vmatpush1.msra.mxu0 0.0
    %444 = vmatprep.subr.mxu0 %v116
    %445 = vmatpush1.msra.mxu0 %v115
    %446 = vmatprep.subr.mxu0 %v91
    %447 = vmatpush1.msra.mxu0 %v90
    %448 = vmatprep.subr.mxu0 %v66
    %449 = vmatpush1.msra.mxu0 %v65
    %450 = vmatprep.subr.mxu0 %v41
    %451 = vmatpush1.msra.mxu0 %v40
    %452 = vmatprep.subr.mxu0 0.0
    %453 = vmatpush2.msra.mxu0 0.0
    %454 = vmatprep.subr.mxu0 0.0
    %455 = vmatpush2.msra.mxu0 0.0
    %456 = vmatprep.subr.mxu0 0.0
    %457 = vmatpush2.msra.mxu0 0.0
    %458 = vmatprep.subr.mxu0 0.0
    %459 = vmatpush2.msra.mxu0 0.0
    %460 = vmatprep.subr.mxu0 0.0
    %461 = vmatpush2.msra.mxu0 0.0
    %462 = vmatprep.subr.mxu0 0.0
    %463 = vmatpush2.msra.mxu0 0.0
    %464 = vmatprep.subr.mxu0 0.0
    %465 = vmatpush2.msra.mxu0 0.0
    %466 = vmatprep.subr.mxu0 0.0
    %467 = vmatpush2.msra.mxu0 0.0
    %468 = vmatprep.subr.mxu0 0.0
    %469 = vmatpush2.msra.mxu0 0.0
    %470 = vmatprep.subr.mxu0 0.0
    %471 = vmatpush2.msra.mxu0 0.0
    %472 = vmatprep.subr.mxu0 0.0
    %473 = vmatpush2.msra.mxu0 0.0
    %474 = vmatprep.subr.mxu0 0.0
    %475 = vmatpush2.msra.mxu0 0.0
    %476 = vmatprep.subr.mxu0 0.0
    %477 = vmatpush2.msra.mxu0 0.0
    %478 = vmatprep.subr.mxu0 0.0
    %479 = vmatpush2.msra.mxu0 0.0
    %480 = vmatprep.subr.mxu0 0.0
    %481 = vmatpush2.msra.mxu0 0.0
    %482 = vmatprep.subr.mxu0 0.0
    %483 = vmatpush2.msra.mxu0 0.0
    %484 = vmatprep.mubr.f32.mxu0 0.0
    %485 = vmatmul.mubr.f32.gmra.mxu0 %v134
    %v486 = vpop.f32.mrf.mxu0
    %v487 = vadd.f32 0.0, %v486
    %v488 = vpop.f32.mrf.mxu0
    %v489 = vadd.f32 0.0, %v488
    %490 = vdwg.mxu0
    %491 = vmatprep.subr.mxu0 0.0
    %492 = vmatpush1.msra.mxu0 0.0
    %493 = vmatprep.subr.mxu0 0.0
    %494 = vmatpush1.msra.mxu0 0.0
    %495 = vmatprep.subr.mxu0 0.0
    %496 = vmatpush1.msra.mxu0 0.0
    %497 = vmatprep.subr.mxu0 0.0
    %498 = vmatpush1.msra.mxu0 0.0
    %499 = vmatprep.subr.mxu0 0.0
    %500 = vmatpush1.msra.mxu0 0.0
    %501 = vmatprep.subr.mxu0 0.0
    %502 = vmatpush1.msra.mxu0 0.0
    %503 = vmatprep.subr.mxu0 0.0
    %504 = vmatpush1.msra.mxu0 0.0
    %505 = vmatprep.subr.mxu0 0.0
    %506 = vmatpush1.msra.mxu0 0.0
    %507 = vmatprep.subr.mxu0 0.0
    %508 = vmatpush1.msra.mxu0 0.0
    %509 = vmatprep.subr.mxu0 0.0
    %510 = vmatpush1.msra.mxu0 0.0
    %511 = vmatprep.subr.mxu0 0.0
    %512 = vmatpush1.msra.mxu0 0.0
    %513 = vmatprep.subr.mxu0 0.0
    %514 = vmatpush1.msra.mxu0 0.0
    %515 = vmatprep.subr.mxu0 %v118
    %516 = vmatpush1.msra.mxu0 %v117
    %517 = vmatprep.subr.mxu0 %v93
    %518 = vmatpush1.msra.mxu0 %v92
    %519 = vmatprep.subr.mxu0 %v68
    %520 = vmatpush1.msra.mxu0 %v67
    %521 = vmatprep.subr.mxu0 %v43
    %522 = vmatpush1.msra.mxu0 %v42
    %523 = vmatprep.subr.mxu0 0.0
    %524 = vmatpush2.msra.mxu0 0.0
    %525 = vmatprep.subr.mxu0 0.0
    %526 = vmatpush2.msra.mxu0 0.0
    %527 = vmatprep.subr.mxu0 0.0
    %528 = vmatpush2.msra.mxu0 0.0
    %529 = vmatprep.subr.mxu0 0.0
    %530 = vmatpush2.msra.mxu0 0.0
    %531 = vmatprep.subr.mxu0 0.0
    %532 = vmatpush2.msra.mxu0 0.0
    %533 = vmatprep.subr.mxu0 0.0
    %534 = vmatpush2.msra.mxu0 0.0
    %535 = vmatprep.subr.mxu0 0.0
    %536 = vmatpush2.msra.mxu0 0.0
    %537 = vmatprep.subr.mxu0 0.0
    %538 = vmatpush2.msra.mxu0 0.0
    %539 = vmatprep.subr.mxu0 0.0
    %540 = vmatpush2.msra.mxu0 0.0
    %541 = vmatprep.subr.mxu0 0.0
    %542 = vmatpush2.msra.mxu0 0.0
    %543 = vmatprep.subr.mxu0 0.0
    %544 = vmatpush2.msra.mxu0 0.0
    %545 = vmatprep.subr.mxu0 0.0
    %546 = vmatpush2.msra.mxu0 0.0
    %547 = vmatprep.subr.mxu0 0.0
    %548 = vmatpush2.msra.mxu0 0.0
    %549 = vmatprep.subr.mxu0 0.0
    %550 = vmatpush2.msra.mxu0 0.0
    %551 = vmatprep.subr.mxu0 0.0
    %552 = vmatpush2.msra.mxu0 0.0
    %553 = vmatprep.subr.mxu0 0.0
    %554 = vmatpush2.msra.mxu0 0.0
    %555 = vmatprep.mubr.f32.mxu0 0.0
    %556 = vmatmul.mubr.f32.gmra.mxu0 %v134
    %v557 = vpop.f32.mrf.mxu0
    %v558 = vadd.f32 0.0, %v557
    %v559 = vpop.f32.mrf.mxu0
    %v560 = vadd.f32 0.0, %v559
    %561 = vdwg.mxu0
    %562 = vmatprep.subr.mxu0 0.0
    %563 = vmatpush1.msra.mxu0 0.0
    %564 = vmatprep.subr.mxu0 0.0
    %565 = vmatpush1.msra.mxu0 0.0
    %566 = vmatprep.subr.mxu0 0.0
    %567 = vmatpush1.msra.mxu0 0.0
    %568 = vmatprep.subr.mxu0 0.0
    %569 = vmatpush1.msra.mxu0 0.0
    %570 = vmatprep.subr.mxu0 0.0
    %571 = vmatpush1.msra.mxu0 0.0
    %572 = vmatprep.subr.mxu0 0.0
    %573 = vmatpush1.msra.mxu0 0.0
    %574 = vmatprep.subr.mxu0 0.0
    %575 = vmatpush1.msra.mxu0 0.0
    %576 = vmatprep.subr.mxu0 0.0
    %577 = vmatpush1.msra.mxu0 0.0
    %578 = vmatprep.subr.mxu0 0.0
    %579 = vmatpush1.msra.mxu0 0.0
    %580 = vmatprep.subr.mxu0 0.0
    %581 = vmatpush1.msra.mxu0 0.0
    %582 = vmatprep.subr.mxu0 0.0
    %583 = vmatpush1.msra.mxu0 0.0
    %584 = vmatprep.subr.mxu0 0.0
    %585 = vmatpush1.msra.mxu0 0.0
    %586 = vmatprep.subr.mxu0 %v120
    %587 = vmatpush1.msra.mxu0 %v119
    %588 = vmatprep.subr.mxu0 %v95
    %589 = vmatpush1.msra.mxu0 %v94
    %590 = vmatprep.subr.mxu0 %v70
    %591 = vmatpush1.msra.mxu0 %v69
    %592 = vmatprep.subr.mxu0 %v45
    %593 = vmatpush1.msra.mxu0 %v44
    %594 = vmatprep.subr.mxu0 0.0
    %595 = vmatpush2.msra.mxu0 0.0
    %596 = vmatprep.subr.mxu0 0.0
    %597 = vmatpush2.msra.mxu0 0.0
    %598 = vmatprep.subr.mxu0 0.0
    %599 = vmatpush2.msra.mxu0 0.0
    %600 = vmatprep.subr.mxu0 0.0
    %601 = vmatpush2.msra.mxu0 0.0
    %602 = vmatprep.subr.mxu0 0.0
    %603 = vmatpush2.msra.mxu0 0.0
    %604 = vmatprep.subr.mxu0 0.0
    %605 = vmatpush2.msra.mxu0 0.0
    %606 = vmatprep.subr.mxu0 0.0
    %607 = vmatpush2.msra.mxu0 0.0
    %608 = vmatprep.subr.mxu0 0.0
    %609 = vmatpush2.msra.mxu0 0.0
    %610 = vmatprep.subr.mxu0 0.0
    %611 = vmatpush2.msra.mxu0 0.0
    %612 = vmatprep.subr.mxu0 0.0
    %613 = vmatpush2.msra.mxu0 0.0
    %614 = vmatprep.subr.mxu0 0.0
    %615 = vmatpush2.msra.mxu0 0.0
    %616 = vmatprep.subr.mxu0 0.0
    %617 = vmatpush2.msra.mxu0 0.0
    %618 = vmatprep.subr.mxu0 0.0
    %619 = vmatpush2.msra.mxu0 0.0
    %620 = vmatprep.subr.mxu0 0.0
    %621 = vmatpush2.msra.mxu0 0.0
    %622 = vmatprep.subr.mxu0 0.0
    %623 = vmatpush2.msra.mxu0 0.0
    %624 = vmatprep.subr.mxu0 0.0
    %625 = vmatpush2.msra.mxu0 0.0
    %626 = vmatprep.mubr.f32.mxu0 0.0
    %627 = vmatmul.mubr.f32.gmra.mxu0 %v134
    %v628 = vpop.f32.mrf.mxu0
    %v629 = vadd.f32 0.0, %v628
    %v630 = vpop.f32.mrf.mxu0
    %v631 = vadd.f32 0.0, %v630
    %632 = vdwg.mxu0
    %633 = vmatprep.subr.mxu0 0.0
    %634 = vmatpush1.msra.mxu0 0.0
    %635 = vmatprep.subr.mxu0 0.0
    %636 = vmatpush1.msra.mxu0 0.0
    %637 = vmatprep.subr.mxu0 0.0
    %638 = vmatpush1.msra.mxu0 0.0
    %639 = vmatprep.subr.mxu0 0.0
    %640 = vmatpush1.msra.mxu0 0.0
    %641 = vmatprep.subr.mxu0 0.0
    %642 = vmatpush1.msra.mxu0 0.0
    %643 = vmatprep.subr.mxu0 0.0
    %644 = vmatpush1.msra.mxu0 0.0
    %645 = vmatprep.subr.mxu0 0.0
    %646 = vmatpush1.msra.mxu0 0.0
    %647 = vmatprep.subr.mxu0 0.0
    %648 = vmatpush1.msra.mxu0 0.0
    %649 = vmatprep.subr.mxu0 0.0
    %650 = vmatpush1.msra.mxu0 0.0
    %651 = vmatprep.subr.mxu0 0.0
    %652 = vmatpush1.msra.mxu0 0.0
    %653 = vmatprep.subr.mxu0 0.0
    %654 = vmatpush1.msra.mxu0 0.0
    %655 = vmatprep.subr.mxu0 0.0
    %656 = vmatpush1.msra.mxu0 0.0
    %657 = vmatprep.subr.mxu0 %v122
    %658 = vmatpush1.msra.mxu0 %v121
    %659 = vmatprep.subr.mxu0 %v97
    %660 = vmatpush1.msra.mxu0 %v96
    %661 = vmatprep.subr.mxu0 %v72
    %662 = vmatpush1.msra.mxu0 %v71
    %663 = vmatprep.subr.mxu0 %v47
    %664 = vmatpush1.msra.mxu0 %v46
    %665 = vmatprep.subr.mxu0 0.0
    %666 = vmatpush2.msra.mxu0 0.0
    %667 = vmatprep.subr.mxu0 0.0
    %668 = vmatpush2.msra.mxu0 0.0
    %669 = vmatprep.subr.mxu0 0.0
    %670 = vmatpush2.msra.mxu0 0.0
    %671 = vmatprep.subr.mxu0 0.0
    %672 = vmatpush2.msra.mxu0 0.0
    %673 = vmatprep.subr.mxu0 0.0
    %674 = vmatpush2.msra.mxu0 0.0
    %675 = vmatprep.subr.mxu0 0.0
    %676 = vmatpush2.msra.mxu0 0.0
    %677 = vmatprep.subr.mxu0 0.0
    %678 = vmatpush2.msra.mxu0 0.0
    %679 = vmatprep.subr.mxu0 0.0
    %680 = vmatpush2.msra.mxu0 0.0
    %681 = vmatprep.subr.mxu0 0.0
    %682 = vmatpush2.msra.mxu0 0.0
    %683 = vmatprep.subr.mxu0 0.0
    %684 = vmatpush2.msra.mxu0 0.0
    %685 = vmatprep.subr.mxu0 0.0
    %686 = vmatpush2.msra.mxu0 0.0
    %687 = vmatprep.subr.mxu0 0.0
    %688 = vmatpush2.msra.mxu0 0.0
    %689 = vmatprep.subr.mxu0 0.0
    %690 = vmatpush2.msra.mxu0 0.0
    %691 = vmatprep.subr.mxu0 0.0
    %692 = vmatpush2.msra.mxu0 0.0
    %693 = vmatprep.subr.mxu0 0.0
    %694 = vmatpush2.msra.mxu0 0.0
    %695 = vmatprep.subr.mxu0 0.0
    %696 = vmatpush2.msra.mxu0 0.0
    %697 = vmatprep.mubr.f32.mxu0 0.0
    %698 = vmatmul.mubr.f32.gmra.mxu0 %v134
    %v699 = vpop.f32.mrf.mxu0
    %v700 = vadd.f32 0.0, %v699
    %v701 = vpop.f32.mrf.mxu0
    %v702 = vadd.f32 0.0, %v701
    %703 = vdwg.mxu0
    %704 = vmatprep.subr.mxu0 0.0
    %705 = vmatpush1.msra.mxu0 0.0
    %706 = vmatprep.subr.mxu0 0.0
    %707 = vmatpush1.msra.mxu0 0.0
    %708 = vmatprep.subr.mxu0 0.0
    %709 = vmatpush1.msra.mxu0 0.0
    %710 = vmatprep.subr.mxu0 0.0
    %711 = vmatpush1.msra.mxu0 0.0
    %712 = vmatprep.subr.mxu0 0.0
    %713 = vmatpush1.msra.mxu0 0.0
    %714 = vmatprep.subr.mxu0 0.0
    %715 = vmatpush1.msra.mxu0 0.0
    %716 = vmatprep.subr.mxu0 0.0
    %717 = vmatpush1.msra.mxu0 0.0
    %718 = vmatprep.subr.mxu0 0.0
    %719 = vmatpush1.msra.mxu0 0.0
    %720 = vmatprep.subr.mxu0 0.0
    %721 = vmatpush1.msra.mxu0 0.0
    %722 = vmatprep.subr.mxu0 0.0
    %723 = vmatpush1.msra.mxu0 0.0
    %724 = vmatprep.subr.mxu0 0.0
    %725 = vmatpush1.msra.mxu0 0.0
    %726 = vmatprep.subr.mxu0 0.0
    %727 = vmatpush1.msra.mxu0 0.0
    %728 = vmatprep.subr.mxu0 %v124
    %729 = vmatpush1.msra.mxu0 %v123
    %730 = vmatprep.subr.mxu0 %v99
    %731 = vmatpush1.msra.mxu0 %v98
    %732 = vmatprep.subr.mxu0 %v74
    %733 = vmatpush1.msra.mxu0 %v73
    %734 = vmatprep.subr.mxu0 %v49
    %735 = vmatpush1.msra.mxu0 %v48
    %736 = vmatprep.subr.mxu0 0.0
    %737 = vmatpush2.msra.mxu0 0.0
    %738 = vmatprep.subr.mxu0 0.0
    %739 = vmatpush2.msra.mxu0 0.0
    %740 = vmatprep.subr.mxu0 0.0
    %741 = vmatpush2.msra.mxu0 0.0
    %742 = vmatprep.subr.mxu0 0.0
    %743 = vmatpush2.msra.mxu0 0.0
    %744 = vmatprep.subr.mxu0 0.0
    %745 = vmatpush2.msra.mxu0 0.0
    %746 = vmatprep.subr.mxu0 0.0
    %747 = vmatpush2.msra.mxu0 0.0
    %748 = vmatprep.subr.mxu0 0.0
    %749 = vmatpush2.msra.mxu0 0.0
    %750 = vmatprep.subr.mxu0 0.0
    %751 = vmatpush2.msra.mxu0 0.0
    %752 = vmatprep.subr.mxu0 0.0
    %753 = vmatpush2.msra.mxu0 0.0
    %754 = vmatprep.subr.mxu0 0.0
    %755 = vmatpush2.msra.mxu0 0.0
    %756 = vmatprep.subr.mxu0 0.0
    %757 = vmatpush2.msra.mxu0 0.0
    %758 = vmatprep.subr.mxu0 0.0
    %759 = vmatpush2.msra.mxu0 0.0
    %760 = vmatprep.subr.mxu0 0.0
    %761 = vmatpush2.msra.mxu0 0.0
    %762 = vmatprep.subr.mxu0 0.0
    %763 = vmatpush2.msra.mxu0 0.0
    %764 = vmatprep.subr.mxu0 0.0
    %765 = vmatpush2.msra.mxu0 0.0
    %766 = vmatprep.subr.mxu0 0.0
    %767 = vmatpush2.msra.mxu0 0.0
    %768 = vmatprep.mubr.f32.mxu0 0.0
    %769 = vmatmul.mubr.f32.gmra.mxu0 %v134
    %v770 = vpop.f32.mrf.mxu0
    %v771 = vadd.f32 0.0, %v770
    %v772 = vpop.f32.mrf.mxu0
    %v773 = vadd.f32 0.0, %v772
    %774 = vdwg.mxu0
    %775 = vmatprep.subr.mxu0 0.0
    %776 = vmatpush1.msra.mxu0 0.0
    %777 = vmatprep.subr.mxu0 0.0
    %778 = vmatpush1.msra.mxu0 0.0
    %779 = vmatprep.subr.mxu0 0.0
    %780 = vmatpush1.msra.mxu0 0.0
    %781 = vmatprep.subr.mxu0 0.0
    %782 = vmatpush1.msra.mxu0 0.0
    %783 = vmatprep.subr.mxu0 0.0
    %784 = vmatpush1.msra.mxu0 0.0
    %785 = vmatprep.subr.mxu0 0.0
    %786 = vmatpush1.msra.mxu0 0.0
    %787 = vmatprep.subr.mxu0 0.0
    %788 = vmatpush1.msra.mxu0 0.0
    %789 = vmatprep.subr.mxu0 0.0
    %790 = vmatpush1.msra.mxu0 0.0
    %791 = vmatprep.subr.mxu0 0.0
    %792 = vmatpush1.msra.mxu0 0.0
    %793 = vmatprep.subr.mxu0 0.0
    %794 = vmatpush1.msra.mxu0 0.0
    %795 = vmatprep.subr.mxu0 0.0
    %796 = vmatpush1.msra.mxu0 0.0
    %797 = vmatprep.subr.mxu0 0.0
    %798 = vmatpush1.msra.mxu0 0.0
    %799 = vmatprep.subr.mxu0 %v126
    %800 = vmatpush1.msra.mxu0 %v125
    %801 = vmatprep.subr.mxu0 %v101
    %802 = vmatpush1.msra.mxu0 %v100
    %803 = vmatprep.subr.mxu0 %v76
    %804 = vmatpush1.msra.mxu0 %v75
    %805 = vmatprep.subr.mxu0 %v51
    %806 = vmatpush1.msra.mxu0 %v50
    %807 = vmatprep.subr.mxu0 0.0
    %808 = vmatpush2.msra.mxu0 0.0
    %809 = vmatprep.subr.mxu0 0.0
    %810 = vmatpush2.msra.mxu0 0.0
    %811 = vmatprep.subr.mxu0 0.0
    %812 = vmatpush2.msra.mxu0 0.0
    %813 = vmatprep.subr.mxu0 0.0
    %814 = vmatpush2.msra.mxu0 0.0
    %815 = vmatprep.subr.mxu0 0.0
    %816 = vmatpush2.msra.mxu0 0.0
    %817 = vmatprep.subr.mxu0 0.0
    %818 = vmatpush2.msra.mxu0 0.0
    %819 = vmatprep.subr.mxu0 0.0
    %820 = vmatpush2.msra.mxu0 0.0
    %821 = vmatprep.subr.mxu0 0.0
    %822 = vmatpush2.msra.mxu0 0.0
    %823 = vmatprep.subr.mxu0 0.0
    %824 = vmatpush2.msra.mxu0 0.0
    %825 = vmatprep.subr.mxu0 0.0
    %826 = vmatpush2.msra.mxu0 0.0
    %827 = vmatprep.subr.mxu0 0.0
    %828 = vmatpush2.msra.mxu0 0.0
    %829 = vmatprep.subr.mxu0 0.0
    %830 = vmatpush2.msra.mxu0 0.0
    %831 = vmatprep.subr.mxu0 0.0
    %832 = vmatpush2.msra.mxu0 0.0
    %833 = vmatprep.subr.mxu0 0.0
    %834 = vmatpush2.msra.mxu0 0.0
    %835 = vmatprep.subr.mxu0 0.0
    %836 = vmatpush2.msra.mxu0 0.0
    %837 = vmatprep.subr.mxu0 0.0
    %838 = vmatpush2.msra.mxu0 0.0
    %839 = vmatprep.mubr.f32.mxu0 0.0
    %840 = vmatmul.mubr.f32.gmra.mxu0 %v134
    %v841 = vpop.f32.mrf.mxu0
    %v842 = vadd.f32 0.0, %v841
    %v843 = vpop.f32.mrf.mxu0
    %v844 = vadd.f32 0.0, %v843
    %845 = vdwg.mxu0
    %846 = vmatprep.subr.mxu0 0.0
    %847 = vmatpush1.msra.mxu0 0.0
    %848 = vmatprep.subr.mxu0 0.0
    %849 = vmatpush1.msra.mxu0 0.0
    %850 = vmatprep.subr.mxu0 0.0
    %851 = vmatpush1.msra.mxu0 0.0
    %852 = vmatprep.subr.mxu0 0.0
    %853 = vmatpush1.msra.mxu0 0.0
    %854 = vmatprep.subr.mxu0 0.0
    %855 = vmatpush1.msra.mxu0 0.0
    %856 = vmatprep.subr.mxu0 0.0
    %857 = vmatpush1.msra.mxu0 0.0
    %858 = vmatprep.subr.mxu0 0.0
    %859 = vmatpush1.msra.mxu0 0.0
    %860 = vmatprep.subr.mxu0 0.0
    %861 = vmatpush1.msra.mxu0 0.0
    %862 = vmatprep.subr.mxu0 0.0
    %863 = vmatpush1.msra.mxu0 0.0
    %864 = vmatprep.subr.mxu0 0.0
    %865 = vmatpush1.msra.mxu0 0.0
    %866 = vmatprep.subr.mxu0 0.0
    %867 = vmatpush1.msra.mxu0 0.0
    %868 = vmatprep.subr.mxu0 0.0
    %869 = vmatpush1.msra.mxu0 0.0
    %870 = vmatprep.subr.mxu0 %v128
    %871 = vmatpush1.msra.mxu0 %v127
    %872 = vmatprep.subr.mxu0 %v103
    %873 = vmatpush1.msra.mxu0 %v102
    %874 = vmatprep.subr.mxu0 %v78
    %875 = vmatpush1.msra.mxu0 %v77
    %876 = vmatprep.subr.mxu0 %v53
    %877 = vmatpush1.msra.mxu0 %v52
    %878 = vmatprep.subr.mxu0 0.0
    %879 = vmatpush2.msra.mxu0 0.0
    %880 = vmatprep.subr.mxu0 0.0
    %881 = vmatpush2.msra.mxu0 0.0
    %882 = vmatprep.subr.mxu0 0.0
    %883 = vmatpush2.msra.mxu0 0.0
    %884 = vmatprep.subr.mxu0 0.0
    %885 = vmatpush2.msra.mxu0 0.0
    %886 = vmatprep.subr.mxu0 0.0
    %887 = vmatpush2.msra.mxu0 0.0
    %888 = vmatprep.subr.mxu0 0.0
    %889 = vmatpush2.msra.mxu0 0.0
    %890 = vmatprep.subr.mxu0 0.0
    %891 = vmatpush2.msra.mxu0 0.0
    %892 = vmatprep.subr.mxu0 0.0
    %893 = vmatpush2.msra.mxu0 0.0
    %894 = vmatprep.subr.mxu0 0.0
    %895 = vmatpush2.msra.mxu0 0.0
    %896 = vmatprep.subr.mxu0 0.0
    %897 = vmatpush2.msra.mxu0 0.0
    %898 = vmatprep.subr.mxu0 0.0
    %899 = vmatpush2.msra.mxu0 0.0
    %900 = vmatprep.subr.mxu0 0.0
    %901 = vmatpush2.msra.mxu0 0.0
    %902 = vmatprep.subr.mxu0 0.0
    %903 = vmatpush2.msra.mxu0 0.0
    %904 = vmatprep.subr.mxu0 0.0
    %905 = vmatpush2.msra.mxu0 0.0
    %906 = vmatprep.subr.mxu0 0.0
    %907 = vmatpush2.msra.mxu0 0.0
    %908 = vmatprep.subr.mxu0 0.0
    %909 = vmatpush2.msra.mxu0 0.0
    %910 = vmatprep.mubr.f32.mxu0 0.0
    %911 = vmatmul.mubr.f32.gmra.mxu0 %v134
    %v912 = vpop.f32.mrf.mxu0
    %v913 = vadd.f32 0.0, %v912
    %v914 = vpop.f32.mrf.mxu0
    %v915 = vadd.f32 0.0, %v914
    %916 = vdwg.mxu0
    %917 = vmatprep.subr.mxu0 0.0
    %918 = vmatpush1.msra.mxu0 0.0
    %919 = vmatprep.subr.mxu0 0.0
    %920 = vmatpush1.msra.mxu0 0.0
    %921 = vmatprep.subr.mxu0 0.0
    %922 = vmatpush1.msra.mxu0 0.0
    %923 = vmatprep.subr.mxu0 0.0
    %924 = vmatpush1.msra.mxu0 0.0
    %925 = vmatprep.subr.mxu0 0.0
    %926 = vmatpush1.msra.mxu0 0.0
    %927 = vmatprep.subr.mxu0 0.0
    %928 = vmatpush1.msra.mxu0 0.0
    %929 = vmatprep.subr.mxu0 0.0
    %930 = vmatpush1.msra.mxu0 0.0
    %931 = vmatprep.subr.mxu0 0.0
    %932 = vmatpush1.msra.mxu0 0.0
    %933 = vmatprep.subr.mxu0 0.0
    %934 = vmatpush1.msra.mxu0 0.0
    %935 = vmatprep.subr.mxu0 0.0
    %936 = vmatpush1.msra.mxu0 0.0
    %937 = vmatprep.subr.mxu0 0.0
    %938 = vmatpush1.msra.mxu0 0.0
    %939 = vmatprep.subr.mxu0 0.0
    %940 = vmatpush1.msra.mxu0 0.0
    %941 = vmatprep.subr.mxu0 %v130
    %942 = vmatpush1.msra.mxu0 %v129
    %943 = vmatprep.subr.mxu0 %v105
    %944 = vmatpush1.msra.mxu0 %v104
    %945 = vmatprep.subr.mxu0 %v80
    %946 = vmatpush1.msra.mxu0 %v79
    %947 = vmatprep.subr.mxu0 %v55
    %948 = vmatpush1.msra.mxu0 %v54
    %949 = vmatprep.subr.mxu0 0.0
    %950 = vmatpush2.msra.mxu0 0.0
    %951 = vmatprep.subr.mxu0 0.0
    %952 = vmatpush2.msra.mxu0 0.0
    %953 = vmatprep.subr.mxu0 0.0
    %954 = vmatpush2.msra.mxu0 0.0
    %955 = vmatprep.subr.mxu0 0.0
    %956 = vmatpush2.msra.mxu0 0.0
    %957 = vmatprep.subr.mxu0 0.0
    %958 = vmatpush2.msra.mxu0 0.0
    %959 = vmatprep.subr.mxu0 0.0
    %960 = vmatpush2.msra.mxu0 0.0
    %961 = vmatprep.subr.mxu0 0.0
    %962 = vmatpush2.msra.mxu0 0.0
    %963 = vmatprep.subr.mxu0 0.0
    %964 = vmatpush2.msra.mxu0 0.0
    %965 = vmatprep.subr.mxu0 0.0
    %966 = vmatpush2.msra.mxu0 0.0
    %967 = vmatprep.subr.mxu0 0.0
    %968 = vmatpush2.msra.mxu0 0.0
    %969 = vmatprep.subr.mxu0 0.0
    %970 = vmatpush2.msra.mxu0 0.0
    %971 = vmatprep.subr.mxu0 0.0
    %972 = vmatpush2.msra.mxu0 0.0
    %973 = vmatprep.subr.mxu0 0.0
    %974 = vmatpush2.msra.mxu0 0.0
    %975 = vmatprep.subr.mxu0 0.0
    %976 = vmatpush2.msra.mxu0 0.0
    %977 = vmatprep.subr.mxu0 0.0
    %978 = vmatpush2.msra.mxu0 0.0
    %979 = vmatprep.subr.mxu0 0.0
    %980 = vmatpush2.msra.mxu0 0.0
    %981 = vmatprep.mubr.f32.mxu0 0.0
    %982 = vmatmul.mubr.f32.gmra.mxu0 %v134
    %v983 = vpop.f32.mrf.mxu0
    %v984 = vadd.f32 0.0, %v983
    %v985 = vpop.f32.mrf.mxu0
    %v986 = vadd.f32 0.0, %v985
    %987 = vdwg.mxu0
    %988 = vmatprep.subr.mxu0 0.0
    %989 = vmatpush1.msra.mxu0 0.0
    %990 = vmatprep.subr.mxu0 0.0
    %991 = vmatpush1.msra.mxu0 0.0
    %992 = vmatprep.subr.mxu0 0.0
    %993 = vmatpush1.msra.mxu0 0.0
    %994 = vmatprep.subr.mxu0 0.0
    %995 = vmatpush1.msra.mxu0 0.0
    %996 = vmatprep.subr.mxu0 0.0
    %997 = vmatpush1.msra.mxu0 0.0
    %998 = vmatprep.subr.mxu0 0.0
    %999 = vmatpush1.msra.mxu0 0.0
    %1000 = vmatprep.subr.mxu0 0.0
    %1001 = vmatpush1.msra.mxu0 0.0
    %1002 = vmatprep.subr.mxu0 0.0
    %1003 = vmatpush1.msra.mxu0 0.0
    %1004 = vmatprep.subr.mxu0 0.0
    %1005 = vmatpush1.msra.mxu0 0.0
    %1006 = vmatprep.subr.mxu0 0.0
    %1007 = vmatpush1.msra.mxu0 0.0
    %1008 = vmatprep.subr.mxu0 0.0
    %1009 = vmatpush1.msra.mxu0 0.0
    %1010 = vmatprep.subr.mxu0 0.0
    %1011 = vmatpush1.msra.mxu0 0.0
    %1012 = vmatprep.subr.mxu0 0.0
    %1013 = vmatpush1.msra.mxu0 %v131
    %1014 = vmatprep.subr.mxu0 0.0
    %1015 = vmatpush1.msra.mxu0 %v106
    %1016 = vmatprep.subr.mxu0 0.0
    %1017 = vmatpush1.msra.mxu0 %v81
    %1018 = vmatprep.subr.mxu0 0.0
    %1019 = vmatpush1.msra.mxu0 %v56
    %1020 = vmatprep.subr.mxu0 0.0
    %1021 = vmatpush2.msra.mxu0 0.0
    %1022 = vmatprep.subr.mxu0 0.0
    %1023 = vmatpush2.msra.mxu0 0.0
    %1024 = vmatprep.subr.mxu0 0.0
    %1025 = vmatpush2.msra.mxu0 0.0
    %1026 = vmatprep.subr.mxu0 0.0
    %1027 = vmatpush2.msra.mxu0 0.0
    %1028 = vmatprep.subr.mxu0 0.0
    %1029 = vmatpush2.msra.mxu0 0.0
    %1030 = vmatprep.subr.mxu0 0.0
    %1031 = vmatpush2.msra.mxu0 0.0
    %1032 = vmatprep.subr.mxu0 0.0
    %1033 = vmatpush2.msra.mxu0 0.0
    %1034 = vmatprep.subr.mxu0 0.0
    %1035 = vmatpush2.msra.mxu0 0.0
    %1036 = vmatprep.subr.mxu0 0.0
    %1037 = vmatpush2.msra.mxu0 0.0
    %1038 = vmatprep.subr.mxu0 0.0
    %1039 = vmatpush2.msra.mxu0 0.0
    %1040 = vmatprep.subr.mxu0 0.0
    %1041 = vmatpush2.msra.mxu0 0.0
    %1042 = vmatprep.subr.mxu0 0.0
    %1043 = vmatpush2.msra.mxu0 0.0
    %1044 = vmatprep.subr.mxu0 0.0
    %1045 = vmatpush2.msra.mxu0 0.0
    %1046 = vmatprep.subr.mxu0 0.0
    %1047 = vmatpush2.msra.mxu0 0.0
    %1048 = vmatprep.subr.mxu0 0.0
    %1049 = vmatpush2.msra.mxu0 0.0
    %1050 = vmatprep.subr.mxu0 0.0
    %1051 = vmatpush2.msra.mxu0 0.0
    %1052 = vmatprep.mubr.f32.mxu0 0.0
    %1053 = vmatmul.mubr.f32.gmra.mxu0 %v134
    %v1054 = vpop.f32.mrf.mxu0
    %v1055 = vadd.f32 0.0, %v1054
    %v1056 = vpop.f32.mrf.mxu0
    %1057 = vdwg.mxu0
    %v1058 = vld [vmem:[%s2] sm:$0xff]
    %v1059 = vld [vmem:[%s2 + $0x8] sm:$0xff]
    %v1060 = vld [vmem:[%s2 + $0x10] sm:$0xff]
    %v1061 = vld [vmem:[%s2 + $0x18] sm:$0x1]
    %v1066 = vlaneseq
    %v1067 = vshrl.u32 %v1066, 7
    %v1068 = vsub.s32 0, %v1067
    %v1069 = vrot.slane %v1058, %v1068
    %v1070 = vlaneseq
    %v1071 = vshrl.u32 %v1070, 7
    %v1072 = vsub.s32 1, %v1071
    %v1073 = vrot.slane %v1058, %v1072
    %v1074 = vlaneseq
    %v1075 = vshrl.u32 %v1074, 7
    %v1076 = vsub.s32 2, %v1075
    %v1077 = vrot.slane %v1058, %v1076
    %v1078 = vlaneseq
    %v1079 = vshrl.u32 %v1078, 7
    %v1080 = vsub.s32 3, %v1079
    %v1081 = vrot.slane %v1058, %v1080
    %v1082 = vlaneseq
    %v1083 = vshrl.u32 %v1082, 7
    %v1084 = vsub.s32 4, %v1083
    %v1085 = vrot.slane %v1058, %v1084
    %v1086 = vlaneseq
    %v1087 = vshrl.u32 %v1086, 7
    %v1088 = vsub.s32 5, %v1087
    %v1089 = vrot.slane %v1058, %v1088
    %v1090 = vlaneseq
    %v1091 = vshrl.u32 %v1090, 7
    %v1092 = vsub.s32 6, %v1091
    %v1093 = vrot.slane %v1058, %v1092
    %v1094 = vlaneseq
    %v1095 = vshrl.u32 %v1094, 7
    %v1096 = vsub.s32 7, %v1095
    %v1097 = vrot.slane %v1058, %v1096
    %v1098 = vlaneseq
    %v1099 = vshrl.u32 %v1098, 7
    %v1100 = vsub.s32 0, %v1099
    %v1101 = vrot.slane %v1059, %v1100
    %v1102 = vlaneseq
    %v1103 = vshrl.u32 %v1102, 7
    %v1104 = vsub.s32 1, %v1103
    %v1105 = vrot.slane %v1059, %v1104
    %v1106 = vlaneseq
    %v1107 = vshrl.u32 %v1106, 7
    %v1108 = vsub.s32 2, %v1107
    %v1109 = vrot.slane %v1059, %v1108
    %v1110 = vlaneseq
    %v1111 = vshrl.u32 %v1110, 7
    %v1112 = vsub.s32 3, %v1111
    %v1113 = vrot.slane %v1059, %v1112
    %v1114 = vlaneseq
    %v1115 = vshrl.u32 %v1114, 7
    %v1116 = vsub.s32 4, %v1115
    %v1117 = vrot.slane %v1059, %v1116
    %v1118 = vlaneseq
    %v1119 = vshrl.u32 %v1118, 7
    %v1120 = vsub.s32 5, %v1119
    %v1121 = vrot.slane %v1059, %v1120
    %v1122 = vlaneseq
    %v1123 = vshrl.u32 %v1122, 7
    %v1124 = vsub.s32 6, %v1123
    %v1125 = vrot.slane %v1059, %v1124
    %v1126 = vlaneseq
    %v1127 = vshrl.u32 %v1126, 7
    %v1128 = vsub.s32 7, %v1127
    %v1129 = vrot.slane %v1059, %v1128
    %v1130 = vlaneseq
    %v1131 = vshrl.u32 %v1130, 7
    %v1132 = vsub.s32 0, %v1131
    %v1133 = vrot.slane %v1060, %v1132
    %v1134 = vlaneseq
    %v1135 = vshrl.u32 %v1134, 7
    %v1136 = vsub.s32 1, %v1135
    %v1137 = vrot.slane %v1060, %v1136
    %v1138 = vlaneseq
    %v1139 = vshrl.u32 %v1138, 7
    %v1140 = vsub.s32 2, %v1139
    %v1141 = vrot.slane %v1060, %v1140
    %v1142 = vlaneseq
    %v1143 = vshrl.u32 %v1142, 7
    %v1144 = vsub.s32 3, %v1143
    %v1145 = vrot.slane %v1060, %v1144
    %v1146 = vlaneseq
    %v1147 = vshrl.u32 %v1146, 7
    %v1148 = vsub.s32 4, %v1147
    %v1149 = vrot.slane %v1060, %v1148
    %v1150 = vlaneseq
    %v1151 = vshrl.u32 %v1150, 7
    %v1152 = vsub.s32 5, %v1151
    %v1153 = vrot.slane %v1060, %v1152
    %v1154 = vlaneseq
    %v1155 = vshrl.u32 %v1154, 7
    %v1156 = vsub.s32 6, %v1155
    %v1157 = vrot.slane %v1060, %v1156
    %v1158 = vlaneseq
    %v1159 = vshrl.u32 %v1158, 7
    %v1160 = vsub.s32 7, %v1159
    %v1161 = vrot.slane %v1060, %v1160
    %v1162 = vlaneseq
    %v1163 = vshrl.u32 %v1162, 7
    %v1164 = vsub.s32 0, %v1163
    %v1165 = vrot.slane %v1061, %v1164
    %v1191 = vmul.f32 %v203, %v1069
    %v1192 = vmul.f32 %v205, %v1073
    %v1193 = vmul.f32 %v274, %v1077
    %v1194 = vmul.f32 %v276, %v1081
    %v1195 = vmul.f32 %v345, %v1085
    %v1196 = vmul.f32 %v347, %v1089
    %v1197 = vmul.f32 %v416, %v1093
    %v1198 = vmul.f32 %v418, %v1097
    %v1199 = vmul.f32 %v487, %v1101
    %v1200 = vmul.f32 %v489, %v1105
    %v1201 = vmul.f32 %v558, %v1109
    %v1202 = vmul.f32 %v560, %v1113
    %v1203 = vmul.f32 %v629, %v1117
    %v1204 = vmul.f32 %v631, %v1121
    %v1205 = vmul.f32 %v700, %v1125
    %v1206 = vmul.f32 %v702, %v1129
    %v1207 = vmul.f32 %v771, %v1133
    %v1208 = vmul.f32 %v773, %v1137
    %v1209 = vmul.f32 %v842, %v1141
    %v1210 = vmul.f32 %v844, %v1145
    %v1211 = vmul.f32 %v913, %v1149
    %v1212 = vmul.f32 %v915, %v1153
    %v1213 = vmul.f32 %v984, %v1157
    %v1214 = vmul.f32 %v986, %v1161
    %v1215 = vmul.f32 %v1055, %v1165
    %v1216 = vld [vmem:[%s3] sm:$0xff]
    %v1217 = vld [vmem:[%s3 + $0x8] sm:$0xff]
    %v1218 = vld [vmem:[%s3 + $0x10] sm:$0xff]
    %v1219 = vld [vmem:[%s3 + $0x18] sm:$0x1]
    %v1224 = vlaneseq
    %v1225 = vshrl.u32 %v1224, 7
    %v1226 = vsub.s32 0, %v1225
    %v1227 = vrot.slane %v1216, %v1226
    %v1228 = vlaneseq
    %v1229 = vshrl.u32 %v1228, 7
    %v1230 = vsub.s32 1, %v1229
    %v1231 = vrot.slane %v1216, %v1230
    %v1232 = vlaneseq
    %v1233 = vshrl.u32 %v1232, 7
    %v1234 = vsub.s32 2, %v1233
    %v1235 = vrot.slane %v1216, %v1234
    %v1236 = vlaneseq
    %v1237 = vshrl.u32 %v1236, 7
    %v1238 = vsub.s32 3, %v1237
    %v1239 = vrot.slane %v1216, %v1238
    %v1240 = vlaneseq
    %v1241 = vshrl.u32 %v1240, 7
    %v1242 = vsub.s32 4, %v1241
    %v1243 = vrot.slane %v1216, %v1242
    %v1244 = vlaneseq
    %v1245 = vshrl.u32 %v1244, 7
    %v1246 = vsub.s32 5, %v1245
    %v1247 = vrot.slane %v1216, %v1246
    %v1248 = vlaneseq
    %v1249 = vshrl.u32 %v1248, 7
    %v1250 = vsub.s32 6, %v1249
    %v1251 = vrot.slane %v1216, %v1250
    %v1252 = vlaneseq
    %v1253 = vshrl.u32 %v1252, 7
    %v1254 = vsub.s32 7, %v1253
    %v1255 = vrot.slane %v1216, %v1254
    %v1256 = vlaneseq
    %v1257 = vshrl.u32 %v1256, 7
    %v1258 = vsub.s32 0, %v1257
    %v1259 = vrot.slane %v1217, %v1258
    %v1260 = vlaneseq
    %v1261 = vshrl.u32 %v1260, 7
    %v1262 = vsub.s32 1, %v1261
    %v1263 = vrot.slane %v1217, %v1262
    %v1264 = vlaneseq
    %v1265 = vshrl.u32 %v1264, 7
    %v1266 = vsub.s32 2, %v1265
    %v1267 = vrot.slane %v1217, %v1266
    %v1268 = vlaneseq
    %v1269 = vshrl.u32 %v1268, 7
    %v1270 = vsub.s32 3, %v1269
    %v1271 = vrot.slane %v1217, %v1270
    %v1272 = vlaneseq
    %v1273 = vshrl.u32 %v1272, 7
    %v1274 = vsub.s32 4, %v1273
    %v1275 = vrot.slane %v1217, %v1274
    %v1276 = vlaneseq
    %v1277 = vshrl.u32 %v1276, 7
    %v1278 = vsub.s32 5, %v1277
    %v1279 = vrot.slane %v1217, %v1278
    %v1280 = vlaneseq
    %v1281 = vshrl.u32 %v1280, 7
    %v1282 = vsub.s32 6, %v1281
    %v1283 = vrot.slane %v1217, %v1282
    %v1284 = vlaneseq
    %v1285 = vshrl.u32 %v1284, 7
    %v1286 = vsub.s32 7, %v1285
    %v1287 = vrot.slane %v1217, %v1286
    %v1288 = vlaneseq
    %v1289 = vshrl.u32 %v1288, 7
    %v1290 = vsub.s32 0, %v1289
    %v1291 = vrot.slane %v1218, %v1290
    %v1292 = vlaneseq
    %v1293 = vshrl.u32 %v1292, 7
    %v1294 = vsub.s32 1, %v1293
    %v1295 = vrot.slane %v1218, %v1294
    %v1296 = vlaneseq
    %v1297 = vshrl.u32 %v1296, 7
    %v1298 = vsub.s32 2, %v1297
    %v1299 = vrot.slane %v1218, %v1298
    %v1300 = vlaneseq
    %v1301 = vshrl.u32 %v1300, 7
    %v1302 = vsub.s32 3, %v1301
    %v1303 = vrot.slane %v1218, %v1302
    %v1304 = vlaneseq
    %v1305 = vshrl.u32 %v1304, 7
    %v1306 = vsub.s32 4, %v1305
    %v1307 = vrot.slane %v1218, %v1306
    %v1308 = vlaneseq
    %v1309 = vshrl.u32 %v1308, 7
    %v1310 = vsub.s32 5, %v1309
    %v1311 = vrot.slane %v1218, %v1310
    %v1312 = vlaneseq
    %v1313 = vshrl.u32 %v1312, 7
    %v1314 = vsub.s32 6, %v1313
    %v1315 = vrot.slane %v1218, %v1314
    %v1316 = vlaneseq
    %v1317 = vshrl.u32 %v1316, 7
    %v1318 = vsub.s32 7, %v1317
    %v1319 = vrot.slane %v1218, %v1318
    %v1320 = vlaneseq
    %v1321 = vshrl.u32 %v1320, 7
    %v1322 = vsub.s32 0, %v1321
    %v1323 = vrot.slane %v1219, %v1322
    %v1349 = vadd.f32 %v1191, %v1227
    %v1350 = vadd.f32 %v1192, %v1231
    %v1351 = vadd.f32 %v1193, %v1235
    %v1352 = vadd.f32 %v1194, %v1239
    %v1353 = vadd.f32 %v1195, %v1243
    %v1354 = vadd.f32 %v1196, %v1247
    %v1355 = vadd.f32 %v1197, %v1251
    %v1356 = vadd.f32 %v1198, %v1255
    %v1357 = vadd.f32 %v1199, %v1259
    %v1358 = vadd.f32 %v1200, %v1263
    %v1359 = vadd.f32 %v1201, %v1267
    %v1360 = vadd.f32 %v1202, %v1271
    %v1361 = vadd.f32 %v1203, %v1275
    %v1362 = vadd.f32 %v1204, %v1279
    %v1363 = vadd.f32 %v1205, %v1283
    %v1364 = vadd.f32 %v1206, %v1287
    %v1365 = vadd.f32 %v1207, %v1291
    %v1366 = vadd.f32 %v1208, %v1295
    %v1367 = vadd.f32 %v1209, %v1299
    %v1368 = vadd.f32 %v1210, %v1303
    %v1369 = vadd.f32 %v1211, %v1307
    %v1370 = vadd.f32 %v1212, %v1311
    %v1371 = vadd.f32 %v1213, %v1315
    %v1372 = vadd.f32 %v1214, %v1319
    %v1373 = vadd.f32 %v1215, %v1323
    %v1374 = vmax.f32 %v1349, 0.0
    %v1375 = vmax.f32 %v1350, 0.0
    %v1376 = vmax.f32 %v1351, 0.0
    %v1377 = vmax.f32 %v1352, 0.0
    %v1378 = vmax.f32 %v1353, 0.0
    %v1379 = vmax.f32 %v1354, 0.0
    %v1380 = vmax.f32 %v1355, 0.0
    %v1381 = vmax.f32 %v1356, 0.0
    %v1382 = vmax.f32 %v1357, 0.0
    %v1383 = vmax.f32 %v1358, 0.0
    %v1384 = vmax.f32 %v1359, 0.0
    %v1385 = vmax.f32 %v1360, 0.0
    %v1386 = vmax.f32 %v1361, 0.0
    %v1387 = vmax.f32 %v1362, 0.0
    %v1388 = vmax.f32 %v1363, 0.0
    %v1389 = vmax.f32 %v1364, 0.0
    %v1390 = vmax.f32 %v1365, 0.0
    %v1391 = vmax.f32 %v1366, 0.0
    %v1392 = vmax.f32 %v1367, 0.0
    %v1393 = vmax.f32 %v1368, 0.0
    %v1394 = vmax.f32 %v1369, 0.0
    %v1395 = vmax.f32 %v1370, 0.0
    %v1396 = vmax.f32 %v1371, 0.0
    %v1397 = vmax.f32 %v1372, 0.0
    %v1398 = vmax.f32 %v1373, 0.0
    %1399 = vst [vmem:[%s4] sm:$0xff] %v1374
    %1400 = vst [vmem:[%s4 + $0x8] sm:$0xff] %v1375
    %1401 = vst [vmem:[%s4 + $0x10] sm:$0xff] %v1376
    %1402 = vst [vmem:[%s4 + $0x18] sm:$0xff] %v1377
    %1403 = vst [vmem:[%s4 + $0x20] sm:$0xff] %v1378
    %1404 = vst [vmem:[%s4 + $0x28] sm:$0xff] %v1379
    %1405 = vst [vmem:[%s4 + $0x30] sm:$0xff] %v1380
    %1406 = vst [vmem:[%s4 + $0x38] sm:$0xff] %v1381
    %1407 = vst [vmem:[%s4 + $0x40] sm:$0xff] %v1382
    %1408 = vst [vmem:[%s4 + $0x48] sm:$0xff] %v1383
    %1409 = vst [vmem:[%s4 + $0x50] sm:$0xff] %v1384
    %1410 = vst [vmem:[%s4 + $0x58] sm:$0xff] %v1385
    %1411 = vst [vmem:[%s4 + $0x60] sm:$0xff] %v1386
    %1412 = vst [vmem:[%s4 + $0x68] sm:$0xff] %v1387
    %1413 = vst [vmem:[%s4 + $0x70] sm:$0xff] %v1388
    %1414 = vst [vmem:[%s4 + $0x78] sm:$0xff] %v1389
    %1415 = vst [vmem:[%s4 + $0x80] sm:$0xff] %v1390
    %1416 = vst [vmem:[%s4 + $0x88] sm:$0xff] %v1391
    %1417 = vst [vmem:[%s4 + $0x90] sm:$0xff] %v1392
    %1418 = vst [vmem:[%s4 + $0x98] sm:$0xff] %v1393
    %1419 = vst [vmem:[%s4 + $0xa0] sm:$0xff] %v1394
    %1420 = vst [vmem:[%s4 + $0xa8] sm:$0xff] %v1395
    %1421 = vst [vmem:[%s4 + $0xb0] sm:$0xff] %v1396
    %1422 = vst [vmem:[%s4 + $0xb8] sm:$0xff] %v1397
    %vm1423 = vcmask 523264
    %1424 = vst.msk [vmem:[%s4 + $0xc0] sm:$0xff] %vm1423, %v1398
    // Predicated region
    $region22: #{mask_decoder_forward.6} parent=1 // pred_check
      _
    $region23: #{mask_decoder_forward.6} parent=1 // pred_check_branch
      %1426 = sbr.rel (0) target = $region25
    $region24: #{mask_decoder_forward.6} parent=1 // pred_region
      _
    $region25: #{mask_decoder_forward.6} parent=1 // pred_fallthru
      _
    // Predicated region
    $region26: #{mask_decoder_forward.6} parent=1 // pred_check
      _
    $region27: #{mask_decoder_forward.6} parent=1 // pred_check_branch
      %1428 = sbr.rel (0) target = $region29
    $region28: #{mask_decoder_forward.6} parent=1 // pred_region
      _
    $region29: #{mask_decoder_forward.6} parent=1 // pred_fallthru
      _
    %1429 = vsyncpa [#allocation3], 1

// kernel: mask_decoder_forward.7
$region0: #{mask_decoder_forward.7}
  #allocation0 [shape = 'u32[]', space=smem, size = 0x4, offset = 0x4, fixed_abs, tag = 'smem constant byte address 0x4 - core index']
  #allocation1 [shape = 'u32[144,128]{1,0:T(1,128)}', space=vmem, size = 0x12000, scoped, tag = 'internal scratch']
  %s0 = inlined_call_operand.vmem [shape: bf16[392,576], index: 0, kind: input, shape index: {}]
  %s1 = inlined_call_operand.hbm [shape: bf16[576,128], index: 1, kind: input, shape index: {}]
  %s2 = inlined_call_operand.hbm [shape: f32[1,128], index: 2, kind: input, shape index: {}]
  %s3 = inlined_call_operand.hbm [shape: f32[1,128], index: 3, kind: input, shape index: {}]
  %s4 = inlined_call_operand.vmem [shape: f32[392,128], index: 4, kind: output, shape index: {}]
  %s5 = sld [smem:[#allocation0]]
  $region38: #{mask_decoder_forward.7} parent=0
    _
  %s7 = ssub.s32 1, %s5
  %s8 = scalar_select 0, %s7, %s5
  $region1: #{mask_decoder_forward.7} parent=0
    #allocation2 [shape = 'u8[147456]{0}', space=vmem, size = 0x24000, scoped, tag = 'input window, operand 1, single buffered']
    #allocation3 [shape = 's32[1]{0}', space=sflag, size = 0x4, scoped, tag = 'scoped memory for mask_decoder_forward.7']
    #allocation4 [shape = 'u8[512]{0}', space=vmem, size = 0x400, scoped, tag = 'input window, operand 2, single buffered']
    #allocation5 [shape = 's32[1]{0}', space=sflag, size = 0x4, scoped, tag = 'scoped memory for mask_decoder_forward.7']
    #allocation6 [shape = 'u8[512]{0}', space=vmem, size = 0x400, scoped, tag = 'input window, operand 3, single buffered']
    %9 = vsyncpa [#allocation3], 0
    %10 = vsyncpa [#allocation5], 0
    // Predicated region
    $region2: #{mask_decoder_forward.7} parent=1 // pred_check
      _
    $region3: #{mask_decoder_forward.7} parent=1 // pred_check_branch
      %12 = sbr.rel (0) target = $region5
    $region4: #{mask_decoder_forward.7} parent=1 // pred_region
      _
    $region5: #{mask_decoder_forward.7} parent=1 // pred_fallthru
      _
    // Predicated region
    $region6: #{mask_decoder_forward.7} parent=1 // pred_check
      _
    $region7: #{mask_decoder_forward.7} parent=1 // pred_check_branch
      %14 = sbr.rel (0) target = $region9
    $region8: #{mask_decoder_forward.7} parent=1 // pred_region
      %s16 = ssub.s32 4608, 4608
      %17 = vsyncadd [#allocation3], %s16
      %s18 = sshll.u32 [#allocation2], 4
      %s19 = int_to_ptr.vmem [resolvable:$true] %s18
      %24 = dma.hbm_to_vmem [thread:$0]  %s1, 4608, %s19, [#allocation3], 64, 64, 4
    $region9: #{mask_decoder_forward.7} parent=1 // pred_fallthru
      _
    // Predicated region
    $region10: #{mask_decoder_forward.7} parent=1 // pred_check
      _
    $region11: #{mask_decoder_forward.7} parent=1 // pred_check_branch
      %26 = sbr.rel (0) target = $region13
    $region12: #{mask_decoder_forward.7} parent=1 // pred_region
      %s28 = ssub.s32 16, 16
      %29 = vsyncadd [#allocation5], %s28
      %s31 = sshll.u32 [#allocation4], 4
      %s32 = int_to_ptr.vmem [resolvable:$true] %s31
      %34 = dma.hbm_to_vmem [thread:$0]  %s2, 16, %s32, [#allocation5]
    $region13: #{mask_decoder_forward.7} parent=1 // pred_fallthru
      _
    // Predicated region
    $region14: #{mask_decoder_forward.7} parent=1 // pred_check
      _
    $region15: #{mask_decoder_forward.7} parent=1 // pred_check_branch
      %36 = sbr.rel (0) target = $region17
    $region16: #{mask_decoder_forward.7} parent=1 // pred_region
      %s38 = ssub.s32 16, 16
      %39 = vsyncadd [#allocation5], %s38
      %s41 = sshll.u32 [#allocation6], 4
      %s42 = int_to_ptr.vmem [resolvable:$true] %s41
      %44 = dma.hbm_to_vmem [thread:$0]  %s3, 16, %s42, [#allocation5]
    $region17: #{mask_decoder_forward.7} parent=1 // pred_fallthru
      _
    // Predicated region
    $region18: #{mask_decoder_forward.7} parent=1 // pred_check
      _
    $region19: #{mask_decoder_forward.7} parent=1 // pred_check_branch
      %46 = sbr.rel (0) target = $region21
    $region20: #{mask_decoder_forward.7} parent=1 // pred_region
      %47 = dma.done [#allocation3], 4608
    $region21: #{mask_decoder_forward.7} parent=1 // pred_fallthru
      _
    // Predicated region
    $region22: #{mask_decoder_forward.7} parent=1 // pred_check
      _
    $region23: #{mask_decoder_forward.7} parent=1 // pred_check_branch
      %49 = sbr.rel (0) target = $region25
    $region24: #{mask_decoder_forward.7} parent=1 // pred_region
      %50 = dma.done [#allocation5], 16
    $region25: #{mask_decoder_forward.7} parent=1 // pred_fallthru
      _
    // Predicated region
    $region26: #{mask_decoder_forward.7} parent=1 // pred_check
      _
    $region27: #{mask_decoder_forward.7} parent=1 // pred_check_branch
      %52 = sbr.rel (0) target = $region29
    $region28: #{mask_decoder_forward.7} parent=1 // pred_region
      %53 = dma.done [#allocation5], 16
    $region29: #{mask_decoder_forward.7} parent=1 // pred_fallthru
      _
    %v55 = vld [vmem:[%s0] sm:$0xff]
    %v56 = vld [vmem:[%s0 + $0x8] sm:$0xff]
    %v57 = vld [vmem:[%s0 + $0x10] sm:$0xf]
    %v58 = vld [vmem:[%s0 + $0x14] sm:$0xff]
    %v59 = vld [vmem:[%s0 + $0x1c] sm:$0xff]
    %v60 = vld [vmem:[%s0 + $0x24] sm:$0xf]
    %v61 = vld [vmem:[%s0 + $0x28] sm:$0xff]
    %v62 = vld [vmem:[%s0 + $0x30] sm:$0xff]
    %v63 = vld [vmem:[%s0 + $0x38] sm:$0xf]
    %v64 = vld [vmem:[%s0 + $0x3c] sm:$0xff]
    %v65 = vld [vmem:[%s0 + $0x44] sm:$0xff]
    %v66 = vld [vmem:[%s0 + $0x4c] sm:$0xf]
    %v67 = vld [vmem:[%s0 + $0x50] sm:$0xff]
    %v68 = vld [vmem:[%s0 + $0x58] sm:$0xff]
    %v69 = vld [vmem:[%s0 + $0x60] sm:$0xf]
    %v70 = vld [vmem:[%s0 + $0x64] sm:$0xff]
    %v71 = vld [vmem:[%s0 + $0x6c] sm:$0xff]
    %v72 = vld [vmem:[%s0 + $0x74] sm:$0xf]
    %v73 = vld [vmem:[%s0 + $0x78] sm:$0xff]
    %v74 = vld [vmem:[%s0 + $0x80] sm:$0xff]
    %v75 = vld [vmem:[%s0 + $0x88] sm:$0xf]
    %v76 = vld [vmem:[%s0 + $0x8c] sm:$0xff]
    %v77 = vld [vmem:[%s0 + $0x94] sm:$0xff]
    %v78 = vld [vmem:[%s0 + $0x9c] sm:$0xf]
    %v79 = vld [vmem:[%s0 + $0xa0] sm:$0xff]
    %v80 = vld [vmem:[%s0 + $0xa8] sm:$0xff]
    %v81 = vld [vmem:[%s0 + $0xb0] sm:$0xf]
    %v82 = vld [vmem:[%s0 + $0xb4] sm:$0xff]
    %v83 = vld [vmem:[%s0 + $0xbc] sm:$0xff]
    %v84 = vld [vmem:[%s0 + $0xc4] sm:$0xf]
    %v85 = vld [vmem:[%s0 + $0xc8] sm:$0xff]
    %v86 = vld [vmem:[%s0 + $0xd0] sm:$0xff]
    %v87 = vld [vmem:[%s0 + $0xd8] sm:$0xf]
    %v88 = vld [vmem:[%s0 + $0xdc] sm:$0xff]
    %v89 = vld [vmem:[%s0 + $0xe4] sm:$0xff]
    %v90 = vld [vmem:[%s0 + $0xec] sm:$0xf]
    %v91 = vld [vmem:[%s0 + $0xf0] sm:$0xff]
    %v92 = vld [vmem:[%s0 + $0xf8] sm:$0xff]
    %v93 = vld [vmem:[%s0 + $0x100] sm:$0xf]
    %v94 = vld [vmem:[%s0 + $0x104] sm:$0xff]
    %v95 = vld [vmem:[%s0 + $0x10c] sm:$0xff]
    %v96 = vld [vmem:[%s0 + $0x114] sm:$0xf]
    %v97 = vld [vmem:[%s0 + $0x118] sm:$0xff]
    %v98 = vld [vmem:[%s0 + $0x120] sm:$0xff]
    %v99 = vld [vmem:[%s0 + $0x128] sm:$0xf]
    %v100 = vld [vmem:[%s0 + $0x12c] sm:$0xff]
    %v101 = vld [vmem:[%s0 + $0x134] sm:$0xff]
    %v102 = vld [vmem:[%s0 + $0x13c] sm:$0xf]
    %v103 = vld [vmem:[%s0 + $0x140] sm:$0xff]
    %v104 = vld [vmem:[%s0 + $0x148] sm:$0xff]
    %v105 = vld [vmem:[%s0 + $0x150] sm:$0xf]
    %v106 = vld [vmem:[%s0 + $0x154] sm:$0xff]
    %v107 = vld [vmem:[%s0 + $0x15c] sm:$0xff]
    %v108 = vld [vmem:[%s0 + $0x164] sm:$0xf]
    %v109 = vld [vmem:[%s0 + $0x168] sm:$0xff]
    %v110 = vld [vmem:[%s0 + $0x170] sm:$0xff]
    %v111 = vld [vmem:[%s0 + $0x178] sm:$0xf]
    %v112 = vld [vmem:[%s0 + $0x17c] sm:$0xff]
    %v113 = vld [vmem:[%s0 + $0x184] sm:$0xff]
    %v114 = vld [vmem:[%s0 + $0x18c] sm:$0xf]
    %v115 = vld [vmem:[%s0 + $0x190] sm:$0xff]
    %v116 = vld [vmem:[%s0 + $0x198] sm:$0xff]
    %v117 = vld [vmem:[%s0 + $0x1a0] sm:$0xf]
    %v118 = vld [vmem:[%s0 + $0x1a4] sm:$0xff]
    %v119 = vld [vmem:[%s0 + $0x1ac] sm:$0xff]
    %v120 = vld [vmem:[%s0 + $0x1b4] sm:$0xf]
    %v121 = vld [vmem:[%s0 + $0x1b8] sm:$0xff]
    %v122 = vld [vmem:[%s0 + $0x1c0] sm:$0xff]
    %v123 = vld [vmem:[%s0 + $0x1c8] sm:$0xf]
    %v124 = vld [vmem:[%s0 + $0x1cc] sm:$0xff]
    %v125 = vld [vmem:[%s0 + $0x1d4] sm:$0xff]
    %v126 = vld [vmem:[%s0 + $0x1dc] sm:$0xf]
    %v127 = vld [vmem:[%s0 + $0x1e0] sm:$0xff]
    %v128 = vld [vmem:[%s0 + $0x1e8] sm:$0xff]
    %v129 = vld [vmem:[%s0 + $0x1f0] sm:$0xf]
    %v130 = vld [vmem:[%s0 + $0x1f4] sm:$0xff]
    %v131 = vld [vmem:[%s0 + $0x1fc] sm:$0xff]
    %v132 = vld [vmem:[%s0 + $0x204] sm:$0xf]
    %v133 = vld [vmem:[%s0 + $0x208] sm:$0xff]
    %v134 = vld [vmem:[%s0 + $0x210] sm:$0xff]
    %v135 = vld [vmem:[%s0 + $0x218] sm:$0xf]
    %v136 = vld [vmem:[%s0 + $0x21c] sm:$0xff]
    %v137 = vld [vmem:[%s0 + $0x224] sm:$0xff]
    %v138 = vld [vmem:[%s0 + $0x22c] sm:$0xf]
    %v139 = vld [vmem:[%s0 + $0x230] sm:$0xff]
    %v140 = vld [vmem:[%s0 + $0x238] sm:$0xff]
    %v141 = vld [vmem:[%s0 + $0x240] sm:$0xf]
    %v142 = vld [vmem:[%s0 + $0x244] sm:$0xff]
    %v143 = vld [vmem:[%s0 + $0x24c] sm:$0xff]
    %v144 = vld [vmem:[%s0 + $0x254] sm:$0xf]
    %v145 = vld [vmem:[%s0 + $0x258] sm:$0xff]
    %v146 = vld [vmem:[%s0 + $0x260] sm:$0xff]
    %v147 = vld [vmem:[%s0 + $0x268] sm:$0xf]
    %v148 = vld [vmem:[%s0 + $0x26c] sm:$0xff]
    %v149 = vld [vmem:[%s0 + $0x274] sm:$0xff]
    %v150 = vld [vmem:[%s0 + $0x27c] sm:$0xf]
    %v151 = vld [vmem:[%s0 + $0x280] sm:$0xff]
    %v152 = vld [vmem:[%s0 + $0x288] sm:$0xff]
    %v153 = vld [vmem:[%s0 + $0x290] sm:$0xf]
    %v154 = vld [vmem:[%s0 + $0x294] sm:$0xff]
    %v155 = vld [vmem:[%s0 + $0x29c] sm:$0xff]
    %v156 = vld [vmem:[%s0 + $0x2a4] sm:$0xf]
    %v157 = vld [vmem:[%s0 + $0x2a8] sm:$0xff]
    %v158 = vld [vmem:[%s0 + $0x2b0] sm:$0xff]
    %v159 = vld [vmem:[%s0 + $0x2b8] sm:$0xf]
    %v160 = vld [vmem:[%s0 + $0x2bc] sm:$0xff]
    %v161 = vld [vmem:[%s0 + $0x2c4] sm:$0xff]
    %v162 = vld [vmem:[%s0 + $0x2cc] sm:$0xf]
    %v163 = vld [vmem:[%s0 + $0x2d0] sm:$0xff]
    %v164 = vld [vmem:[%s0 + $0x2d8] sm:$0xff]
    %v165 = vld [vmem:[%s0 + $0x2e0] sm:$0xf]
    %v166 = vld [vmem:[%s0 + $0x2e4] sm:$0xff]
    %v167 = vld [vmem:[%s0 + $0x2ec] sm:$0xff]
    %v168 = vld [vmem:[%s0 + $0x2f4] sm:$0xf]
    %v169 = vld [vmem:[%s0 + $0x2f8] sm:$0xff]
    %v170 = vld [vmem:[%s0 + $0x300] sm:$0xff]
    %v171 = vld [vmem:[%s0 + $0x308] sm:$0xf]
    %v172 = vld [vmem:[%s0 + $0x30c] sm:$0xff]
    %v173 = vld [vmem:[%s0 + $0x314] sm:$0xff]
    %v174 = vld [vmem:[%s0 + $0x31c] sm:$0xf]
    %v175 = vld [vmem:[%s0 + $0x320] sm:$0xff]
    %v176 = vld [vmem:[%s0 + $0x328] sm:$0xff]
    %v177 = vld [vmem:[%s0 + $0x330] sm:$0xf]
    %v178 = vld [vmem:[%s0 + $0x334] sm:$0xff]
    %v179 = vld [vmem:[%s0 + $0x33c] sm:$0xff]
    %v180 = vld [vmem:[%s0 + $0x344] sm:$0xf]
    %v181 = vld [vmem:[%s0 + $0x348] sm:$0xff]
    %v182 = vld [vmem:[%s0 + $0x350] sm:$0xff]
    %v183 = vld [vmem:[%s0 + $0x358] sm:$0xf]
    %v184 = vld [vmem:[%s0 + $0x35c] sm:$0xff]
    %v185 = vld [vmem:[%s0 + $0x364] sm:$0xff]
    %v186 = vld [vmem:[%s0 + $0x36c] sm:$0xf]
    %v187 = vld [vmem:[%s0 + $0x370] sm:$0xff]
    %v188 = vld [vmem:[%s0 + $0x378] sm:$0xff]
    %v189 = vld [vmem:[%s0 + $0x380] sm:$0xf]
    %v190 = vld [vmem:[%s0 + $0x384] sm:$0xff]
    %v191 = vld [vmem:[%s0 + $0x38c] sm:$0xff]
    %v192 = vld [vmem:[%s0 + $0x394] sm:$0xf]
    %v193 = vld [vmem:[%s0 + $0x398] sm:$0xff]
    %v194 = vld [vmem:[%s0 + $0x3a0] sm:$0xff]
    %v195 = vld [vmem:[%s0 + $0x3a8] sm:$0xf]
    %v196 = vld [vmem:[%s0 + $0x3ac] sm:$0xff]
    %v197 = vld [vmem:[%s0 + $0x3b4] sm:$0xff]
    %v198 = vld [vmem:[%s0 + $0x3bc] sm:$0xf]
    %v199 = vld [vmem:[%s0 + $0x3c0] sm:$0xff]
    %v200 = vld [vmem:[%s0 + $0x3c8] sm:$0xff]
    %v201 = vld [vmem:[%s0 + $0x3d0] sm:$0xf]
    %v202 = vld [vmem:[#allocation2] sm:$0xf]
    %v203 = vld [vmem:[#allocation2 + $0x4] sm:$0xf]
    %v204 = vld [vmem:[#allocation2 + $0x8] sm:$0xf]
    %v205 = vld [vmem:[#allocation2 + $0xc] sm:$0xf]
    %v206 = vld [vmem:[#allocation2 + $0x10] sm:$0xf]
    %v207 = vld [vmem:[#allocation2 + $0x14] sm:$0xf]
    %v208 = vld [vmem:[#allocation2 + $0x18] sm:$0xf]
    %v209 = vld [vmem:[#allocation2 + $0x1c] sm:$0xf]
    %v210 = vld [vmem:[#allocation2 + $0x20] sm:$0xf]
    %v211 = vld [vmem:[#allocation2 + $0x24] sm:$0xf]
    %v212 = vld [vmem:[#allocation2 + $0x28] sm:$0xf]
    %v213 = vld [vmem:[#allocation2 + $0x2c] sm:$0xf]
    %v214 = vld [vmem:[#allocation2 + $0x30] sm:$0xf]
    %v215 = vld [vmem:[#allocation2 + $0x34] sm:$0xf]
    %v216 = vld [vmem:[#allocation2 + $0x38] sm:$0xf]
    %v217 = vld [vmem:[#allocation2 + $0x3c] sm:$0xf]
    %v218 = vld [vmem:[#allocation2 + $0x40] sm:$0xf]
    %v219 = vld [vmem:[#allocation2 + $0x44] sm:$0xf]
    %v220 = vld [vmem:[#allocation2 + $0x48] sm:$0xf]
    %v221 = vld [vmem:[#allocation2 + $0x4c] sm:$0xf]
    %v222 = vld [vmem:[#allocation2 + $0x50] sm:$0xf]
    %v223 = vld [vmem:[#allocation2 + $0x54] sm:$0xf]
    %v224 = vld [vmem:[#allocation2 + $0x58] sm:$0xf]
    %v225 = vld [vmem:[#allocation2 + $0x5c] sm:$0xf]
    %v226 = vld [vmem:[#allocation2 + $0x60] sm:$0xf]
    %v227 = vld [vmem:[#allocation2 + $0x64] sm:$0xf]
    %v228 = vld [vmem:[#allocation2 + $0x68] sm:$0xf]
    %v229 = vld [vmem:[#allocation2 + $0x6c] sm:$0xf]
    %v230 = vld [vmem:[#allocation2 + $0x70] sm:$0xf]
    %v231 = vld [vmem:[#allocation2 + $0x74] sm:$0xf]
    %v232 = vld [vmem:[#allocation2 + $0x78] sm:$0xf]
    %v233 = vld [vmem:[#allocation2 + $0x7c] sm:$0xf]
    %v234 = vld [vmem:[#allocation2 + $0x80] sm:$0xf]
    %v235 = vld [vmem:[#allocation2 + $0x84] sm:$0xf]
    %v236 = vld [vmem:[#allocation2 + $0x88] sm:$0xf]
    %v237 = vld [vmem:[#allocation2 + $0x8c] sm:$0xf]
    %v238 = vld [vmem:[#allocation2 + $0x90] sm:$0xf]
    %v239 = vld [vmem:[#allocation2 + $0x94] sm:$0xf]
    %v240 = vld [vmem:[#allocation2 + $0x98] sm:$0xf]
    %v241 = vld [vmem:[#allocation2 + $0x9c] sm:$0xf]
    %v242 = vld [vmem:[#allocation2 + $0xa0] sm:$0xf]
    %v243 = vld [vmem:[#allocation2 + $0xa4] sm:$0xf]
    %v244 = vld [vmem:[#allocation2 + $0xa8] sm:$0xf]
    %v245 = vld [vmem:[#allocation2 + $0xac] sm:$0xf]
    %v246 = vld [vmem:[#allocation2 + $0xb0] sm:$0xf]
    %v247 = vld [vmem:[#allocation2 + $0xb4] sm:$0xf]
    %v248 = vld [vmem:[#allocation2 + $0xb8] sm:$0xf]
    %v249 = vld [vmem:[#allocation2 + $0xbc] sm:$0xf]
    %v250 = vld [vmem:[#allocation2 + $0xc0] sm:$0xf]
    %v251 = vld [vmem:[#allocation2 + $0xc4] sm:$0xf]
    %v252 = vld [vmem:[#allocation2 + $0xc8] sm:$0xf]
    %v253 = vld [vmem:[#allocation2 + $0xcc] sm:$0xf]
    %v254 = vld [vmem:[#allocation2 + $0xd0] sm:$0xf]
    %v255 = vld [vmem:[#allocation2 + $0xd4] sm:$0xf]
    %v256 = vld [vmem:[#allocation2 + $0xd8] sm:$0xf]
    %v257 = vld [vmem:[#allocation2 + $0xdc] sm:$0xf]
    %v258 = vld [vmem:[#allocation2 + $0xe0] sm:$0xf]
    %v259 = vld [vmem:[#allocation2 + $0xe4] sm:$0xf]
    %v260 = vld [vmem:[#allocation2 + $0xe8] sm:$0xf]
    %v261 = vld [vmem:[#allocation2 + $0xec] sm:$0xf]
    %v262 = vld [vmem:[#allocation2 + $0xf0] sm:$0xf]
    %v263 = vld [vmem:[#allocation2 + $0xf4] sm:$0xf]
    %v264 = vld [vmem:[#allocation2 + $0xf8] sm:$0xf]
    %v265 = vld [vmem:[#allocation2 + $0xfc] sm:$0xf]
    %v266 = vld [vmem:[#allocation2 + $0x100] sm:$0xf]
    %v267 = vld [vmem:[#allocation2 + $0x104] sm:$0xf]
    %v268 = vld [vmem:[#allocation2 + $0x108] sm:$0xf]
    %v269 = vld [vmem:[#allocation2 + $0x10c] sm:$0xf]
    %v270 = vld [vmem:[#allocation2 + $0x110] sm:$0xf]
    %v271 = vld [vmem:[#allocation2 + $0x114] sm:$0xf]
    %v272 = vld [vmem:[#allocation2 + $0x118] sm:$0xf]
    %v273 = vld [vmem:[#allocation2 + $0x11c] sm:$0xf]
    %v421 = vunpack.c.l.b16 %v55
    %v422 = vunpack.c.h.b16 %v55
    %v423 = vunpack.c.l.b16 %v56
    %v424 = vunpack.c.h.b16 %v56
    %v425 = vunpack.c.l.b16 %v57
    %v426 = vunpack.c.l.b16 %v58
    %v427 = vunpack.c.h.b16 %v58
    %v428 = vunpack.c.l.b16 %v59
    %v429 = vunpack.c.h.b16 %v59
    %v430 = vunpack.c.l.b16 %v60
    %v431 = vunpack.c.l.b16 %v61
    %v432 = vunpack.c.h.b16 %v61
    %v433 = vunpack.c.l.b16 %v62
    %v434 = vunpack.c.h.b16 %v62
    %v435 = vunpack.c.l.b16 %v63
    %v436 = vunpack.c.l.b16 %v64
    %v437 = vunpack.c.h.b16 %v64
    %v438 = vunpack.c.l.b16 %v65
    %v439 = vunpack.c.h.b16 %v65
    %v440 = vunpack.c.l.b16 %v66
    %v441 = vunpack.c.l.b16 %v67
    %v442 = vunpack.c.h.b16 %v67
    %v443 = vunpack.c.l.b16 %v68
    %v444 = vunpack.c.h.b16 %v68
    %v445 = vunpack.c.l.b16 %v69
    %v446 = vunpack.c.l.b16 %v70
    %v447 = vunpack.c.h.b16 %v70
    %v448 = vunpack.c.l.b16 %v71
    %v449 = vunpack.c.h.b16 %v71
    %v450 = vunpack.c.l.b16 %v72
    %v451 = vunpack.c.l.b16 %v73
    %v452 = vunpack.c.h.b16 %v73
    %v453 = vunpack.c.l.b16 %v74
    %v454 = vunpack.c.h.b16 %v74
    %v455 = vunpack.c.l.b16 %v75
    %v456 = vunpack.c.l.b16 %v76
    %v457 = vunpack.c.h.b16 %v76
    %v458 = vunpack.c.l.b16 %v77
    %v459 = vunpack.c.h.b16 %v77
    %v460 = vunpack.c.l.b16 %v78
    %v461 = vunpack.c.l.b16 %v79
    %v462 = vunpack.c.h.b16 %v79
    %v463 = vunpack.c.l.b16 %v80
    %v464 = vunpack.c.h.b16 %v80
    %v465 = vunpack.c.l.b16 %v81
    %v466 = vunpack.c.l.b16 %v82
    %v467 = vunpack.c.h.b16 %v82
    %v468 = vunpack.c.l.b16 %v83
    %v469 = vunpack.c.h.b16 %v83
    %v470 = vunpack.c.l.b16 %v84
    %v471 = vunpack.c.l.b16 %v85
    %v472 = vunpack.c.h.b16 %v85
    %v473 = vunpack.c.l.b16 %v86
    %v474 = vunpack.c.h.b16 %v86
    %v475 = vunpack.c.l.b16 %v87
    %v476 = vunpack.c.l.b16 %v88
    %v477 = vunpack.c.h.b16 %v88
    %v478 = vunpack.c.l.b16 %v89
    %v479 = vunpack.c.h.b16 %v89
    %v480 = vunpack.c.l.b16 %v90
    %v481 = vunpack.c.l.b16 %v91
    %v482 = vunpack.c.h.b16 %v91
    %v483 = vunpack.c.l.b16 %v92
    %v484 = vunpack.c.h.b16 %v92
    %v485 = vunpack.c.l.b16 %v93
    %v486 = vunpack.c.l.b16 %v94
    %v487 = vunpack.c.h.b16 %v94
    %v488 = vunpack.c.l.b16 %v95
    %v489 = vunpack.c.h.b16 %v95
    %v490 = vunpack.c.l.b16 %v96
    %v491 = vunpack.c.l.b16 %v97
    %v492 = vunpack.c.h.b16 %v97
    %v493 = vunpack.c.l.b16 %v98
    %v494 = vunpack.c.h.b16 %v98
    %v495 = vunpack.c.l.b16 %v99
    %v496 = vunpack.c.l.b16 %v100
    %v497 = vunpack.c.h.b16 %v100
    %v498 = vunpack.c.l.b16 %v101
    %v499 = vunpack.c.h.b16 %v101
    %v500 = vunpack.c.l.b16 %v102
    %v501 = vunpack.c.l.b16 %v103
    %v502 = vunpack.c.h.b16 %v103
    %v503 = vunpack.c.l.b16 %v104
    %v504 = vunpack.c.h.b16 %v104
    %v505 = vunpack.c.l.b16 %v105
    %v506 = vunpack.c.l.b16 %v106
    %v507 = vunpack.c.h.b16 %v106
    %v508 = vunpack.c.l.b16 %v107
    %v509 = vunpack.c.h.b16 %v107
    %v510 = vunpack.c.l.b16 %v108
    %v511 = vunpack.c.l.b16 %v109
    %v512 = vunpack.c.h.b16 %v109
    %v513 = vunpack.c.l.b16 %v110
    %v514 = vunpack.c.h.b16 %v110
    %v515 = vunpack.c.l.b16 %v111
    %v516 = vunpack.c.l.b16 %v112
    %v517 = vunpack.c.h.b16 %v112
    %v518 = vunpack.c.l.b16 %v113
    %v519 = vunpack.c.h.b16 %v113
    %v520 = vunpack.c.l.b16 %v114
    %v521 = vunpack.c.l.b16 %v115
    %v522 = vunpack.c.h.b16 %v115
    %v523 = vunpack.c.l.b16 %v116
    %v524 = vunpack.c.h.b16 %v116
    %v525 = vunpack.c.l.b16 %v117
    %v526 = vunpack.c.l.b16 %v118
    %v527 = vunpack.c.h.b16 %v118
    %v528 = vunpack.c.l.b16 %v119
    %v529 = vunpack.c.h.b16 %v119
    %v530 = vunpack.c.l.b16 %v120
    %v531 = vunpack.c.l.b16 %v121
    %v532 = vunpack.c.h.b16 %v121
    %v533 = vunpack.c.l.b16 %v122
    %v534 = vunpack.c.h.b16 %v122
    %v535 = vunpack.c.l.b16 %v123
    %v536 = vunpack.c.l.b16 %v124
    %v537 = vunpack.c.h.b16 %v124
    %v538 = vunpack.c.l.b16 %v125
    %v539 = vunpack.c.h.b16 %v125
    %v540 = vunpack.c.l.b16 %v126
    %v541 = vunpack.c.l.b16 %v127
    %v542 = vunpack.c.h.b16 %v127
    %v543 = vunpack.c.l.b16 %v128
    %v544 = vunpack.c.h.b16 %v128
    %v545 = vunpack.c.l.b16 %v129
    %v546 = vunpack.c.l.b16 %v130
    %v547 = vunpack.c.h.b16 %v130
    %v548 = vunpack.c.l.b16 %v131
    %v549 = vunpack.c.h.b16 %v131
    %v550 = vunpack.c.l.b16 %v132
    %v551 = vunpack.c.l.b16 %v133
    %v552 = vunpack.c.h.b16 %v133
    %v553 = vunpack.c.l.b16 %v134
    %v554 = vunpack.c.h.b16 %v134
    %v555 = vunpack.c.l.b16 %v135
    %v556 = vunpack.c.l.b16 %v136
    %v557 = vunpack.c.h.b16 %v136
    %v558 = vunpack.c.l.b16 %v137
    %v559 = vunpack.c.h.b16 %v137
    %v560 = vunpack.c.l.b16 %v138
    %v561 = vunpack.c.l.b16 %v139
    %v562 = vunpack.c.h.b16 %v139
    %v563 = vunpack.c.l.b16 %v140
    %v564 = vunpack.c.h.b16 %v140
    %v565 = vunpack.c.l.b16 %v141
    %v566 = vunpack.c.l.b16 %v142
    %v567 = vunpack.c.h.b16 %v142
    %v568 = vunpack.c.l.b16 %v143
    %v569 = vunpack.c.h.b16 %v143
    %v570 = vunpack.c.l.b16 %v144
    %v571 = vunpack.c.l.b16 %v145
    %v572 = vunpack.c.h.b16 %v145
    %v573 = vunpack.c.l.b16 %v146
    %v574 = vunpack.c.h.b16 %v146
    %v575 = vunpack.c.l.b16 %v147
    %v576 = vunpack.c.l.b16 %v148
    %v577 = vunpack.c.h.b16 %v148
    %v578 = vunpack.c.l.b16 %v149
    %v579 = vunpack.c.h.b16 %v149
    %v580 = vunpack.c.l.b16 %v150
    %v581 = vunpack.c.l.b16 %v151
    %v582 = vunpack.c.h.b16 %v151
    %v583 = vunpack.c.l.b16 %v152
    %v584 = vunpack.c.h.b16 %v152
    %v585 = vunpack.c.l.b16 %v153
    %v586 = vunpack.c.l.b16 %v154
    %v587 = vunpack.c.h.b16 %v154
    %v588 = vunpack.c.l.b16 %v155
    %v589 = vunpack.c.h.b16 %v155
    %v590 = vunpack.c.l.b16 %v156
    %v591 = vunpack.c.l.b16 %v157
    %v592 = vunpack.c.h.b16 %v157
    %v593 = vunpack.c.l.b16 %v158
    %v594 = vunpack.c.h.b16 %v158
    %v595 = vunpack.c.l.b16 %v159
    %v596 = vunpack.c.l.b16 %v160
    %v597 = vunpack.c.h.b16 %v160
    %v598 = vunpack.c.l.b16 %v161
    %v599 = vunpack.c.h.b16 %v161
    %v600 = vunpack.c.l.b16 %v162
    %v601 = vunpack.c.l.b16 %v163
    %v602 = vunpack.c.h.b16 %v163
    %v603 = vunpack.c.l.b16 %v164
    %v604 = vunpack.c.h.b16 %v164
    %v605 = vunpack.c.l.b16 %v165
    %v606 = vunpack.c.l.b16 %v166
    %v607 = vunpack.c.h.b16 %v166
    %v608 = vunpack.c.l.b16 %v167
    %v609 = vunpack.c.h.b16 %v167
    %v610 = vunpack.c.l.b16 %v168
    %v611 = vunpack.c.l.b16 %v169
    %v612 = vunpack.c.h.b16 %v169
    %v613 = vunpack.c.l.b16 %v170
    %v614 = vunpack.c.h.b16 %v170
    %v615 = vunpack.c.l.b16 %v171
    %v616 = vunpack.c.l.b16 %v172
    %v617 = vunpack.c.h.b16 %v172
    %v618 = vunpack.c.l.b16 %v173
    %v619 = vunpack.c.h.b16 %v173
    %v620 = vunpack.c.l.b16 %v174
    %v621 = vunpack.c.l.b16 %v175
    %v622 = vunpack.c.h.b16 %v175
    %v623 = vunpack.c.l.b16 %v176
    %v624 = vunpack.c.h.b16 %v176
    %v625 = vunpack.c.l.b16 %v177
    %v626 = vunpack.c.l.b16 %v178
    %v627 = vunpack.c.h.b16 %v178
    %v628 = vunpack.c.l.b16 %v179
    %v629 = vunpack.c.h.b16 %v179
    %v630 = vunpack.c.l.b16 %v180
    %v631 = vunpack.c.l.b16 %v181
    %v632 = vunpack.c.h.b16 %v181
    %v633 = vunpack.c.l.b16 %v182
    %v634 = vunpack.c.h.b16 %v182
    %v635 = vunpack.c.l.b16 %v183
    %v636 = vunpack.c.l.b16 %v184
    %v637 = vunpack.c.h.b16 %v184
    %v638 = vunpack.c.l.b16 %v185
    %v639 = vunpack.c.h.b16 %v185
    %v640 = vunpack.c.l.b16 %v186
    %v641 = vunpack.c.l.b16 %v187
    %v642 = vunpack.c.h.b16 %v187
    %v643 = vunpack.c.l.b16 %v188
    %v644 = vunpack.c.h.b16 %v188
    %v645 = vunpack.c.l.b16 %v189
    %v646 = vunpack.c.l.b16 %v190
    %v647 = vunpack.c.h.b16 %v190
    %v648 = vunpack.c.l.b16 %v191
    %v649 = vunpack.c.h.b16 %v191
    %v650 = vunpack.c.l.b16 %v192
    %v651 = vunpack.c.l.b16 %v193
    %v652 = vunpack.c.h.b16 %v193
    %v653 = vunpack.c.l.b16 %v194
    %v654 = vunpack.c.h.b16 %v194
    %v655 = vunpack.c.l.b16 %v195
    %v656 = vunpack.c.l.b16 %v196
    %v657 = vunpack.c.h.b16 %v196
    %v658 = vunpack.c.l.b16 %v197
    %v659 = vunpack.c.h.b16 %v197
    %v660 = vunpack.c.l.b16 %v198
    %v661 = vunpack.c.l.b16 %v199
    %v662 = vunpack.c.h.b16 %v199
    %v663 = vunpack.c.l.b16 %v200
    %v664 = vunpack.c.h.b16 %v200
    %v665 = vunpack.c.l.b16 %v201
    %v666 = vpack.c.b16 %v426, %v421
    %v667 = vpack.c.b16 %v427, %v422
    %v668 = vpack.c.b16 %v428, %v423
    %v669 = vpack.c.b16 %v429, %v424
    %v670 = vpack.c.b16 %v430, %v425
    %v671 = vpack.c.b16 %v436, %v431
    %v672 = vpack.c.b16 %v437, %v432
    %v673 = vpack.c.b16 %v438, %v433
    %v674 = vpack.c.b16 %v439, %v434
    %v675 = vpack.c.b16 %v440, %v435
    %v676 = vpack.c.b16 %v446, %v441
    %v677 = vpack.c.b16 %v447, %v442
    %v678 = vpack.c.b16 %v448, %v443
    %v679 = vpack.c.b16 %v449, %v444
    %v680 = vpack.c.b16 %v450, %v445
    %v681 = vpack.c.b16 %v456, %v451
    %v682 = vpack.c.b16 %v457, %v452
    %v683 = vpack.c.b16 %v458, %v453
    %v684 = vpack.c.b16 %v459, %v454
    %v685 = vpack.c.b16 %v460, %v455
    %v686 = vpack.c.b16 %v466, %v461
    %v687 = vpack.c.b16 %v467, %v462
    %v688 = vpack.c.b16 %v468, %v463
    %v689 = vpack.c.b16 %v469, %v464
    %v690 = vpack.c.b16 %v470, %v465
    %v691 = vpack.c.b16 %v476, %v471
    %v692 = vpack.c.b16 %v477, %v472
    %v693 = vpack.c.b16 %v478, %v473
    %v694 = vpack.c.b16 %v479, %v474
    %v695 = vpack.c.b16 %v480, %v475
    %v696 = vpack.c.b16 %v486, %v481
    %v697 = vpack.c.b16 %v487, %v482
    %v698 = vpack.c.b16 %v488, %v483
    %v699 = vpack.c.b16 %v489, %v484
    %v700 = vpack.c.b16 %v490, %v485
    %v701 = vpack.c.b16 %v496, %v491
    %v702 = vpack.c.b16 %v497, %v492
    %v703 = vpack.c.b16 %v498, %v493
    %v704 = vpack.c.b16 %v499, %v494
    %v705 = vpack.c.b16 %v500, %v495
    %v706 = vpack.c.b16 %v506, %v501
    %v707 = vpack.c.b16 %v507, %v502
    %v708 = vpack.c.b16 %v508, %v503
    %v709 = vpack.c.b16 %v509, %v504
    %v710 = vpack.c.b16 %v510, %v505
    %v711 = vpack.c.b16 %v516, %v511
    %v712 = vpack.c.b16 %v517, %v512
    %v713 = vpack.c.b16 %v518, %v513
    %v714 = vpack.c.b16 %v519, %v514
    %v715 = vpack.c.b16 %v520, %v515
    %v716 = vpack.c.b16 %v526, %v521
    %v717 = vpack.c.b16 %v527, %v522
    %v718 = vpack.c.b16 %v528, %v523
    %v719 = vpack.c.b16 %v529, %v524
    %v720 = vpack.c.b16 %v530, %v525
    %v721 = vpack.c.b16 %v536, %v531
    %v722 = vpack.c.b16 %v537, %v532
    %v723 = vpack.c.b16 %v538, %v533
    %v724 = vpack.c.b16 %v539, %v534
    %v725 = vpack.c.b16 %v540, %v535
    %v726 = vpack.c.b16 %v546, %v541
    %v727 = vpack.c.b16 %v547, %v542
    %v728 = vpack.c.b16 %v548, %v543
    %v729 = vpack.c.b16 %v549, %v544
    %v730 = vpack.c.b16 %v550, %v545
    %v731 = vpack.c.b16 %v556, %v551
    %v732 = vpack.c.b16 %v557, %v552
    %v733 = vpack.c.b16 %v558, %v553
    %v734 = vpack.c.b16 %v559, %v554
    %v735 = vpack.c.b16 %v560, %v555
    %v736 = vpack.c.b16 %v566, %v561
    %v737 = vpack.c.b16 %v567, %v562
    %v738 = vpack.c.b16 %v568, %v563
    %v739 = vpack.c.b16 %v569, %v564
    %v740 = vpack.c.b16 %v570, %v565
    %v741 = vpack.c.b16 %v576, %v571
    %v742 = vpack.c.b16 %v577, %v572
    %v743 = vpack.c.b16 %v578, %v573
    %v744 = vpack.c.b16 %v579, %v574
    %v745 = vpack.c.b16 %v580, %v575
    %v746 = vpack.c.b16 %v586, %v581
    %v747 = vpack.c.b16 %v587, %v582
    %v748 = vpack.c.b16 %v588, %v583
    %v749 = vpack.c.b16 %v589, %v584
    %v750 = vpack.c.b16 %v590, %v585
    %v751 = vpack.c.b16 %v596, %v591
    %v752 = vpack.c.b16 %v597, %v592
    %v753 = vpack.c.b16 %v598, %v593
    %v754 = vpack.c.b16 %v599, %v594
    %v755 = vpack.c.b16 %v600, %v595
    %v756 = vpack.c.b16 %v606, %v601
    %v757 = vpack.c.b16 %v607, %v602
    %v758 = vpack.c.b16 %v608, %v603
    %v759 = vpack.c.b16 %v609, %v604
    %v760 = vpack.c.b16 %v610, %v605
    %v761 = vpack.c.b16 %v616, %v611
    %v762 = vpack.c.b16 %v617, %v612
    %v763 = vpack.c.b16 %v618, %v613
    %v764 = vpack.c.b16 %v619, %v614
    %v765 = vpack.c.b16 %v620, %v615
    %v766 = vpack.c.b16 %v626, %v621
    %v767 = vpack.c.b16 %v627, %v622
    %v768 = vpack.c.b16 %v628, %v623
    %v769 = vpack.c.b16 %v629, %v624
    %v770 = vpack.c.b16 %v630, %v625
    %v771 = vpack.c.b16 %v636, %v631
    %v772 = vpack.c.b16 %v637, %v632
    %v773 = vpack.c.b16 %v638, %v633
    %v774 = vpack.c.b16 %v639, %v634
    %v775 = vpack.c.b16 %v640, %v635
    %v776 = vpack.c.b16 %v646, %v641
    %v777 = vpack.c.b16 %v647, %v642
    %v778 = vpack.c.b16 %v648, %v643
    %v779 = vpack.c.b16 %v649, %v644
    %v780 = vpack.c.b16 %v650, %v645
    %v781 = vpack.c.b16 %v656, %v651
    %v782 = vpack.c.b16 %v657, %v652
    %v783 = vpack.c.b16 %v658, %v653
    %v784 = vpack.c.b16 %v659, %v654
    %v785 = vpack.c.b16 %v660, %v655
    %v786 = vpack.c.b16 %v661, %v661
    %v787 = vpack.c.b16 %v662, %v662
    %v788 = vpack.c.b16 %v663, %v663
    %v789 = vpack.c.b16 %v664, %v664
    %v790 = vpack.c.b16 %v665, %v665
    %v963 = vunpack.c.l.b16 %v202
    %v964 = vunpack.c.l.b16 %v203
    %v965 = vunpack.c.l.b16 %v204
    %v966 = vunpack.c.l.b16 %v205
    %v967 = vunpack.c.l.b16 %v206
    %v968 = vunpack.c.l.b16 %v207
    %v969 = vunpack.c.l.b16 %v208
    %v970 = vunpack.c.l.b16 %v209
    %v971 = vunpack.c.l.b16 %v210
    %v972 = vunpack.c.l.b16 %v211
    %v973 = vunpack.c.l.b16 %v212
    %v974 = vunpack.c.l.b16 %v213
    %v975 = vunpack.c.l.b16 %v214
    %v976 = vunpack.c.l.b16 %v215
    %v977 = vunpack.c.l.b16 %v216
    %v978 = vunpack.c.l.b16 %v217
    %v979 = vunpack.c.l.b16 %v218
    %v980 = vunpack.c.l.b16 %v219
    %v981 = vunpack.c.l.b16 %v220
    %v982 = vunpack.c.l.b16 %v221
    %v983 = vunpack.c.l.b16 %v222
    %v984 = vunpack.c.l.b16 %v223
    %v985 = vunpack.c.l.b16 %v224
    %v986 = vunpack.c.l.b16 %v225
    %v987 = vunpack.c.l.b16 %v226
    %v988 = vunpack.c.l.b16 %v227
    %v989 = vunpack.c.l.b16 %v228
    %v990 = vunpack.c.l.b16 %v229
    %v991 = vunpack.c.l.b16 %v230
    %v992 = vunpack.c.l.b16 %v231
    %v993 = vunpack.c.l.b16 %v232
    %v994 = vunpack.c.l.b16 %v233
    %v995 = vunpack.c.l.b16 %v234
    %v996 = vunpack.c.l.b16 %v235
    %v997 = vunpack.c.l.b16 %v236
    %v998 = vunpack.c.l.b16 %v237
    %v999 = vunpack.c.l.b16 %v238
    %v1000 = vunpack.c.l.b16 %v239
    %v1001 = vunpack.c.l.b16 %v240
    %v1002 = vunpack.c.l.b16 %v241
    %v1003 = vunpack.c.l.b16 %v242
    %v1004 = vunpack.c.l.b16 %v243
    %v1005 = vunpack.c.l.b16 %v244
    %v1006 = vunpack.c.l.b16 %v245
    %v1007 = vunpack.c.l.b16 %v246
    %v1008 = vunpack.c.l.b16 %v247
    %v1009 = vunpack.c.l.b16 %v248
    %v1010 = vunpack.c.l.b16 %v249
    %v1011 = vunpack.c.l.b16 %v250
    %v1012 = vunpack.c.l.b16 %v251
    %v1013 = vunpack.c.l.b16 %v252
    %v1014 = vunpack.c.l.b16 %v253
    %v1015 = vunpack.c.l.b16 %v254
    %v1016 = vunpack.c.l.b16 %v255
    %v1017 = vunpack.c.l.b16 %v256
    %v1018 = vunpack.c.l.b16 %v257
    %v1019 = vunpack.c.l.b16 %v258
    %v1020 = vunpack.c.l.b16 %v259
    %v1021 = vunpack.c.l.b16 %v260
    %v1022 = vunpack.c.l.b16 %v261
    %v1023 = vunpack.c.l.b16 %v262
    %v1024 = vunpack.c.l.b16 %v263
    %v1025 = vunpack.c.l.b16 %v264
    %v1026 = vunpack.c.l.b16 %v265
    %v1027 = vunpack.c.l.b16 %v266
    %v1028 = vunpack.c.l.b16 %v267
    %v1029 = vunpack.c.l.b16 %v268
    %v1030 = vunpack.c.l.b16 %v269
    %v1031 = vunpack.c.l.b16 %v270
    %v1032 = vunpack.c.l.b16 %v271
    %v1033 = vunpack.c.l.b16 %v272
    %v1034 = vunpack.c.l.b16 %v273
    %v1035 = vpack.c.b16 %v964, %v963
    %v1036 = vpack.c.b16 %v966, %v965
    %v1037 = vpack.c.b16 %v968, %v967
    %v1038 = vpack.c.b16 %v970, %v969
    %v1039 = vpack.c.b16 %v972, %v971
    %v1040 = vpack.c.b16 %v974, %v973
    %v1041 = vpack.c.b16 %v976, %v975
    %v1042 = vpack.c.b16 %v978, %v977
    %v1043 = vpack.c.b16 %v980, %v979
    %v1044 = vpack.c.b16 %v982, %v981
    %v1045 = vpack.c.b16 %v984, %v983
    %v1046 = vpack.c.b16 %v986, %v985
    %v1047 = vpack.c.b16 %v988, %v987
    %v1048 = vpack.c.b16 %v990, %v989
    %v1049 = vpack.c.b16 %v992, %v991
    %v1050 = vpack.c.b16 %v994, %v993
    %v1051 = vpack.c.b16 %v996, %v995
    %v1052 = vpack.c.b16 %v998, %v997
    %v1053 = vpack.c.b16 %v1000, %v999
    %v1054 = vpack.c.b16 %v1002, %v1001
    %v1055 = vpack.c.b16 %v1004, %v1003
    %v1056 = vpack.c.b16 %v1006, %v1005
    %v1057 = vpack.c.b16 %v1008, %v1007
    %v1058 = vpack.c.b16 %v1010, %v1009
    %v1059 = vpack.c.b16 %v1012, %v1011
    %v1060 = vpack.c.b16 %v1014, %v1013
    %v1061 = vpack.c.b16 %v1016, %v1015
    %v1062 = vpack.c.b16 %v1018, %v1017
    %v1063 = vpack.c.b16 %v1020, %v1019
    %v1064 = vpack.c.b16 %v1022, %v1021
    %v1065 = vpack.c.b16 %v1024, %v1023
    %v1066 = vpack.c.b16 %v1026, %v1025
    %v1067 = vpack.c.b16 %v1028, %v1027
    %v1068 = vpack.c.b16 %v1030, %v1029
    %v1069 = vpack.c.b16 %v1032, %v1031
    %v1070 = vpack.c.b16 %v1034, %v1033
    %vm1107 = vcmask 523264
    %v1109 = vsel %vm1107, %v670, 0
    %v1112 = vsel %vm1107, %v675, 0
    %v1115 = vsel %vm1107, %v680, 0
    %v1118 = vsel %vm1107, %v685, 0
    %v1121 = vsel %vm1107, %v690, 0
    %v1124 = vsel %vm1107, %v695, 0
    %v1127 = vsel %vm1107, %v700, 0
    %v1130 = vsel %vm1107, %v705, 0
    %v1133 = vsel %vm1107, %v710, 0
    %v1136 = vsel %vm1107, %v715, 0
    %v1139 = vsel %vm1107, %v720, 0
    %v1142 = vsel %vm1107, %v725, 0
    %v1145 = vsel %vm1107, %v730, 0
    %v1148 = vsel %vm1107, %v735, 0
    %v1151 = vsel %vm1107, %v740, 0
    %v1154 = vsel %vm1107, %v745, 0
    %v1157 = vsel %vm1107, %v750, 0
    %v1160 = vsel %vm1107, %v755, 0
    %v1163 = vsel %vm1107, %v760, 0
    %v1166 = vsel %vm1107, %v765, 0
    %v1169 = vsel %vm1107, %v770, 0
    %v1172 = vsel %vm1107, %v775, 0
    %v1175 = vsel %vm1107, %v780, 0
    %v1178 = vsel %vm1107, %v785, 0
    %v1181 = vsel %vm1107, %v790, 0
    %1183 = vmatprep.subr.bf16.mxu0 0
    %1184 = vmatpush1.bf16.msra.mxu0 %v1042
    %1185 = vmatprep.subr.bf16.mxu0 0
    %1186 = vmatpush1.bf16.msra.mxu0 %v1041
    %1187 = vmatprep.subr.bf16.mxu0 0
    %1188 = vmatpush1.bf16.msra.mxu0 %v1040
    %1189 = vmatprep.subr.bf16.mxu0 0
    %1190 = vmatpush1.bf16.msra.mxu0 %v1039
    %1191 = vmatprep.subr.bf16.mxu0 0
    %1192 = vmatpush1.bf16.msra.mxu0 %v1038
    %1193 = vmatprep.subr.bf16.mxu0 0
    %1194 = vmatpush1.bf16.msra.mxu0 %v1037
    %1195 = vmatprep.subr.bf16.mxu0 0
    %1196 = vmatpush1.bf16.msra.mxu0 %v1036
    %1197 = vmatprep.subr.bf16.mxu0 0
    %1198 = vmatpush1.bf16.msra.mxu0 %v1035
    %1199 = vmatprep.subr.bf16.mxu0 0
    %1200 = vmatpush2.bf16.msra.mxu0 %v1050
    %1201 = vmatprep.subr.bf16.mxu0 0
    %1202 = vmatpush2.bf16.msra.mxu0 %v1049
    %1203 = vmatprep.subr.bf16.mxu0 0
    %1204 = vmatpush2.bf16.msra.mxu0 %v1048
    %1205 = vmatprep.subr.bf16.mxu0 0
    %1206 = vmatpush2.bf16.msra.mxu0 %v1047
    %1207 = vmatprep.subr.bf16.mxu0 0
    %1208 = vmatpush2.bf16.msra.mxu0 %v1046
    %1209 = vmatprep.subr.bf16.mxu0 0
    %1210 = vmatpush2.bf16.msra.mxu0 %v1045
    %1211 = vmatprep.subr.bf16.mxu0 0
    %1212 = vmatpush2.bf16.msra.mxu0 %v1044
    %1213 = vmatprep.subr.bf16.mxu0 0
    %1214 = vmatpush2.bf16.msra.mxu0 %v1043
    %1215 = vmatprep.mubr.bf16.mxu0 %v667
    %1216 = vmatmul.mubr.bf16.gmra.mxu0 %v666
    %v1217 = vpop.f32.mrf.mxu0
    %v1218 = vadd.f32 0.0, %v1217
    %v1219 = vpop.f32.mrf.mxu0
    %v1220 = vpop.f32.mrf.mxu0
    %v1221 = vadd.f32 0.0, %v1220
    %v1222 = vpop.f32.mrf.mxu0
    %1223 = vmatprep.mubr.bf16.mxu0 %v672
    %1224 = vmatmul.mubr.bf16.gmra.mxu0 %v671
    %v1225 = vpop.f32.mrf.mxu0
    %v1226 = vadd.f32 0.0, %v1225
    %v1227 = vpop.f32.mrf.mxu0
    %v1228 = vpop.f32.mrf.mxu0
    %v1229 = vadd.f32 0.0, %v1228
    %v1230 = vpop.f32.mrf.mxu0
    %1231 = vmatprep.mubr.bf16.mxu0 %v677
    %1232 = vmatmul.mubr.bf16.gmra.mxu0 %v676
    %v1233 = vpop.f32.mrf.mxu0
    %v1234 = vadd.f32 0.0, %v1233
    %v1235 = vpop.f32.mrf.mxu0
    %v1236 = vpop.f32.mrf.mxu0
    %v1237 = vadd.f32 0.0, %v1236
    %v1238 = vpop.f32.mrf.mxu0
    %1239 = vmatprep.mubr.bf16.mxu0 %v682
    %1240 = vmatmul.mubr.bf16.gmra.mxu0 %v681
    %v1241 = vpop.f32.mrf.mxu0
    %v1242 = vadd.f32 0.0, %v1241
    %v1243 = vpop.f32.mrf.mxu0
    %v1244 = vpop.f32.mrf.mxu0
    %v1245 = vadd.f32 0.0, %v1244
    %v1246 = vpop.f32.mrf.mxu0
    %1247 = vmatprep.mubr.bf16.mxu0 %v687
    %1248 = vmatmul.mubr.bf16.gmra.mxu0 %v686
    %v1249 = vpop.f32.mrf.mxu0
    %v1250 = vadd.f32 0.0, %v1249
    %v1251 = vpop.f32.mrf.mxu0
    %v1252 = vpop.f32.mrf.mxu0
    %v1253 = vadd.f32 0.0, %v1252
    %v1254 = vpop.f32.mrf.mxu0
    %1255 = vmatprep.mubr.bf16.mxu0 %v692
    %1256 = vmatmul.mubr.bf16.gmra.mxu0 %v691
    %v1257 = vpop.f32.mrf.mxu0
    %v1258 = vadd.f32 0.0, %v1257
    %v1259 = vpop.f32.mrf.mxu0
    %v1260 = vpop.f32.mrf.mxu0
    %v1261 = vadd.f32 0.0, %v1260
    %v1262 = vpop.f32.mrf.mxu0
    %1263 = vmatprep.mubr.bf16.mxu0 %v697
    %1264 = vmatmul.mubr.bf16.gmra.mxu0 %v696
    %v1265 = vpop.f32.mrf.mxu0
    %v1266 = vadd.f32 0.0, %v1265
    %v1267 = vpop.f32.mrf.mxu0
    %v1268 = vpop.f32.mrf.mxu0
    %v1269 = vadd.f32 0.0, %v1268
    %v1270 = vpop.f32.mrf.mxu0
    %1271 = vmatprep.mubr.bf16.mxu0 %v702
    %1272 = vmatmul.mubr.bf16.gmra.mxu0 %v701
    %v1273 = vpop.f32.mrf.mxu0
    %v1274 = vadd.f32 0.0, %v1273
    %v1275 = vpop.f32.mrf.mxu0
    %v1276 = vpop.f32.mrf.mxu0
    %v1277 = vadd.f32 0.0, %v1276
    %v1278 = vpop.f32.mrf.mxu0
    %1279 = vmatprep.mubr.bf16.mxu0 %v707
    %1280 = vmatmul.mubr.bf16.gmra.mxu0 %v706
    %v1281 = vpop.f32.mrf.mxu0
    %v1282 = vadd.f32 0.0, %v1281
    %v1283 = vpop.f32.mrf.mxu0
    %v1284 = vpop.f32.mrf.mxu0
    %v1285 = vadd.f32 0.0, %v1284
    %v1286 = vpop.f32.mrf.mxu0
    %1287 = vmatprep.mubr.bf16.mxu0 %v712
    %1288 = vmatmul.mubr.bf16.gmra.mxu0 %v711
    %v1289 = vpop.f32.mrf.mxu0
    %v1290 = vadd.f32 0.0, %v1289
    %v1291 = vpop.f32.mrf.mxu0
    %v1292 = vpop.f32.mrf.mxu0
    %v1293 = vadd.f32 0.0, %v1292
    %v1294 = vpop.f32.mrf.mxu0
    %1295 = vmatprep.mubr.bf16.mxu0 %v717
    %1296 = vmatmul.mubr.bf16.gmra.mxu0 %v716
    %v1297 = vpop.f32.mrf.mxu0
    %v1298 = vadd.f32 0.0, %v1297
    %v1299 = vpop.f32.mrf.mxu0
    %v1300 = vpop.f32.mrf.mxu0
    %v1301 = vadd.f32 0.0, %v1300
    %v1302 = vpop.f32.mrf.mxu0
    %1303 = vmatprep.mubr.bf16.mxu0 %v722
    %1304 = vmatmul.mubr.bf16.gmra.mxu0 %v721
    %v1305 = vpop.f32.mrf.mxu0
    %v1306 = vadd.f32 0.0, %v1305
    %v1307 = vpop.f32.mrf.mxu0
    %v1308 = vpop.f32.mrf.mxu0
    %v1309 = vadd.f32 0.0, %v1308
    %v1310 = vpop.f32.mrf.mxu0
    %1311 = vmatprep.mubr.bf16.mxu0 %v727
    %1312 = vmatmul.mubr.bf16.gmra.mxu0 %v726
    %v1313 = vpop.f32.mrf.mxu0
    %v1314 = vadd.f32 0.0, %v1313
    %v1315 = vpop.f32.mrf.mxu0
    %v1316 = vpop.f32.mrf.mxu0
    %v1317 = vadd.f32 0.0, %v1316
    %v1318 = vpop.f32.mrf.mxu0
    %1319 = vmatprep.mubr.bf16.mxu0 %v732
    %1320 = vmatmul.mubr.bf16.gmra.mxu0 %v731
    %v1321 = vpop.f32.mrf.mxu0
    %v1322 = vadd.f32 0.0, %v1321
    %v1323 = vpop.f32.mrf.mxu0
    %v1324 = vpop.f32.mrf.mxu0
    %v1325 = vadd.f32 0.0, %v1324
    %v1326 = vpop.f32.mrf.mxu0
    %1327 = vmatprep.mubr.bf16.mxu0 %v737
    %1328 = vmatmul.mubr.bf16.gmra.mxu0 %v736
    %v1329 = vpop.f32.mrf.mxu0
    %v1330 = vadd.f32 0.0, %v1329
    %v1331 = vpop.f32.mrf.mxu0
    %v1332 = vpop.f32.mrf.mxu0
    %v1333 = vadd.f32 0.0, %v1332
    %v1334 = vpop.f32.mrf.mxu0
    %1335 = vmatprep.mubr.bf16.mxu0 %v742
    %1336 = vmatmul.mubr.bf16.gmra.mxu0 %v741
    %v1337 = vpop.f32.mrf.mxu0
    %v1338 = vadd.f32 0.0, %v1337
    %v1339 = vpop.f32.mrf.mxu0
    %v1340 = vpop.f32.mrf.mxu0
    %v1341 = vadd.f32 0.0, %v1340
    %v1342 = vpop.f32.mrf.mxu0
    %1343 = vmatprep.mubr.bf16.mxu0 %v747
    %1344 = vmatmul.mubr.bf16.gmra.mxu0 %v746
    %v1345 = vpop.f32.mrf.mxu0
    %v1346 = vadd.f32 0.0, %v1345
    %v1347 = vpop.f32.mrf.mxu0
    %v1348 = vpop.f32.mrf.mxu0
    %v1349 = vadd.f32 0.0, %v1348
    %v1350 = vpop.f32.mrf.mxu0
    %1351 = vmatprep.mubr.bf16.mxu0 %v752
    %1352 = vmatmul.mubr.bf16.gmra.mxu0 %v751
    %v1353 = vpop.f32.mrf.mxu0
    %v1354 = vadd.f32 0.0, %v1353
    %v1355 = vpop.f32.mrf.mxu0
    %v1356 = vpop.f32.mrf.mxu0
    %v1357 = vadd.f32 0.0, %v1356
    %v1358 = vpop.f32.mrf.mxu0
    %1359 = vmatprep.mubr.bf16.mxu0 %v757
    %1360 = vmatmul.mubr.bf16.gmra.mxu0 %v756
    %v1361 = vpop.f32.mrf.mxu0
    %v1362 = vadd.f32 0.0, %v1361
    %v1363 = vpop.f32.mrf.mxu0
    %v1364 = vpop.f32.mrf.mxu0
    %v1365 = vadd.f32 0.0, %v1364
    %v1366 = vpop.f32.mrf.mxu0
    %1367 = vmatprep.mubr.bf16.mxu0 %v762
    %1368 = vmatmul.mubr.bf16.gmra.mxu0 %v761
    %v1369 = vpop.f32.mrf.mxu0
    %v1370 = vadd.f32 0.0, %v1369
    %v1371 = vpop.f32.mrf.mxu0
    %v1372 = vpop.f32.mrf.mxu0
    %v1373 = vadd.f32 0.0, %v1372
    %v1374 = vpop.f32.mrf.mxu0
    %1375 = vmatprep.mubr.bf16.mxu0 %v767
    %1376 = vmatmul.mubr.bf16.gmra.mxu0 %v766
    %v1377 = vpop.f32.mrf.mxu0
    %v1378 = vadd.f32 0.0, %v1377
    %v1379 = vpop.f32.mrf.mxu0
    %v1380 = vpop.f32.mrf.mxu0
    %v1381 = vadd.f32 0.0, %v1380
    %v1382 = vpop.f32.mrf.mxu0
    %1383 = vmatprep.mubr.bf16.mxu0 %v772
    %1384 = vmatmul.mubr.bf16.gmra.mxu0 %v771
    %v1385 = vpop.f32.mrf.mxu0
    %v1386 = vadd.f32 0.0, %v1385
    %v1387 = vpop.f32.mrf.mxu0
    %v1388 = vpop.f32.mrf.mxu0
    %v1389 = vadd.f32 0.0, %v1388
    %v1390 = vpop.f32.mrf.mxu0
    %1391 = vmatprep.mubr.bf16.mxu0 %v777
    %1392 = vmatmul.mubr.bf16.gmra.mxu0 %v776
    %v1393 = vpop.f32.mrf.mxu0
    %v1394 = vadd.f32 0.0, %v1393
    %v1395 = vpop.f32.mrf.mxu0
    %v1396 = vpop.f32.mrf.mxu0
    %v1397 = vadd.f32 0.0, %v1396
    %v1398 = vpop.f32.mrf.mxu0
    %1399 = vmatprep.mubr.bf16.mxu0 %v782
    %1400 = vmatmul.mubr.bf16.gmra.mxu0 %v781
    %v1401 = vpop.f32.mrf.mxu0
    %v1402 = vadd.f32 0.0, %v1401
    %v1403 = vpop.f32.mrf.mxu0
    %v1404 = vpop.f32.mrf.mxu0
    %v1405 = vadd.f32 0.0, %v1404
    %v1406 = vpop.f32.mrf.mxu0
    %1407 = vmatprep.mubr.bf16.mxu0 %v787
    %1408 = vmatmul.mubr.bf16.gmra.mxu0 %v786
    %v1409 = vpop.f32.mrf.mxu0
    %v1410 = vadd.f32 0.0, %v1409
    %v1411 = vpop.f32.mrf.mxu0
    %v1412 = vpop.f32.mrf.mxu0
    %v1413 = vpop.f32.mrf.mxu0
    %1414 = vdwg.mxu0
    %1415 = vmatprep.subr.bf16.mxu0 0
    %1416 = vmatpush1.bf16.msra.mxu0 %v1058
    %1417 = vmatprep.subr.bf16.mxu0 0
    %1418 = vmatpush1.bf16.msra.mxu0 %v1057
    %1419 = vmatprep.subr.bf16.mxu0 0
    %1420 = vmatpush1.bf16.msra.mxu0 %v1056
    %1421 = vmatprep.subr.bf16.mxu0 0
    %1422 = vmatpush1.bf16.msra.mxu0 %v1055
    %1423 = vmatprep.subr.bf16.mxu0 0
    %1424 = vmatpush1.bf16.msra.mxu0 %v1054
    %1425 = vmatprep.subr.bf16.mxu0 0
    %1426 = vmatpush1.bf16.msra.mxu0 %v1053
    %1427 = vmatprep.subr.bf16.mxu0 0
    %1428 = vmatpush1.bf16.msra.mxu0 %v1052
    %1429 = vmatprep.subr.bf16.mxu0 0
    %1430 = vmatpush1.bf16.msra.mxu0 %v1051
    %1431 = vmatprep.subr.bf16.mxu0 0
    %1432 = vmatpush2.bf16.msra.mxu0 %v1066
    %1433 = vmatprep.subr.bf16.mxu0 0
    %1434 = vmatpush2.bf16.msra.mxu0 %v1065
    %1435 = vmatprep.subr.bf16.mxu0 0
    %1436 = vmatpush2.bf16.msra.mxu0 %v1064
    %1437 = vmatprep.subr.bf16.mxu0 0
    %1438 = vmatpush2.bf16.msra.mxu0 %v1063
    %1439 = vmatprep.subr.bf16.mxu0 0
    %1440 = vmatpush2.bf16.msra.mxu0 %v1062
    %1441 = vmatprep.subr.bf16.mxu0 0
    %1442 = vmatpush2.bf16.msra.mxu0 %v1061
    %1443 = vmatprep.subr.bf16.mxu0 0
    %1444 = vmatpush2.bf16.msra.mxu0 %v1060
    %1445 = vmatprep.subr.bf16.mxu0 0
    %1446 = vmatpush2.bf16.msra.mxu0 %v1059
    %1447 = vmatprep.mubr.bf16.mxu0 %v669
    %1448 = vmatmul.mubr.bf16.gmra.mxu0 %v668
    %v1449 = vpop.f32.mrf.mxu0
    %v1450 = vadd.f32 %v1218, %v1449
    %v1451 = vpop.f32.mrf.mxu0
    %v1452 = vpop.f32.mrf.mxu0
    %v1453 = vadd.f32 %v1221, %v1452
    %v1454 = vpop.f32.mrf.mxu0
    %1455 = vmatprep.mubr.bf16.mxu0 %v674
    %1456 = vmatmul.mubr.bf16.gmra.mxu0 %v673
    %v1457 = vpop.f32.mrf.mxu0
    %v1458 = vadd.f32 %v1226, %v1457
    %v1459 = vpop.f32.mrf.mxu0
    %v1460 = vpop.f32.mrf.mxu0
    %v1461 = vadd.f32 %v1229, %v1460
    %v1462 = vpop.f32.mrf.mxu0
    %1463 = vmatprep.mubr.bf16.mxu0 %v679
    %1464 = vmatmul.mubr.bf16.gmra.mxu0 %v678
    %v1465 = vpop.f32.mrf.mxu0
    %v1466 = vadd.f32 %v1234, %v1465
    %v1467 = vpop.f32.mrf.mxu0
    %v1468 = vpop.f32.mrf.mxu0
    %v1469 = vadd.f32 %v1237, %v1468
    %v1470 = vpop.f32.mrf.mxu0
    %1471 = vmatprep.mubr.bf16.mxu0 %v684
    %1472 = vmatmul.mubr.bf16.gmra.mxu0 %v683
    %v1473 = vpop.f32.mrf.mxu0
    %v1474 = vadd.f32 %v1242, %v1473
    %v1475 = vpop.f32.mrf.mxu0
    %v1476 = vpop.f32.mrf.mxu0
    %v1477 = vadd.f32 %v1245, %v1476
    %v1478 = vpop.f32.mrf.mxu0
    %1479 = vmatprep.mubr.bf16.mxu0 %v689
    %1480 = vmatmul.mubr.bf16.gmra.mxu0 %v688
    %v1481 = vpop.f32.mrf.mxu0
    %v1482 = vadd.f32 %v1250, %v1481
    %v1483 = vpop.f32.mrf.mxu0
    %v1484 = vpop.f32.mrf.mxu0
    %v1485 = vadd.f32 %v1253, %v1484
    %v1486 = vpop.f32.mrf.mxu0
    %1487 = vmatprep.mubr.bf16.mxu0 %v694
    %1488 = vmatmul.mubr.bf16.gmra.mxu0 %v693
    %v1489 = vpop.f32.mrf.mxu0
    %v1490 = vadd.f32 %v1258, %v1489
    %v1491 = vpop.f32.mrf.mxu0
    %v1492 = vpop.f32.mrf.mxu0
    %v1493 = vadd.f32 %v1261, %v1492
    %v1494 = vpop.f32.mrf.mxu0
    %1495 = vmatprep.mubr.bf16.mxu0 %v699
    %1496 = vmatmul.mubr.bf16.gmra.mxu0 %v698
    %v1497 = vpop.f32.mrf.mxu0
    %v1498 = vadd.f32 %v1266, %v1497
    %v1499 = vpop.f32.mrf.mxu0
    %v1500 = vpop.f32.mrf.mxu0
    %v1501 = vadd.f32 %v1269, %v1500
    %v1502 = vpop.f32.mrf.mxu0
    %1503 = vmatprep.mubr.bf16.mxu0 %v704
    %1504 = vmatmul.mubr.bf16.gmra.mxu0 %v703
    %v1505 = vpop.f32.mrf.mxu0
    %v1506 = vadd.f32 %v1274, %v1505
    %v1507 = vpop.f32.mrf.mxu0
    %v1508 = vpop.f32.mrf.mxu0
    %v1509 = vadd.f32 %v1277, %v1508
    %v1510 = vpop.f32.mrf.mxu0
    %1511 = vmatprep.mubr.bf16.mxu0 %v709
    %1512 = vmatmul.mubr.bf16.gmra.mxu0 %v708
    %v1513 = vpop.f32.mrf.mxu0
    %v1514 = vadd.f32 %v1282, %v1513
    %v1515 = vpop.f32.mrf.mxu0
    %v1516 = vpop.f32.mrf.mxu0
    %v1517 = vadd.f32 %v1285, %v1516
    %v1518 = vpop.f32.mrf.mxu0
    %1519 = vmatprep.mubr.bf16.mxu0 %v714
    %1520 = vmatmul.mubr.bf16.gmra.mxu0 %v713
    %v1521 = vpop.f32.mrf.mxu0
    %v1522 = vadd.f32 %v1290, %v1521
    %v1523 = vpop.f32.mrf.mxu0
    %v1524 = vpop.f32.mrf.mxu0
    %v1525 = vadd.f32 %v1293, %v1524
    %v1526 = vpop.f32.mrf.mxu0
    %1527 = vmatprep.mubr.bf16.mxu0 %v719
    %1528 = vmatmul.mubr.bf16.gmra.mxu0 %v718
    %v1529 = vpop.f32.mrf.mxu0
    %v1530 = vadd.f32 %v1298, %v1529
    %v1531 = vpop.f32.mrf.mxu0
    %v1532 = vpop.f32.mrf.mxu0
    %v1533 = vadd.f32 %v1301, %v1532
    %v1534 = vpop.f32.mrf.mxu0
    %1535 = vmatprep.mubr.bf16.mxu0 %v724
    %1536 = vmatmul.mubr.bf16.gmra.mxu0 %v723
    %v1537 = vpop.f32.mrf.mxu0
    %v1538 = vadd.f32 %v1306, %v1537
    %v1539 = vpop.f32.mrf.mxu0
    %v1540 = vpop.f32.mrf.mxu0
    %v1541 = vadd.f32 %v1309, %v1540
    %v1542 = vpop.f32.mrf.mxu0
    %1543 = vmatprep.mubr.bf16.mxu0 %v729
    %1544 = vmatmul.mubr.bf16.gmra.mxu0 %v728
    %v1545 = vpop.f32.mrf.mxu0
    %v1546 = vadd.f32 %v1314, %v1545
    %v1547 = vpop.f32.mrf.mxu0
    %v1548 = vpop.f32.mrf.mxu0
    %v1549 = vadd.f32 %v1317, %v1548
    %v1550 = vpop.f32.mrf.mxu0
    %1551 = vmatprep.mubr.bf16.mxu0 %v734
    %1552 = vmatmul.mubr.bf16.gmra.mxu0 %v733
    %v1553 = vpop.f32.mrf.mxu0
    %v1554 = vadd.f32 %v1322, %v1553
    %v1555 = vpop.f32.mrf.mxu0
    %v1556 = vpop.f32.mrf.mxu0
    %v1557 = vadd.f32 %v1325, %v1556
    %v1558 = vpop.f32.mrf.mxu0
    %1559 = vmatprep.mubr.bf16.mxu0 %v739
    %1560 = vmatmul.mubr.bf16.gmra.mxu0 %v738
    %v1561 = vpop.f32.mrf.mxu0
    %v1562 = vadd.f32 %v1330, %v1561
    %v1563 = vpop.f32.mrf.mxu0
    %v1564 = vpop.f32.mrf.mxu0
    %v1565 = vadd.f32 %v1333, %v1564
    %v1566 = vpop.f32.mrf.mxu0
    %1567 = vmatprep.mubr.bf16.mxu0 %v744
    %1568 = vmatmul.mubr.bf16.gmra.mxu0 %v743
    %v1569 = vpop.f32.mrf.mxu0
    %v1570 = vadd.f32 %v1338, %v1569
    %v1571 = vpop.f32.mrf.mxu0
    %v1572 = vpop.f32.mrf.mxu0
    %v1573 = vadd.f32 %v1341, %v1572
    %v1574 = vpop.f32.mrf.mxu0
    %1575 = vmatprep.mubr.bf16.mxu0 %v749
    %1576 = vmatmul.mubr.bf16.gmra.mxu0 %v748
    %v1577 = vpop.f32.mrf.mxu0
    %v1578 = vadd.f32 %v1346, %v1577
    %v1579 = vpop.f32.mrf.mxu0
    %v1580 = vpop.f32.mrf.mxu0
    %v1581 = vadd.f32 %v1349, %v1580
    %v1582 = vpop.f32.mrf.mxu0
    %1583 = vmatprep.mubr.bf16.mxu0 %v754
    %1584 = vmatmul.mubr.bf16.gmra.mxu0 %v753
    %v1585 = vpop.f32.mrf.mxu0
    %v1586 = vadd.f32 %v1354, %v1585
    %v1587 = vpop.f32.mrf.mxu0
    %v1588 = vpop.f32.mrf.mxu0
    %v1589 = vadd.f32 %v1357, %v1588
    %v1590 = vpop.f32.mrf.mxu0
    %1591 = vmatprep.mubr.bf16.mxu0 %v759
    %1592 = vmatmul.mubr.bf16.gmra.mxu0 %v758
    %v1593 = vpop.f32.mrf.mxu0
    %v1594 = vadd.f32 %v1362, %v1593
    %v1595 = vpop.f32.mrf.mxu0
    %v1596 = vpop.f32.mrf.mxu0
    %v1597 = vadd.f32 %v1365, %v1596
    %v1598 = vpop.f32.mrf.mxu0
    %1599 = vmatprep.mubr.bf16.mxu0 %v764
    %1600 = vmatmul.mubr.bf16.gmra.mxu0 %v763
    %v1601 = vpop.f32.mrf.mxu0
    %v1602 = vadd.f32 %v1370, %v1601
    %v1603 = vpop.f32.mrf.mxu0
    %v1604 = vpop.f32.mrf.mxu0
    %v1605 = vadd.f32 %v1373, %v1604
    %v1606 = vpop.f32.mrf.mxu0
    %1607 = vmatprep.mubr.bf16.mxu0 %v769
    %1608 = vmatmul.mubr.bf16.gmra.mxu0 %v768
    %v1609 = vpop.f32.mrf.mxu0
    %v1610 = vadd.f32 %v1378, %v1609
    %v1611 = vpop.f32.mrf.mxu0
    %v1612 = vpop.f32.mrf.mxu0
    %v1613 = vadd.f32 %v1381, %v1612
    %v1614 = vpop.f32.mrf.mxu0
    %1615 = vmatprep.mubr.bf16.mxu0 %v774
    %1616 = vmatmul.mubr.bf16.gmra.mxu0 %v773
    %v1617 = vpop.f32.mrf.mxu0
    %v1618 = vadd.f32 %v1386, %v1617
    %v1619 = vpop.f32.mrf.mxu0
    %v1620 = vpop.f32.mrf.mxu0
    %v1621 = vadd.f32 %v1389, %v1620
    %v1622 = vpop.f32.mrf.mxu0
    %1623 = vmatprep.mubr.bf16.mxu0 %v779
    %1624 = vmatmul.mubr.bf16.gmra.mxu0 %v778
    %v1625 = vpop.f32.mrf.mxu0
    %v1626 = vadd.f32 %v1394, %v1625
    %v1627 = vpop.f32.mrf.mxu0
    %v1628 = vpop.f32.mrf.mxu0
    %v1629 = vadd.f32 %v1397, %v1628
    %v1630 = vpop.f32.mrf.mxu0
    %1631 = vmatprep.mubr.bf16.mxu0 %v784
    %1632 = vmatmul.mubr.bf16.gmra.mxu0 %v783
    %v1633 = vpop.f32.mrf.mxu0
    %v1634 = vadd.f32 %v1402, %v1633
    %v1635 = vpop.f32.mrf.mxu0
    %v1636 = vpop.f32.mrf.mxu0
    %v1637 = vadd.f32 %v1405, %v1636
    %v1638 = vpop.f32.mrf.mxu0
    %1639 = vmatprep.mubr.bf16.mxu0 %v789
    %1640 = vmatmul.mubr.bf16.gmra.mxu0 %v788
    %v1641 = vpop.f32.mrf.mxu0
    %v1642 = vadd.f32 %v1410, %v1641
    %v1643 = vpop.f32.mrf.mxu0
    %v1644 = vpop.f32.mrf.mxu0
    %v1645 = vpop.f32.mrf.mxu0
    %1646 = vdwg.mxu0
    %1647 = vmatprep.subr.bf16.mxu0 0
    %1648 = vmatpush1.bf16.msra.mxu0 0
    %1649 = vmatprep.subr.bf16.mxu0 0
    %1650 = vmatpush1.bf16.msra.mxu0 0
    %1651 = vmatprep.subr.bf16.mxu0 0
    %1652 = vmatpush1.bf16.msra.mxu0 0
    %1653 = vmatprep.subr.bf16.mxu0 0
    %1654 = vmatpush1.bf16.msra.mxu0 0
    %1655 = vmatprep.subr.bf16.mxu0 0
    %1656 = vmatpush1.bf16.msra.mxu0 %v1070
    %1657 = vmatprep.subr.bf16.mxu0 0
    %1658 = vmatpush1.bf16.msra.mxu0 %v1069
    %1659 = vmatprep.subr.bf16.mxu0 0
    %1660 = vmatpush1.bf16.msra.mxu0 %v1068
    %1661 = vmatprep.subr.bf16.mxu0 0
    %1662 = vmatpush1.bf16.msra.mxu0 %v1067
    %1663 = vmatprep.subr.bf16.mxu0 0
    %1664 = vmatpush2.bf16.msra.mxu0 0
    %1665 = vmatprep.subr.bf16.mxu0 0
    %1666 = vmatpush2.bf16.msra.mxu0 0
    %1667 = vmatprep.subr.bf16.mxu0 0
    %1668 = vmatpush2.bf16.msra.mxu0 0
    %1669 = vmatprep.subr.bf16.mxu0 0
    %1670 = vmatpush2.bf16.msra.mxu0 0
    %1671 = vmatprep.subr.bf16.mxu0 0
    %1672 = vmatpush2.bf16.msra.mxu0 0
    %1673 = vmatprep.subr.bf16.mxu0 0
    %1674 = vmatpush2.bf16.msra.mxu0 0
    %1675 = vmatprep.subr.bf16.mxu0 0
    %1676 = vmatpush2.bf16.msra.mxu0 0
    %1677 = vmatprep.subr.bf16.mxu0 0
    %1678 = vmatpush2.bf16.msra.mxu0 0
    %1679 = vmatprep.mubr.bf16.mxu0 0
    %1680 = vmatmul.mubr.bf16.gmra.mxu0 %v1109
    %v1681 = vpop.f32.mrf.mxu0
    %v1682 = vadd.f32 %v1450, %v1681
    %v1683 = vpop.f32.mrf.mxu0
    %v1684 = vpop.f32.mrf.mxu0
    %v1685 = vadd.f32 %v1453, %v1684
    %v1686 = vpop.f32.mrf.mxu0
    %1687 = vmatprep.mubr.bf16.mxu0 0
    %1688 = vmatmul.mubr.bf16.gmra.mxu0 %v1112
    %v1689 = vpop.f32.mrf.mxu0
    %v1690 = vadd.f32 %v1458, %v1689
    %v1691 = vpop.f32.mrf.mxu0
    %v1692 = vpop.f32.mrf.mxu0
    %v1693 = vadd.f32 %v1461, %v1692
    %v1694 = vpop.f32.mrf.mxu0
    %1695 = vmatprep.mubr.bf16.mxu0 0
    %1696 = vmatmul.mubr.bf16.gmra.mxu0 %v1115
    %v1697 = vpop.f32.mrf.mxu0
    %v1698 = vadd.f32 %v1466, %v1697
    %v1699 = vpop.f32.mrf.mxu0
    %v1700 = vpop.f32.mrf.mxu0
    %v1701 = vadd.f32 %v1469, %v1700
    %v1702 = vpop.f32.mrf.mxu0
    %1703 = vmatprep.mubr.bf16.mxu0 0
    %1704 = vmatmul.mubr.bf16.gmra.mxu0 %v1118
    %v1705 = vpop.f32.mrf.mxu0
    %v1706 = vadd.f32 %v1474, %v1705
    %v1707 = vpop.f32.mrf.mxu0
    %v1708 = vpop.f32.mrf.mxu0
    %v1709 = vadd.f32 %v1477, %v1708
    %v1710 = vpop.f32.mrf.mxu0
    %1711 = vmatprep.mubr.bf16.mxu0 0
    %1712 = vmatmul.mubr.bf16.gmra.mxu0 %v1121
    %v1713 = vpop.f32.mrf.mxu0
    %v1714 = vadd.f32 %v1482, %v1713
    %v1715 = vpop.f32.mrf.mxu0
    %v1716 = vpop.f32.mrf.mxu0
    %v1717 = vadd.f32 %v1485, %v1716
    %v1718 = vpop.f32.mrf.mxu0
    %1719 = vmatprep.mubr.bf16.mxu0 0
    %1720 = vmatmul.mubr.bf16.gmra.mxu0 %v1124
    %v1721 = vpop.f32.mrf.mxu0
    %v1722 = vadd.f32 %v1490, %v1721
    %v1723 = vpop.f32.mrf.mxu0
    %v1724 = vpop.f32.mrf.mxu0
    %v1725 = vadd.f32 %v1493, %v1724
    %v1726 = vpop.f32.mrf.mxu0
    %1727 = vmatprep.mubr.bf16.mxu0 0
    %1728 = vmatmul.mubr.bf16.gmra.mxu0 %v1127
    %v1729 = vpop.f32.mrf.mxu0
    %v1730 = vadd.f32 %v1498, %v1729
    %v1731 = vpop.f32.mrf.mxu0
    %v1732 = vpop.f32.mrf.mxu0
    %v1733 = vadd.f32 %v1501, %v1732
    %v1734 = vpop.f32.mrf.mxu0
    %1735 = vmatprep.mubr.bf16.mxu0 0
    %1736 = vmatmul.mubr.bf16.gmra.mxu0 %v1130
    %v1737 = vpop.f32.mrf.mxu0
    %v1738 = vadd.f32 %v1506, %v1737
    %v1739 = vpop.f32.mrf.mxu0
    %v1740 = vpop.f32.mrf.mxu0
    %v1741 = vadd.f32 %v1509, %v1740
    %v1742 = vpop.f32.mrf.mxu0
    %1743 = vmatprep.mubr.bf16.mxu0 0
    %1744 = vmatmul.mubr.bf16.gmra.mxu0 %v1133
    %v1745 = vpop.f32.mrf.mxu0
    %v1746 = vadd.f32 %v1514, %v1745
    %v1747 = vpop.f32.mrf.mxu0
    %v1748 = vpop.f32.mrf.mxu0
    %v1749 = vadd.f32 %v1517, %v1748
    %v1750 = vpop.f32.mrf.mxu0
    %1751 = vmatprep.mubr.bf16.mxu0 0
    %1752 = vmatmul.mubr.bf16.gmra.mxu0 %v1136
    %v1753 = vpop.f32.mrf.mxu0
    %v1754 = vadd.f32 %v1522, %v1753
    %v1755 = vpop.f32.mrf.mxu0
    %v1756 = vpop.f32.mrf.mxu0
    %v1757 = vadd.f32 %v1525, %v1756
    %v1758 = vpop.f32.mrf.mxu0
    %1759 = vmatprep.mubr.bf16.mxu0 0
    %1760 = vmatmul.mubr.bf16.gmra.mxu0 %v1139
    %v1761 = vpop.f32.mrf.mxu0
    %v1762 = vadd.f32 %v1530, %v1761
    %v1763 = vpop.f32.mrf.mxu0
    %v1764 = vpop.f32.mrf.mxu0
    %v1765 = vadd.f32 %v1533, %v1764
    %v1766 = vpop.f32.mrf.mxu0
    %1767 = vmatprep.mubr.bf16.mxu0 0
    %1768 = vmatmul.mubr.bf16.gmra.mxu0 %v1142
    %v1769 = vpop.f32.mrf.mxu0
    %v1770 = vadd.f32 %v1538, %v1769
    %v1771 = vpop.f32.mrf.mxu0
    %v1772 = vpop.f32.mrf.mxu0
    %v1773 = vadd.f32 %v1541, %v1772
    %v1774 = vpop.f32.mrf.mxu0
    %1775 = vmatprep.mubr.bf16.mxu0 0
    %1776 = vmatmul.mubr.bf16.gmra.mxu0 %v1145
    %v1777 = vpop.f32.mrf.mxu0
    %v1778 = vadd.f32 %v1546, %v1777
    %v1779 = vpop.f32.mrf.mxu0
    %v1780 = vpop.f32.mrf.mxu0
    %v1781 = vadd.f32 %v1549, %v1780
    %v1782 = vpop.f32.mrf.mxu0
    %1783 = vmatprep.mubr.bf16.mxu0 0
    %1784 = vmatmul.mubr.bf16.gmra.mxu0 %v1148
    %v1785 = vpop.f32.mrf.mxu0
    %v1786 = vadd.f32 %v1554, %v1785
    %v1787 = vpop.f32.mrf.mxu0
    %v1788 = vpop.f32.mrf.mxu0
    %v1789 = vadd.f32 %v1557, %v1788
    %v1790 = vpop.f32.mrf.mxu0
    %1791 = vmatprep.mubr.bf16.mxu0 0
    %1792 = vmatmul.mubr.bf16.gmra.mxu0 %v1151
    %v1793 = vpop.f32.mrf.mxu0
    %v1794 = vadd.f32 %v1562, %v1793
    %v1795 = vpop.f32.mrf.mxu0
    %v1796 = vpop.f32.mrf.mxu0
    %v1797 = vadd.f32 %v1565, %v1796
    %v1798 = vpop.f32.mrf.mxu0
    %1799 = vmatprep.mubr.bf16.mxu0 0
    %1800 = vmatmul.mubr.bf16.gmra.mxu0 %v1154
    %v1801 = vpop.f32.mrf.mxu0
    %v1802 = vadd.f32 %v1570, %v1801
    %v1803 = vpop.f32.mrf.mxu0
    %v1804 = vpop.f32.mrf.mxu0
    %v1805 = vadd.f32 %v1573, %v1804
    %v1806 = vpop.f32.mrf.mxu0
    %1807 = vmatprep.mubr.bf16.mxu0 0
    %1808 = vmatmul.mubr.bf16.gmra.mxu0 %v1157
    %v1809 = vpop.f32.mrf.mxu0
    %v1810 = vadd.f32 %v1578, %v1809
    %v1811 = vpop.f32.mrf.mxu0
    %v1812 = vpop.f32.mrf.mxu0
    %v1813 = vadd.f32 %v1581, %v1812
    %v1814 = vpop.f32.mrf.mxu0
    %1815 = vmatprep.mubr.bf16.mxu0 0
    %1816 = vmatmul.mubr.bf16.gmra.mxu0 %v1160
    %v1817 = vpop.f32.mrf.mxu0
    %v1818 = vadd.f32 %v1586, %v1817
    %v1819 = vpop.f32.mrf.mxu0
    %v1820 = vpop.f32.mrf.mxu0
    %v1821 = vadd.f32 %v1589, %v1820
    %v1822 = vpop.f32.mrf.mxu0
    %1823 = vmatprep.mubr.bf16.mxu0 0
    %1824 = vmatmul.mubr.bf16.gmra.mxu0 %v1163
    %v1825 = vpop.f32.mrf.mxu0
    %v1826 = vadd.f32 %v1594, %v1825
    %v1827 = vpop.f32.mrf.mxu0
    %v1828 = vpop.f32.mrf.mxu0
    %v1829 = vadd.f32 %v1597, %v1828
    %v1830 = vpop.f32.mrf.mxu0
    %1831 = vmatprep.mubr.bf16.mxu0 0
    %1832 = vmatmul.mubr.bf16.gmra.mxu0 %v1166
    %v1833 = vpop.f32.mrf.mxu0
    %v1834 = vadd.f32 %v1602, %v1833
    %v1835 = vpop.f32.mrf.mxu0
    %v1836 = vpop.f32.mrf.mxu0
    %v1837 = vadd.f32 %v1605, %v1836
    %v1838 = vpop.f32.mrf.mxu0
    %1839 = vmatprep.mubr.bf16.mxu0 0
    %1840 = vmatmul.mubr.bf16.gmra.mxu0 %v1169
    %v1841 = vpop.f32.mrf.mxu0
    %v1842 = vadd.f32 %v1610, %v1841
    %v1843 = vpop.f32.mrf.mxu0
    %v1844 = vpop.f32.mrf.mxu0
    %v1845 = vadd.f32 %v1613, %v1844
    %v1846 = vpop.f32.mrf.mxu0
    %1847 = vmatprep.mubr.bf16.mxu0 0
    %1848 = vmatmul.mubr.bf16.gmra.mxu0 %v1172
    %v1849 = vpop.f32.mrf.mxu0
    %v1850 = vadd.f32 %v1618, %v1849
    %v1851 = vpop.f32.mrf.mxu0
    %v1852 = vpop.f32.mrf.mxu0
    %v1853 = vadd.f32 %v1621, %v1852
    %v1854 = vpop.f32.mrf.mxu0
    %1855 = vmatprep.mubr.bf16.mxu0 0
    %1856 = vmatmul.mubr.bf16.gmra.mxu0 %v1175
    %v1857 = vpop.f32.mrf.mxu0
    %v1858 = vadd.f32 %v1626, %v1857
    %v1859 = vpop.f32.mrf.mxu0
    %v1860 = vpop.f32.mrf.mxu0
    %v1861 = vadd.f32 %v1629, %v1860
    %v1862 = vpop.f32.mrf.mxu0
    %1863 = vmatprep.mubr.bf16.mxu0 0
    %1864 = vmatmul.mubr.bf16.gmra.mxu0 %v1178
    %v1865 = vpop.f32.mrf.mxu0
    %v1866 = vadd.f32 %v1634, %v1865
    %v1867 = vpop.f32.mrf.mxu0
    %v1868 = vpop.f32.mrf.mxu0
    %v1869 = vadd.f32 %v1637, %v1868
    %v1870 = vpop.f32.mrf.mxu0
    %1871 = vmatprep.mubr.bf16.mxu0 0
    %1872 = vmatmul.mubr.bf16.gmra.mxu0 %v1181
    %v1873 = vpop.f32.mrf.mxu0
    %v1874 = vadd.f32 %v1642, %v1873
    %v1875 = vpop.f32.mrf.mxu0
    %v1876 = vpop.f32.mrf.mxu0
    %v1877 = vpop.f32.mrf.mxu0
    %1878 = vdwg.mxu0
    %v1879 = vld [vmem:[#allocation4] sm:$0x1]
    %v1881 = vlaneseq
    %v1882 = vshrl.u32 %v1881, 7
    %v1883 = vsub.s32 0, %v1882
    %v1884 = vrot.slane %v1879, %v1883
    %v1886 = vmul.f32 %v1682, %v1884
    %v1887 = vmul.f32 %v1685, %v1884
    %v1888 = vmul.f32 %v1690, %v1884
    %v1889 = vmul.f32 %v1693, %v1884
    %v1890 = vmul.f32 %v1698, %v1884
    %v1891 = vmul.f32 %v1701, %v1884
    %v1892 = vmul.f32 %v1706, %v1884
    %v1893 = vmul.f32 %v1709, %v1884
    %v1894 = vmul.f32 %v1714, %v1884
    %v1895 = vmul.f32 %v1717, %v1884
    %v1896 = vmul.f32 %v1722, %v1884
    %v1897 = vmul.f32 %v1725, %v1884
    %v1898 = vmul.f32 %v1730, %v1884
    %v1899 = vmul.f32 %v1733, %v1884
    %v1900 = vmul.f32 %v1738, %v1884
    %v1901 = vmul.f32 %v1741, %v1884
    %v1902 = vmul.f32 %v1746, %v1884
    %v1903 = vmul.f32 %v1749, %v1884
    %v1904 = vmul.f32 %v1754, %v1884
    %v1905 = vmul.f32 %v1757, %v1884
    %v1906 = vmul.f32 %v1762, %v1884
    %v1907 = vmul.f32 %v1765, %v1884
    %v1908 = vmul.f32 %v1770, %v1884
    %v1909 = vmul.f32 %v1773, %v1884
    %v1910 = vmul.f32 %v1778, %v1884
    %v1911 = vmul.f32 %v1781, %v1884
    %v1912 = vmul.f32 %v1786, %v1884
    %v1913 = vmul.f32 %v1789, %v1884
    %v1914 = vmul.f32 %v1794, %v1884
    %v1915 = vmul.f32 %v1797, %v1884
    %v1916 = vmul.f32 %v1802, %v1884
    %v1917 = vmul.f32 %v1805, %v1884
    %v1918 = vmul.f32 %v1810, %v1884
    %v1919 = vmul.f32 %v1813, %v1884
    %v1920 = vmul.f32 %v1818, %v1884
    %v1921 = vmul.f32 %v1821, %v1884
    %v1922 = vmul.f32 %v1826, %v1884
    %v1923 = vmul.f32 %v1829, %v1884
    %v1924 = vmul.f32 %v1834, %v1884
    %v1925 = vmul.f32 %v1837, %v1884
    %v1926 = vmul.f32 %v1842, %v1884
    %v1927 = vmul.f32 %v1845, %v1884
    %v1928 = vmul.f32 %v1850, %v1884
    %v1929 = vmul.f32 %v1853, %v1884
    %v1930 = vmul.f32 %v1858, %v1884
    %v1931 = vmul.f32 %v1861, %v1884
    %v1932 = vmul.f32 %v1866, %v1884
    %v1933 = vmul.f32 %v1869, %v1884
    %v1934 = vmul.f32 %v1874, %v1884
    %v1935 = vld [vmem:[#allocation6] sm:$0x1]
    %v1937 = vlaneseq
    %v1938 = vshrl.u32 %v1937, 7
    %v1939 = vsub.s32 0, %v1938
    %v1940 = vrot.slane %v1935, %v1939
    %v1942 = vadd.f32 %v1886, %v1940
    %v1943 = vadd.f32 %v1887, %v1940
    %v1944 = vadd.f32 %v1888, %v1940
    %v1945 = vadd.f32 %v1889, %v1940
    %v1946 = vadd.f32 %v1890, %v1940
    %v1947 = vadd.f32 %v1891, %v1940
    %v1948 = vadd.f32 %v1892, %v1940
    %v1949 = vadd.f32 %v1893, %v1940
    %v1950 = vadd.f32 %v1894, %v1940
    %v1951 = vadd.f32 %v1895, %v1940
    %v1952 = vadd.f32 %v1896, %v1940
    %v1953 = vadd.f32 %v1897, %v1940
    %v1954 = vadd.f32 %v1898, %v1940
    %v1955 = vadd.f32 %v1899, %v1940
    %v1956 = vadd.f32 %v1900, %v1940
    %v1957 = vadd.f32 %v1901, %v1940
    %v1958 = vadd.f32 %v1902, %v1940
    %v1959 = vadd.f32 %v1903, %v1940
    %v1960 = vadd.f32 %v1904, %v1940
    %v1961 = vadd.f32 %v1905, %v1940
    %v1962 = vadd.f32 %v1906, %v1940
    %v1963 = vadd.f32 %v1907, %v1940
    %v1964 = vadd.f32 %v1908, %v1940
    %v1965 = vadd.f32 %v1909, %v1940
    %v1966 = vadd.f32 %v1910, %v1940
    %v1967 = vadd.f32 %v1911, %v1940
    %v1968 = vadd.f32 %v1912, %v1940
    %v1969 = vadd.f32 %v1913, %v1940
    %v1970 = vadd.f32 %v1914, %v1940
    %v1971 = vadd.f32 %v1915, %v1940
    %v1972 = vadd.f32 %v1916, %v1940
    %v1973 = vadd.f32 %v1917, %v1940
    %v1974 = vadd.f32 %v1918, %v1940
    %v1975 = vadd.f32 %v1919, %v1940
    %v1976 = vadd.f32 %v1920, %v1940
    %v1977 = vadd.f32 %v1921, %v1940
    %v1978 = vadd.f32 %v1922, %v1940
    %v1979 = vadd.f32 %v1923, %v1940
    %v1980 = vadd.f32 %v1924, %v1940
    %v1981 = vadd.f32 %v1925, %v1940
    %v1982 = vadd.f32 %v1926, %v1940
    %v1983 = vadd.f32 %v1927, %v1940
    %v1984 = vadd.f32 %v1928, %v1940
    %v1985 = vadd.f32 %v1929, %v1940
    %v1986 = vadd.f32 %v1930, %v1940
    %v1987 = vadd.f32 %v1931, %v1940
    %v1988 = vadd.f32 %v1932, %v1940
    %v1989 = vadd.f32 %v1933, %v1940
    %v1990 = vadd.f32 %v1934, %v1940
    %v1991 = vmax.f32 %v1942, 0.0
    %v1992 = vmax.f32 %v1943, 0.0
    %v1993 = vmax.f32 %v1944, 0.0
    %v1994 = vmax.f32 %v1945, 0.0
    %v1995 = vmax.f32 %v1946, 0.0
    %v1996 = vmax.f32 %v1947, 0.0
    %v1997 = vmax.f32 %v1948, 0.0
    %v1998 = vmax.f32 %v1949, 0.0
    %v1999 = vmax.f32 %v1950, 0.0
    %v2000 = vmax.f32 %v1951, 0.0
    %v2001 = vmax.f32 %v1952, 0.0
    %v2002 = vmax.f32 %v1953, 0.0
    %v2003 = vmax.f32 %v1954, 0.0
    %v2004 = vmax.f32 %v1955, 0.0
    %v2005 = vmax.f32 %v1956, 0.0
    %v2006 = vmax.f32 %v1957, 0.0
    %v2007 = vmax.f32 %v1958, 0.0
    %v2008 = vmax.f32 %v1959, 0.0
    %v2009 = vmax.f32 %v1960, 0.0
    %v2010 = vmax.f32 %v1961, 0.0
    %v2011 = vmax.f32 %v1962, 0.0
    %v2012 = vmax.f32 %v1963, 0.0
    %v2013 = vmax.f32 %v1964, 0.0
    %v2014 = vmax.f32 %v1965, 0.0
    %v2015 = vmax.f32 %v1966, 0.0
    %v2016 = vmax.f32 %v1967, 0.0
    %v2017 = vmax.f32 %v1968, 0.0
    %v2018 = vmax.f32 %v1969, 0.0
    %v2019 = vmax.f32 %v1970, 0.0
    %v2020 = vmax.f32 %v1971, 0.0
    %v2021 = vmax.f32 %v1972, 0.0
    %v2022 = vmax.f32 %v1973, 0.0
    %v2023 = vmax.f32 %v1974, 0.0
    %v2024 = vmax.f32 %v1975, 0.0
    %v2025 = vmax.f32 %v1976, 0.0
    %v2026 = vmax.f32 %v1977, 0.0
    %v2027 = vmax.f32 %v1978, 0.0
    %v2028 = vmax.f32 %v1979, 0.0
    %v2029 = vmax.f32 %v1980, 0.0
    %v2030 = vmax.f32 %v1981, 0.0
    %v2031 = vmax.f32 %v1982, 0.0
    %v2032 = vmax.f32 %v1983, 0.0
    %v2033 = vmax.f32 %v1984, 0.0
    %v2034 = vmax.f32 %v1985, 0.0
    %v2035 = vmax.f32 %v1986, 0.0
    %v2036 = vmax.f32 %v1987, 0.0
    %v2037 = vmax.f32 %v1988, 0.0
    %v2038 = vmax.f32 %v1989, 0.0
    %v2039 = vmax.f32 %v1990, 0.0
    %2040 = vst [vmem:[%s4] sm:$0xff] %v1991
    %2041 = vst [vmem:[%s4 + $0x8] sm:$0xff] %v1992
    %2042 = vst [vmem:[%s4 + $0x10] sm:$0xff] %v1993
    %2043 = vst [vmem:[%s4 + $0x18] sm:$0xff] %v1994
    %2044 = vst [vmem:[%s4 + $0x20] sm:$0xff] %v1995
    %2045 = vst [vmem:[%s4 + $0x28] sm:$0xff] %v1996
    %2046 = vst [vmem:[%s4 + $0x30] sm:$0xff] %v1997
    %2047 = vst [vmem:[%s4 + $0x38] sm:$0xff] %v1998
    %2048 = vst [vmem:[%s4 + $0x40] sm:$0xff] %v1999
    %2049 = vst [vmem:[%s4 + $0x48] sm:$0xff] %v2000
    %2050 = vst [vmem:[%s4 + $0x50] sm:$0xff] %v2001
    %2051 = vst [vmem:[%s4 + $0x58] sm:$0xff] %v2002
    %2052 = vst [vmem:[%s4 + $0x60] sm:$0xff] %v2003
    %2053 = vst [vmem:[%s4 + $0x68] sm:$0xff] %v2004
    %2054 = vst [vmem:[%s4 + $0x70] sm:$0xff] %v2005
    %2055 = vst [vmem:[%s4 + $0x78] sm:$0xff] %v2006
    %2056 = vst [vmem:[%s4 + $0x80] sm:$0xff] %v2007
    %2057 = vst [vmem:[%s4 + $0x88] sm:$0xff] %v2008
    %2058 = vst [vmem:[%s4 + $0x90] sm:$0xff] %v2009
    %2059 = vst [vmem:[%s4 + $0x98] sm:$0xff] %v2010
    %2060 = vst [vmem:[%s4 + $0xa0] sm:$0xff] %v2011
    %2061 = vst [vmem:[%s4 + $0xa8] sm:$0xff] %v2012
    %2062 = vst [vmem:[%s4 + $0xb0] sm:$0xff] %v2013
    %2063 = vst [vmem:[%s4 + $0xb8] sm:$0xff] %v2014
    %2064 = vst [vmem:[%s4 + $0xc0] sm:$0xff] %v2015
    %2065 = vst [vmem:[%s4 + $0xc8] sm:$0xff] %v2016
    %2066 = vst [vmem:[%s4 + $0xd0] sm:$0xff] %v2017
    %2067 = vst [vmem:[%s4 + $0xd8] sm:$0xff] %v2018
    %2068 = vst [vmem:[%s4 + $0xe0] sm:$0xff] %v2019
    %2069 = vst [vmem:[%s4 + $0xe8] sm:$0xff] %v2020
    %2070 = vst [vmem:[%s4 + $0xf0] sm:$0xff] %v2021
    %2071 = vst [vmem:[%s4 + $0xf8] sm:$0xff] %v2022
    %2072 = vst [vmem:[%s4 + $0x100] sm:$0xff] %v2023
    %2073 = vst [vmem:[%s4 + $0x108] sm:$0xff] %v2024
    %2074 = vst [vmem:[%s4 + $0x110] sm:$0xff] %v2025
    %2075 = vst [vmem:[%s4 + $0x118] sm:$0xff] %v2026
    %2076 = vst [vmem:[%s4 + $0x120] sm:$0xff] %v2027
    %2077 = vst [vmem:[%s4 + $0x128] sm:$0xff] %v2028
    %2078 = vst [vmem:[%s4 + $0x130] sm:$0xff] %v2029
    %2079 = vst [vmem:[%s4 + $0x138] sm:$0xff] %v2030
    %2080 = vst [vmem:[%s4 + $0x140] sm:$0xff] %v2031
    %2081 = vst [vmem:[%s4 + $0x148] sm:$0xff] %v2032
    %2082 = vst [vmem:[%s4 + $0x150] sm:$0xff] %v2033
    %2083 = vst [vmem:[%s4 + $0x158] sm:$0xff] %v2034
    %2084 = vst [vmem:[%s4 + $0x160] sm:$0xff] %v2035
    %2085 = vst [vmem:[%s4 + $0x168] sm:$0xff] %v2036
    %2086 = vst [vmem:[%s4 + $0x170] sm:$0xff] %v2037
    %2087 = vst [vmem:[%s4 + $0x178] sm:$0xff] %v2038
    %2088 = vst [vmem:[%s4 + $0x180] sm:$0xff] %v2039
    // Predicated region
    $region30: #{mask_decoder_forward.7} parent=1 // pred_check
      _
    $region31: #{mask_decoder_forward.7} parent=1 // pred_check_branch
      %2090 = sbr.rel (0) target = $region33
    $region32: #{mask_decoder_forward.7} parent=1 // pred_region
      _
    $region33: #{mask_decoder_forward.7} parent=1 // pred_fallthru
      _
    // Predicated region
    $region34: #{mask_decoder_forward.7} parent=1 // pred_check
      _
    $region35: #{mask_decoder_forward.7} parent=1 // pred_check_branch
      %2092 = sbr.rel (0) target = $region37
    $region36: #{mask_decoder_forward.7} parent=1 // pred_region
      _
    $region37: #{mask_decoder_forward.7} parent=1 // pred_fallthru
      _
    %2093 = vsyncpa [#allocation3], 1
    %2094 = vsyncpa [#allocation5], 1

// kernel: mask_decoder_forward.8
$region0: #{mask_decoder_forward.8}
  #allocation0 [shape = 'u32[]', space=smem, size = 0x4, offset = 0x4, fixed_abs, tag = 'smem constant byte address 0x4 - core index']
  #allocation1 [shape = 'u32[144,128]{1,0:T(1,128)}', space=vmem, size = 0x12000, scoped, tag = 'internal scratch']
  %s0 = inlined_call_operand.vmem [shape: bf16[6656,288], index: 0, kind: input, shape index: {}]
  %s1 = inlined_call_operand.vmem [shape: bf16[288,64], index: 1, kind: input, shape index: {}]
  %s2 = inlined_call_operand.vmem [shape: f32[1,64], index: 2, kind: input, shape index: {}]
  %s3 = inlined_call_operand.vmem [shape: f32[1,64], index: 3, kind: input, shape index: {}]
  %s4 = inlined_call_operand.vmem [shape: f32[6656,64], index: 4, kind: output, shape index: {}]
  %s5 = sld [smem:[#allocation0]]
  $region49: #{mask_decoder_forward.8} parent=0
    _
  %s7 = ssub.s32 1, %s5
  %s8 = scalar_select 0, %s7, %s5
  loop: start=0, step=1, limit=15
  $region2: #{mask_decoder_forward.8} parent=0 // loop_pre_header
    _
  $region3: #{mask_decoder_forward.8} parent=0 // loop_header
    %s10 = sphi 0, %s14
    %p11 = scmp.ge.s32.totalorder %s10, 15
    %s20 = sphi 0, %s22
    %s23 = sphi 0, %s20
    %s24 = sphi 0, %s23
    %s40 = sphi 0, %s24
    %s44 = sphi 0, %s44
    %s46 = sphi 0, %s44
    %s47 = sphi 0, %s46
    %s61 = sphi 0, %s47
    %s65 = sphi 0, %s65
    %s67 = sphi 0, %s65
    %s68 = sphi 0, %s67
    %s82 = sphi 0, %s68
    %s86 = sphi 0, %s86
    %s88 = sphi 0, %s86
    %s89 = sphi 0, %s88
    %s103 = sphi 0, %s89
    %s109 = sphi 0, %s111
    %s112 = sphi 0, %s109
    %s113 = sphi 0, %s112
    %s129 = sphi 0, %s113
  $region4: #{mask_decoder_forward.8} parent=0 // loop_header_branch
    %13 = sbr.rel (%p11) target = $region8
  $region5: #{mask_decoder_forward.8} parent=0 // loop_body
    %s15 = ssub.s32 %s10, 1
    %s16 = ssub.s32 %s10, 2
    %s17 = sadd.s32 %s10, 1
    %s18 = ssub.s32 %s10, %s17
    %p19 = scmp.eq.s32.totalorder %s18, 0
    %s21 = sadd.s32 %s20, 1
    %s22 = scalar_select %p19, %s20, %s21
    %p25 = pneg %p19
    %p26 = scmp.eq.s32.totalorder %s10, 12
    %p27 = por %p25, %p26
    %p28 = scmp.ne.s32.totalorder %s20, %s23
    %p29 = scmp.eq.s32.totalorder %s10, 0
    %p30 = por %p28, %p29
    %p31 = scmp.ne.s32.totalorder %s20, %s23
    %p32 = scmp.eq.s32.totalorder %s15, 12
    %p33 = por %p31, %p32
    %p34 = scmp.ne.s32.totalorder %s23, %s24
    %p35 = scmp.eq.s32.totalorder %s15, 0
    %p36 = por %p34, %p35
    %p37 = scmp.ne.s32.totalorder %s23, %s24
    %p38 = scmp.eq.s32.totalorder %s16, 12
    %p39 = por %p37, %p38
    %p41 = scmp.ne.s32.totalorder %s24, %s40
    %p42 = scmp.eq.s32.totalorder %s16, 0
    %p43 = por %p41, %p42
    %s45 = sadd.s32 %s44, 1
    %p48 = scmp.eq.s32.totalorder %s10, 12
    %p49 = scmp.ne.s32.totalorder %s44, %s46
    %p50 = scmp.eq.s32.totalorder %s10, 0
    %p51 = por %p49, %p50
    %p52 = scmp.ne.s32.totalorder %s44, %s46
    %p53 = scmp.eq.s32.totalorder %s15, 12
    %p54 = por %p52, %p53
    %p55 = scmp.ne.s32.totalorder %s46, %s47
    %p56 = scmp.eq.s32.totalorder %s15, 0
    %p57 = por %p55, %p56
    %p58 = scmp.ne.s32.totalorder %s46, %s47
    %p59 = scmp.eq.s32.totalorder %s16, 12
    %p60 = por %p58, %p59
    %p62 = scmp.ne.s32.totalorder %s47, %s61
    %p63 = scmp.eq.s32.totalorder %s16, 0
    %p64 = por %p62, %p63
    %s66 = sadd.s32 %s65, 1
    %p69 = scmp.eq.s32.totalorder %s10, 12
    %p70 = scmp.ne.s32.totalorder %s65, %s67
    %p71 = scmp.eq.s32.totalorder %s10, 0
    %p72 = por %p70, %p71
    %p73 = scmp.ne.s32.totalorder %s65, %s67
    %p74 = scmp.eq.s32.totalorder %s15, 12
    %p75 = por %p73, %p74
    %p76 = scmp.ne.s32.totalorder %s67, %s68
    %p77 = scmp.eq.s32.totalorder %s15, 0
    %p78 = por %p76, %p77
    %p79 = scmp.ne.s32.totalorder %s67, %s68
    %p80 = scmp.eq.s32.totalorder %s16, 12
    %p81 = por %p79, %p80
    %p83 = scmp.ne.s32.totalorder %s68, %s82
    %p84 = scmp.eq.s32.totalorder %s16, 0
    %p85 = por %p83, %p84
    %s87 = sadd.s32 %s86, 1
    %p90 = scmp.eq.s32.totalorder %s10, 12
    %p91 = scmp.ne.s32.totalorder %s86, %s88
    %p92 = scmp.eq.s32.totalorder %s10, 0
    %p93 = por %p91, %p92
    %p94 = scmp.ne.s32.totalorder %s86, %s88
    %p95 = scmp.eq.s32.totalorder %s15, 12
    %p96 = por %p94, %p95
    %p97 = scmp.ne.s32.totalorder %s88, %s89
    %p98 = scmp.eq.s32.totalorder %s15, 0
    %p99 = por %p97, %p98
    %p100 = scmp.ne.s32.totalorder %s88, %s89
    %p101 = scmp.eq.s32.totalorder %s16, 12
    %p102 = por %p100, %p101
    %p104 = scmp.ne.s32.totalorder %s89, %s103
    %p105 = scmp.eq.s32.totalorder %s16, 0
    %p106 = por %p104, %p105
    %s107 = ssub.s32 %s10, %s17
    %p108 = scmp.eq.s32.totalorder %s107, 0
    %s110 = sadd.s32 %s109, 1
    %s111 = scalar_select %p108, %s109, %s110
    %p114 = pneg %p108
    %p115 = scmp.eq.s32.totalorder %s10, 12
    %p116 = por %p114, %p115
    %p117 = scmp.ne.s32.totalorder %s109, %s112
    %p118 = scmp.eq.s32.totalorder %s10, 0
    %p119 = por %p117, %p118
    %p120 = scmp.ne.s32.totalorder %s109, %s112
    %p121 = scmp.eq.s32.totalorder %s15, 12
    %p122 = por %p120, %p121
    %p123 = scmp.ne.s32.totalorder %s112, %s113
    %p124 = scmp.eq.s32.totalorder %s15, 0
    %p125 = por %p123, %p124
    %p126 = scmp.ne.s32.totalorder %s112, %s113
    %p127 = scmp.eq.s32.totalorder %s16, 12
    %p128 = por %p126, %p127
    %p130 = scmp.ne.s32.totalorder %s113, %s129
    %p131 = scmp.eq.s32.totalorder %s16, 0
    %p132 = por %p130, %p131
    %p133 = scmp.le.s32.totalorder 1, %s10
    %p134 = scmp.lt.s32.totalorder %s10, 14
    %p135 = pnand %p133, %p134
    %p136 = pneg %p135
    // Predicated region
    $region9: #{mask_decoder_forward.8} parent=5 // pred_check
      _
    $region10: #{mask_decoder_forward.8} parent=5 // pred_check_branch
      %138 = sbr.rel (%p135) target = $region12
    $region11: #{mask_decoder_forward.8} parent=5 // pred_region
      %s139 = ssub.s32 %s10, 1
      // Predicated region
      $region13: #{mask_decoder_forward.8} parent=11 // pred_check
        %p140 = pneg %p57
      $region14: #{mask_decoder_forward.8} parent=11 // pred_check_branch
        %142 = sbr.rel (%p140) target = $region16
      $region15: #{mask_decoder_forward.8} parent=11 // pred_region
        _
      $region16: #{mask_decoder_forward.8} parent=11 // pred_fallthru
        _
      // Predicated region
      $region17: #{mask_decoder_forward.8} parent=11 // pred_check
        %p143 = pneg %p78
      $region18: #{mask_decoder_forward.8} parent=11 // pred_check_branch
        %145 = sbr.rel (%p143) target = $region20
      $region19: #{mask_decoder_forward.8} parent=11 // pred_region
        _
      $region20: #{mask_decoder_forward.8} parent=11 // pred_fallthru
        _
      // Predicated region
      $region21: #{mask_decoder_forward.8} parent=11 // pred_check
        %p146 = pneg %p99
      $region22: #{mask_decoder_forward.8} parent=11 // pred_check_branch
        %148 = sbr.rel (%p146) target = $region24
      $region23: #{mask_decoder_forward.8} parent=11 // pred_region
        _
      $region24: #{mask_decoder_forward.8} parent=11 // pred_fallthru
        _
    $region12: #{mask_decoder_forward.8} parent=5 // pred_fallthru
      _
    %p149 = scmp.lt.s32.totalorder %s10, 13
    // Predicated region
    $region25: #{mask_decoder_forward.8} parent=5 // pred_check
      %p150 = pneg %p149
    $region26: #{mask_decoder_forward.8} parent=5 // pred_check_branch
      %152 = sbr.rel (%p150) target = $region28
    $region27: #{mask_decoder_forward.8} parent=5 // pred_region
      // Predicated region
      $region29: #{mask_decoder_forward.8} parent=27 // pred_check
        %p153 = pneg %p30
      $region30: #{mask_decoder_forward.8} parent=27 // pred_check_branch
        %155 = sbr.rel (%p153) target = $region32
      $region31: #{mask_decoder_forward.8} parent=27 // pred_region
        %s156 = smul.u32 64, %s10
        %p157 = scmp.lt.s32.totalorder %s156, 831
        %s158 = scalar_select %p157, %s156, 831
        %s159 = smul.addr %s158, 3
        %s160 = smul.addr %s159, 4
        %s161 = scalar_lea.vmem %s0, %s160
        %s162 = smul.u32 64, %s10
      $region32: #{mask_decoder_forward.8} parent=27 // pred_fallthru
        _
    $region28: #{mask_decoder_forward.8} parent=5 // pred_fallthru
      _
    %p163 = scmp.le.s32.totalorder 1, %s10
    %p164 = scmp.lt.s32.totalorder %s10, 14
    %p165 = pnand %p163, %p164
    %p166 = pneg %p165
    // Predicated region
    $region33: #{mask_decoder_forward.8} parent=5 // pred_check
      _
    $region34: #{mask_decoder_forward.8} parent=5 // pred_check_branch
      %168 = sbr.rel (%p165) target = $region36
    $region35: #{mask_decoder_forward.8} parent=5 // pred_region
      %s169 = ssub.s32 %s10, 1
      %s170 = smul.u32 64, %s15
      %p171 = scmp.lt.s32.totalorder %s170, 831
      %s172 = scalar_select %p171, %s170, 831
      %s173 = smul.addr %s172, 3
      %s174 = smul.addr %s173, 4
      %s175 = scalar_lea.vmem %s0, %s174
      %p176 = pneg %p36
      %p177 = pneg %p33
      %p178 = pneg %p57
      %p179 = pneg %p54
      %p180 = pneg %p78
      %p181 = pneg %p75
      %p182 = pneg %p99
      %p183 = pneg %p96
      %p184 = pneg %p125
      %p185 = pneg %p122
      %s186 = smul.u32 64, %s15
      %p187 = scmp.lt.s32.totalorder %s186, 831
      %s188 = scalar_select %p187, %s186, 831
      %s189 = smul.addr %s188, 8
      %s190 = scalar_lea.vmem %s4, %s189
      %s191 = smul.u32 64, %s15
      %p192 = scmp.lt.s32.totalorder %s191, 831
      %s193 = scalar_select %p192, %s191, 831
      %s194 = smul.addr %s193, 3
      %s195 = smul.addr %s194, 4
      %s196 = scalar_lea.vmem %s0, %s195
      %s197 = smul.u32 64, %s15
      %s198 = smul.u32 64, %s15
      %p199 = scmp.lt.s32.totalorder %s198, 831
      %s200 = scalar_select %p199, %s198, 831
      %s201 = smul.addr %s200, 8
      %s202 = scalar_lea.vmem %s4, %s201
      %s203 = smul.u32 64, %s15
      %v205 = vld [vmem:[%s196] sm:$0xff]
      %v206 = vld [vmem:[%s196 + $0x8] sm:$0xf]
      %v207 = vld [vmem:[%s196 + $0xc] sm:$0xff]
      %v208 = vld [vmem:[%s196 + $0x14] sm:$0xf]
      %v209 = vld [vmem:[%s196 + $0x18] sm:$0xff]
      %v210 = vld [vmem:[%s196 + $0x20] sm:$0xf]
      %v211 = vld [vmem:[%s196 + $0x24] sm:$0xff]
      %v212 = vld [vmem:[%s196 + $0x2c] sm:$0xf]
      %v213 = vld [vmem:[%s196 + $0x30] sm:$0xff]
      %v214 = vld [vmem:[%s196 + $0x38] sm:$0xf]
      %v215 = vld [vmem:[%s196 + $0x3c] sm:$0xff]
      %v216 = vld [vmem:[%s196 + $0x44] sm:$0xf]
      %v217 = vld [vmem:[%s196 + $0x48] sm:$0xff]
      %v218 = vld [vmem:[%s196 + $0x50] sm:$0xf]
      %v219 = vld [vmem:[%s196 + $0x54] sm:$0xff]
      %v220 = vld [vmem:[%s196 + $0x5c] sm:$0xf]
      %v221 = vld [vmem:[%s196 + $0x60] sm:$0xff]
      %v222 = vld [vmem:[%s196 + $0x68] sm:$0xf]
      %v223 = vld [vmem:[%s196 + $0x6c] sm:$0xff]
      %v224 = vld [vmem:[%s196 + $0x74] sm:$0xf]
      %v225 = vld [vmem:[%s196 + $0x78] sm:$0xff]
      %v226 = vld [vmem:[%s196 + $0x80] sm:$0xf]
      %v227 = vld [vmem:[%s196 + $0x84] sm:$0xff]
      %v228 = vld [vmem:[%s196 + $0x8c] sm:$0xf]
      %v229 = vld [vmem:[%s196 + $0x90] sm:$0xff]
      %v230 = vld [vmem:[%s196 + $0x98] sm:$0xf]
      %v231 = vld [vmem:[%s196 + $0x9c] sm:$0xff]
      %v232 = vld [vmem:[%s196 + $0xa4] sm:$0xf]
      %v233 = vld [vmem:[%s196 + $0xa8] sm:$0xff]
      %v234 = vld [vmem:[%s196 + $0xb0] sm:$0xf]
      %v235 = vld [vmem:[%s196 + $0xb4] sm:$0xff]
      %v236 = vld [vmem:[%s196 + $0xbc] sm:$0xf]
      %v237 = vld [vmem:[%s196 + $0xc0] sm:$0xff]
      %v238 = vld [vmem:[%s196 + $0xc8] sm:$0xf]
      %v239 = vld [vmem:[%s196 + $0xcc] sm:$0xff]
      %v240 = vld [vmem:[%s196 + $0xd4] sm:$0xf]
      %v241 = vld [vmem:[%s196 + $0xd8] sm:$0xff]
      %v242 = vld [vmem:[%s196 + $0xe0] sm:$0xf]
      %v243 = vld [vmem:[%s196 + $0xe4] sm:$0xff]
      %v244 = vld [vmem:[%s196 + $0xec] sm:$0xf]
      %v245 = vld [vmem:[%s196 + $0xf0] sm:$0xff]
      %v246 = vld [vmem:[%s196 + $0xf8] sm:$0xf]
      %v247 = vld [vmem:[%s196 + $0xfc] sm:$0xff]
      %v248 = vld [vmem:[%s196 + $0x104] sm:$0xf]
      %v249 = vld [vmem:[%s196 + $0x108] sm:$0xff]
      %v250 = vld [vmem:[%s196 + $0x110] sm:$0xf]
      %v251 = vld [vmem:[%s196 + $0x114] sm:$0xff]
      %v252 = vld [vmem:[%s196 + $0x11c] sm:$0xf]
      %v253 = vld [vmem:[%s196 + $0x120] sm:$0xff]
      %v254 = vld [vmem:[%s196 + $0x128] sm:$0xf]
      %v255 = vld [vmem:[%s196 + $0x12c] sm:$0xff]
      %v256 = vld [vmem:[%s196 + $0x134] sm:$0xf]
      %v257 = vld [vmem:[%s196 + $0x138] sm:$0xff]
      %v258 = vld [vmem:[%s196 + $0x140] sm:$0xf]
      %v259 = vld [vmem:[%s196 + $0x144] sm:$0xff]
      %v260 = vld [vmem:[%s196 + $0x14c] sm:$0xf]
      %v261 = vld [vmem:[%s196 + $0x150] sm:$0xff]
      %v262 = vld [vmem:[%s196 + $0x158] sm:$0xf]
      %v263 = vld [vmem:[%s196 + $0x15c] sm:$0xff]
      %v264 = vld [vmem:[%s196 + $0x164] sm:$0xf]
      %v265 = vld [vmem:[%s196 + $0x168] sm:$0xff]
      %v266 = vld [vmem:[%s196 + $0x170] sm:$0xf]
      %v267 = vld [vmem:[%s196 + $0x174] sm:$0xff]
      %v268 = vld [vmem:[%s196 + $0x17c] sm:$0xf]
      %v269 = vld [vmem:[%s196 + $0x180] sm:$0xff]
      %v270 = vld [vmem:[%s196 + $0x188] sm:$0xf]
      %v271 = vld [vmem:[%s196 + $0x18c] sm:$0xff]
      %v272 = vld [vmem:[%s196 + $0x194] sm:$0xf]
      %v273 = vld [vmem:[%s196 + $0x198] sm:$0xff]
      %v274 = vld [vmem:[%s196 + $0x1a0] sm:$0xf]
      %v275 = vld [vmem:[%s196 + $0x1a4] sm:$0xff]
      %v276 = vld [vmem:[%s196 + $0x1ac] sm:$0xf]
      %v277 = vld [vmem:[%s196 + $0x1b0] sm:$0xff]
      %v278 = vld [vmem:[%s196 + $0x1b8] sm:$0xf]
      %v279 = vld [vmem:[%s196 + $0x1bc] sm:$0xff]
      %v280 = vld [vmem:[%s196 + $0x1c4] sm:$0xf]
      %v281 = vld [vmem:[%s196 + $0x1c8] sm:$0xff]
      %v282 = vld [vmem:[%s196 + $0x1d0] sm:$0xf]
      %v283 = vld [vmem:[%s196 + $0x1d4] sm:$0xff]
      %v284 = vld [vmem:[%s196 + $0x1dc] sm:$0xf]
      %v285 = vld [vmem:[%s196 + $0x1e0] sm:$0xff]
      %v286 = vld [vmem:[%s196 + $0x1e8] sm:$0xf]
      %v287 = vld [vmem:[%s196 + $0x1ec] sm:$0xff]
      %v288 = vld [vmem:[%s196 + $0x1f4] sm:$0xf]
      %v289 = vld [vmem:[%s196 + $0x1f8] sm:$0xff]
      %v290 = vld [vmem:[%s196 + $0x200] sm:$0xf]
      %v291 = vld [vmem:[%s196 + $0x204] sm:$0xff]
      %v292 = vld [vmem:[%s196 + $0x20c] sm:$0xf]
      %v293 = vld [vmem:[%s196 + $0x210] sm:$0xff]
      %v294 = vld [vmem:[%s196 + $0x218] sm:$0xf]
      %v295 = vld [vmem:[%s196 + $0x21c] sm:$0xff]
      %v296 = vld [vmem:[%s196 + $0x224] sm:$0xf]
      %v297 = vld [vmem:[%s196 + $0x228] sm:$0xff]
      %v298 = vld [vmem:[%s196 + $0x230] sm:$0xf]
      %v299 = vld [vmem:[%s196 + $0x234] sm:$0xff]
      %v300 = vld [vmem:[%s196 + $0x23c] sm:$0xf]
      %v301 = vld [vmem:[%s196 + $0x240] sm:$0xff]
      %v302 = vld [vmem:[%s196 + $0x248] sm:$0xf]
      %v303 = vld [vmem:[%s196 + $0x24c] sm:$0xff]
      %v304 = vld [vmem:[%s196 + $0x254] sm:$0xf]
      %v305 = vld [vmem:[%s196 + $0x258] sm:$0xff]
      %v306 = vld [vmem:[%s196 + $0x260] sm:$0xf]
      %v307 = vld [vmem:[%s196 + $0x264] sm:$0xff]
      %v308 = vld [vmem:[%s196 + $0x26c] sm:$0xf]
      %v309 = vld [vmem:[%s196 + $0x270] sm:$0xff]
      %v310 = vld [vmem:[%s196 + $0x278] sm:$0xf]
      %v311 = vld [vmem:[%s196 + $0x27c] sm:$0xff]
      %v312 = vld [vmem:[%s196 + $0x284] sm:$0xf]
      %v313 = vld [vmem:[%s196 + $0x288] sm:$0xff]
      %v314 = vld [vmem:[%s196 + $0x290] sm:$0xf]
      %v315 = vld [vmem:[%s196 + $0x294] sm:$0xff]
      %v316 = vld [vmem:[%s196 + $0x29c] sm:$0xf]
      %v317 = vld [vmem:[%s196 + $0x2a0] sm:$0xff]
      %v318 = vld [vmem:[%s196 + $0x2a8] sm:$0xf]
      %v319 = vld [vmem:[%s196 + $0x2ac] sm:$0xff]
      %v320 = vld [vmem:[%s196 + $0x2b4] sm:$0xf]
      %v321 = vld [vmem:[%s196 + $0x2b8] sm:$0xff]
      %v322 = vld [vmem:[%s196 + $0x2c0] sm:$0xf]
      %v323 = vld [vmem:[%s196 + $0x2c4] sm:$0xff]
      %v324 = vld [vmem:[%s196 + $0x2cc] sm:$0xf]
      %v325 = vld [vmem:[%s196 + $0x2d0] sm:$0xff]
      %v326 = vld [vmem:[%s196 + $0x2d8] sm:$0xf]
      %v327 = vld [vmem:[%s196 + $0x2dc] sm:$0xff]
      %v328 = vld [vmem:[%s196 + $0x2e4] sm:$0xf]
      %v329 = vld [vmem:[%s196 + $0x2e8] sm:$0xff]
      %v330 = vld [vmem:[%s196 + $0x2f0] sm:$0xf]
      %v331 = vld [vmem:[%s196 + $0x2f4] sm:$0xff]
      %v332 = vld [vmem:[%s196 + $0x2fc] sm:$0xf]
      %v333 = vld [vmem:[%s1] sm:$0xf]
      %v334 = vld [vmem:[%s1 + $0x4] sm:$0xf]
      %v335 = vld [vmem:[%s1 + $0x8] sm:$0xf]
      %v336 = vld [vmem:[%s1 + $0xc] sm:$0xf]
      %v337 = vld [vmem:[%s1 + $0x10] sm:$0xf]
      %v338 = vld [vmem:[%s1 + $0x14] sm:$0xf]
      %v339 = vld [vmem:[%s1 + $0x18] sm:$0xf]
      %v340 = vld [vmem:[%s1 + $0x1c] sm:$0xf]
      %v341 = vld [vmem:[%s1 + $0x20] sm:$0xf]
      %v342 = vld [vmem:[%s1 + $0x24] sm:$0xf]
      %v343 = vld [vmem:[%s1 + $0x28] sm:$0xf]
      %v344 = vld [vmem:[%s1 + $0x2c] sm:$0xf]
      %v345 = vld [vmem:[%s1 + $0x30] sm:$0xf]
      %v346 = vld [vmem:[%s1 + $0x34] sm:$0xf]
      %v347 = vld [vmem:[%s1 + $0x38] sm:$0xf]
      %v348 = vld [vmem:[%s1 + $0x3c] sm:$0xf]
      %v349 = vld [vmem:[%s1 + $0x40] sm:$0xf]
      %v350 = vld [vmem:[%s1 + $0x44] sm:$0xf]
      %v351 = vld [vmem:[%s1 + $0x48] sm:$0xf]
      %v352 = vld [vmem:[%s1 + $0x4c] sm:$0xf]
      %v353 = vld [vmem:[%s1 + $0x50] sm:$0xf]
      %v354 = vld [vmem:[%s1 + $0x54] sm:$0xf]
      %v355 = vld [vmem:[%s1 + $0x58] sm:$0xf]
      %v356 = vld [vmem:[%s1 + $0x5c] sm:$0xf]
      %v357 = vld [vmem:[%s1 + $0x60] sm:$0xf]
      %v358 = vld [vmem:[%s1 + $0x64] sm:$0xf]
      %v359 = vld [vmem:[%s1 + $0x68] sm:$0xf]
      %v360 = vld [vmem:[%s1 + $0x6c] sm:$0xf]
      %v361 = vld [vmem:[%s1 + $0x70] sm:$0xf]
      %v362 = vld [vmem:[%s1 + $0x74] sm:$0xf]
      %v363 = vld [vmem:[%s1 + $0x78] sm:$0xf]
      %v364 = vld [vmem:[%s1 + $0x7c] sm:$0xf]
      %v365 = vld [vmem:[%s1 + $0x80] sm:$0xf]
      %v366 = vld [vmem:[%s1 + $0x84] sm:$0xf]
      %v367 = vld [vmem:[%s1 + $0x88] sm:$0xf]
      %v368 = vld [vmem:[%s1 + $0x8c] sm:$0xf]
      %v497 = vunpack.c.l.b16 %v205
      %v498 = vunpack.c.h.b16 %v205
      %v499 = vunpack.c.l.b16 %v206
      %v500 = vunpack.c.l.b16 %v207
      %v501 = vunpack.c.h.b16 %v207
      %v502 = vunpack.c.l.b16 %v208
      %v503 = vunpack.c.l.b16 %v209
      %v504 = vunpack.c.h.b16 %v209
      %v505 = vunpack.c.l.b16 %v210
      %v506 = vunpack.c.l.b16 %v211
      %v507 = vunpack.c.h.b16 %v211
      %v508 = vunpack.c.l.b16 %v212
      %v509 = vunpack.c.l.b16 %v213
      %v510 = vunpack.c.h.b16 %v213
      %v511 = vunpack.c.l.b16 %v214
      %v512 = vunpack.c.l.b16 %v215
      %v513 = vunpack.c.h.b16 %v215
      %v514 = vunpack.c.l.b16 %v216
      %v515 = vunpack.c.l.b16 %v217
      %v516 = vunpack.c.h.b16 %v217
      %v517 = vunpack.c.l.b16 %v218
      %v518 = vunpack.c.l.b16 %v219
      %v519 = vunpack.c.h.b16 %v219
      %v520 = vunpack.c.l.b16 %v220
      %v521 = vunpack.c.l.b16 %v221
      %v522 = vunpack.c.h.b16 %v221
      %v523 = vunpack.c.l.b16 %v222
      %v524 = vunpack.c.l.b16 %v223
      %v525 = vunpack.c.h.b16 %v223
      %v526 = vunpack.c.l.b16 %v224
      %v527 = vunpack.c.l.b16 %v225
      %v528 = vunpack.c.h.b16 %v225
      %v529 = vunpack.c.l.b16 %v226
      %v530 = vunpack.c.l.b16 %v227
      %v531 = vunpack.c.h.b16 %v227
      %v532 = vunpack.c.l.b16 %v228
      %v533 = vunpack.c.l.b16 %v229
      %v534 = vunpack.c.h.b16 %v229
      %v535 = vunpack.c.l.b16 %v230
      %v536 = vunpack.c.l.b16 %v231
      %v537 = vunpack.c.h.b16 %v231
      %v538 = vunpack.c.l.b16 %v232
      %v539 = vunpack.c.l.b16 %v233
      %v540 = vunpack.c.h.b16 %v233
      %v541 = vunpack.c.l.b16 %v234
      %v542 = vunpack.c.l.b16 %v235
      %v543 = vunpack.c.h.b16 %v235
      %v544 = vunpack.c.l.b16 %v236
      %v545 = vunpack.c.l.b16 %v237
      %v546 = vunpack.c.h.b16 %v237
      %v547 = vunpack.c.l.b16 %v238
      %v548 = vunpack.c.l.b16 %v239
      %v549 = vunpack.c.h.b16 %v239
      %v550 = vunpack.c.l.b16 %v240
      %v551 = vunpack.c.l.b16 %v241
      %v552 = vunpack.c.h.b16 %v241
      %v553 = vunpack.c.l.b16 %v242
      %v554 = vunpack.c.l.b16 %v243
      %v555 = vunpack.c.h.b16 %v243
      %v556 = vunpack.c.l.b16 %v244
      %v557 = vunpack.c.l.b16 %v245
      %v558 = vunpack.c.h.b16 %v245
      %v559 = vunpack.c.l.b16 %v246
      %v560 = vunpack.c.l.b16 %v247
      %v561 = vunpack.c.h.b16 %v247
      %v562 = vunpack.c.l.b16 %v248
      %v563 = vunpack.c.l.b16 %v249
      %v564 = vunpack.c.h.b16 %v249
      %v565 = vunpack.c.l.b16 %v250
      %v566 = vunpack.c.l.b16 %v251
      %v567 = vunpack.c.h.b16 %v251
      %v568 = vunpack.c.l.b16 %v252
      %v569 = vunpack.c.l.b16 %v253
      %v570 = vunpack.c.h.b16 %v253
      %v571 = vunpack.c.l.b16 %v254
      %v572 = vunpack.c.l.b16 %v255
      %v573 = vunpack.c.h.b16 %v255
      %v574 = vunpack.c.l.b16 %v256
      %v575 = vunpack.c.l.b16 %v257
      %v576 = vunpack.c.h.b16 %v257
      %v577 = vunpack.c.l.b16 %v258
      %v578 = vunpack.c.l.b16 %v259
      %v579 = vunpack.c.h.b16 %v259
      %v580 = vunpack.c.l.b16 %v260
      %v581 = vunpack.c.l.b16 %v261
      %v582 = vunpack.c.h.b16 %v261
      %v583 = vunpack.c.l.b16 %v262
      %v584 = vunpack.c.l.b16 %v263
      %v585 = vunpack.c.h.b16 %v263
      %v586 = vunpack.c.l.b16 %v264
      %v587 = vunpack.c.l.b16 %v265
      %v588 = vunpack.c.h.b16 %v265
      %v589 = vunpack.c.l.b16 %v266
      %v590 = vunpack.c.l.b16 %v267
      %v591 = vunpack.c.h.b16 %v267
      %v592 = vunpack.c.l.b16 %v268
      %v593 = vunpack.c.l.b16 %v269
      %v594 = vunpack.c.h.b16 %v269
      %v595 = vunpack.c.l.b16 %v270
      %v596 = vunpack.c.l.b16 %v271
      %v597 = vunpack.c.h.b16 %v271
      %v598 = vunpack.c.l.b16 %v272
      %v599 = vunpack.c.l.b16 %v273
      %v600 = vunpack.c.h.b16 %v273
      %v601 = vunpack.c.l.b16 %v274
      %v602 = vunpack.c.l.b16 %v275
      %v603 = vunpack.c.h.b16 %v275
      %v604 = vunpack.c.l.b16 %v276
      %v605 = vunpack.c.l.b16 %v277
      %v606 = vunpack.c.h.b16 %v277
      %v607 = vunpack.c.l.b16 %v278
      %v608 = vunpack.c.l.b16 %v279
      %v609 = vunpack.c.h.b16 %v279
      %v610 = vunpack.c.l.b16 %v280
      %v611 = vunpack.c.l.b16 %v281
      %v612 = vunpack.c.h.b16 %v281
      %v613 = vunpack.c.l.b16 %v282
      %v614 = vunpack.c.l.b16 %v283
      %v615 = vunpack.c.h.b16 %v283
      %v616 = vunpack.c.l.b16 %v284
      %v617 = vunpack.c.l.b16 %v285
      %v618 = vunpack.c.h.b16 %v285
      %v619 = vunpack.c.l.b16 %v286
      %v620 = vunpack.c.l.b16 %v287
      %v621 = vunpack.c.h.b16 %v287
      %v622 = vunpack.c.l.b16 %v288
      %v623 = vunpack.c.l.b16 %v289
      %v624 = vunpack.c.h.b16 %v289
      %v625 = vunpack.c.l.b16 %v290
      %v626 = vunpack.c.l.b16 %v291
      %v627 = vunpack.c.h.b16 %v291
      %v628 = vunpack.c.l.b16 %v292
      %v629 = vunpack.c.l.b16 %v293
      %v630 = vunpack.c.h.b16 %v293
      %v631 = vunpack.c.l.b16 %v294
      %v632 = vunpack.c.l.b16 %v295
      %v633 = vunpack.c.h.b16 %v295
      %v634 = vunpack.c.l.b16 %v296
      %v635 = vunpack.c.l.b16 %v297
      %v636 = vunpack.c.h.b16 %v297
      %v637 = vunpack.c.l.b16 %v298
      %v638 = vunpack.c.l.b16 %v299
      %v639 = vunpack.c.h.b16 %v299
      %v640 = vunpack.c.l.b16 %v300
      %v641 = vunpack.c.l.b16 %v301
      %v642 = vunpack.c.h.b16 %v301
      %v643 = vunpack.c.l.b16 %v302
      %v644 = vunpack.c.l.b16 %v303
      %v645 = vunpack.c.h.b16 %v303
      %v646 = vunpack.c.l.b16 %v304
      %v647 = vunpack.c.l.b16 %v305
      %v648 = vunpack.c.h.b16 %v305
      %v649 = vunpack.c.l.b16 %v306
      %v650 = vunpack.c.l.b16 %v307
      %v651 = vunpack.c.h.b16 %v307
      %v652 = vunpack.c.l.b16 %v308
      %v653 = vunpack.c.l.b16 %v309
      %v654 = vunpack.c.h.b16 %v309
      %v655 = vunpack.c.l.b16 %v310
      %v656 = vunpack.c.l.b16 %v311
      %v657 = vunpack.c.h.b16 %v311
      %v658 = vunpack.c.l.b16 %v312
      %v659 = vunpack.c.l.b16 %v313
      %v660 = vunpack.c.h.b16 %v313
      %v661 = vunpack.c.l.b16 %v314
      %v662 = vunpack.c.l.b16 %v315
      %v663 = vunpack.c.h.b16 %v315
      %v664 = vunpack.c.l.b16 %v316
      %v665 = vunpack.c.l.b16 %v317
      %v666 = vunpack.c.h.b16 %v317
      %v667 = vunpack.c.l.b16 %v318
      %v668 = vunpack.c.l.b16 %v319
      %v669 = vunpack.c.h.b16 %v319
      %v670 = vunpack.c.l.b16 %v320
      %v671 = vunpack.c.l.b16 %v321
      %v672 = vunpack.c.h.b16 %v321
      %v673 = vunpack.c.l.b16 %v322
      %v674 = vunpack.c.l.b16 %v323
      %v675 = vunpack.c.h.b16 %v323
      %v676 = vunpack.c.l.b16 %v324
      %v677 = vunpack.c.l.b16 %v325
      %v678 = vunpack.c.h.b16 %v325
      %v679 = vunpack.c.l.b16 %v326
      %v680 = vunpack.c.l.b16 %v327
      %v681 = vunpack.c.h.b16 %v327
      %v682 = vunpack.c.l.b16 %v328
      %v683 = vunpack.c.l.b16 %v329
      %v684 = vunpack.c.h.b16 %v329
      %v685 = vunpack.c.l.b16 %v330
      %v686 = vunpack.c.l.b16 %v331
      %v687 = vunpack.c.h.b16 %v331
      %v688 = vunpack.c.l.b16 %v332
      %v689 = vpack.c.b16 %v500, %v497
      %v690 = vpack.c.b16 %v501, %v498
      %v691 = vpack.c.b16 %v502, %v499
      %v692 = vpack.c.b16 %v506, %v503
      %v693 = vpack.c.b16 %v507, %v504
      %v694 = vpack.c.b16 %v508, %v505
      %v695 = vpack.c.b16 %v512, %v509
      %v696 = vpack.c.b16 %v513, %v510
      %v697 = vpack.c.b16 %v514, %v511
      %v698 = vpack.c.b16 %v518, %v515
      %v699 = vpack.c.b16 %v519, %v516
      %v700 = vpack.c.b16 %v520, %v517
      %v701 = vpack.c.b16 %v524, %v521
      %v702 = vpack.c.b16 %v525, %v522
      %v703 = vpack.c.b16 %v526, %v523
      %v704 = vpack.c.b16 %v530, %v527
      %v705 = vpack.c.b16 %v531, %v528
      %v706 = vpack.c.b16 %v532, %v529
      %v707 = vpack.c.b16 %v536, %v533
      %v708 = vpack.c.b16 %v537, %v534
      %v709 = vpack.c.b16 %v538, %v535
      %v710 = vpack.c.b16 %v542, %v539
      %v711 = vpack.c.b16 %v543, %v540
      %v712 = vpack.c.b16 %v544, %v541
      %v713 = vpack.c.b16 %v548, %v545
      %v714 = vpack.c.b16 %v549, %v546
      %v715 = vpack.c.b16 %v550, %v547
      %v716 = vpack.c.b16 %v554, %v551
      %v717 = vpack.c.b16 %v555, %v552
      %v718 = vpack.c.b16 %v556, %v553
      %v719 = vpack.c.b16 %v560, %v557
      %v720 = vpack.c.b16 %v561, %v558
      %v721 = vpack.c.b16 %v562, %v559
      %v722 = vpack.c.b16 %v566, %v563
      %v723 = vpack.c.b16 %v567, %v564
      %v724 = vpack.c.b16 %v568, %v565
      %v725 = vpack.c.b16 %v572, %v569
      %v726 = vpack.c.b16 %v573, %v570
      %v727 = vpack.c.b16 %v574, %v571
      %v728 = vpack.c.b16 %v578, %v575
      %v729 = vpack.c.b16 %v579, %v576
      %v730 = vpack.c.b16 %v580, %v577
      %v731 = vpack.c.b16 %v584, %v581
      %v732 = vpack.c.b16 %v585, %v582
      %v733 = vpack.c.b16 %v586, %v583
      %v734 = vpack.c.b16 %v590, %v587
      %v735 = vpack.c.b16 %v591, %v588
      %v736 = vpack.c.b16 %v592, %v589
      %v737 = vpack.c.b16 %v596, %v593
      %v738 = vpack.c.b16 %v597, %v594
      %v739 = vpack.c.b16 %v598, %v595
      %v740 = vpack.c.b16 %v602, %v599
      %v741 = vpack.c.b16 %v603, %v600
      %v742 = vpack.c.b16 %v604, %v601
      %v743 = vpack.c.b16 %v608, %v605
      %v744 = vpack.c.b16 %v609, %v606
      %v745 = vpack.c.b16 %v610, %v607
      %v746 = vpack.c.b16 %v614, %v611
      %v747 = vpack.c.b16 %v615, %v612
      %v748 = vpack.c.b16 %v616, %v613
      %v749 = vpack.c.b16 %v620, %v617
      %v750 = vpack.c.b16 %v621, %v618
      %v751 = vpack.c.b16 %v622, %v619
      %v752 = vpack.c.b16 %v626, %v623
      %v753 = vpack.c.b16 %v627, %v624
      %v754 = vpack.c.b16 %v628, %v625
      %v755 = vpack.c.b16 %v632, %v629
      %v756 = vpack.c.b16 %v633, %v630
      %v757 = vpack.c.b16 %v634, %v631
      %v758 = vpack.c.b16 %v638, %v635
      %v759 = vpack.c.b16 %v639, %v636
      %v760 = vpack.c.b16 %v640, %v637
      %v761 = vpack.c.b16 %v644, %v641
      %v762 = vpack.c.b16 %v645, %v642
      %v763 = vpack.c.b16 %v646, %v643
      %v764 = vpack.c.b16 %v650, %v647
      %v765 = vpack.c.b16 %v651, %v648
      %v766 = vpack.c.b16 %v652, %v649
      %v767 = vpack.c.b16 %v656, %v653
      %v768 = vpack.c.b16 %v657, %v654
      %v769 = vpack.c.b16 %v658, %v655
      %v770 = vpack.c.b16 %v662, %v659
      %v771 = vpack.c.b16 %v663, %v660
      %v772 = vpack.c.b16 %v664, %v661
      %v773 = vpack.c.b16 %v668, %v665
      %v774 = vpack.c.b16 %v669, %v666
      %v775 = vpack.c.b16 %v670, %v667
      %v776 = vpack.c.b16 %v674, %v671
      %v777 = vpack.c.b16 %v675, %v672
      %v778 = vpack.c.b16 %v676, %v673
      %v779 = vpack.c.b16 %v680, %v677
      %v780 = vpack.c.b16 %v681, %v678
      %v781 = vpack.c.b16 %v682, %v679
      %v782 = vpack.c.b16 %v686, %v683
      %v783 = vpack.c.b16 %v687, %v684
      %v784 = vpack.c.b16 %v688, %v685
      %v885 = vunpack.c.l.b16 %v333
      %v886 = vunpack.c.l.b16 %v334
      %v887 = vunpack.c.l.b16 %v335
      %v888 = vunpack.c.l.b16 %v336
      %v889 = vunpack.c.l.b16 %v337
      %v890 = vunpack.c.l.b16 %v338
      %v891 = vunpack.c.l.b16 %v339
      %v892 = vunpack.c.l.b16 %v340
      %v893 = vunpack.c.l.b16 %v341
      %v894 = vunpack.c.l.b16 %v342
      %v895 = vunpack.c.l.b16 %v343
      %v896 = vunpack.c.l.b16 %v344
      %v897 = vunpack.c.l.b16 %v345
      %v898 = vunpack.c.l.b16 %v346
      %v899 = vunpack.c.l.b16 %v347
      %v900 = vunpack.c.l.b16 %v348
      %v901 = vunpack.c.l.b16 %v349
      %v902 = vunpack.c.l.b16 %v350
      %v903 = vunpack.c.l.b16 %v351
      %v904 = vunpack.c.l.b16 %v352
      %v905 = vunpack.c.l.b16 %v353
      %v906 = vunpack.c.l.b16 %v354
      %v907 = vunpack.c.l.b16 %v355
      %v908 = vunpack.c.l.b16 %v356
      %v909 = vunpack.c.l.b16 %v357
      %v910 = vunpack.c.l.b16 %v358
      %v911 = vunpack.c.l.b16 %v359
      %v912 = vunpack.c.l.b16 %v360
      %v913 = vunpack.c.l.b16 %v361
      %v914 = vunpack.c.l.b16 %v362
      %v915 = vunpack.c.l.b16 %v363
      %v916 = vunpack.c.l.b16 %v364
      %v917 = vunpack.c.l.b16 %v365
      %v918 = vunpack.c.l.b16 %v366
      %v919 = vunpack.c.l.b16 %v367
      %v920 = vunpack.c.l.b16 %v368
      %v921 = vpack.c.b16 %v886, %v885
      %v922 = vpack.c.b16 %v888, %v887
      %v923 = vpack.c.b16 %v890, %v889
      %v924 = vpack.c.b16 %v892, %v891
      %v925 = vpack.c.b16 %v894, %v893
      %v926 = vpack.c.b16 %v896, %v895
      %v927 = vpack.c.b16 %v898, %v897
      %v928 = vpack.c.b16 %v900, %v899
      %v929 = vpack.c.b16 %v902, %v901
      %v930 = vpack.c.b16 %v904, %v903
      %v931 = vpack.c.b16 %v906, %v905
      %v932 = vpack.c.b16 %v908, %v907
      %v933 = vpack.c.b16 %v910, %v909
      %v934 = vpack.c.b16 %v912, %v911
      %v935 = vpack.c.b16 %v914, %v913
      %v936 = vpack.c.b16 %v916, %v915
      %v937 = vpack.c.b16 %v918, %v917
      %v938 = vpack.c.b16 %v920, %v919
      %vm957 = vcmask 261120
      %v959 = vsel %vm957, %v691, 0
      %v962 = vsel %vm957, %v694, 0
      %v965 = vsel %vm957, %v697, 0
      %v968 = vsel %vm957, %v700, 0
      %v971 = vsel %vm957, %v703, 0
      %v974 = vsel %vm957, %v706, 0
      %v977 = vsel %vm957, %v709, 0
      %v980 = vsel %vm957, %v712, 0
      %v983 = vsel %vm957, %v715, 0
      %v986 = vsel %vm957, %v718, 0
      %v989 = vsel %vm957, %v721, 0
      %v992 = vsel %vm957, %v724, 0
      %v995 = vsel %vm957, %v727, 0
      %v998 = vsel %vm957, %v730, 0
      %v1001 = vsel %vm957, %v733, 0
      %v1004 = vsel %vm957, %v736, 0
      %v1007 = vsel %vm957, %v739, 0
      %v1010 = vsel %vm957, %v742, 0
      %v1013 = vsel %vm957, %v745, 0
      %v1016 = vsel %vm957, %v748, 0
      %v1019 = vsel %vm957, %v751, 0
      %v1022 = vsel %vm957, %v754, 0
      %v1025 = vsel %vm957, %v757, 0
      %v1028 = vsel %vm957, %v760, 0
      %v1031 = vsel %vm957, %v763, 0
      %v1034 = vsel %vm957, %v766, 0
      %v1037 = vsel %vm957, %v769, 0
      %v1040 = vsel %vm957, %v772, 0
      %v1043 = vsel %vm957, %v775, 0
      %v1046 = vsel %vm957, %v778, 0
      %v1049 = vsel %vm957, %v781, 0
      %v1052 = vsel %vm957, %v784, 0
      %1054 = vmatprep.subr.bf16.mxu0 0
      %1055 = vmatpush1.bf16.msra.mxu0 %v928
      %1056 = vmatprep.subr.bf16.mxu0 0
      %1057 = vmatpush1.bf16.msra.mxu0 %v927
      %1058 = vmatprep.subr.bf16.mxu0 0
      %1059 = vmatpush1.bf16.msra.mxu0 %v926
      %1060 = vmatprep.subr.bf16.mxu0 0
      %1061 = vmatpush1.bf16.msra.mxu0 %v925
      %1062 = vmatprep.subr.bf16.mxu0 0
      %1063 = vmatpush1.bf16.msra.mxu0 %v924
      %1064 = vmatprep.subr.bf16.mxu0 0
      %1065 = vmatpush1.bf16.msra.mxu0 %v923
      %1066 = vmatprep.subr.bf16.mxu0 0
      %1067 = vmatpush1.bf16.msra.mxu0 %v922
      %1068 = vmatprep.subr.bf16.mxu0 0
      %1069 = vmatpush1.bf16.msra.mxu0 %v921
      %1070 = vmatprep.subr.bf16.mxu0 0
      %1071 = vmatpush2.bf16.msra.mxu0 %v936
      %1072 = vmatprep.subr.bf16.mxu0 0
      %1073 = vmatpush2.bf16.msra.mxu0 %v935
      %1074 = vmatprep.subr.bf16.mxu0 0
      %1075 = vmatpush2.bf16.msra.mxu0 %v934
      %1076 = vmatprep.subr.bf16.mxu0 0
      %1077 = vmatpush2.bf16.msra.mxu0 %v933
      %1078 = vmatprep.subr.bf16.mxu0 0
      %1079 = vmatpush2.bf16.msra.mxu0 %v932
      %1080 = vmatprep.subr.bf16.mxu0 0
      %1081 = vmatpush2.bf16.msra.mxu0 %v931
      %1082 = vmatprep.subr.bf16.mxu0 0
      %1083 = vmatpush2.bf16.msra.mxu0 %v930
      %1084 = vmatprep.subr.bf16.mxu0 0
      %1085 = vmatpush2.bf16.msra.mxu0 %v929
      %1086 = vmatprep.mubr.bf16.mxu0 %v690
      %1087 = vmatmul.mubr.bf16.gmra.mxu0 %v689
      %v1088 = vpop.f32.mrf.mxu0
      %v1089 = vadd.f32 0.0, %v1088
      %v1090 = vpop.f32.mrf.mxu0
      %v1091 = vpop.f32.mrf.mxu0
      %v1092 = vadd.f32 0.0, %v1091
      %v1093 = vpop.f32.mrf.mxu0
      %1094 = vmatprep.mubr.bf16.mxu0 %v693
      %1095 = vmatmul.mubr.bf16.gmra.mxu0 %v692
      %v1096 = vpop.f32.mrf.mxu0
      %v1097 = vadd.f32 0.0, %v1096
      %v1098 = vpop.f32.mrf.mxu0
      %v1099 = vpop.f32.mrf.mxu0
      %v1100 = vadd.f32 0.0, %v1099
      %v1101 = vpop.f32.mrf.mxu0
      %1102 = vmatprep.mubr.bf16.mxu0 %v696
      %1103 = vmatmul.mubr.bf16.gmra.mxu0 %v695
      %v1104 = vpop.f32.mrf.mxu0
      %v1105 = vadd.f32 0.0, %v1104
      %v1106 = vpop.f32.mrf.mxu0
      %v1107 = vpop.f32.mrf.mxu0
      %v1108 = vadd.f32 0.0, %v1107
      %v1109 = vpop.f32.mrf.mxu0
      %1110 = vmatprep.mubr.bf16.mxu0 %v699
      %1111 = vmatmul.mubr.bf16.gmra.mxu0 %v698
      %v1112 = vpop.f32.mrf.mxu0
      %v1113 = vadd.f32 0.0, %v1112
      %v1114 = vpop.f32.mrf.mxu0
      %v1115 = vpop.f32.mrf.mxu0
      %v1116 = vadd.f32 0.0, %v1115
      %v1117 = vpop.f32.mrf.mxu0
      %1118 = vmatprep.mubr.bf16.mxu0 %v702
      %1119 = vmatmul.mubr.bf16.gmra.mxu0 %v701
      %v1120 = vpop.f32.mrf.mxu0
      %v1121 = vadd.f32 0.0, %v1120
      %v1122 = vpop.f32.mrf.mxu0
      %v1123 = vpop.f32.mrf.mxu0
      %v1124 = vadd.f32 0.0, %v1123
      %v1125 = vpop.f32.mrf.mxu0
      %1126 = vmatprep.mubr.bf16.mxu0 %v705
      %1127 = vmatmul.mubr.bf16.gmra.mxu0 %v704
      %v1128 = vpop.f32.mrf.mxu0
      %v1129 = vadd.f32 0.0, %v1128
      %v1130 = vpop.f32.mrf.mxu0
      %v1131 = vpop.f32.mrf.mxu0
      %v1132 = vadd.f32 0.0, %v1131
      %v1133 = vpop.f32.mrf.mxu0
      %1134 = vmatprep.mubr.bf16.mxu0 %v708
      %1135 = vmatmul.mubr.bf16.gmra.mxu0 %v707
      %v1136 = vpop.f32.mrf.mxu0
      %v1137 = vadd.f32 0.0, %v1136
      %v1138 = vpop.f32.mrf.mxu0
      %v1139 = vpop.f32.mrf.mxu0
      %v1140 = vadd.f32 0.0, %v1139
      %v1141 = vpop.f32.mrf.mxu0
      %1142 = vmatprep.mubr.bf16.mxu0 %v711
      %1143 = vmatmul.mubr.bf16.gmra.mxu0 %v710
      %v1144 = vpop.f32.mrf.mxu0
      %v1145 = vadd.f32 0.0, %v1144
      %v1146 = vpop.f32.mrf.mxu0
      %v1147 = vpop.f32.mrf.mxu0
      %v1148 = vadd.f32 0.0, %v1147
      %v1149 = vpop.f32.mrf.mxu0
      %1150 = vmatprep.mubr.bf16.mxu0 %v714
      %1151 = vmatmul.mubr.bf16.gmra.mxu0 %v713
      %v1152 = vpop.f32.mrf.mxu0
      %v1153 = vadd.f32 0.0, %v1152
      %v1154 = vpop.f32.mrf.mxu0
      %v1155 = vpop.f32.mrf.mxu0
      %v1156 = vadd.f32 0.0, %v1155
      %v1157 = vpop.f32.mrf.mxu0
      %1158 = vmatprep.mubr.bf16.mxu0 %v717
      %1159 = vmatmul.mubr.bf16.gmra.mxu0 %v716
      %v1160 = vpop.f32.mrf.mxu0
      %v1161 = vadd.f32 0.0, %v1160
      %v1162 = vpop.f32.mrf.mxu0
      %v1163 = vpop.f32.mrf.mxu0
      %v1164 = vadd.f32 0.0, %v1163
      %v1165 = vpop.f32.mrf.mxu0
      %1166 = vmatprep.mubr.bf16.mxu0 %v720
      %1167 = vmatmul.mubr.bf16.gmra.mxu0 %v719
      %v1168 = vpop.f32.mrf.mxu0
      %v1169 = vadd.f32 0.0, %v1168
      %v1170 = vpop.f32.mrf.mxu0
      %v1171 = vpop.f32.mrf.mxu0
      %v1172 = vadd.f32 0.0, %v1171
      %v1173 = vpop.f32.mrf.mxu0
      %1174 = vmatprep.mubr.bf16.mxu0 %v723
      %1175 = vmatmul.mubr.bf16.gmra.mxu0 %v722
      %v1176 = vpop.f32.mrf.mxu0
      %v1177 = vadd.f32 0.0, %v1176
      %v1178 = vpop.f32.mrf.mxu0
      %v1179 = vpop.f32.mrf.mxu0
      %v1180 = vadd.f32 0.0, %v1179
      %v1181 = vpop.f32.mrf.mxu0
      %1182 = vmatprep.mubr.bf16.mxu0 %v726
      %1183 = vmatmul.mubr.bf16.gmra.mxu0 %v725
      %v1184 = vpop.f32.mrf.mxu0
      %v1185 = vadd.f32 0.0, %v1184
      %v1186 = vpop.f32.mrf.mxu0
      %v1187 = vpop.f32.mrf.mxu0
      %v1188 = vadd.f32 0.0, %v1187
      %v1189 = vpop.f32.mrf.mxu0
      %1190 = vmatprep.mubr.bf16.mxu0 %v729
      %1191 = vmatmul.mubr.bf16.gmra.mxu0 %v728
      %v1192 = vpop.f32.mrf.mxu0
      %v1193 = vadd.f32 0.0, %v1192
      %v1194 = vpop.f32.mrf.mxu0
      %v1195 = vpop.f32.mrf.mxu0
      %v1196 = vadd.f32 0.0, %v1195
      %v1197 = vpop.f32.mrf.mxu0
      %1198 = vmatprep.mubr.bf16.mxu0 %v732
      %1199 = vmatmul.mubr.bf16.gmra.mxu0 %v731
      %v1200 = vpop.f32.mrf.mxu0
      %v1201 = vadd.f32 0.0, %v1200
      %v1202 = vpop.f32.mrf.mxu0
      %v1203 = vpop.f32.mrf.mxu0
      %v1204 = vadd.f32 0.0, %v1203
      %v1205 = vpop.f32.mrf.mxu0
      %1206 = vmatprep.mubr.bf16.mxu0 %v735
      %1207 = vmatmul.mubr.bf16.gmra.mxu0 %v734
      %v1208 = vpop.f32.mrf.mxu0
      %v1209 = vadd.f32 0.0, %v1208
      %v1210 = vpop.f32.mrf.mxu0
      %v1211 = vpop.f32.mrf.mxu0
      %v1212 = vadd.f32 0.0, %v1211
      %v1213 = vpop.f32.mrf.mxu0
      %1214 = vmatprep.mubr.bf16.mxu0 %v738
      %1215 = vmatmul.mubr.bf16.gmra.mxu0 %v737
      %v1216 = vpop.f32.mrf.mxu0
      %v1217 = vadd.f32 0.0, %v1216
      %v1218 = vpop.f32.mrf.mxu0
      %v1219 = vpop.f32.mrf.mxu0
      %v1220 = vadd.f32 0.0, %v1219
      %v1221 = vpop.f32.mrf.mxu0
      %1222 = vmatprep.mubr.bf16.mxu0 %v741
      %1223 = vmatmul.mubr.bf16.gmra.mxu0 %v740
      %v1224 = vpop.f32.mrf.mxu0
      %v1225 = vadd.f32 0.0, %v1224
      %v1226 = vpop.f32.mrf.mxu0
      %v1227 = vpop.f32.mrf.mxu0
      %v1228 = vadd.f32 0.0, %v1227
      %v1229 = vpop.f32.mrf.mxu0
      %1230 = vmatprep.mubr.bf16.mxu0 %v744
      %1231 = vmatmul.mubr.bf16.gmra.mxu0 %v743
      %v1232 = vpop.f32.mrf.mxu0
      %v1233 = vadd.f32 0.0, %v1232
      %v1234 = vpop.f32.mrf.mxu0
      %v1235 = vpop.f32.mrf.mxu0
      %v1236 = vadd.f32 0.0, %v1235
      %v1237 = vpop.f32.mrf.mxu0
      %1238 = vmatprep.mubr.bf16.mxu0 %v747
      %1239 = vmatmul.mubr.bf16.gmra.mxu0 %v746
      %v1240 = vpop.f32.mrf.mxu0
      %v1241 = vadd.f32 0.0, %v1240
      %v1242 = vpop.f32.mrf.mxu0
      %v1243 = vpop.f32.mrf.mxu0
      %v1244 = vadd.f32 0.0, %v1243
      %v1245 = vpop.f32.mrf.mxu0
      %1246 = vmatprep.mubr.bf16.mxu0 %v750
      %1247 = vmatmul.mubr.bf16.gmra.mxu0 %v749
      %v1248 = vpop.f32.mrf.mxu0
      %v1249 = vadd.f32 0.0, %v1248
      %v1250 = vpop.f32.mrf.mxu0
      %v1251 = vpop.f32.mrf.mxu0
      %v1252 = vadd.f32 0.0, %v1251
      %v1253 = vpop.f32.mrf.mxu0
      %1254 = vmatprep.mubr.bf16.mxu0 %v753
      %1255 = vmatmul.mubr.bf16.gmra.mxu0 %v752
      %v1256 = vpop.f32.mrf.mxu0
      %v1257 = vadd.f32 0.0, %v1256
      %v1258 = vpop.f32.mrf.mxu0
      %v1259 = vpop.f32.mrf.mxu0
      %v1260 = vadd.f32 0.0, %v1259
      %v1261 = vpop.f32.mrf.mxu0
      %1262 = vmatprep.mubr.bf16.mxu0 %v756
      %1263 = vmatmul.mubr.bf16.gmra.mxu0 %v755
      %v1264 = vpop.f32.mrf.mxu0
      %v1265 = vadd.f32 0.0, %v1264
      %v1266 = vpop.f32.mrf.mxu0
      %v1267 = vpop.f32.mrf.mxu0
      %v1268 = vadd.f32 0.0, %v1267
      %v1269 = vpop.f32.mrf.mxu0
      %1270 = vmatprep.mubr.bf16.mxu0 %v759
      %1271 = vmatmul.mubr.bf16.gmra.mxu0 %v758
      %v1272 = vpop.f32.mrf.mxu0
      %v1273 = vadd.f32 0.0, %v1272
      %v1274 = vpop.f32.mrf.mxu0
      %v1275 = vpop.f32.mrf.mxu0
      %v1276 = vadd.f32 0.0, %v1275
      %v1277 = vpop.f32.mrf.mxu0
      %1278 = vmatprep.mubr.bf16.mxu0 %v762
      %1279 = vmatmul.mubr.bf16.gmra.mxu0 %v761
      %v1280 = vpop.f32.mrf.mxu0
      %v1281 = vadd.f32 0.0, %v1280
      %v1282 = vpop.f32.mrf.mxu0
      %v1283 = vpop.f32.mrf.mxu0
      %v1284 = vadd.f32 0.0, %v1283
      %v1285 = vpop.f32.mrf.mxu0
      %1286 = vmatprep.mubr.bf16.mxu0 %v765
      %1287 = vmatmul.mubr.bf16.gmra.mxu0 %v764
      %v1288 = vpop.f32.mrf.mxu0
      %v1289 = vadd.f32 0.0, %v1288
      %v1290 = vpop.f32.mrf.mxu0
      %v1291 = vpop.f32.mrf.mxu0
      %v1292 = vadd.f32 0.0, %v1291
      %v1293 = vpop.f32.mrf.mxu0
      %1294 = vmatprep.mubr.bf16.mxu0 %v768
      %1295 = vmatmul.mubr.bf16.gmra.mxu0 %v767
      %v1296 = vpop.f32.mrf.mxu0
      %v1297 = vadd.f32 0.0, %v1296
      %v1298 = vpop.f32.mrf.mxu0
      %v1299 = vpop.f32.mrf.mxu0
      %v1300 = vadd.f32 0.0, %v1299
      %v1301 = vpop.f32.mrf.mxu0
      %1302 = vmatprep.mubr.bf16.mxu0 %v771
      %1303 = vmatmul.mubr.bf16.gmra.mxu0 %v770
      %v1304 = vpop.f32.mrf.mxu0
      %v1305 = vadd.f32 0.0, %v1304
      %v1306 = vpop.f32.mrf.mxu0
      %v1307 = vpop.f32.mrf.mxu0
      %v1308 = vadd.f32 0.0, %v1307
      %v1309 = vpop.f32.mrf.mxu0
      %1310 = vmatprep.mubr.bf16.mxu0 %v774
      %1311 = vmatmul.mubr.bf16.gmra.mxu0 %v773
      %v1312 = vpop.f32.mrf.mxu0
      %v1313 = vadd.f32 0.0, %v1312
      %v1314 = vpop.f32.mrf.mxu0
      %v1315 = vpop.f32.mrf.mxu0
      %v1316 = vadd.f32 0.0, %v1315
      %v1317 = vpop.f32.mrf.mxu0
      %1318 = vmatprep.mubr.bf16.mxu0 %v777
      %1319 = vmatmul.mubr.bf16.gmra.mxu0 %v776
      %v1320 = vpop.f32.mrf.mxu0
      %v1321 = vadd.f32 0.0, %v1320
      %v1322 = vpop.f32.mrf.mxu0
      %v1323 = vpop.f32.mrf.mxu0
      %v1324 = vadd.f32 0.0, %v1323
      %v1325 = vpop.f32.mrf.mxu0
      %1326 = vmatprep.mubr.bf16.mxu0 %v780
      %1327 = vmatmul.mubr.bf16.gmra.mxu0 %v779
      %v1328 = vpop.f32.mrf.mxu0
      %v1329 = vadd.f32 0.0, %v1328
      %v1330 = vpop.f32.mrf.mxu0
      %v1331 = vpop.f32.mrf.mxu0
      %v1332 = vadd.f32 0.0, %v1331
      %v1333 = vpop.f32.mrf.mxu0
      %1334 = vmatprep.mubr.bf16.mxu0 %v783
      %1335 = vmatmul.mubr.bf16.gmra.mxu0 %v782
      %v1336 = vpop.f32.mrf.mxu0
      %v1337 = vadd.f32 0.0, %v1336
      %v1338 = vpop.f32.mrf.mxu0
      %v1339 = vpop.f32.mrf.mxu0
      %v1340 = vadd.f32 0.0, %v1339
      %v1341 = vpop.f32.mrf.mxu0
      %1342 = vdwg.mxu0
      %1343 = vmatprep.subr.bf16.mxu0 0
      %1344 = vmatpush1.bf16.msra.mxu0 0
      %1345 = vmatprep.subr.bf16.mxu0 0
      %1346 = vmatpush1.bf16.msra.mxu0 0
      %1347 = vmatprep.subr.bf16.mxu0 0
      %1348 = vmatpush1.bf16.msra.mxu0 0
      %1349 = vmatprep.subr.bf16.mxu0 0
      %1350 = vmatpush1.bf16.msra.mxu0 0
      %1351 = vmatprep.subr.bf16.mxu0 0
      %1352 = vmatpush1.bf16.msra.mxu0 0
      %1353 = vmatprep.subr.bf16.mxu0 0
      %1354 = vmatpush1.bf16.msra.mxu0 0
      %1355 = vmatprep.subr.bf16.mxu0 0
      %1356 = vmatpush1.bf16.msra.mxu0 %v938
      %1357 = vmatprep.subr.bf16.mxu0 0
      %1358 = vmatpush1.bf16.msra.mxu0 %v937
      %1359 = vmatprep.subr.bf16.mxu0 0
      %1360 = vmatpush2.bf16.msra.mxu0 0
      %1361 = vmatprep.subr.bf16.mxu0 0
      %1362 = vmatpush2.bf16.msra.mxu0 0
      %1363 = vmatprep.subr.bf16.mxu0 0
      %1364 = vmatpush2.bf16.msra.mxu0 0
      %1365 = vmatprep.subr.bf16.mxu0 0
      %1366 = vmatpush2.bf16.msra.mxu0 0
      %1367 = vmatprep.subr.bf16.mxu0 0
      %1368 = vmatpush2.bf16.msra.mxu0 0
      %1369 = vmatprep.subr.bf16.mxu0 0
      %1370 = vmatpush2.bf16.msra.mxu0 0
      %1371 = vmatprep.subr.bf16.mxu0 0
      %1372 = vmatpush2.bf16.msra.mxu0 0
      %1373 = vmatprep.subr.bf16.mxu0 0
      %1374 = vmatpush2.bf16.msra.mxu0 0
      %1375 = vmatprep.mubr.bf16.mxu0 0
      %1376 = vmatmul.mubr.bf16.gmra.mxu0 %v959
      %v1377 = vpop.f32.mrf.mxu0
      %v1378 = vadd.f32 %v1089, %v1377
      %v1379 = vpop.f32.mrf.mxu0
      %v1380 = vpop.f32.mrf.mxu0
      %v1381 = vadd.f32 %v1092, %v1380
      %v1382 = vpop.f32.mrf.mxu0
      %1383 = vmatprep.mubr.bf16.mxu0 0
      %1384 = vmatmul.mubr.bf16.gmra.mxu0 %v962
      %v1385 = vpop.f32.mrf.mxu0
      %v1386 = vadd.f32 %v1097, %v1385
      %v1387 = vpop.f32.mrf.mxu0
      %v1388 = vpop.f32.mrf.mxu0
      %v1389 = vadd.f32 %v1100, %v1388
      %v1390 = vpop.f32.mrf.mxu0
      %1391 = vmatprep.mubr.bf16.mxu0 0
      %1392 = vmatmul.mubr.bf16.gmra.mxu0 %v965
      %v1393 = vpop.f32.mrf.mxu0
      %v1394 = vadd.f32 %v1105, %v1393
      %v1395 = vpop.f32.mrf.mxu0
      %v1396 = vpop.f32.mrf.mxu0
      %v1397 = vadd.f32 %v1108, %v1396
      %v1398 = vpop.f32.mrf.mxu0
      %1399 = vmatprep.mubr.bf16.mxu0 0
      %1400 = vmatmul.mubr.bf16.gmra.mxu0 %v968
      %v1401 = vpop.f32.mrf.mxu0
      %v1402 = vadd.f32 %v1113, %v1401
      %v1403 = vpop.f32.mrf.mxu0
      %v1404 = vpop.f32.mrf.mxu0
      %v1405 = vadd.f32 %v1116, %v1404
      %v1406 = vpop.f32.mrf.mxu0
      %1407 = vmatprep.mubr.bf16.mxu0 0
      %1408 = vmatmul.mubr.bf16.gmra.mxu0 %v971
      %v1409 = vpop.f32.mrf.mxu0
      %v1410 = vadd.f32 %v1121, %v1409
      %v1411 = vpop.f32.mrf.mxu0
      %v1412 = vpop.f32.mrf.mxu0
      %v1413 = vadd.f32 %v1124, %v1412
      %v1414 = vpop.f32.mrf.mxu0
      %1415 = vmatprep.mubr.bf16.mxu0 0
      %1416 = vmatmul.mubr.bf16.gmra.mxu0 %v974
      %v1417 = vpop.f32.mrf.mxu0
      %v1418 = vadd.f32 %v1129, %v1417
      %v1419 = vpop.f32.mrf.mxu0
      %v1420 = vpop.f32.mrf.mxu0
      %v1421 = vadd.f32 %v1132, %v1420
      %v1422 = vpop.f32.mrf.mxu0
      %1423 = vmatprep.mubr.bf16.mxu0 0
      %1424 = vmatmul.mubr.bf16.gmra.mxu0 %v977
      %v1425 = vpop.f32.mrf.mxu0
      %v1426 = vadd.f32 %v1137, %v1425
      %v1427 = vpop.f32.mrf.mxu0
      %v1428 = vpop.f32.mrf.mxu0
      %v1429 = vadd.f32 %v1140, %v1428
      %v1430 = vpop.f32.mrf.mxu0
      %1431 = vmatprep.mubr.bf16.mxu0 0
      %1432 = vmatmul.mubr.bf16.gmra.mxu0 %v980
      %v1433 = vpop.f32.mrf.mxu0
      %v1434 = vadd.f32 %v1145, %v1433
      %v1435 = vpop.f32.mrf.mxu0
      %v1436 = vpop.f32.mrf.mxu0
      %v1437 = vadd.f32 %v1148, %v1436
      %v1438 = vpop.f32.mrf.mxu0
      %1439 = vmatprep.mubr.bf16.mxu0 0
      %1440 = vmatmul.mubr.bf16.gmra.mxu0 %v983
      %v1441 = vpop.f32.mrf.mxu0
      %v1442 = vadd.f32 %v1153, %v1441
      %v1443 = vpop.f32.mrf.mxu0
      %v1444 = vpop.f32.mrf.mxu0
      %v1445 = vadd.f32 %v1156, %v1444
      %v1446 = vpop.f32.mrf.mxu0
      %1447 = vmatprep.mubr.bf16.mxu0 0
      %1448 = vmatmul.mubr.bf16.gmra.mxu0 %v986
      %v1449 = vpop.f32.mrf.mxu0
      %v1450 = vadd.f32 %v1161, %v1449
      %v1451 = vpop.f32.mrf.mxu0
      %v1452 = vpop.f32.mrf.mxu0
      %v1453 = vadd.f32 %v1164, %v1452
      %v1454 = vpop.f32.mrf.mxu0
      %1455 = vmatprep.mubr.bf16.mxu0 0
      %1456 = vmatmul.mubr.bf16.gmra.mxu0 %v989
      %v1457 = vpop.f32.mrf.mxu0
      %v1458 = vadd.f32 %v1169, %v1457
      %v1459 = vpop.f32.mrf.mxu0
      %v1460 = vpop.f32.mrf.mxu0
      %v1461 = vadd.f32 %v1172, %v1460
      %v1462 = vpop.f32.mrf.mxu0
      %1463 = vmatprep.mubr.bf16.mxu0 0
      %1464 = vmatmul.mubr.bf16.gmra.mxu0 %v992
      %v1465 = vpop.f32.mrf.mxu0
      %v1466 = vadd.f32 %v1177, %v1465
      %v1467 = vpop.f32.mrf.mxu0
      %v1468 = vpop.f32.mrf.mxu0
      %v1469 = vadd.f32 %v1180, %v1468
      %v1470 = vpop.f32.mrf.mxu0
      %1471 = vmatprep.mubr.bf16.mxu0 0
      %1472 = vmatmul.mubr.bf16.gmra.mxu0 %v995
      %v1473 = vpop.f32.mrf.mxu0
      %v1474 = vadd.f32 %v1185, %v1473
      %v1475 = vpop.f32.mrf.mxu0
      %v1476 = vpop.f32.mrf.mxu0
      %v1477 = vadd.f32 %v1188, %v1476
      %v1478 = vpop.f32.mrf.mxu0
      %1479 = vmatprep.mubr.bf16.mxu0 0
      %1480 = vmatmul.mubr.bf16.gmra.mxu0 %v998
      %v1481 = vpop.f32.mrf.mxu0
      %v1482 = vadd.f32 %v1193, %v1481
      %v1483 = vpop.f32.mrf.mxu0
      %v1484 = vpop.f32.mrf.mxu0
      %v1485 = vadd.f32 %v1196, %v1484
      %v1486 = vpop.f32.mrf.mxu0
      %1487 = vmatprep.mubr.bf16.mxu0 0
      %1488 = vmatmul.mubr.bf16.gmra.mxu0 %v1001
      %v1489 = vpop.f32.mrf.mxu0
      %v1490 = vadd.f32 %v1201, %v1489
      %v1491 = vpop.f32.mrf.mxu0
      %v1492 = vpop.f32.mrf.mxu0
      %v1493 = vadd.f32 %v1204, %v1492
      %v1494 = vpop.f32.mrf.mxu0
      %1495 = vmatprep.mubr.bf16.mxu0 0
      %1496 = vmatmul.mubr.bf16.gmra.mxu0 %v1004
      %v1497 = vpop.f32.mrf.mxu0
      %v1498 = vadd.f32 %v1209, %v1497
      %v1499 = vpop.f32.mrf.mxu0
      %v1500 = vpop.f32.mrf.mxu0
      %v1501 = vadd.f32 %v1212, %v1500
      %v1502 = vpop.f32.mrf.mxu0
      %1503 = vmatprep.mubr.bf16.mxu0 0
      %1504 = vmatmul.mubr.bf16.gmra.mxu0 %v1007
      %v1505 = vpop.f32.mrf.mxu0
      %v1506 = vadd.f32 %v1217, %v1505
      %v1507 = vpop.f32.mrf.mxu0
      %v1508 = vpop.f32.mrf.mxu0
      %v1509 = vadd.f32 %v1220, %v1508
      %v1510 = vpop.f32.mrf.mxu0
      %1511 = vmatprep.mubr.bf16.mxu0 0
      %1512 = vmatmul.mubr.bf16.gmra.mxu0 %v1010
      %v1513 = vpop.f32.mrf.mxu0
      %v1514 = vadd.f32 %v1225, %v1513
      %v1515 = vpop.f32.mrf.mxu0
      %v1516 = vpop.f32.mrf.mxu0
      %v1517 = vadd.f32 %v1228, %v1516
      %v1518 = vpop.f32.mrf.mxu0
      %1519 = vmatprep.mubr.bf16.mxu0 0
      %1520 = vmatmul.mubr.bf16.gmra.mxu0 %v1013
      %v1521 = vpop.f32.mrf.mxu0
      %v1522 = vadd.f32 %v1233, %v1521
      %v1523 = vpop.f32.mrf.mxu0
      %v1524 = vpop.f32.mrf.mxu0
      %v1525 = vadd.f32 %v1236, %v1524
      %v1526 = vpop.f32.mrf.mxu0
      %1527 = vmatprep.mubr.bf16.mxu0 0
      %1528 = vmatmul.mubr.bf16.gmra.mxu0 %v1016
      %v1529 = vpop.f32.mrf.mxu0
      %v1530 = vadd.f32 %v1241, %v1529
      %v1531 = vpop.f32.mrf.mxu0
      %v1532 = vpop.f32.mrf.mxu0
      %v1533 = vadd.f32 %v1244, %v1532
      %v1534 = vpop.f32.mrf.mxu0
      %1535 = vmatprep.mubr.bf16.mxu0 0
      %1536 = vmatmul.mubr.bf16.gmra.mxu0 %v1019
      %v1537 = vpop.f32.mrf.mxu0
      %v1538 = vadd.f32 %v1249, %v1537
      %v1539 = vpop.f32.mrf.mxu0
      %v1540 = vpop.f32.mrf.mxu0
      %v1541 = vadd.f32 %v1252, %v1540
      %v1542 = vpop.f32.mrf.mxu0
      %1543 = vmatprep.mubr.bf16.mxu0 0
      %1544 = vmatmul.mubr.bf16.gmra.mxu0 %v1022
      %v1545 = vpop.f32.mrf.mxu0
      %v1546 = vadd.f32 %v1257, %v1545
      %v1547 = vpop.f32.mrf.mxu0
      %v1548 = vpop.f32.mrf.mxu0
      %v1549 = vadd.f32 %v1260, %v1548
      %v1550 = vpop.f32.mrf.mxu0
      %1551 = vmatprep.mubr.bf16.mxu0 0
      %1552 = vmatmul.mubr.bf16.gmra.mxu0 %v1025
      %v1553 = vpop.f32.mrf.mxu0
      %v1554 = vadd.f32 %v1265, %v1553
      %v1555 = vpop.f32.mrf.mxu0
      %v1556 = vpop.f32.mrf.mxu0
      %v1557 = vadd.f32 %v1268, %v1556
      %v1558 = vpop.f32.mrf.mxu0
      %1559 = vmatprep.mubr.bf16.mxu0 0
      %1560 = vmatmul.mubr.bf16.gmra.mxu0 %v1028
      %v1561 = vpop.f32.mrf.mxu0
      %v1562 = vadd.f32 %v1273, %v1561
      %v1563 = vpop.f32.mrf.mxu0
      %v1564 = vpop.f32.mrf.mxu0
      %v1565 = vadd.f32 %v1276, %v1564
      %v1566 = vpop.f32.mrf.mxu0
      %1567 = vmatprep.mubr.bf16.mxu0 0
      %1568 = vmatmul.mubr.bf16.gmra.mxu0 %v1031
      %v1569 = vpop.f32.mrf.mxu0
      %v1570 = vadd.f32 %v1281, %v1569
      %v1571 = vpop.f32.mrf.mxu0
      %v1572 = vpop.f32.mrf.mxu0
      %v1573 = vadd.f32 %v1284, %v1572
      %v1574 = vpop.f32.mrf.mxu0
      %1575 = vmatprep.mubr.bf16.mxu0 0
      %1576 = vmatmul.mubr.bf16.gmra.mxu0 %v1034
      %v1577 = vpop.f32.mrf.mxu0
      %v1578 = vadd.f32 %v1289, %v1577
      %v1579 = vpop.f32.mrf.mxu0
      %v1580 = vpop.f32.mrf.mxu0
      %v1581 = vadd.f32 %v1292, %v1580
      %v1582 = vpop.f32.mrf.mxu0
      %1583 = vmatprep.mubr.bf16.mxu0 0
      %1584 = vmatmul.mubr.bf16.gmra.mxu0 %v1037
      %v1585 = vpop.f32.mrf.mxu0
      %v1586 = vadd.f32 %v1297, %v1585
      %v1587 = vpop.f32.mrf.mxu0
      %v1588 = vpop.f32.mrf.mxu0
      %v1589 = vadd.f32 %v1300, %v1588
      %v1590 = vpop.f32.mrf.mxu0
      %1591 = vmatprep.mubr.bf16.mxu0 0
      %1592 = vmatmul.mubr.bf16.gmra.mxu0 %v1040
      %v1593 = vpop.f32.mrf.mxu0
      %v1594 = vadd.f32 %v1305, %v1593
      %v1595 = vpop.f32.mrf.mxu0
      %v1596 = vpop.f32.mrf.mxu0
      %v1597 = vadd.f32 %v1308, %v1596
      %v1598 = vpop.f32.mrf.mxu0
      %1599 = vmatprep.mubr.bf16.mxu0 0
      %1600 = vmatmul.mubr.bf16.gmra.mxu0 %v1043
      %v1601 = vpop.f32.mrf.mxu0
      %v1602 = vadd.f32 %v1313, %v1601
      %v1603 = vpop.f32.mrf.mxu0
      %v1604 = vpop.f32.mrf.mxu0
      %v1605 = vadd.f32 %v1316, %v1604
      %v1606 = vpop.f32.mrf.mxu0
      %1607 = vmatprep.mubr.bf16.mxu0 0
      %1608 = vmatmul.mubr.bf16.gmra.mxu0 %v1046
      %v1609 = vpop.f32.mrf.mxu0
      %v1610 = vadd.f32 %v1321, %v1609
      %v1611 = vpop.f32.mrf.mxu0
      %v1612 = vpop.f32.mrf.mxu0
      %v1613 = vadd.f32 %v1324, %v1612
      %v1614 = vpop.f32.mrf.mxu0
      %1615 = vmatprep.mubr.bf16.mxu0 0
      %1616 = vmatmul.mubr.bf16.gmra.mxu0 %v1049
      %v1617 = vpop.f32.mrf.mxu0
      %v1618 = vadd.f32 %v1329, %v1617
      %v1619 = vpop.f32.mrf.mxu0
      %v1620 = vpop.f32.mrf.mxu0
      %v1621 = vadd.f32 %v1332, %v1620
      %v1622 = vpop.f32.mrf.mxu0
      %1623 = vmatprep.mubr.bf16.mxu0 0
      %1624 = vmatmul.mubr.bf16.gmra.mxu0 %v1052
      %v1625 = vpop.f32.mrf.mxu0
      %v1626 = vadd.f32 %v1337, %v1625
      %v1627 = vpop.f32.mrf.mxu0
      %v1628 = vpop.f32.mrf.mxu0
      %v1629 = vadd.f32 %v1340, %v1628
      %v1630 = vpop.f32.mrf.mxu0
      %1631 = vdwg.mxu0
      %v1632 = vld [vmem:[%s2] sm:$0x1]
      %v1634 = vlaneseq
      %v1635 = vshrl.u32 %v1634, 7
      %v1636 = vsub.s32 0, %v1635
      %v1637 = vrot.slane %v1632, %v1636
      %v1639 = vmul.f32 %v1378, %v1637
      %v1640 = vmul.f32 %v1381, %v1637
      %v1641 = vmul.f32 %v1386, %v1637
      %v1642 = vmul.f32 %v1389, %v1637
      %v1643 = vmul.f32 %v1394, %v1637
      %v1644 = vmul.f32 %v1397, %v1637
      %v1645 = vmul.f32 %v1402, %v1637
      %v1646 = vmul.f32 %v1405, %v1637
      %v1647 = vmul.f32 %v1410, %v1637
      %v1648 = vmul.f32 %v1413, %v1637
      %v1649 = vmul.f32 %v1418, %v1637
      %v1650 = vmul.f32 %v1421, %v1637
      %v1651 = vmul.f32 %v1426, %v1637
      %v1652 = vmul.f32 %v1429, %v1637
      %v1653 = vmul.f32 %v1434, %v1637
      %v1654 = vmul.f32 %v1437, %v1637
      %v1655 = vmul.f32 %v1442, %v1637
      %v1656 = vmul.f32 %v1445, %v1637
      %v1657 = vmul.f32 %v1450, %v1637
      %v1658 = vmul.f32 %v1453, %v1637
      %v1659 = vmul.f32 %v1458, %v1637
      %v1660 = vmul.f32 %v1461, %v1637
      %v1661 = vmul.f32 %v1466, %v1637
      %v1662 = vmul.f32 %v1469, %v1637
      %v1663 = vmul.f32 %v1474, %v1637
      %v1664 = vmul.f32 %v1477, %v1637
      %v1665 = vmul.f32 %v1482, %v1637
      %v1666 = vmul.f32 %v1485, %v1637
      %v1667 = vmul.f32 %v1490, %v1637
      %v1668 = vmul.f32 %v1493, %v1637
      %v1669 = vmul.f32 %v1498, %v1637
      %v1670 = vmul.f32 %v1501, %v1637
      %v1671 = vmul.f32 %v1506, %v1637
      %v1672 = vmul.f32 %v1509, %v1637
      %v1673 = vmul.f32 %v1514, %v1637
      %v1674 = vmul.f32 %v1517, %v1637
      %v1675 = vmul.f32 %v1522, %v1637
      %v1676 = vmul.f32 %v1525, %v1637
      %v1677 = vmul.f32 %v1530, %v1637
      %v1678 = vmul.f32 %v1533, %v1637
      %v1679 = vmul.f32 %v1538, %v1637
      %v1680 = vmul.f32 %v1541, %v1637
      %v1681 = vmul.f32 %v1546, %v1637
      %v1682 = vmul.f32 %v1549, %v1637
      %v1683 = vmul.f32 %v1554, %v1637
      %v1684 = vmul.f32 %v1557, %v1637
      %v1685 = vmul.f32 %v1562, %v1637
      %v1686 = vmul.f32 %v1565, %v1637
      %v1687 = vmul.f32 %v1570, %v1637
      %v1688 = vmul.f32 %v1573, %v1637
      %v1689 = vmul.f32 %v1578, %v1637
      %v1690 = vmul.f32 %v1581, %v1637
      %v1691 = vmul.f32 %v1586, %v1637
      %v1692 = vmul.f32 %v1589, %v1637
      %v1693 = vmul.f32 %v1594, %v1637
      %v1694 = vmul.f32 %v1597, %v1637
      %v1695 = vmul.f32 %v1602, %v1637
      %v1696 = vmul.f32 %v1605, %v1637
      %v1697 = vmul.f32 %v1610, %v1637
      %v1698 = vmul.f32 %v1613, %v1637
      %v1699 = vmul.f32 %v1618, %v1637
      %v1700 = vmul.f32 %v1621, %v1637
      %v1701 = vmul.f32 %v1626, %v1637
      %v1702 = vmul.f32 %v1629, %v1637
      %v1703 = vld [vmem:[%s3] sm:$0x1]
      %v1705 = vlaneseq
      %v1706 = vshrl.u32 %v1705, 7
      %v1707 = vsub.s32 0, %v1706
      %v1708 = vrot.slane %v1703, %v1707
      %v1710 = vadd.f32 %v1639, %v1708
      %v1711 = vadd.f32 %v1640, %v1708
      %v1712 = vadd.f32 %v1641, %v1708
      %v1713 = vadd.f32 %v1642, %v1708
      %v1714 = vadd.f32 %v1643, %v1708
      %v1715 = vadd.f32 %v1644, %v1708
      %v1716 = vadd.f32 %v1645, %v1708
      %v1717 = vadd.f32 %v1646, %v1708
      %v1718 = vadd.f32 %v1647, %v1708
      %v1719 = vadd.f32 %v1648, %v1708
      %v1720 = vadd.f32 %v1649, %v1708
      %v1721 = vadd.f32 %v1650, %v1708
      %v1722 = vadd.f32 %v1651, %v1708
      %v1723 = vadd.f32 %v1652, %v1708
      %v1724 = vadd.f32 %v1653, %v1708
      %v1725 = vadd.f32 %v1654, %v1708
      %v1726 = vadd.f32 %v1655, %v1708
      %v1727 = vadd.f32 %v1656, %v1708
      %v1728 = vadd.f32 %v1657, %v1708
      %v1729 = vadd.f32 %v1658, %v1708
      %v1730 = vadd.f32 %v1659, %v1708
      %v1731 = vadd.f32 %v1660, %v1708
      %v1732 = vadd.f32 %v1661, %v1708
      %v1733 = vadd.f32 %v1662, %v1708
      %v1734 = vadd.f32 %v1663, %v1708
      %v1735 = vadd.f32 %v1664, %v1708
      %v1736 = vadd.f32 %v1665, %v1708
      %v1737 = vadd.f32 %v1666, %v1708
      %v1738 = vadd.f32 %v1667, %v1708
      %v1739 = vadd.f32 %v1668, %v1708
      %v1740 = vadd.f32 %v1669, %v1708
      %v1741 = vadd.f32 %v1670, %v1708
      %v1742 = vadd.f32 %v1671, %v1708
      %v1743 = vadd.f32 %v1672, %v1708
      %v1744 = vadd.f32 %v1673, %v1708
      %v1745 = vadd.f32 %v1674, %v1708
      %v1746 = vadd.f32 %v1675, %v1708
      %v1747 = vadd.f32 %v1676, %v1708
      %v1748 = vadd.f32 %v1677, %v1708
      %v1749 = vadd.f32 %v1678, %v1708
      %v1750 = vadd.f32 %v1679, %v1708
      %v1751 = vadd.f32 %v1680, %v1708
      %v1752 = vadd.f32 %v1681, %v1708
      %v1753 = vadd.f32 %v1682, %v1708
      %v1754 = vadd.f32 %v1683, %v1708
      %v1755 = vadd.f32 %v1684, %v1708
      %v1756 = vadd.f32 %v1685, %v1708
      %v1757 = vadd.f32 %v1686, %v1708
      %v1758 = vadd.f32 %v1687, %v1708
      %v1759 = vadd.f32 %v1688, %v1708
      %v1760 = vadd.f32 %v1689, %v1708
      %v1761 = vadd.f32 %v1690, %v1708
      %v1762 = vadd.f32 %v1691, %v1708
      %v1763 = vadd.f32 %v1692, %v1708
      %v1764 = vadd.f32 %v1693, %v1708
      %v1765 = vadd.f32 %v1694, %v1708
      %v1766 = vadd.f32 %v1695, %v1708
      %v1767 = vadd.f32 %v1696, %v1708
      %v1768 = vadd.f32 %v1697, %v1708
      %v1769 = vadd.f32 %v1698, %v1708
      %v1770 = vadd.f32 %v1699, %v1708
      %v1771 = vadd.f32 %v1700, %v1708
      %v1772 = vadd.f32 %v1701, %v1708
      %v1773 = vadd.f32 %v1702, %v1708
      %v1774 = vmax.f32 %v1710, 0.0
      %v1775 = vmax.f32 %v1711, 0.0
      %v1776 = vmax.f32 %v1712, 0.0
      %v1777 = vmax.f32 %v1713, 0.0
      %v1778 = vmax.f32 %v1714, 0.0
      %v1779 = vmax.f32 %v1715, 0.0
      %v1780 = vmax.f32 %v1716, 0.0
      %v1781 = vmax.f32 %v1717, 0.0
      %v1782 = vmax.f32 %v1718, 0.0
      %v1783 = vmax.f32 %v1719, 0.0
      %v1784 = vmax.f32 %v1720, 0.0
      %v1785 = vmax.f32 %v1721, 0.0
      %v1786 = vmax.f32 %v1722, 0.0
      %v1787 = vmax.f32 %v1723, 0.0
      %v1788 = vmax.f32 %v1724, 0.0
      %v1789 = vmax.f32 %v1725, 0.0
      %v1790 = vmax.f32 %v1726, 0.0
      %v1791 = vmax.f32 %v1727, 0.0
      %v1792 = vmax.f32 %v1728, 0.0
      %v1793 = vmax.f32 %v1729, 0.0
      %v1794 = vmax.f32 %v1730, 0.0
      %v1795 = vmax.f32 %v1731, 0.0
      %v1796 = vmax.f32 %v1732, 0.0
      %v1797 = vmax.f32 %v1733, 0.0
      %v1798 = vmax.f32 %v1734, 0.0
      %v1799 = vmax.f32 %v1735, 0.0
      %v1800 = vmax.f32 %v1736, 0.0
      %v1801 = vmax.f32 %v1737, 0.0
      %v1802 = vmax.f32 %v1738, 0.0
      %v1803 = vmax.f32 %v1739, 0.0
      %v1804 = vmax.f32 %v1740, 0.0
      %v1805 = vmax.f32 %v1741, 0.0
      %v1806 = vmax.f32 %v1742, 0.0
      %v1807 = vmax.f32 %v1743, 0.0
      %v1808 = vmax.f32 %v1744, 0.0
      %v1809 = vmax.f32 %v1745, 0.0
      %v1810 = vmax.f32 %v1746, 0.0
      %v1811 = vmax.f32 %v1747, 0.0
      %v1812 = vmax.f32 %v1748, 0.0
      %v1813 = vmax.f32 %v1749, 0.0
      %v1814 = vmax.f32 %v1750, 0.0
      %v1815 = vmax.f32 %v1751, 0.0
      %v1816 = vmax.f32 %v1752, 0.0
      %v1817 = vmax.f32 %v1753, 0.0
      %v1818 = vmax.f32 %v1754, 0.0
      %v1819 = vmax.f32 %v1755, 0.0
      %v1820 = vmax.f32 %v1756, 0.0
      %v1821 = vmax.f32 %v1757, 0.0
      %v1822 = vmax.f32 %v1758, 0.0
      %v1823 = vmax.f32 %v1759, 0.0
      %v1824 = vmax.f32 %v1760, 0.0
      %v1825 = vmax.f32 %v1761, 0.0
      %v1826 = vmax.f32 %v1762, 0.0
      %v1827 = vmax.f32 %v1763, 0.0
      %v1828 = vmax.f32 %v1764, 0.0
      %v1829 = vmax.f32 %v1765, 0.0
      %v1830 = vmax.f32 %v1766, 0.0
      %v1831 = vmax.f32 %v1767, 0.0
      %v1832 = vmax.f32 %v1768, 0.0
      %v1833 = vmax.f32 %v1769, 0.0
      %v1834 = vmax.f32 %v1770, 0.0
      %v1835 = vmax.f32 %v1771, 0.0
      %v1836 = vmax.f32 %v1772, 0.0
      %v1837 = vmax.f32 %v1773, 0.0
      %vm1838 = vcmask 523264
      %1839 = vst.msk [vmem:[%s202] sm:$0xff] %vm1838, %v1774
      %1840 = vst.msk [vmem:[%s202 + $0x8] sm:$0xff] %vm1838, %v1775
      %1841 = vst.msk [vmem:[%s202 + $0x10] sm:$0xff] %vm1838, %v1776
      %1842 = vst.msk [vmem:[%s202 + $0x18] sm:$0xff] %vm1838, %v1777
      %1843 = vst.msk [vmem:[%s202 + $0x20] sm:$0xff] %vm1838, %v1778
      %1844 = vst.msk [vmem:[%s202 + $0x28] sm:$0xff] %vm1838, %v1779
      %1845 = vst.msk [vmem:[%s202 + $0x30] sm:$0xff] %vm1838, %v1780
      %1846 = vst.msk [vmem:[%s202 + $0x38] sm:$0xff] %vm1838, %v1781
      %1847 = vst.msk [vmem:[%s202 + $0x40] sm:$0xff] %vm1838, %v1782
      %1848 = vst.msk [vmem:[%s202 + $0x48] sm:$0xff] %vm1838, %v1783
      %1849 = vst.msk [vmem:[%s202 + $0x50] sm:$0xff] %vm1838, %v1784
      %1850 = vst.msk [vmem:[%s202 + $0x58] sm:$0xff] %vm1838, %v1785
      %1851 = vst.msk [vmem:[%s202 + $0x60] sm:$0xff] %vm1838, %v1786
      %1852 = vst.msk [vmem:[%s202 + $0x68] sm:$0xff] %vm1838, %v1787
      %1853 = vst.msk [vmem:[%s202 + $0x70] sm:$0xff] %vm1838, %v1788
      %1854 = vst.msk [vmem:[%s202 + $0x78] sm:$0xff] %vm1838, %v1789
      %1855 = vst.msk [vmem:[%s202 + $0x80] sm:$0xff] %vm1838, %v1790
      %1856 = vst.msk [vmem:[%s202 + $0x88] sm:$0xff] %vm1838, %v1791
      %1857 = vst.msk [vmem:[%s202 + $0x90] sm:$0xff] %vm1838, %v1792
      %1858 = vst.msk [vmem:[%s202 + $0x98] sm:$0xff] %vm1838, %v1793
      %1859 = vst.msk [vmem:[%s202 + $0xa0] sm:$0xff] %vm1838, %v1794
      %1860 = vst.msk [vmem:[%s202 + $0xa8] sm:$0xff] %vm1838, %v1795
      %1861 = vst.msk [vmem:[%s202 + $0xb0] sm:$0xff] %vm1838, %v1796
      %1862 = vst.msk [vmem:[%s202 + $0xb8] sm:$0xff] %vm1838, %v1797
      %1863 = vst.msk [vmem:[%s202 + $0xc0] sm:$0xff] %vm1838, %v1798
      %1864 = vst.msk [vmem:[%s202 + $0xc8] sm:$0xff] %vm1838, %v1799
      %1865 = vst.msk [vmem:[%s202 + $0xd0] sm:$0xff] %vm1838, %v1800
      %1866 = vst.msk [vmem:[%s202 + $0xd8] sm:$0xff] %vm1838, %v1801
      %1867 = vst.msk [vmem:[%s202 + $0xe0] sm:$0xff] %vm1838, %v1802
      %1868 = vst.msk [vmem:[%s202 + $0xe8] sm:$0xff] %vm1838, %v1803
      %1869 = vst.msk [vmem:[%s202 + $0xf0] sm:$0xff] %vm1838, %v1804
      %1870 = vst.msk [vmem:[%s202 + $0xf8] sm:$0xff] %vm1838, %v1805
      %1871 = vst.msk [vmem:[%s202 + $0x100] sm:$0xff] %vm1838, %v1806
      %1872 = vst.msk [vmem:[%s202 + $0x108] sm:$0xff] %vm1838, %v1807
      %1873 = vst.msk [vmem:[%s202 + $0x110] sm:$0xff] %vm1838, %v1808
      %1874 = vst.msk [vmem:[%s202 + $0x118] sm:$0xff] %vm1838, %v1809
      %1875 = vst.msk [vmem:[%s202 + $0x120] sm:$0xff] %vm1838, %v1810
      %1876 = vst.msk [vmem:[%s202 + $0x128] sm:$0xff] %vm1838, %v1811
      %1877 = vst.msk [vmem:[%s202 + $0x130] sm:$0xff] %vm1838, %v1812
      %1878 = vst.msk [vmem:[%s202 + $0x138] sm:$0xff] %vm1838, %v1813
      %1879 = vst.msk [vmem:[%s202 + $0x140] sm:$0xff] %vm1838, %v1814
      %1880 = vst.msk [vmem:[%s202 + $0x148] sm:$0xff] %vm1838, %v1815
      %1881 = vst.msk [vmem:[%s202 + $0x150] sm:$0xff] %vm1838, %v1816
      %1882 = vst.msk [vmem:[%s202 + $0x158] sm:$0xff] %vm1838, %v1817
      %1883 = vst.msk [vmem:[%s202 + $0x160] sm:$0xff] %vm1838, %v1818
      %1884 = vst.msk [vmem:[%s202 + $0x168] sm:$0xff] %vm1838, %v1819
      %1885 = vst.msk [vmem:[%s202 + $0x170] sm:$0xff] %vm1838, %v1820
      %1886 = vst.msk [vmem:[%s202 + $0x178] sm:$0xff] %vm1838, %v1821
      %1887 = vst.msk [vmem:[%s202 + $0x180] sm:$0xff] %vm1838, %v1822
      %1888 = vst.msk [vmem:[%s202 + $0x188] sm:$0xff] %vm1838, %v1823
      %1889 = vst.msk [vmem:[%s202 + $0x190] sm:$0xff] %vm1838, %v1824
      %1890 = vst.msk [vmem:[%s202 + $0x198] sm:$0xff] %vm1838, %v1825
      %1891 = vst.msk [vmem:[%s202 + $0x1a0] sm:$0xff] %vm1838, %v1826
      %1892 = vst.msk [vmem:[%s202 + $0x1a8] sm:$0xff] %vm1838, %v1827
      %1893 = vst.msk [vmem:[%s202 + $0x1b0] sm:$0xff] %vm1838, %v1828
      %1894 = vst.msk [vmem:[%s202 + $0x1b8] sm:$0xff] %vm1838, %v1829
      %1895 = vst.msk [vmem:[%s202 + $0x1c0] sm:$0xff] %vm1838, %v1830
      %1896 = vst.msk [vmem:[%s202 + $0x1c8] sm:$0xff] %vm1838, %v1831
      %1897 = vst.msk [vmem:[%s202 + $0x1d0] sm:$0xff] %vm1838, %v1832
      %1898 = vst.msk [vmem:[%s202 + $0x1d8] sm:$0xff] %vm1838, %v1833
      %1899 = vst.msk [vmem:[%s202 + $0x1e0] sm:$0xff] %vm1838, %v1834
      %1900 = vst.msk [vmem:[%s202 + $0x1e8] sm:$0xff] %vm1838, %v1835
      %1901 = vst.msk [vmem:[%s202 + $0x1f0] sm:$0xff] %vm1838, %v1836
      %1902 = vst.msk [vmem:[%s202 + $0x1f8] sm:$0xff] %vm1838, %v1837
      %s1903 = smul.u32 64, %s15
      %p1904 = scmp.lt.s32.totalorder %s1903, 831
      %s1905 = scalar_select %p1904, %s1903, 831
      %s1906 = smul.addr %s1905, 8
      %s1907 = scalar_lea.vmem %s4, %s1906
      // Predicated region
      $region37: #{mask_decoder_forward.8} parent=35 // pred_check
        %p1908 = pneg %p122
      $region38: #{mask_decoder_forward.8} parent=35 // pred_check_branch
        %1910 = sbr.rel (%p1908) target = $region40
      $region39: #{mask_decoder_forward.8} parent=35 // pred_region
        %s1911 = smul.u32 64, %s15
      $region40: #{mask_decoder_forward.8} parent=35 // pred_fallthru
        _
    $region36: #{mask_decoder_forward.8} parent=5 // pred_fallthru
      _
    %p1912 = scmp.le.s32.totalorder 2, %s10
    // Predicated region
    $region41: #{mask_decoder_forward.8} parent=5 // pred_check
      %p1913 = pneg %p1912
    $region42: #{mask_decoder_forward.8} parent=5 // pred_check_branch
      %1915 = sbr.rel (%p1913) target = $region44
    $region43: #{mask_decoder_forward.8} parent=5 // pred_region
      %s1916 = ssub.s32 %s10, 2
      // Predicated region
      $region45: #{mask_decoder_forward.8} parent=43 // pred_check
        %p1917 = pneg %p128
      $region46: #{mask_decoder_forward.8} parent=43 // pred_check_branch
        %1919 = sbr.rel (%p1917) target = $region48
      $region47: #{mask_decoder_forward.8} parent=43 // pred_region
        %s1920 = smul.u32 64, %s16
        %p1921 = scmp.lt.s32.totalorder %s1920, 831
        %s1922 = scalar_select %p1921, %s1920, 831
        %s1923 = smul.addr %s1922, 8
        %s1924 = scalar_lea.vmem %s4, %s1923
      $region48: #{mask_decoder_forward.8} parent=43 // pred_fallthru
        _
    $region44: #{mask_decoder_forward.8} parent=5 // pred_fallthru
      _
  $region6: #{mask_decoder_forward.8} parent=0 // loop_footer
    %s14 = sadd.s32 1, %s10
  $region7: #{mask_decoder_forward.8} parent=0 // loop_footer_branch
    %9 = sbr.rel target = $region3
  $region8: #{mask_decoder_forward.8} parent=0 // loop_exit
    _

// kernel: mask_decoder_forward.9
$region0: #{mask_decoder_forward.9}
  #allocation0 [shape = 'u32[]', space=smem, size = 0x4, offset = 0x4, fixed_abs, tag = 'smem constant byte address 0x4 - core index']
  #allocation1 [shape = 'u32[144,128]{1,0:T(1,128)}', space=vmem, size = 0x12000, scoped, tag = 'internal scratch']
  %s0 = inlined_call_operand.vmem [shape: bf16[25088,144], index: 0, kind: input, shape index: {}]
  %s1 = inlined_call_operand.vmem [shape: bf16[144,4], index: 1, kind: input, shape index: {}]
  %s2 = inlined_call_operand.vmem [shape: f32[1,4], index: 2, kind: input, shape index: {}]
  %s3 = inlined_call_operand.vmem [shape: f32[1,4], index: 3, kind: input, shape index: {}]
  %s4 = inlined_call_operand.vmem [shape: f32[25088,4], index: 4, kind: output, shape index: {}]
  %s5 = sld [smem:[#allocation0]]
  $region49: #{mask_decoder_forward.9} parent=0
    _
  %s7 = ssub.s32 1, %s5
  %s8 = scalar_select 0, %s7, %s5
  loop: start=0, step=1, limit=51
  $region2: #{mask_decoder_forward.9} parent=0 // loop_pre_header
    _
  $region3: #{mask_decoder_forward.9} parent=0 // loop_header
    %s10 = sphi 0, %s14
    %p11 = scmp.ge.s32.totalorder %s10, 51
    %s20 = sphi 0, %s22
    %s23 = sphi 0, %s20
    %s24 = sphi 0, %s23
    %s40 = sphi 0, %s24
    %s44 = sphi 0, %s44
    %s46 = sphi 0, %s44
    %s47 = sphi 0, %s46
    %s61 = sphi 0, %s47
    %s65 = sphi 0, %s65
    %s67 = sphi 0, %s65
    %s68 = sphi 0, %s67
    %s82 = sphi 0, %s68
    %s86 = sphi 0, %s86
    %s88 = sphi 0, %s86
    %s89 = sphi 0, %s88
    %s103 = sphi 0, %s89
    %s109 = sphi 0, %s111
    %s112 = sphi 0, %s109
    %s113 = sphi 0, %s112
    %s129 = sphi 0, %s113
  $region4: #{mask_decoder_forward.9} parent=0 // loop_header_branch
    %13 = sbr.rel (%p11) target = $region8
  $region5: #{mask_decoder_forward.9} parent=0 // loop_body
    %s15 = ssub.s32 %s10, 1
    %s16 = ssub.s32 %s10, 2
    %s17 = sadd.s32 %s10, 1
    %s18 = ssub.s32 %s10, %s17
    %p19 = scmp.eq.s32.totalorder %s18, 0
    %s21 = sadd.s32 %s20, 1
    %s22 = scalar_select %p19, %s20, %s21
    %p25 = pneg %p19
    %p26 = scmp.eq.s32.totalorder %s10, 48
    %p27 = por %p25, %p26
    %p28 = scmp.ne.s32.totalorder %s20, %s23
    %p29 = scmp.eq.s32.totalorder %s10, 0
    %p30 = por %p28, %p29
    %p31 = scmp.ne.s32.totalorder %s20, %s23
    %p32 = scmp.eq.s32.totalorder %s15, 48
    %p33 = por %p31, %p32
    %p34 = scmp.ne.s32.totalorder %s23, %s24
    %p35 = scmp.eq.s32.totalorder %s15, 0
    %p36 = por %p34, %p35
    %p37 = scmp.ne.s32.totalorder %s23, %s24
    %p38 = scmp.eq.s32.totalorder %s16, 48
    %p39 = por %p37, %p38
    %p41 = scmp.ne.s32.totalorder %s24, %s40
    %p42 = scmp.eq.s32.totalorder %s16, 0
    %p43 = por %p41, %p42
    %s45 = sadd.s32 %s44, 1
    %p48 = scmp.eq.s32.totalorder %s10, 48
    %p49 = scmp.ne.s32.totalorder %s44, %s46
    %p50 = scmp.eq.s32.totalorder %s10, 0
    %p51 = por %p49, %p50
    %p52 = scmp.ne.s32.totalorder %s44, %s46
    %p53 = scmp.eq.s32.totalorder %s15, 48
    %p54 = por %p52, %p53
    %p55 = scmp.ne.s32.totalorder %s46, %s47
    %p56 = scmp.eq.s32.totalorder %s15, 0
    %p57 = por %p55, %p56
    %p58 = scmp.ne.s32.totalorder %s46, %s47
    %p59 = scmp.eq.s32.totalorder %s16, 48
    %p60 = por %p58, %p59
    %p62 = scmp.ne.s32.totalorder %s47, %s61
    %p63 = scmp.eq.s32.totalorder %s16, 0
    %p64 = por %p62, %p63
    %s66 = sadd.s32 %s65, 1
    %p69 = scmp.eq.s32.totalorder %s10, 48
    %p70 = scmp.ne.s32.totalorder %s65, %s67
    %p71 = scmp.eq.s32.totalorder %s10, 0
    %p72 = por %p70, %p71
    %p73 = scmp.ne.s32.totalorder %s65, %s67
    %p74 = scmp.eq.s32.totalorder %s15, 48
    %p75 = por %p73, %p74
    %p76 = scmp.ne.s32.totalorder %s67, %s68
    %p77 = scmp.eq.s32.totalorder %s15, 0
    %p78 = por %p76, %p77
    %p79 = scmp.ne.s32.totalorder %s67, %s68
    %p80 = scmp.eq.s32.totalorder %s16, 48
    %p81 = por %p79, %p80
    %p83 = scmp.ne.s32.totalorder %s68, %s82
    %p84 = scmp.eq.s32.totalorder %s16, 0
    %p85 = por %p83, %p84
    %s87 = sadd.s32 %s86, 1
    %p90 = scmp.eq.s32.totalorder %s10, 48
    %p91 = scmp.ne.s32.totalorder %s86, %s88
    %p92 = scmp.eq.s32.totalorder %s10, 0
    %p93 = por %p91, %p92
    %p94 = scmp.ne.s32.totalorder %s86, %s88
    %p95 = scmp.eq.s32.totalorder %s15, 48
    %p96 = por %p94, %p95
    %p97 = scmp.ne.s32.totalorder %s88, %s89
    %p98 = scmp.eq.s32.totalorder %s15, 0
    %p99 = por %p97, %p98
    %p100 = scmp.ne.s32.totalorder %s88, %s89
    %p101 = scmp.eq.s32.totalorder %s16, 48
    %p102 = por %p100, %p101
    %p104 = scmp.ne.s32.totalorder %s89, %s103
    %p105 = scmp.eq.s32.totalorder %s16, 0
    %p106 = por %p104, %p105
    %s107 = ssub.s32 %s10, %s17
    %p108 = scmp.eq.s32.totalorder %s107, 0
    %s110 = sadd.s32 %s109, 1
    %s111 = scalar_select %p108, %s109, %s110
    %p114 = pneg %p108
    %p115 = scmp.eq.s32.totalorder %s10, 48
    %p116 = por %p114, %p115
    %p117 = scmp.ne.s32.totalorder %s109, %s112
    %p118 = scmp.eq.s32.totalorder %s10, 0
    %p119 = por %p117, %p118
    %p120 = scmp.ne.s32.totalorder %s109, %s112
    %p121 = scmp.eq.s32.totalorder %s15, 48
    %p122 = por %p120, %p121
    %p123 = scmp.ne.s32.totalorder %s112, %s113
    %p124 = scmp.eq.s32.totalorder %s15, 0
    %p125 = por %p123, %p124
    %p126 = scmp.ne.s32.totalorder %s112, %s113
    %p127 = scmp.eq.s32.totalorder %s16, 48
    %p128 = por %p126, %p127
    %p130 = scmp.ne.s32.totalorder %s113, %s129
    %p131 = scmp.eq.s32.totalorder %s16, 0
    %p132 = por %p130, %p131
    %p133 = scmp.le.s32.totalorder 1, %s10
    %p134 = scmp.lt.s32.totalorder %s10, 50
    %p135 = pnand %p133, %p134
    %p136 = pneg %p135
    // Predicated region
    $region9: #{mask_decoder_forward.9} parent=5 // pred_check
      _
    $region10: #{mask_decoder_forward.9} parent=5 // pred_check_branch
      %138 = sbr.rel (%p135) target = $region12
    $region11: #{mask_decoder_forward.9} parent=5 // pred_region
      %s139 = ssub.s32 %s10, 1
      // Predicated region
      $region13: #{mask_decoder_forward.9} parent=11 // pred_check
        %p140 = pneg %p57
      $region14: #{mask_decoder_forward.9} parent=11 // pred_check_branch
        %142 = sbr.rel (%p140) target = $region16
      $region15: #{mask_decoder_forward.9} parent=11 // pred_region
        _
      $region16: #{mask_decoder_forward.9} parent=11 // pred_fallthru
        _
      // Predicated region
      $region17: #{mask_decoder_forward.9} parent=11 // pred_check
        %p143 = pneg %p78
      $region18: #{mask_decoder_forward.9} parent=11 // pred_check_branch
        %145 = sbr.rel (%p143) target = $region20
      $region19: #{mask_decoder_forward.9} parent=11 // pred_region
        _
      $region20: #{mask_decoder_forward.9} parent=11 // pred_fallthru
        _
      // Predicated region
      $region21: #{mask_decoder_forward.9} parent=11 // pred_check
        %p146 = pneg %p99
      $region22: #{mask_decoder_forward.9} parent=11 // pred_check_branch
        %148 = sbr.rel (%p146) target = $region24
      $region23: #{mask_decoder_forward.9} parent=11 // pred_region
        _
      $region24: #{mask_decoder_forward.9} parent=11 // pred_fallthru
        _
    $region12: #{mask_decoder_forward.9} parent=5 // pred_fallthru
      _
    %p149 = scmp.lt.s32.totalorder %s10, 49
    // Predicated region
    $region25: #{mask_decoder_forward.9} parent=5 // pred_check
      %p150 = pneg %p149
    $region26: #{mask_decoder_forward.9} parent=5 // pred_check_branch
      %152 = sbr.rel (%p150) target = $region28
    $region27: #{mask_decoder_forward.9} parent=5 // pred_region
      // Predicated region
      $region29: #{mask_decoder_forward.9} parent=27 // pred_check
        %p153 = pneg %p30
      $region30: #{mask_decoder_forward.9} parent=27 // pred_check_branch
        %155 = sbr.rel (%p153) target = $region32
      $region31: #{mask_decoder_forward.9} parent=27 // pred_region
        %s156 = smul.u32 64, %s10
        %p157 = scmp.lt.s32.totalorder %s156, 3135
        %s158 = scalar_select %p157, %s156, 3135
        %s159 = smul.addr %s158, 2
        %s160 = smul.addr %s159, 4
        %s161 = scalar_lea.vmem %s0, %s160
        %s162 = smul.u32 64, %s10
      $region32: #{mask_decoder_forward.9} parent=27 // pred_fallthru
        _
    $region28: #{mask_decoder_forward.9} parent=5 // pred_fallthru
      _
    %p163 = scmp.le.s32.totalorder 1, %s10
    %p164 = scmp.lt.s32.totalorder %s10, 50
    %p165 = pnand %p163, %p164
    %p166 = pneg %p165
    // Predicated region
    $region33: #{mask_decoder_forward.9} parent=5 // pred_check
      _
    $region34: #{mask_decoder_forward.9} parent=5 // pred_check_branch
      %168 = sbr.rel (%p165) target = $region36
    $region35: #{mask_decoder_forward.9} parent=5 // pred_region
      %s169 = ssub.s32 %s10, 1
      %s170 = smul.u32 64, %s15
      %p171 = scmp.lt.s32.totalorder %s170, 3135
      %s172 = scalar_select %p171, %s170, 3135
      %s173 = smul.addr %s172, 2
      %s174 = smul.addr %s173, 4
      %s175 = scalar_lea.vmem %s0, %s174
      %p176 = pneg %p36
      %p177 = pneg %p33
      %p178 = pneg %p57
      %p179 = pneg %p54
      %p180 = pneg %p78
      %p181 = pneg %p75
      %p182 = pneg %p99
      %p183 = pneg %p96
      %p184 = pneg %p125
      %p185 = pneg %p122
      %s186 = smul.u32 64, %s15
      %p187 = scmp.lt.s32.totalorder %s186, 3135
      %s188 = scalar_select %p187, %s186, 3135
      %s189 = smul.addr %s188, 8
      %s190 = scalar_lea.vmem %s4, %s189
      %s191 = smul.u32 64, %s15
      %p192 = scmp.lt.s32.totalorder %s191, 3135
      %s193 = scalar_select %p192, %s191, 3135
      %s194 = smul.addr %s193, 2
      %s195 = smul.addr %s194, 4
      %s196 = scalar_lea.vmem %s0, %s195
      %s197 = smul.u32 64, %s15
      %s198 = smul.u32 64, %s15
      %p199 = scmp.lt.s32.totalorder %s198, 3135
      %s200 = scalar_select %p199, %s198, 3135
      %s201 = smul.addr %s200, 8
      %s202 = scalar_lea.vmem %s4, %s201
      %s203 = smul.u32 64, %s15
      %v205 = vld [vmem:[%s196] sm:$0xff]
      %v206 = vld [vmem:[%s196 + $0x8] sm:$0xff]
      %v207 = vld [vmem:[%s196 + $0x10] sm:$0xff]
      %v208 = vld [vmem:[%s196 + $0x18] sm:$0xff]
      %v209 = vld [vmem:[%s196 + $0x20] sm:$0xff]
      %v210 = vld [vmem:[%s196 + $0x28] sm:$0xff]
      %v211 = vld [vmem:[%s196 + $0x30] sm:$0xff]
      %v212 = vld [vmem:[%s196 + $0x38] sm:$0xff]
      %v213 = vld [vmem:[%s196 + $0x40] sm:$0xff]
      %v214 = vld [vmem:[%s196 + $0x48] sm:$0xff]
      %v215 = vld [vmem:[%s196 + $0x50] sm:$0xff]
      %v216 = vld [vmem:[%s196 + $0x58] sm:$0xff]
      %v217 = vld [vmem:[%s196 + $0x60] sm:$0xff]
      %v218 = vld [vmem:[%s196 + $0x68] sm:$0xff]
      %v219 = vld [vmem:[%s196 + $0x70] sm:$0xff]
      %v220 = vld [vmem:[%s196 + $0x78] sm:$0xff]
      %v221 = vld [vmem:[%s196 + $0x80] sm:$0xff]
      %v222 = vld [vmem:[%s196 + $0x88] sm:$0xff]
      %v223 = vld [vmem:[%s196 + $0x90] sm:$0xff]
      %v224 = vld [vmem:[%s196 + $0x98] sm:$0xff]
      %v225 = vld [vmem:[%s196 + $0xa0] sm:$0xff]
      %v226 = vld [vmem:[%s196 + $0xa8] sm:$0xff]
      %v227 = vld [vmem:[%s196 + $0xb0] sm:$0xff]
      %v228 = vld [vmem:[%s196 + $0xb8] sm:$0xff]
      %v229 = vld [vmem:[%s196 + $0xc0] sm:$0xff]
      %v230 = vld [vmem:[%s196 + $0xc8] sm:$0xff]
      %v231 = vld [vmem:[%s196 + $0xd0] sm:$0xff]
      %v232 = vld [vmem:[%s196 + $0xd8] sm:$0xff]
      %v233 = vld [vmem:[%s196 + $0xe0] sm:$0xff]
      %v234 = vld [vmem:[%s196 + $0xe8] sm:$0xff]
      %v235 = vld [vmem:[%s196 + $0xf0] sm:$0xff]
      %v236 = vld [vmem:[%s196 + $0xf8] sm:$0xff]
      %v237 = vld [vmem:[%s196 + $0x100] sm:$0xff]
      %v238 = vld [vmem:[%s196 + $0x108] sm:$0xff]
      %v239 = vld [vmem:[%s196 + $0x110] sm:$0xff]
      %v240 = vld [vmem:[%s196 + $0x118] sm:$0xff]
      %v241 = vld [vmem:[%s196 + $0x120] sm:$0xff]
      %v242 = vld [vmem:[%s196 + $0x128] sm:$0xff]
      %v243 = vld [vmem:[%s196 + $0x130] sm:$0xff]
      %v244 = vld [vmem:[%s196 + $0x138] sm:$0xff]
      %v245 = vld [vmem:[%s196 + $0x140] sm:$0xff]
      %v246 = vld [vmem:[%s196 + $0x148] sm:$0xff]
      %v247 = vld [vmem:[%s196 + $0x150] sm:$0xff]
      %v248 = vld [vmem:[%s196 + $0x158] sm:$0xff]
      %v249 = vld [vmem:[%s196 + $0x160] sm:$0xff]
      %v250 = vld [vmem:[%s196 + $0x168] sm:$0xff]
      %v251 = vld [vmem:[%s196 + $0x170] sm:$0xff]
      %v252 = vld [vmem:[%s196 + $0x178] sm:$0xff]
      %v253 = vld [vmem:[%s196 + $0x180] sm:$0xff]
      %v254 = vld [vmem:[%s196 + $0x188] sm:$0xff]
      %v255 = vld [vmem:[%s196 + $0x190] sm:$0xff]
      %v256 = vld [vmem:[%s196 + $0x198] sm:$0xff]
      %v257 = vld [vmem:[%s196 + $0x1a0] sm:$0xff]
      %v258 = vld [vmem:[%s196 + $0x1a8] sm:$0xff]
      %v259 = vld [vmem:[%s196 + $0x1b0] sm:$0xff]
      %v260 = vld [vmem:[%s196 + $0x1b8] sm:$0xff]
      %v261 = vld [vmem:[%s196 + $0x1c0] sm:$0xff]
      %v262 = vld [vmem:[%s196 + $0x1c8] sm:$0xff]
      %v263 = vld [vmem:[%s196 + $0x1d0] sm:$0xff]
      %v264 = vld [vmem:[%s196 + $0x1d8] sm:$0xff]
      %v265 = vld [vmem:[%s196 + $0x1e0] sm:$0xff]
      %v266 = vld [vmem:[%s196 + $0x1e8] sm:$0xff]
      %v267 = vld [vmem:[%s196 + $0x1f0] sm:$0xff]
      %v268 = vld [vmem:[%s196 + $0x1f8] sm:$0xff]
      %v269 = vld [vmem:[%s1] sm:$0xf]
      %v270 = vld [vmem:[%s1 + $0x4] sm:$0xf]
      %v271 = vld [vmem:[%s1 + $0x8] sm:$0xf]
      %v272 = vld [vmem:[%s1 + $0xc] sm:$0xf]
      %v273 = vld [vmem:[%s1 + $0x10] sm:$0xf]
      %v274 = vld [vmem:[%s1 + $0x14] sm:$0xf]
      %v275 = vld [vmem:[%s1 + $0x18] sm:$0xf]
      %v276 = vld [vmem:[%s1 + $0x1c] sm:$0xf]
      %v277 = vld [vmem:[%s1 + $0x20] sm:$0xf]
      %v278 = vld [vmem:[%s1 + $0x24] sm:$0xf]
      %v279 = vld [vmem:[%s1 + $0x28] sm:$0xf]
      %v280 = vld [vmem:[%s1 + $0x2c] sm:$0xf]
      %v281 = vld [vmem:[%s1 + $0x30] sm:$0xf]
      %v282 = vld [vmem:[%s1 + $0x34] sm:$0xf]
      %v283 = vld [vmem:[%s1 + $0x38] sm:$0xf]
      %v284 = vld [vmem:[%s1 + $0x3c] sm:$0xf]
      %v285 = vld [vmem:[%s1 + $0x40] sm:$0xf]
      %v286 = vld [vmem:[%s1 + $0x44] sm:$0xf]
      %v351 = vunpack.c.l.b16 %v205
      %v352 = vunpack.c.h.b16 %v205
      %v353 = vunpack.c.l.b16 %v206
      %v354 = vunpack.c.h.b16 %v206
      %v355 = vunpack.c.l.b16 %v207
      %v356 = vunpack.c.h.b16 %v207
      %v357 = vunpack.c.l.b16 %v208
      %v358 = vunpack.c.h.b16 %v208
      %v359 = vunpack.c.l.b16 %v209
      %v360 = vunpack.c.h.b16 %v209
      %v361 = vunpack.c.l.b16 %v210
      %v362 = vunpack.c.h.b16 %v210
      %v363 = vunpack.c.l.b16 %v211
      %v364 = vunpack.c.h.b16 %v211
      %v365 = vunpack.c.l.b16 %v212
      %v366 = vunpack.c.h.b16 %v212
      %v367 = vunpack.c.l.b16 %v213
      %v368 = vunpack.c.h.b16 %v213
      %v369 = vunpack.c.l.b16 %v214
      %v370 = vunpack.c.h.b16 %v214
      %v371 = vunpack.c.l.b16 %v215
      %v372 = vunpack.c.h.b16 %v215
      %v373 = vunpack.c.l.b16 %v216
      %v374 = vunpack.c.h.b16 %v216
      %v375 = vunpack.c.l.b16 %v217
      %v376 = vunpack.c.h.b16 %v217
      %v377 = vunpack.c.l.b16 %v218
      %v378 = vunpack.c.h.b16 %v218
      %v379 = vunpack.c.l.b16 %v219
      %v380 = vunpack.c.h.b16 %v219
      %v381 = vunpack.c.l.b16 %v220
      %v382 = vunpack.c.h.b16 %v220
      %v383 = vunpack.c.l.b16 %v221
      %v384 = vunpack.c.h.b16 %v221
      %v385 = vunpack.c.l.b16 %v222
      %v386 = vunpack.c.h.b16 %v222
      %v387 = vunpack.c.l.b16 %v223
      %v388 = vunpack.c.h.b16 %v223
      %v389 = vunpack.c.l.b16 %v224
      %v390 = vunpack.c.h.b16 %v224
      %v391 = vunpack.c.l.b16 %v225
      %v392 = vunpack.c.h.b16 %v225
      %v393 = vunpack.c.l.b16 %v226
      %v394 = vunpack.c.h.b16 %v226
      %v395 = vunpack.c.l.b16 %v227
      %v396 = vunpack.c.h.b16 %v227
      %v397 = vunpack.c.l.b16 %v228
      %v398 = vunpack.c.h.b16 %v228
      %v399 = vunpack.c.l.b16 %v229
      %v400 = vunpack.c.h.b16 %v229
      %v401 = vunpack.c.l.b16 %v230
      %v402 = vunpack.c.h.b16 %v230
      %v403 = vunpack.c.l.b16 %v231
      %v404 = vunpack.c.h.b16 %v231
      %v405 = vunpack.c.l.b16 %v232
      %v406 = vunpack.c.h.b16 %v232
      %v407 = vunpack.c.l.b16 %v233
      %v408 = vunpack.c.h.b16 %v233
      %v409 = vunpack.c.l.b16 %v234
      %v410 = vunpack.c.h.b16 %v234
      %v411 = vunpack.c.l.b16 %v235
      %v412 = vunpack.c.h.b16 %v235
      %v413 = vunpack.c.l.b16 %v236
      %v414 = vunpack.c.h.b16 %v236
      %v415 = vunpack.c.l.b16 %v237
      %v416 = vunpack.c.h.b16 %v237
      %v417 = vunpack.c.l.b16 %v238
      %v418 = vunpack.c.h.b16 %v238
      %v419 = vunpack.c.l.b16 %v239
      %v420 = vunpack.c.h.b16 %v239
      %v421 = vunpack.c.l.b16 %v240
      %v422 = vunpack.c.h.b16 %v240
      %v423 = vunpack.c.l.b16 %v241
      %v424 = vunpack.c.h.b16 %v241
      %v425 = vunpack.c.l.b16 %v242
      %v426 = vunpack.c.h.b16 %v242
      %v427 = vunpack.c.l.b16 %v243
      %v428 = vunpack.c.h.b16 %v243
      %v429 = vunpack.c.l.b16 %v244
      %v430 = vunpack.c.h.b16 %v244
      %v431 = vunpack.c.l.b16 %v245
      %v432 = vunpack.c.h.b16 %v245
      %v433 = vunpack.c.l.b16 %v246
      %v434 = vunpack.c.h.b16 %v246
      %v435 = vunpack.c.l.b16 %v247
      %v436 = vunpack.c.h.b16 %v247
      %v437 = vunpack.c.l.b16 %v248
      %v438 = vunpack.c.h.b16 %v248
      %v439 = vunpack.c.l.b16 %v249
      %v440 = vunpack.c.h.b16 %v249
      %v441 = vunpack.c.l.b16 %v250
      %v442 = vunpack.c.h.b16 %v250
      %v443 = vunpack.c.l.b16 %v251
      %v444 = vunpack.c.h.b16 %v251
      %v445 = vunpack.c.l.b16 %v252
      %v446 = vunpack.c.h.b16 %v252
      %v447 = vunpack.c.l.b16 %v253
      %v448 = vunpack.c.h.b16 %v253
      %v449 = vunpack.c.l.b16 %v254
      %v450 = vunpack.c.h.b16 %v254
      %v451 = vunpack.c.l.b16 %v255
      %v452 = vunpack.c.h.b16 %v255
      %v453 = vunpack.c.l.b16 %v256
      %v454 = vunpack.c.h.b16 %v256
      %v455 = vunpack.c.l.b16 %v257
      %v456 = vunpack.c.h.b16 %v257
      %v457 = vunpack.c.l.b16 %v258
      %v458 = vunpack.c.h.b16 %v258
      %v459 = vunpack.c.l.b16 %v259
      %v460 = vunpack.c.h.b16 %v259
      %v461 = vunpack.c.l.b16 %v260
      %v462 = vunpack.c.h.b16 %v260
      %v463 = vunpack.c.l.b16 %v261
      %v464 = vunpack.c.h.b16 %v261
      %v465 = vunpack.c.l.b16 %v262
      %v466 = vunpack.c.h.b16 %v262
      %v467 = vunpack.c.l.b16 %v263
      %v468 = vunpack.c.h.b16 %v263
      %v469 = vunpack.c.l.b16 %v264
      %v470 = vunpack.c.h.b16 %v264
      %v471 = vunpack.c.l.b16 %v265
      %v472 = vunpack.c.h.b16 %v265
      %v473 = vunpack.c.l.b16 %v266
      %v474 = vunpack.c.h.b16 %v266
      %v475 = vunpack.c.l.b16 %v267
      %v476 = vunpack.c.h.b16 %v267
      %v477 = vunpack.c.l.b16 %v268
      %v478 = vunpack.c.h.b16 %v268
      %v479 = vpack.c.b16 %v353, %v351
      %v480 = vpack.c.b16 %v354, %v352
      %v481 = vpack.c.b16 %v357, %v355
      %v482 = vpack.c.b16 %v358, %v356
      %v483 = vpack.c.b16 %v361, %v359
      %v484 = vpack.c.b16 %v362, %v360
      %v485 = vpack.c.b16 %v365, %v363
      %v486 = vpack.c.b16 %v366, %v364
      %v487 = vpack.c.b16 %v369, %v367
      %v488 = vpack.c.b16 %v370, %v368
      %v489 = vpack.c.b16 %v373, %v371
      %v490 = vpack.c.b16 %v374, %v372
      %v491 = vpack.c.b16 %v377, %v375
      %v492 = vpack.c.b16 %v378, %v376
      %v493 = vpack.c.b16 %v381, %v379
      %v494 = vpack.c.b16 %v382, %v380
      %v495 = vpack.c.b16 %v385, %v383
      %v496 = vpack.c.b16 %v386, %v384
      %v497 = vpack.c.b16 %v389, %v387
      %v498 = vpack.c.b16 %v390, %v388
      %v499 = vpack.c.b16 %v393, %v391
      %v500 = vpack.c.b16 %v394, %v392
      %v501 = vpack.c.b16 %v397, %v395
      %v502 = vpack.c.b16 %v398, %v396
      %v503 = vpack.c.b16 %v401, %v399
      %v504 = vpack.c.b16 %v402, %v400
      %v505 = vpack.c.b16 %v405, %v403
      %v506 = vpack.c.b16 %v406, %v404
      %v507 = vpack.c.b16 %v409, %v407
      %v508 = vpack.c.b16 %v410, %v408
      %v509 = vpack.c.b16 %v413, %v411
      %v510 = vpack.c.b16 %v414, %v412
      %v511 = vpack.c.b16 %v417, %v415
      %v512 = vpack.c.b16 %v418, %v416
      %v513 = vpack.c.b16 %v421, %v419
      %v514 = vpack.c.b16 %v422, %v420
      %v515 = vpack.c.b16 %v425, %v423
      %v516 = vpack.c.b16 %v426, %v424
      %v517 = vpack.c.b16 %v429, %v427
      %v518 = vpack.c.b16 %v430, %v428
      %v519 = vpack.c.b16 %v433, %v431
      %v520 = vpack.c.b16 %v434, %v432
      %v521 = vpack.c.b16 %v437, %v435
      %v522 = vpack.c.b16 %v438, %v436
      %v523 = vpack.c.b16 %v441, %v439
      %v524 = vpack.c.b16 %v442, %v440
      %v525 = vpack.c.b16 %v445, %v443
      %v526 = vpack.c.b16 %v446, %v444
      %v527 = vpack.c.b16 %v449, %v447
      %v528 = vpack.c.b16 %v450, %v448
      %v529 = vpack.c.b16 %v453, %v451
      %v530 = vpack.c.b16 %v454, %v452
      %v531 = vpack.c.b16 %v457, %v455
      %v532 = vpack.c.b16 %v458, %v456
      %v533 = vpack.c.b16 %v461, %v459
      %v534 = vpack.c.b16 %v462, %v460
      %v535 = vpack.c.b16 %v465, %v463
      %v536 = vpack.c.b16 %v466, %v464
      %v537 = vpack.c.b16 %v469, %v467
      %v538 = vpack.c.b16 %v470, %v468
      %v539 = vpack.c.b16 %v473, %v471
      %v540 = vpack.c.b16 %v474, %v472
      %v541 = vpack.c.b16 %v477, %v475
      %v542 = vpack.c.b16 %v478, %v476
      %v593 = vunpack.c.l.b16 %v269
      %v594 = vunpack.c.l.b16 %v270
      %v595 = vunpack.c.l.b16 %v271
      %v596 = vunpack.c.l.b16 %v272
      %v597 = vunpack.c.l.b16 %v273
      %v598 = vunpack.c.l.b16 %v274
      %v599 = vunpack.c.l.b16 %v275
      %v600 = vunpack.c.l.b16 %v276
      %v601 = vunpack.c.l.b16 %v277
      %v602 = vunpack.c.l.b16 %v278
      %v603 = vunpack.c.l.b16 %v279
      %v604 = vunpack.c.l.b16 %v280
      %v605 = vunpack.c.l.b16 %v281
      %v606 = vunpack.c.l.b16 %v282
      %v607 = vunpack.c.l.b16 %v283
      %v608 = vunpack.c.l.b16 %v284
      %v609 = vunpack.c.l.b16 %v285
      %v610 = vunpack.c.l.b16 %v286
      %v611 = vpack.c.b16 %v594, %v593
      %v612 = vpack.c.b16 %v596, %v595
      %v613 = vpack.c.b16 %v598, %v597
      %v614 = vpack.c.b16 %v600, %v599
      %v615 = vpack.c.b16 %v602, %v601
      %v616 = vpack.c.b16 %v604, %v603
      %v617 = vpack.c.b16 %v606, %v605
      %v618 = vpack.c.b16 %v608, %v607
      %v619 = vpack.c.b16 %v610, %v609
      %vm629 = vcmask 130048
      %v631 = vsel %vm629, %v480, 0
      %v634 = vsel %vm629, %v482, 0
      %v637 = vsel %vm629, %v484, 0
      %v640 = vsel %vm629, %v486, 0
      %v643 = vsel %vm629, %v488, 0
      %v646 = vsel %vm629, %v490, 0
      %v649 = vsel %vm629, %v492, 0
      %v652 = vsel %vm629, %v494, 0
      %v655 = vsel %vm629, %v496, 0
      %v658 = vsel %vm629, %v498, 0
      %v661 = vsel %vm629, %v500, 0
      %v664 = vsel %vm629, %v502, 0
      %v667 = vsel %vm629, %v504, 0
      %v670 = vsel %vm629, %v506, 0
      %v673 = vsel %vm629, %v508, 0
      %v676 = vsel %vm629, %v510, 0
      %v679 = vsel %vm629, %v512, 0
      %v682 = vsel %vm629, %v514, 0
      %v685 = vsel %vm629, %v516, 0
      %v688 = vsel %vm629, %v518, 0
      %v691 = vsel %vm629, %v520, 0
      %v694 = vsel %vm629, %v522, 0
      %v697 = vsel %vm629, %v524, 0
      %v700 = vsel %vm629, %v526, 0
      %v703 = vsel %vm629, %v528, 0
      %v706 = vsel %vm629, %v530, 0
      %v709 = vsel %vm629, %v532, 0
      %v712 = vsel %vm629, %v534, 0
      %v715 = vsel %vm629, %v536, 0
      %v718 = vsel %vm629, %v538, 0
      %v721 = vsel %vm629, %v540, 0
      %v724 = vsel %vm629, %v542, 0
      %726 = vmatprep.subr.bf16.mxu0 0
      %727 = vmatpush1.bf16.msra.mxu0 %v618
      %728 = vmatprep.subr.bf16.mxu0 0
      %729 = vmatpush1.bf16.msra.mxu0 %v617
      %730 = vmatprep.subr.bf16.mxu0 0
      %731 = vmatpush1.bf16.msra.mxu0 %v616
      %732 = vmatprep.subr.bf16.mxu0 0
      %733 = vmatpush1.bf16.msra.mxu0 %v615
      %734 = vmatprep.subr.bf16.mxu0 0
      %735 = vmatpush1.bf16.msra.mxu0 %v614
      %736 = vmatprep.subr.bf16.mxu0 0
      %737 = vmatpush1.bf16.msra.mxu0 %v613
      %738 = vmatprep.subr.bf16.mxu0 0
      %739 = vmatpush1.bf16.msra.mxu0 %v612
      %740 = vmatprep.subr.bf16.mxu0 0
      %741 = vmatpush1.bf16.msra.mxu0 %v611
      %742 = vmatprep.subr.bf16.mxu0 0
      %743 = vmatpush2.bf16.msra.mxu0 0
      %744 = vmatprep.subr.bf16.mxu0 0
      %745 = vmatpush2.bf16.msra.mxu0 0
      %746 = vmatprep.subr.bf16.mxu0 0
      %747 = vmatpush2.bf16.msra.mxu0 0
      %748 = vmatprep.subr.bf16.mxu0 0
      %749 = vmatpush2.bf16.msra.mxu0 0
      %750 = vmatprep.subr.bf16.mxu0 0
      %751 = vmatpush2.bf16.msra.mxu0 0
      %752 = vmatprep.subr.bf16.mxu0 0
      %753 = vmatpush2.bf16.msra.mxu0 0
      %754 = vmatprep.subr.bf16.mxu0 0
      %755 = vmatpush2.bf16.msra.mxu0 0
      %756 = vmatprep.subr.bf16.mxu0 0
      %757 = vmatpush2.bf16.msra.mxu0 %v619
      %758 = vmatprep.mubr.bf16.mxu0 %v631
      %759 = vmatmul.mubr.bf16.gmra.mxu0 %v479
      %v760 = vpop.f32.mrf.mxu0
      %v761 = vadd.f32 0.0, %v760
      %v762 = vpop.f32.mrf.mxu0
      %v763 = vpop.f32.mrf.mxu0
      %v764 = vadd.f32 0.0, %v763
      %v765 = vpop.f32.mrf.mxu0
      %766 = vmatprep.mubr.bf16.mxu0 %v634
      %767 = vmatmul.mubr.bf16.gmra.mxu0 %v481
      %v768 = vpop.f32.mrf.mxu0
      %v769 = vadd.f32 0.0, %v768
      %v770 = vpop.f32.mrf.mxu0
      %v771 = vpop.f32.mrf.mxu0
      %v772 = vadd.f32 0.0, %v771
      %v773 = vpop.f32.mrf.mxu0
      %774 = vmatprep.mubr.bf16.mxu0 %v637
      %775 = vmatmul.mubr.bf16.gmra.mxu0 %v483
      %v776 = vpop.f32.mrf.mxu0
      %v777 = vadd.f32 0.0, %v776
      %v778 = vpop.f32.mrf.mxu0
      %v779 = vpop.f32.mrf.mxu0
      %v780 = vadd.f32 0.0, %v779
      %v781 = vpop.f32.mrf.mxu0
      %782 = vmatprep.mubr.bf16.mxu0 %v640
      %783 = vmatmul.mubr.bf16.gmra.mxu0 %v485
      %v784 = vpop.f32.mrf.mxu0
      %v785 = vadd.f32 0.0, %v784
      %v786 = vpop.f32.mrf.mxu0
      %v787 = vpop.f32.mrf.mxu0
      %v788 = vadd.f32 0.0, %v787
      %v789 = vpop.f32.mrf.mxu0
      %790 = vmatprep.mubr.bf16.mxu0 %v643
      %791 = vmatmul.mubr.bf16.gmra.mxu0 %v487
      %v792 = vpop.f32.mrf.mxu0
      %v793 = vadd.f32 0.0, %v792
      %v794 = vpop.f32.mrf.mxu0
      %v795 = vpop.f32.mrf.mxu0
      %v796 = vadd.f32 0.0, %v795
      %v797 = vpop.f32.mrf.mxu0
      %798 = vmatprep.mubr.bf16.mxu0 %v646
      %799 = vmatmul.mubr.bf16.gmra.mxu0 %v489
      %v800 = vpop.f32.mrf.mxu0
      %v801 = vadd.f32 0.0, %v800
      %v802 = vpop.f32.mrf.mxu0
      %v803 = vpop.f32.mrf.mxu0
      %v804 = vadd.f32 0.0, %v803
      %v805 = vpop.f32.mrf.mxu0
      %806 = vmatprep.mubr.bf16.mxu0 %v649
      %807 = vmatmul.mubr.bf16.gmra.mxu0 %v491
      %v808 = vpop.f32.mrf.mxu0
      %v809 = vadd.f32 0.0, %v808
      %v810 = vpop.f32.mrf.mxu0
      %v811 = vpop.f32.mrf.mxu0
      %v812 = vadd.f32 0.0, %v811
      %v813 = vpop.f32.mrf.mxu0
      %814 = vmatprep.mubr.bf16.mxu0 %v652
      %815 = vmatmul.mubr.bf16.gmra.mxu0 %v493
      %v816 = vpop.f32.mrf.mxu0
      %v817 = vadd.f32 0.0, %v816
      %v818 = vpop.f32.mrf.mxu0
      %v819 = vpop.f32.mrf.mxu0
      %v820 = vadd.f32 0.0, %v819
      %v821 = vpop.f32.mrf.mxu0
      %822 = vmatprep.mubr.bf16.mxu0 %v655
      %823 = vmatmul.mubr.bf16.gmra.mxu0 %v495
      %v824 = vpop.f32.mrf.mxu0
      %v825 = vadd.f32 0.0, %v824
      %v826 = vpop.f32.mrf.mxu0
      %v827 = vpop.f32.mrf.mxu0
      %v828 = vadd.f32 0.0, %v827
      %v829 = vpop.f32.mrf.mxu0
      %830 = vmatprep.mubr.bf16.mxu0 %v658
      %831 = vmatmul.mubr.bf16.gmra.mxu0 %v497
      %v832 = vpop.f32.mrf.mxu0
      %v833 = vadd.f32 0.0, %v832
      %v834 = vpop.f32.mrf.mxu0
      %v835 = vpop.f32.mrf.mxu0
      %v836 = vadd.f32 0.0, %v835
      %v837 = vpop.f32.mrf.mxu0
      %838 = vmatprep.mubr.bf16.mxu0 %v661
      %839 = vmatmul.mubr.bf16.gmra.mxu0 %v499
      %v840 = vpop.f32.mrf.mxu0
      %v841 = vadd.f32 0.0, %v840
      %v842 = vpop.f32.mrf.mxu0
      %v843 = vpop.f32.mrf.mxu0
      %v844 = vadd.f32 0.0, %v843
      %v845 = vpop.f32.mrf.mxu0
      %846 = vmatprep.mubr.bf16.mxu0 %v664
      %847 = vmatmul.mubr.bf16.gmra.mxu0 %v501
      %v848 = vpop.f32.mrf.mxu0
      %v849 = vadd.f32 0.0, %v848
      %v850 = vpop.f32.mrf.mxu0
      %v851 = vpop.f32.mrf.mxu0
      %v852 = vadd.f32 0.0, %v851
      %v853 = vpop.f32.mrf.mxu0
      %854 = vmatprep.mubr.bf16.mxu0 %v667
      %855 = vmatmul.mubr.bf16.gmra.mxu0 %v503
      %v856 = vpop.f32.mrf.mxu0
      %v857 = vadd.f32 0.0, %v856
      %v858 = vpop.f32.mrf.mxu0
      %v859 = vpop.f32.mrf.mxu0
      %v860 = vadd.f32 0.0, %v859
      %v861 = vpop.f32.mrf.mxu0
      %862 = vmatprep.mubr.bf16.mxu0 %v670
      %863 = vmatmul.mubr.bf16.gmra.mxu0 %v505
      %v864 = vpop.f32.mrf.mxu0
      %v865 = vadd.f32 0.0, %v864
      %v866 = vpop.f32.mrf.mxu0
      %v867 = vpop.f32.mrf.mxu0
      %v868 = vadd.f32 0.0, %v867
      %v869 = vpop.f32.mrf.mxu0
      %870 = vmatprep.mubr.bf16.mxu0 %v673
      %871 = vmatmul.mubr.bf16.gmra.mxu0 %v507
      %v872 = vpop.f32.mrf.mxu0
      %v873 = vadd.f32 0.0, %v872
      %v874 = vpop.f32.mrf.mxu0
      %v875 = vpop.f32.mrf.mxu0
      %v876 = vadd.f32 0.0, %v875
      %v877 = vpop.f32.mrf.mxu0
      %878 = vmatprep.mubr.bf16.mxu0 %v676
      %879 = vmatmul.mubr.bf16.gmra.mxu0 %v509
      %v880 = vpop.f32.mrf.mxu0
      %v881 = vadd.f32 0.0, %v880
      %v882 = vpop.f32.mrf.mxu0
      %v883 = vpop.f32.mrf.mxu0
      %v884 = vadd.f32 0.0, %v883
      %v885 = vpop.f32.mrf.mxu0
      %886 = vmatprep.mubr.bf16.mxu0 %v679
      %887 = vmatmul.mubr.bf16.gmra.mxu0 %v511
      %v888 = vpop.f32.mrf.mxu0
      %v889 = vadd.f32 0.0, %v888
      %v890 = vpop.f32.mrf.mxu0
      %v891 = vpop.f32.mrf.mxu0
      %v892 = vadd.f32 0.0, %v891
      %v893 = vpop.f32.mrf.mxu0
      %894 = vmatprep.mubr.bf16.mxu0 %v682
      %895 = vmatmul.mubr.bf16.gmra.mxu0 %v513
      %v896 = vpop.f32.mrf.mxu0
      %v897 = vadd.f32 0.0, %v896
      %v898 = vpop.f32.mrf.mxu0
      %v899 = vpop.f32.mrf.mxu0
      %v900 = vadd.f32 0.0, %v899
      %v901 = vpop.f32.mrf.mxu0
      %902 = vmatprep.mubr.bf16.mxu0 %v685
      %903 = vmatmul.mubr.bf16.gmra.mxu0 %v515
      %v904 = vpop.f32.mrf.mxu0
      %v905 = vadd.f32 0.0, %v904
      %v906 = vpop.f32.mrf.mxu0
      %v907 = vpop.f32.mrf.mxu0
      %v908 = vadd.f32 0.0, %v907
      %v909 = vpop.f32.mrf.mxu0
      %910 = vmatprep.mubr.bf16.mxu0 %v688
      %911 = vmatmul.mubr.bf16.gmra.mxu0 %v517
      %v912 = vpop.f32.mrf.mxu0
      %v913 = vadd.f32 0.0, %v912
      %v914 = vpop.f32.mrf.mxu0
      %v915 = vpop.f32.mrf.mxu0
      %v916 = vadd.f32 0.0, %v915
      %v917 = vpop.f32.mrf.mxu0
      %918 = vmatprep.mubr.bf16.mxu0 %v691
      %919 = vmatmul.mubr.bf16.gmra.mxu0 %v519
      %v920 = vpop.f32.mrf.mxu0
      %v921 = vadd.f32 0.0, %v920
      %v922 = vpop.f32.mrf.mxu0
      %v923 = vpop.f32.mrf.mxu0
      %v924 = vadd.f32 0.0, %v923
      %v925 = vpop.f32.mrf.mxu0
      %926 = vmatprep.mubr.bf16.mxu0 %v694
      %927 = vmatmul.mubr.bf16.gmra.mxu0 %v521
      %v928 = vpop.f32.mrf.mxu0
      %v929 = vadd.f32 0.0, %v928
      %v930 = vpop.f32.mrf.mxu0
      %v931 = vpop.f32.mrf.mxu0
      %v932 = vadd.f32 0.0, %v931
      %v933 = vpop.f32.mrf.mxu0
      %934 = vmatprep.mubr.bf16.mxu0 %v697
      %935 = vmatmul.mubr.bf16.gmra.mxu0 %v523
      %v936 = vpop.f32.mrf.mxu0
      %v937 = vadd.f32 0.0, %v936
      %v938 = vpop.f32.mrf.mxu0
      %v939 = vpop.f32.mrf.mxu0
      %v940 = vadd.f32 0.0, %v939
      %v941 = vpop.f32.mrf.mxu0
      %942 = vmatprep.mubr.bf16.mxu0 %v700
      %943 = vmatmul.mubr.bf16.gmra.mxu0 %v525
      %v944 = vpop.f32.mrf.mxu0
      %v945 = vadd.f32 0.0, %v944
      %v946 = vpop.f32.mrf.mxu0
      %v947 = vpop.f32.mrf.mxu0
      %v948 = vadd.f32 0.0, %v947
      %v949 = vpop.f32.mrf.mxu0
      %950 = vmatprep.mubr.bf16.mxu0 %v703
      %951 = vmatmul.mubr.bf16.gmra.mxu0 %v527
      %v952 = vpop.f32.mrf.mxu0
      %v953 = vadd.f32 0.0, %v952
      %v954 = vpop.f32.mrf.mxu0
      %v955 = vpop.f32.mrf.mxu0
      %v956 = vadd.f32 0.0, %v955
      %v957 = vpop.f32.mrf.mxu0
      %958 = vmatprep.mubr.bf16.mxu0 %v706
      %959 = vmatmul.mubr.bf16.gmra.mxu0 %v529
      %v960 = vpop.f32.mrf.mxu0
      %v961 = vadd.f32 0.0, %v960
      %v962 = vpop.f32.mrf.mxu0
      %v963 = vpop.f32.mrf.mxu0
      %v964 = vadd.f32 0.0, %v963
      %v965 = vpop.f32.mrf.mxu0
      %966 = vmatprep.mubr.bf16.mxu0 %v709
      %967 = vmatmul.mubr.bf16.gmra.mxu0 %v531
      %v968 = vpop.f32.mrf.mxu0
      %v969 = vadd.f32 0.0, %v968
      %v970 = vpop.f32.mrf.mxu0
      %v971 = vpop.f32.mrf.mxu0
      %v972 = vadd.f32 0.0, %v971
      %v973 = vpop.f32.mrf.mxu0
      %974 = vmatprep.mubr.bf16.mxu0 %v712
      %975 = vmatmul.mubr.bf16.gmra.mxu0 %v533
      %v976 = vpop.f32.mrf.mxu0
      %v977 = vadd.f32 0.0, %v976
      %v978 = vpop.f32.mrf.mxu0
      %v979 = vpop.f32.mrf.mxu0
      %v980 = vadd.f32 0.0, %v979
      %v981 = vpop.f32.mrf.mxu0
      %982 = vmatprep.mubr.bf16.mxu0 %v715
      %983 = vmatmul.mubr.bf16.gmra.mxu0 %v535
      %v984 = vpop.f32.mrf.mxu0
      %v985 = vadd.f32 0.0, %v984
      %v986 = vpop.f32.mrf.mxu0
      %v987 = vpop.f32.mrf.mxu0
      %v988 = vadd.f32 0.0, %v987
      %v989 = vpop.f32.mrf.mxu0
      %990 = vmatprep.mubr.bf16.mxu0 %v718
      %991 = vmatmul.mubr.bf16.gmra.mxu0 %v537
      %v992 = vpop.f32.mrf.mxu0
      %v993 = vadd.f32 0.0, %v992
      %v994 = vpop.f32.mrf.mxu0
      %v995 = vpop.f32.mrf.mxu0
      %v996 = vadd.f32 0.0, %v995
      %v997 = vpop.f32.mrf.mxu0
      %998 = vmatprep.mubr.bf16.mxu0 %v721
      %999 = vmatmul.mubr.bf16.gmra.mxu0 %v539
      %v1000 = vpop.f32.mrf.mxu0
      %v1001 = vadd.f32 0.0, %v1000
      %v1002 = vpop.f32.mrf.mxu0
      %v1003 = vpop.f32.mrf.mxu0
      %v1004 = vadd.f32 0.0, %v1003
      %v1005 = vpop.f32.mrf.mxu0
      %1006 = vmatprep.mubr.bf16.mxu0 %v724
      %1007 = vmatmul.mubr.bf16.gmra.mxu0 %v541
      %v1008 = vpop.f32.mrf.mxu0
      %v1009 = vadd.f32 0.0, %v1008
      %v1010 = vpop.f32.mrf.mxu0
      %v1011 = vpop.f32.mrf.mxu0
      %v1012 = vadd.f32 0.0, %v1011
      %v1013 = vpop.f32.mrf.mxu0
      %1014 = vdwg.mxu0
      %v1015 = vld [vmem:[%s2] sm:$0x1]
      %v1017 = vlaneseq
      %v1018 = vshrl.u32 %v1017, 7
      %v1019 = vsub.s32 0, %v1018
      %v1020 = vrot.slane %v1015, %v1019
      %v1022 = vmul.f32 %v761, %v1020
      %v1023 = vmul.f32 %v764, %v1020
      %v1024 = vmul.f32 %v769, %v1020
      %v1025 = vmul.f32 %v772, %v1020
      %v1026 = vmul.f32 %v777, %v1020
      %v1027 = vmul.f32 %v780, %v1020
      %v1028 = vmul.f32 %v785, %v1020
      %v1029 = vmul.f32 %v788, %v1020
      %v1030 = vmul.f32 %v793, %v1020
      %v1031 = vmul.f32 %v796, %v1020
      %v1032 = vmul.f32 %v801, %v1020
      %v1033 = vmul.f32 %v804, %v1020
      %v1034 = vmul.f32 %v809, %v1020
      %v1035 = vmul.f32 %v812, %v1020
      %v1036 = vmul.f32 %v817, %v1020
      %v1037 = vmul.f32 %v820, %v1020
      %v1038 = vmul.f32 %v825, %v1020
      %v1039 = vmul.f32 %v828, %v1020
      %v1040 = vmul.f32 %v833, %v1020
      %v1041 = vmul.f32 %v836, %v1020
      %v1042 = vmul.f32 %v841, %v1020
      %v1043 = vmul.f32 %v844, %v1020
      %v1044 = vmul.f32 %v849, %v1020
      %v1045 = vmul.f32 %v852, %v1020
      %v1046 = vmul.f32 %v857, %v1020
      %v1047 = vmul.f32 %v860, %v1020
      %v1048 = vmul.f32 %v865, %v1020
      %v1049 = vmul.f32 %v868, %v1020
      %v1050 = vmul.f32 %v873, %v1020
      %v1051 = vmul.f32 %v876, %v1020
      %v1052 = vmul.f32 %v881, %v1020
      %v1053 = vmul.f32 %v884, %v1020
      %v1054 = vmul.f32 %v889, %v1020
      %v1055 = vmul.f32 %v892, %v1020
      %v1056 = vmul.f32 %v897, %v1020
      %v1057 = vmul.f32 %v900, %v1020
      %v1058 = vmul.f32 %v905, %v1020
      %v1059 = vmul.f32 %v908, %v1020
      %v1060 = vmul.f32 %v913, %v1020
      %v1061 = vmul.f32 %v916, %v1020
      %v1062 = vmul.f32 %v921, %v1020
      %v1063 = vmul.f32 %v924, %v1020
      %v1064 = vmul.f32 %v929, %v1020
      %v1065 = vmul.f32 %v932, %v1020
      %v1066 = vmul.f32 %v937, %v1020
      %v1067 = vmul.f32 %v940, %v1020
      %v1068 = vmul.f32 %v945, %v1020
      %v1069 = vmul.f32 %v948, %v1020
      %v1070 = vmul.f32 %v953, %v1020
      %v1071 = vmul.f32 %v956, %v1020
      %v1072 = vmul.f32 %v961, %v1020
      %v1073 = vmul.f32 %v964, %v1020
      %v1074 = vmul.f32 %v969, %v1020
      %v1075 = vmul.f32 %v972, %v1020
      %v1076 = vmul.f32 %v977, %v1020
      %v1077 = vmul.f32 %v980, %v1020
      %v1078 = vmul.f32 %v985, %v1020
      %v1079 = vmul.f32 %v988, %v1020
      %v1080 = vmul.f32 %v993, %v1020
      %v1081 = vmul.f32 %v996, %v1020
      %v1082 = vmul.f32 %v1001, %v1020
      %v1083 = vmul.f32 %v1004, %v1020
      %v1084 = vmul.f32 %v1009, %v1020
      %v1085 = vmul.f32 %v1012, %v1020
      %v1086 = vld [vmem:[%s3] sm:$0x1]
      %v1088 = vlaneseq
      %v1089 = vshrl.u32 %v1088, 7
      %v1090 = vsub.s32 0, %v1089
      %v1091 = vrot.slane %v1086, %v1090
      %v1093 = vadd.f32 %v1022, %v1091
      %v1094 = vadd.f32 %v1023, %v1091
      %v1095 = vadd.f32 %v1024, %v1091
      %v1096 = vadd.f32 %v1025, %v1091
      %v1097 = vadd.f32 %v1026, %v1091
      %v1098 = vadd.f32 %v1027, %v1091
      %v1099 = vadd.f32 %v1028, %v1091
      %v1100 = vadd.f32 %v1029, %v1091
      %v1101 = vadd.f32 %v1030, %v1091
      %v1102 = vadd.f32 %v1031, %v1091
      %v1103 = vadd.f32 %v1032, %v1091
      %v1104 = vadd.f32 %v1033, %v1091
      %v1105 = vadd.f32 %v1034, %v1091
      %v1106 = vadd.f32 %v1035, %v1091
      %v1107 = vadd.f32 %v1036, %v1091
      %v1108 = vadd.f32 %v1037, %v1091
      %v1109 = vadd.f32 %v1038, %v1091
      %v1110 = vadd.f32 %v1039, %v1091
      %v1111 = vadd.f32 %v1040, %v1091
      %v1112 = vadd.f32 %v1041, %v1091
      %v1113 = vadd.f32 %v1042, %v1091
      %v1114 = vadd.f32 %v1043, %v1091
      %v1115 = vadd.f32 %v1044, %v1091
      %v1116 = vadd.f32 %v1045, %v1091
      %v1117 = vadd.f32 %v1046, %v1091
      %v1118 = vadd.f32 %v1047, %v1091
      %v1119 = vadd.f32 %v1048, %v1091
      %v1120 = vadd.f32 %v1049, %v1091
      %v1121 = vadd.f32 %v1050, %v1091
      %v1122 = vadd.f32 %v1051, %v1091
      %v1123 = vadd.f32 %v1052, %v1091
      %v1124 = vadd.f32 %v1053, %v1091
      %v1125 = vadd.f32 %v1054, %v1091
      %v1126 = vadd.f32 %v1055, %v1091
      %v1127 = vadd.f32 %v1056, %v1091
      %v1128 = vadd.f32 %v1057, %v1091
      %v1129 = vadd.f32 %v1058, %v1091
      %v1130 = vadd.f32 %v1059, %v1091
      %v1131 = vadd.f32 %v1060, %v1091
      %v1132 = vadd.f32 %v1061, %v1091
      %v1133 = vadd.f32 %v1062, %v1091
      %v1134 = vadd.f32 %v1063, %v1091
      %v1135 = vadd.f32 %v1064, %v1091
      %v1136 = vadd.f32 %v1065, %v1091
      %v1137 = vadd.f32 %v1066, %v1091
      %v1138 = vadd.f32 %v1067, %v1091
      %v1139 = vadd.f32 %v1068, %v1091
      %v1140 = vadd.f32 %v1069, %v1091
      %v1141 = vadd.f32 %v1070, %v1091
      %v1142 = vadd.f32 %v1071, %v1091
      %v1143 = vadd.f32 %v1072, %v1091
      %v1144 = vadd.f32 %v1073, %v1091
      %v1145 = vadd.f32 %v1074, %v1091
      %v1146 = vadd.f32 %v1075, %v1091
      %v1147 = vadd.f32 %v1076, %v1091
      %v1148 = vadd.f32 %v1077, %v1091
      %v1149 = vadd.f32 %v1078, %v1091
      %v1150 = vadd.f32 %v1079, %v1091
      %v1151 = vadd.f32 %v1080, %v1091
      %v1152 = vadd.f32 %v1081, %v1091
      %v1153 = vadd.f32 %v1082, %v1091
      %v1154 = vadd.f32 %v1083, %v1091
      %v1155 = vadd.f32 %v1084, %v1091
      %v1156 = vadd.f32 %v1085, %v1091
      %vm1157 = vcmask 31744
      %1158 = vst.msk [vmem:[%s202] sm:$0xff] %vm1157, %v1093
      %1159 = vst.msk [vmem:[%s202 + $0x8] sm:$0xff] %vm1157, %v1094
      %1160 = vst.msk [vmem:[%s202 + $0x10] sm:$0xff] %vm1157, %v1095
      %1161 = vst.msk [vmem:[%s202 + $0x18] sm:$0xff] %vm1157, %v1096
      %1162 = vst.msk [vmem:[%s202 + $0x20] sm:$0xff] %vm1157, %v1097
      %1163 = vst.msk [vmem:[%s202 + $0x28] sm:$0xff] %vm1157, %v1098
      %1164 = vst.msk [vmem:[%s202 + $0x30] sm:$0xff] %vm1157, %v1099
      %1165 = vst.msk [vmem:[%s202 + $0x38] sm:$0xff] %vm1157, %v1100
      %1166 = vst.msk [vmem:[%s202 + $0x40] sm:$0xff] %vm1157, %v1101
      %1167 = vst.msk [vmem:[%s202 + $0x48] sm:$0xff] %vm1157, %v1102
      %1168 = vst.msk [vmem:[%s202 + $0x50] sm:$0xff] %vm1157, %v1103
      %1169 = vst.msk [vmem:[%s202 + $0x58] sm:$0xff] %vm1157, %v1104
      %1170 = vst.msk [vmem:[%s202 + $0x60] sm:$0xff] %vm1157, %v1105
      %1171 = vst.msk [vmem:[%s202 + $0x68] sm:$0xff] %vm1157, %v1106
      %1172 = vst.msk [vmem:[%s202 + $0x70] sm:$0xff] %vm1157, %v1107
      %1173 = vst.msk [vmem:[%s202 + $0x78] sm:$0xff] %vm1157, %v1108
      %1174 = vst.msk [vmem:[%s202 + $0x80] sm:$0xff] %vm1157, %v1109
      %1175 = vst.msk [vmem:[%s202 + $0x88] sm:$0xff] %vm1157, %v1110
      %1176 = vst.msk [vmem:[%s202 + $0x90] sm:$0xff] %vm1157, %v1111
      %1177 = vst.msk [vmem:[%s202 + $0x98] sm:$0xff] %vm1157, %v1112
      %1178 = vst.msk [vmem:[%s202 + $0xa0] sm:$0xff] %vm1157, %v1113
      %1179 = vst.msk [vmem:[%s202 + $0xa8] sm:$0xff] %vm1157, %v1114
      %1180 = vst.msk [vmem:[%s202 + $0xb0] sm:$0xff] %vm1157, %v1115
      %1181 = vst.msk [vmem:[%s202 + $0xb8] sm:$0xff] %vm1157, %v1116
      %1182 = vst.msk [vmem:[%s202 + $0xc0] sm:$0xff] %vm1157, %v1117
      %1183 = vst.msk [vmem:[%s202 + $0xc8] sm:$0xff] %vm1157, %v1118
      %1184 = vst.msk [vmem:[%s202 + $0xd0] sm:$0xff] %vm1157, %v1119
      %1185 = vst.msk [vmem:[%s202 + $0xd8] sm:$0xff] %vm1157, %v1120
      %1186 = vst.msk [vmem:[%s202 + $0xe0] sm:$0xff] %vm1157, %v1121
      %1187 = vst.msk [vmem:[%s202 + $0xe8] sm:$0xff] %vm1157, %v1122
      %1188 = vst.msk [vmem:[%s202 + $0xf0] sm:$0xff] %vm1157, %v1123
      %1189 = vst.msk [vmem:[%s202 + $0xf8] sm:$0xff] %vm1157, %v1124
      %1190 = vst.msk [vmem:[%s202 + $0x100] sm:$0xff] %vm1157, %v1125
      %1191 = vst.msk [vmem:[%s202 + $0x108] sm:$0xff] %vm1157, %v1126
      %1192 = vst.msk [vmem:[%s202 + $0x110] sm:$0xff] %vm1157, %v1127
      %1193 = vst.msk [vmem:[%s202 + $0x118] sm:$0xff] %vm1157, %v1128
      %1194 = vst.msk [vmem:[%s202 + $0x120] sm:$0xff] %vm1157, %v1129
      %1195 = vst.msk [vmem:[%s202 + $0x128] sm:$0xff] %vm1157, %v1130
      %1196 = vst.msk [vmem:[%s202 + $0x130] sm:$0xff] %vm1157, %v1131
      %1197 = vst.msk [vmem:[%s202 + $0x138] sm:$0xff] %vm1157, %v1132
      %1198 = vst.msk [vmem:[%s202 + $0x140] sm:$0xff] %vm1157, %v1133
      %1199 = vst.msk [vmem:[%s202 + $0x148] sm:$0xff] %vm1157, %v1134
      %1200 = vst.msk [vmem:[%s202 + $0x150] sm:$0xff] %vm1157, %v1135
      %1201 = vst.msk [vmem:[%s202 + $0x158] sm:$0xff] %vm1157, %v1136
      %1202 = vst.msk [vmem:[%s202 + $0x160] sm:$0xff] %vm1157, %v1137
      %1203 = vst.msk [vmem:[%s202 + $0x168] sm:$0xff] %vm1157, %v1138
      %1204 = vst.msk [vmem:[%s202 + $0x170] sm:$0xff] %vm1157, %v1139
      %1205 = vst.msk [vmem:[%s202 + $0x178] sm:$0xff] %vm1157, %v1140
      %1206 = vst.msk [vmem:[%s202 + $0x180] sm:$0xff] %vm1157, %v1141
      %1207 = vst.msk [vmem:[%s202 + $0x188] sm:$0xff] %vm1157, %v1142
      %1208 = vst.msk [vmem:[%s202 + $0x190] sm:$0xff] %vm1157, %v1143
      %1209 = vst.msk [vmem:[%s202 + $0x198] sm:$0xff] %vm1157, %v1144
      %1210 = vst.msk [vmem:[%s202 + $0x1a0] sm:$0xff] %vm1157, %v1145
      %1211 = vst.msk [vmem:[%s202 + $0x1a8] sm:$0xff] %vm1157, %v1146
      %1212 = vst.msk [vmem:[%s202 + $0x1b0] sm:$0xff] %vm1157, %v1147
      %1213 = vst.msk [vmem:[%s202 + $0x1b8] sm:$0xff] %vm1157, %v1148
      %1214 = vst.msk [vmem:[%s202 + $0x1c0] sm:$0xff] %vm1157, %v1149
      %1215 = vst.msk [vmem:[%s202 + $0x1c8] sm:$0xff] %vm1157, %v1150
      %1216 = vst.msk [vmem:[%s202 + $0x1d0] sm:$0xff] %vm1157, %v1151
      %1217 = vst.msk [vmem:[%s202 + $0x1d8] sm:$0xff] %vm1157, %v1152
      %1218 = vst.msk [vmem:[%s202 + $0x1e0] sm:$0xff] %vm1157, %v1153
      %1219 = vst.msk [vmem:[%s202 + $0x1e8] sm:$0xff] %vm1157, %v1154
      %1220 = vst.msk [vmem:[%s202 + $0x1f0] sm:$0xff] %vm1157, %v1155
      %1221 = vst.msk [vmem:[%s202 + $0x1f8] sm:$0xff] %vm1157, %v1156
      %s1222 = smul.u32 64, %s15
      %p1223 = scmp.lt.s32.totalorder %s1222, 3135
      %s1224 = scalar_select %p1223, %s1222, 3135
      %s1225 = smul.addr %s1224, 8
      %s1226 = scalar_lea.vmem %s4, %s1225
      // Predicated region
      $region37: #{mask_decoder_forward.9} parent=35 // pred_check
        %p1227 = pneg %p122
      $region38: #{mask_decoder_forward.9} parent=35 // pred_check_branch
        %1229 = sbr.rel (%p1227) target = $region40
      $region39: #{mask_decoder_forward.9} parent=35 // pred_region
        %s1230 = smul.u32 64, %s15
      $region40: #{mask_decoder_forward.9} parent=35 // pred_fallthru
        _
    $region36: #{mask_decoder_forward.9} parent=5 // pred_fallthru
      _
    %p1231 = scmp.le.s32.totalorder 2, %s10
    // Predicated region
    $region41: #{mask_decoder_forward.9} parent=5 // pred_check
      %p1232 = pneg %p1231
    $region42: #{mask_decoder_forward.9} parent=5 // pred_check_branch
      %1234 = sbr.rel (%p1232) target = $region44
    $region43: #{mask_decoder_forward.9} parent=5 // pred_region
      %s1235 = ssub.s32 %s10, 2
      // Predicated region
      $region45: #{mask_decoder_forward.9} parent=43 // pred_check
        %p1236 = pneg %p128
      $region46: #{mask_decoder_forward.9} parent=43 // pred_check_branch
        %1238 = sbr.rel (%p1236) target = $region48
      $region47: #{mask_decoder_forward.9} parent=43 // pred_region
        %s1239 = smul.u32 64, %s16
        %p1240 = scmp.lt.s32.totalorder %s1239, 3135
        %s1241 = scalar_select %p1240, %s1239, 3135
        %s1242 = smul.addr %s1241, 8
        %s1243 = scalar_lea.vmem %s4, %s1242
      $region48: #{mask_decoder_forward.9} parent=43 // pred_fallthru
        _
    $region44: #{mask_decoder_forward.9} parent=5 // pred_fallthru
      _
  $region6: #{mask_decoder_forward.9} parent=0 // loop_footer
    %s14 = sadd.s32 1, %s10
  $region7: #{mask_decoder_forward.9} parent=0 // loop_footer_branch
    %9 = sbr.rel target = $region3
  $region8: #{mask_decoder_forward.9} parent=0 // loop_exit
    _

// kernel: mask_decoder_forward.10
$region0: #{mask_decoder_forward.10}
  #allocation0 [shape = 'u32[]', space=smem, size = 0x4, offset = 0x4, fixed_abs, tag = 'smem constant byte address 0x4 - core index']
  #allocation1 [shape = 'u32[144,128]{1,0:T(1,128)}', space=vmem, size = 0x12000, scoped, tag = 'internal scratch']
  %s0 = inlined_call_operand.vmem [shape: f32[448,224], index: 0, kind: input, shape index: {}]
  %s1 = inlined_call_operand.vmem [shape: f32[224,64], index: 1, kind: input, shape index: {}]
  %s2 = inlined_call_operand.vmem [shape: f32[1,64], index: 2, kind: input, shape index: {}]
  %s3 = inlined_call_operand.vmem [shape: f32[1,64], index: 3, kind: input, shape index: {}]
  %s4 = inlined_call_operand.vmem [shape: f32[448,64], index: 4, kind: output, shape index: {}]
  %s5 = sld [smem:[#allocation0]]
  $region26: #{mask_decoder_forward.10} parent=0
    _
  %s7 = ssub.s32 1, %s5
  %s8 = scalar_select 0, %s7, %s5
  // Predicated region
  $region2: #{mask_decoder_forward.10} parent=0 // pred_check
    _
  $region3: #{mask_decoder_forward.10} parent=0 // pred_check_branch
    %10 = sbr.rel (0) target = $region5
  $region4: #{mask_decoder_forward.10} parent=0 // pred_region
    _
  $region5: #{mask_decoder_forward.10} parent=0 // pred_fallthru
    _
  // Predicated region
  $region6: #{mask_decoder_forward.10} parent=0 // pred_check
    _
  $region7: #{mask_decoder_forward.10} parent=0 // pred_check_branch
    %12 = sbr.rel (0) target = $region9
  $region8: #{mask_decoder_forward.10} parent=0 // pred_region
    _
  $region9: #{mask_decoder_forward.10} parent=0 // pred_fallthru
    _
  // Predicated region
  $region10: #{mask_decoder_forward.10} parent=0 // pred_check
    _
  $region11: #{mask_decoder_forward.10} parent=0 // pred_check_branch
    %14 = sbr.rel (0) target = $region13
  $region12: #{mask_decoder_forward.10} parent=0 // pred_region
    _
  $region13: #{mask_decoder_forward.10} parent=0 // pred_fallthru
    _
  // Predicated region
  $region14: #{mask_decoder_forward.10} parent=0 // pred_check
    _
  $region15: #{mask_decoder_forward.10} parent=0 // pred_check_branch
    %16 = sbr.rel (0) target = $region17
  $region16: #{mask_decoder_forward.10} parent=0 // pred_region
    _
  $region17: #{mask_decoder_forward.10} parent=0 // pred_fallthru
    _
  %v17 = vld [vmem:[%s0] sm:$0xff]
  %v18 = vld [vmem:[%s0 + $0x8] sm:$0xff]
  %v19 = vld [vmem:[%s0 + $0x10] sm:$0xff]
  %v20 = vld [vmem:[%s0 + $0x18] sm:$0xff]
  %v21 = vld [vmem:[%s0 + $0x20] sm:$0xff]
  %v22 = vld [vmem:[%s0 + $0x28] sm:$0xff]
  %v23 = vld [vmem:[%s0 + $0x30] sm:$0xff]
  %v24 = vld [vmem:[%s0 + $0x38] sm:$0xff]
  %v25 = vld [vmem:[%s0 + $0x40] sm:$0xff]
  %v26 = vld [vmem:[%s0 + $0x48] sm:$0xff]
  %v27 = vld [vmem:[%s0 + $0x50] sm:$0xff]
  %v28 = vld [vmem:[%s0 + $0x58] sm:$0xff]
  %v29 = vld [vmem:[%s0 + $0x60] sm:$0xff]
  %v30 = vld [vmem:[%s0 + $0x68] sm:$0xff]
  %v31 = vld [vmem:[%s0 + $0x70] sm:$0xff]
  %v32 = vld [vmem:[%s0 + $0x78] sm:$0xff]
  %v33 = vld [vmem:[%s0 + $0x80] sm:$0xff]
  %v34 = vld [vmem:[%s0 + $0x88] sm:$0xff]
  %v35 = vld [vmem:[%s0 + $0x90] sm:$0xff]
  %v36 = vld [vmem:[%s0 + $0x98] sm:$0xff]
  %v37 = vld [vmem:[%s0 + $0xa0] sm:$0xff]
  %v38 = vld [vmem:[%s0 + $0xa8] sm:$0xff]
  %v39 = vld [vmem:[%s0 + $0xb0] sm:$0xff]
  %v40 = vld [vmem:[%s0 + $0xb8] sm:$0xff]
  %v41 = vld [vmem:[%s0 + $0xc0] sm:$0xff]
  %v42 = vld [vmem:[%s0 + $0xc8] sm:$0xff]
  %v43 = vld [vmem:[%s0 + $0xd0] sm:$0xff]
  %v44 = vld [vmem:[%s0 + $0xd8] sm:$0xff]
  %v45 = vld [vmem:[%s0 + $0xe0] sm:$0xff]
  %v46 = vld [vmem:[%s0 + $0xe8] sm:$0xff]
  %v47 = vld [vmem:[%s0 + $0xf0] sm:$0xff]
  %v48 = vld [vmem:[%s0 + $0xf8] sm:$0xff]
  %v49 = vld [vmem:[%s0 + $0x100] sm:$0xff]
  %v50 = vld [vmem:[%s0 + $0x108] sm:$0xff]
  %v51 = vld [vmem:[%s0 + $0x110] sm:$0xff]
  %v52 = vld [vmem:[%s0 + $0x118] sm:$0xff]
  %v53 = vld [vmem:[%s0 + $0x120] sm:$0xff]
  %v54 = vld [vmem:[%s0 + $0x128] sm:$0xff]
  %v55 = vld [vmem:[%s0 + $0x130] sm:$0xff]
  %v56 = vld [vmem:[%s0 + $0x138] sm:$0xff]
  %v57 = vld [vmem:[%s0 + $0x140] sm:$0xff]
  %v58 = vld [vmem:[%s0 + $0x148] sm:$0xff]
  %v59 = vld [vmem:[%s0 + $0x150] sm:$0xff]
  %v60 = vld [vmem:[%s0 + $0x158] sm:$0xff]
  %v61 = vld [vmem:[%s0 + $0x160] sm:$0xff]
  %v62 = vld [vmem:[%s0 + $0x168] sm:$0xff]
  %v63 = vld [vmem:[%s0 + $0x170] sm:$0xff]
  %v64 = vld [vmem:[%s0 + $0x178] sm:$0xff]
  %v65 = vld [vmem:[%s0 + $0x180] sm:$0xff]
  %v66 = vld [vmem:[%s0 + $0x188] sm:$0xff]
  %v67 = vld [vmem:[%s0 + $0x190] sm:$0xff]
  %v68 = vld [vmem:[%s0 + $0x198] sm:$0xff]
  %v69 = vld [vmem:[%s0 + $0x1a0] sm:$0xff]
  %v70 = vld [vmem:[%s0 + $0x1a8] sm:$0xff]
  %v71 = vld [vmem:[%s0 + $0x1b0] sm:$0xff]
  %v72 = vld [vmem:[%s0 + $0x1b8] sm:$0xff]
  %v73 = vld [vmem:[%s0 + $0x1c0] sm:$0xff]
  %v74 = vld [vmem:[%s0 + $0x1c8] sm:$0xff]
  %v75 = vld [vmem:[%s0 + $0x1d0] sm:$0xff]
  %v76 = vld [vmem:[%s0 + $0x1d8] sm:$0xff]
  %v77 = vld [vmem:[%s0 + $0x1e0] sm:$0xff]
  %v78 = vld [vmem:[%s0 + $0x1e8] sm:$0xff]
  %v79 = vld [vmem:[%s0 + $0x1f0] sm:$0xff]
  %v80 = vld [vmem:[%s0 + $0x1f8] sm:$0xff]
  %v81 = vld [vmem:[%s0 + $0x200] sm:$0xff]
  %v82 = vld [vmem:[%s0 + $0x208] sm:$0xff]
  %v83 = vld [vmem:[%s0 + $0x210] sm:$0xff]
  %v84 = vld [vmem:[%s0 + $0x218] sm:$0xff]
  %v85 = vld [vmem:[%s0 + $0x220] sm:$0xff]
  %v86 = vld [vmem:[%s0 + $0x228] sm:$0xff]
  %v87 = vld [vmem:[%s0 + $0x230] sm:$0xff]
  %v88 = vld [vmem:[%s0 + $0x238] sm:$0xff]
  %v89 = vld [vmem:[%s0 + $0x240] sm:$0xff]
  %v90 = vld [vmem:[%s0 + $0x248] sm:$0xff]
  %v91 = vld [vmem:[%s0 + $0x250] sm:$0xff]
  %v92 = vld [vmem:[%s0 + $0x258] sm:$0xff]
  %v93 = vld [vmem:[%s0 + $0x260] sm:$0xff]
  %v94 = vld [vmem:[%s0 + $0x268] sm:$0xff]
  %v95 = vld [vmem:[%s0 + $0x270] sm:$0xff]
  %v96 = vld [vmem:[%s0 + $0x278] sm:$0xff]
  %v97 = vld [vmem:[%s0 + $0x280] sm:$0xff]
  %v98 = vld [vmem:[%s0 + $0x288] sm:$0xff]
  %v99 = vld [vmem:[%s0 + $0x290] sm:$0xff]
  %v100 = vld [vmem:[%s0 + $0x298] sm:$0xff]
  %v101 = vld [vmem:[%s0 + $0x2a0] sm:$0xff]
  %v102 = vld [vmem:[%s0 + $0x2a8] sm:$0xff]
  %v103 = vld [vmem:[%s0 + $0x2b0] sm:$0xff]
  %v104 = vld [vmem:[%s0 + $0x2b8] sm:$0xff]
  %v105 = vld [vmem:[%s0 + $0x2c0] sm:$0xff]
  %v106 = vld [vmem:[%s0 + $0x2c8] sm:$0xff]
  %v107 = vld [vmem:[%s0 + $0x2d0] sm:$0xff]
  %v108 = vld [vmem:[%s0 + $0x2d8] sm:$0xff]
  %v109 = vld [vmem:[%s0 + $0x2e0] sm:$0xff]
  %v110 = vld [vmem:[%s0 + $0x2e8] sm:$0xff]
  %v111 = vld [vmem:[%s0 + $0x2f0] sm:$0xff]
  %v112 = vld [vmem:[%s0 + $0x2f8] sm:$0xff]
  %v113 = vld [vmem:[%s0 + $0x300] sm:$0xff]
  %v114 = vld [vmem:[%s0 + $0x308] sm:$0xff]
  %v115 = vld [vmem:[%s0 + $0x310] sm:$0xff]
  %v116 = vld [vmem:[%s0 + $0x318] sm:$0xff]
  %v117 = vld [vmem:[%s0 + $0x320] sm:$0xff]
  %v118 = vld [vmem:[%s0 + $0x328] sm:$0xff]
  %v119 = vld [vmem:[%s0 + $0x330] sm:$0xff]
  %v120 = vld [vmem:[%s0 + $0x338] sm:$0xff]
  %v121 = vld [vmem:[%s0 + $0x340] sm:$0xff]
  %v122 = vld [vmem:[%s0 + $0x348] sm:$0xff]
  %v123 = vld [vmem:[%s0 + $0x350] sm:$0xff]
  %v124 = vld [vmem:[%s0 + $0x358] sm:$0xff]
  %v125 = vld [vmem:[%s0 + $0x360] sm:$0xff]
  %v126 = vld [vmem:[%s0 + $0x368] sm:$0xff]
  %v127 = vld [vmem:[%s0 + $0x370] sm:$0xff]
  %v128 = vld [vmem:[%s0 + $0x378] sm:$0xff]
  %v129 = vld [vmem:[%s1] sm:$0xff]
  %v130 = vld [vmem:[%s1 + $0x8] sm:$0xff]
  %v131 = vld [vmem:[%s1 + $0x10] sm:$0xff]
  %v132 = vld [vmem:[%s1 + $0x18] sm:$0xff]
  %v133 = vld [vmem:[%s1 + $0x20] sm:$0xff]
  %v134 = vld [vmem:[%s1 + $0x28] sm:$0xff]
  %v135 = vld [vmem:[%s1 + $0x30] sm:$0xff]
  %v136 = vld [vmem:[%s1 + $0x38] sm:$0xff]
  %v137 = vld [vmem:[%s1 + $0x40] sm:$0xff]
  %v138 = vld [vmem:[%s1 + $0x48] sm:$0xff]
  %v139 = vld [vmem:[%s1 + $0x50] sm:$0xff]
  %v140 = vld [vmem:[%s1 + $0x58] sm:$0xff]
  %v141 = vld [vmem:[%s1 + $0x60] sm:$0xff]
  %v142 = vld [vmem:[%s1 + $0x68] sm:$0xff]
  %v143 = vld [vmem:[%s1 + $0x70] sm:$0xff]
  %v144 = vld [vmem:[%s1 + $0x78] sm:$0xff]
  %v145 = vld [vmem:[%s1 + $0x80] sm:$0xff]
  %v146 = vld [vmem:[%s1 + $0x88] sm:$0xff]
  %v147 = vld [vmem:[%s1 + $0x90] sm:$0xff]
  %v148 = vld [vmem:[%s1 + $0x98] sm:$0xff]
  %v149 = vld [vmem:[%s1 + $0xa0] sm:$0xff]
  %v150 = vld [vmem:[%s1 + $0xa8] sm:$0xff]
  %v151 = vld [vmem:[%s1 + $0xb0] sm:$0xff]
  %v152 = vld [vmem:[%s1 + $0xb8] sm:$0xff]
  %v153 = vld [vmem:[%s1 + $0xc0] sm:$0xff]
  %v154 = vld [vmem:[%s1 + $0xc8] sm:$0xff]
  %v155 = vld [vmem:[%s1 + $0xd0] sm:$0xff]
  %v156 = vld [vmem:[%s1 + $0xd8] sm:$0xff]
  %vm157 = vcmask 785408
  %v159 = vsel %vm157, %v18, 0
  %v162 = vsel %vm157, %v20, 0
  %v165 = vsel %vm157, %v22, 0
  %v168 = vsel %vm157, %v24, 0
  %v171 = vsel %vm157, %v26, 0
  %v174 = vsel %vm157, %v28, 0
  %v177 = vsel %vm157, %v30, 0
  %v180 = vsel %vm157, %v32, 0
  %v183 = vsel %vm157, %v34, 0
  %v186 = vsel %vm157, %v36, 0
  %v189 = vsel %vm157, %v38, 0
  %v192 = vsel %vm157, %v40, 0
  %v195 = vsel %vm157, %v42, 0
  %v198 = vsel %vm157, %v44, 0
  %v201 = vsel %vm157, %v46, 0
  %v204 = vsel %vm157, %v48, 0
  %v207 = vsel %vm157, %v50, 0
  %v210 = vsel %vm157, %v52, 0
  %v213 = vsel %vm157, %v54, 0
  %v216 = vsel %vm157, %v56, 0
  %v219 = vsel %vm157, %v58, 0
  %v222 = vsel %vm157, %v60, 0
  %v225 = vsel %vm157, %v62, 0
  %v228 = vsel %vm157, %v64, 0
  %v231 = vsel %vm157, %v66, 0
  %v234 = vsel %vm157, %v68, 0
  %v237 = vsel %vm157, %v70, 0
  %v240 = vsel %vm157, %v72, 0
  %v243 = vsel %vm157, %v74, 0
  %v246 = vsel %vm157, %v76, 0
  %v249 = vsel %vm157, %v78, 0
  %v252 = vsel %vm157, %v80, 0
  %v255 = vsel %vm157, %v82, 0
  %v258 = vsel %vm157, %v84, 0
  %v261 = vsel %vm157, %v86, 0
  %v264 = vsel %vm157, %v88, 0
  %v267 = vsel %vm157, %v90, 0
  %v270 = vsel %vm157, %v92, 0
  %v273 = vsel %vm157, %v94, 0
  %v276 = vsel %vm157, %v96, 0
  %v279 = vsel %vm157, %v98, 0
  %v282 = vsel %vm157, %v100, 0
  %v285 = vsel %vm157, %v102, 0
  %v288 = vsel %vm157, %v104, 0
  %v291 = vsel %vm157, %v106, 0
  %v294 = vsel %vm157, %v108, 0
  %v297 = vsel %vm157, %v110, 0
  %v300 = vsel %vm157, %v112, 0
  %v303 = vsel %vm157, %v114, 0
  %v306 = vsel %vm157, %v116, 0
  %v309 = vsel %vm157, %v118, 0
  %v312 = vsel %vm157, %v120, 0
  %v315 = vsel %vm157, %v122, 0
  %v318 = vsel %vm157, %v124, 0
  %v321 = vsel %vm157, %v126, 0
  %v324 = vsel %vm157, %v128, 0
  %326 = vmatprep.subr.mxu0 0.0
  %327 = vmatpush1.msra.mxu0 %v144
  %328 = vmatprep.subr.mxu0 0.0
  %329 = vmatpush1.msra.mxu0 %v143
  %330 = vmatprep.subr.mxu0 0.0
  %331 = vmatpush1.msra.mxu0 %v142
  %332 = vmatprep.subr.mxu0 0.0
  %333 = vmatpush1.msra.mxu0 %v141
  %334 = vmatprep.subr.mxu0 0.0
  %335 = vmatpush1.msra.mxu0 %v140
  %336 = vmatprep.subr.mxu0 0.0
  %337 = vmatpush1.msra.mxu0 %v139
  %338 = vmatprep.subr.mxu0 0.0
  %339 = vmatpush1.msra.mxu0 %v138
  %340 = vmatprep.subr.mxu0 0.0
  %341 = vmatpush1.msra.mxu0 %v137
  %342 = vmatprep.subr.mxu0 0.0
  %343 = vmatpush1.msra.mxu0 %v136
  %344 = vmatprep.subr.mxu0 0.0
  %345 = vmatpush1.msra.mxu0 %v135
  %346 = vmatprep.subr.mxu0 0.0
  %347 = vmatpush1.msra.mxu0 %v134
  %348 = vmatprep.subr.mxu0 0.0
  %349 = vmatpush1.msra.mxu0 %v133
  %350 = vmatprep.subr.mxu0 0.0
  %351 = vmatpush1.msra.mxu0 %v132
  %352 = vmatprep.subr.mxu0 0.0
  %353 = vmatpush1.msra.mxu0 %v131
  %354 = vmatprep.subr.mxu0 0.0
  %355 = vmatpush1.msra.mxu0 %v130
  %356 = vmatprep.subr.mxu0 0.0
  %357 = vmatpush1.msra.mxu0 %v129
  %358 = vmatprep.subr.mxu0 0.0
  %359 = vmatpush2.msra.mxu0 0.0
  %360 = vmatprep.subr.mxu0 0.0
  %361 = vmatpush2.msra.mxu0 0.0
  %362 = vmatprep.subr.mxu0 0.0
  %363 = vmatpush2.msra.mxu0 0.0
  %364 = vmatprep.subr.mxu0 0.0
  %365 = vmatpush2.msra.mxu0 0.0
  %366 = vmatprep.subr.mxu0 0.0
  %367 = vmatpush2.msra.mxu0 %v156
  %368 = vmatprep.subr.mxu0 0.0
  %369 = vmatpush2.msra.mxu0 %v155
  %370 = vmatprep.subr.mxu0 0.0
  %371 = vmatpush2.msra.mxu0 %v154
  %372 = vmatprep.subr.mxu0 0.0
  %373 = vmatpush2.msra.mxu0 %v153
  %374 = vmatprep.subr.mxu0 0.0
  %375 = vmatpush2.msra.mxu0 %v152
  %376 = vmatprep.subr.mxu0 0.0
  %377 = vmatpush2.msra.mxu0 %v151
  %378 = vmatprep.subr.mxu0 0.0
  %379 = vmatpush2.msra.mxu0 %v150
  %380 = vmatprep.subr.mxu0 0.0
  %381 = vmatpush2.msra.mxu0 %v149
  %382 = vmatprep.subr.mxu0 0.0
  %383 = vmatpush2.msra.mxu0 %v148
  %384 = vmatprep.subr.mxu0 0.0
  %385 = vmatpush2.msra.mxu0 %v147
  %386 = vmatprep.subr.mxu0 0.0
  %387 = vmatpush2.msra.mxu0 %v146
  %388 = vmatprep.subr.mxu0 0.0
  %389 = vmatpush2.msra.mxu0 %v145
  %390 = vmatprep.mubr.f32.mxu0 %v159
  %391 = vmatmul.mubr.f32.gmra.mxu0 %v17
  %v392 = vpop.f32.mrf.mxu0
  %v393 = vadd.f32 0.0, %v392
  %v394 = vpop.f32.mrf.mxu0
  %395 = vmatprep.mubr.f32.mxu0 %v162
  %396 = vmatmul.mubr.f32.gmra.mxu0 %v19
  %v397 = vpop.f32.mrf.mxu0
  %v398 = vadd.f32 0.0, %v397
  %v399 = vpop.f32.mrf.mxu0
  %400 = vmatprep.mubr.f32.mxu0 %v165
  %401 = vmatmul.mubr.f32.gmra.mxu0 %v21
  %v402 = vpop.f32.mrf.mxu0
  %v403 = vadd.f32 0.0, %v402
  %v404 = vpop.f32.mrf.mxu0
  %405 = vmatprep.mubr.f32.mxu0 %v168
  %406 = vmatmul.mubr.f32.gmra.mxu0 %v23
  %v407 = vpop.f32.mrf.mxu0
  %v408 = vadd.f32 0.0, %v407
  %v409 = vpop.f32.mrf.mxu0
  %410 = vmatprep.mubr.f32.mxu0 %v171
  %411 = vmatmul.mubr.f32.gmra.mxu0 %v25
  %v412 = vpop.f32.mrf.mxu0
  %v413 = vadd.f32 0.0, %v412
  %v414 = vpop.f32.mrf.mxu0
  %415 = vmatprep.mubr.f32.mxu0 %v174
  %416 = vmatmul.mubr.f32.gmra.mxu0 %v27
  %v417 = vpop.f32.mrf.mxu0
  %v418 = vadd.f32 0.0, %v417
  %v419 = vpop.f32.mrf.mxu0
  %420 = vmatprep.mubr.f32.mxu0 %v177
  %421 = vmatmul.mubr.f32.gmra.mxu0 %v29
  %v422 = vpop.f32.mrf.mxu0
  %v423 = vadd.f32 0.0, %v422
  %v424 = vpop.f32.mrf.mxu0
  %425 = vmatprep.mubr.f32.mxu0 %v180
  %426 = vmatmul.mubr.f32.gmra.mxu0 %v31
  %v427 = vpop.f32.mrf.mxu0
  %v428 = vadd.f32 0.0, %v427
  %v429 = vpop.f32.mrf.mxu0
  %430 = vmatprep.mubr.f32.mxu0 %v183
  %431 = vmatmul.mubr.f32.gmra.mxu0 %v33
  %v432 = vpop.f32.mrf.mxu0
  %v433 = vadd.f32 0.0, %v432
  %v434 = vpop.f32.mrf.mxu0
  %435 = vmatprep.mubr.f32.mxu0 %v186
  %436 = vmatmul.mubr.f32.gmra.mxu0 %v35
  %v437 = vpop.f32.mrf.mxu0
  %v438 = vadd.f32 0.0, %v437
  %v439 = vpop.f32.mrf.mxu0
  %440 = vmatprep.mubr.f32.mxu0 %v189
  %441 = vmatmul.mubr.f32.gmra.mxu0 %v37
  %v442 = vpop.f32.mrf.mxu0
  %v443 = vadd.f32 0.0, %v442
  %v444 = vpop.f32.mrf.mxu0
  %445 = vmatprep.mubr.f32.mxu0 %v192
  %446 = vmatmul.mubr.f32.gmra.mxu0 %v39
  %v447 = vpop.f32.mrf.mxu0
  %v448 = vadd.f32 0.0, %v447
  %v449 = vpop.f32.mrf.mxu0
  %450 = vmatprep.mubr.f32.mxu0 %v195
  %451 = vmatmul.mubr.f32.gmra.mxu0 %v41
  %v452 = vpop.f32.mrf.mxu0
  %v453 = vadd.f32 0.0, %v452
  %v454 = vpop.f32.mrf.mxu0
  %455 = vmatprep.mubr.f32.mxu0 %v198
  %456 = vmatmul.mubr.f32.gmra.mxu0 %v43
  %v457 = vpop.f32.mrf.mxu0
  %v458 = vadd.f32 0.0, %v457
  %v459 = vpop.f32.mrf.mxu0
  %460 = vmatprep.mubr.f32.mxu0 %v201
  %461 = vmatmul.mubr.f32.gmra.mxu0 %v45
  %v462 = vpop.f32.mrf.mxu0
  %v463 = vadd.f32 0.0, %v462
  %v464 = vpop.f32.mrf.mxu0
  %465 = vmatprep.mubr.f32.mxu0 %v204
  %466 = vmatmul.mubr.f32.gmra.mxu0 %v47
  %v467 = vpop.f32.mrf.mxu0
  %v468 = vadd.f32 0.0, %v467
  %v469 = vpop.f32.mrf.mxu0
  %470 = vmatprep.mubr.f32.mxu0 %v207
  %471 = vmatmul.mubr.f32.gmra.mxu0 %v49
  %v472 = vpop.f32.mrf.mxu0
  %v473 = vadd.f32 0.0, %v472
  %v474 = vpop.f32.mrf.mxu0
  %475 = vmatprep.mubr.f32.mxu0 %v210
  %476 = vmatmul.mubr.f32.gmra.mxu0 %v51
  %v477 = vpop.f32.mrf.mxu0
  %v478 = vadd.f32 0.0, %v477
  %v479 = vpop.f32.mrf.mxu0
  %480 = vmatprep.mubr.f32.mxu0 %v213
  %481 = vmatmul.mubr.f32.gmra.mxu0 %v53
  %v482 = vpop.f32.mrf.mxu0
  %v483 = vadd.f32 0.0, %v482
  %v484 = vpop.f32.mrf.mxu0
  %485 = vmatprep.mubr.f32.mxu0 %v216
  %486 = vmatmul.mubr.f32.gmra.mxu0 %v55
  %v487 = vpop.f32.mrf.mxu0
  %v488 = vadd.f32 0.0, %v487
  %v489 = vpop.f32.mrf.mxu0
  %490 = vmatprep.mubr.f32.mxu0 %v219
  %491 = vmatmul.mubr.f32.gmra.mxu0 %v57
  %v492 = vpop.f32.mrf.mxu0
  %v493 = vadd.f32 0.0, %v492
  %v494 = vpop.f32.mrf.mxu0
  %495 = vmatprep.mubr.f32.mxu0 %v222
  %496 = vmatmul.mubr.f32.gmra.mxu0 %v59
  %v497 = vpop.f32.mrf.mxu0
  %v498 = vadd.f32 0.0, %v497
  %v499 = vpop.f32.mrf.mxu0
  %500 = vmatprep.mubr.f32.mxu0 %v225
  %501 = vmatmul.mubr.f32.gmra.mxu0 %v61
  %v502 = vpop.f32.mrf.mxu0
  %v503 = vadd.f32 0.0, %v502
  %v504 = vpop.f32.mrf.mxu0
  %505 = vmatprep.mubr.f32.mxu0 %v228
  %506 = vmatmul.mubr.f32.gmra.mxu0 %v63
  %v507 = vpop.f32.mrf.mxu0
  %v508 = vadd.f32 0.0, %v507
  %v509 = vpop.f32.mrf.mxu0
  %510 = vmatprep.mubr.f32.mxu0 %v231
  %511 = vmatmul.mubr.f32.gmra.mxu0 %v65
  %v512 = vpop.f32.mrf.mxu0
  %v513 = vadd.f32 0.0, %v512
  %v514 = vpop.f32.mrf.mxu0
  %515 = vmatprep.mubr.f32.mxu0 %v234
  %516 = vmatmul.mubr.f32.gmra.mxu0 %v67
  %v517 = vpop.f32.mrf.mxu0
  %v518 = vadd.f32 0.0, %v517
  %v519 = vpop.f32.mrf.mxu0
  %520 = vmatprep.mubr.f32.mxu0 %v237
  %521 = vmatmul.mubr.f32.gmra.mxu0 %v69
  %v522 = vpop.f32.mrf.mxu0
  %v523 = vadd.f32 0.0, %v522
  %v524 = vpop.f32.mrf.mxu0
  %525 = vmatprep.mubr.f32.mxu0 %v240
  %526 = vmatmul.mubr.f32.gmra.mxu0 %v71
  %v527 = vpop.f32.mrf.mxu0
  %v528 = vadd.f32 0.0, %v527
  %v529 = vpop.f32.mrf.mxu0
  %530 = vmatprep.mubr.f32.mxu0 %v243
  %531 = vmatmul.mubr.f32.gmra.mxu0 %v73
  %v532 = vpop.f32.mrf.mxu0
  %v533 = vadd.f32 0.0, %v532
  %v534 = vpop.f32.mrf.mxu0
  %535 = vmatprep.mubr.f32.mxu0 %v246
  %536 = vmatmul.mubr.f32.gmra.mxu0 %v75
  %v537 = vpop.f32.mrf.mxu0
  %v538 = vadd.f32 0.0, %v537
  %v539 = vpop.f32.mrf.mxu0
  %540 = vmatprep.mubr.f32.mxu0 %v249
  %541 = vmatmul.mubr.f32.gmra.mxu0 %v77
  %v542 = vpop.f32.mrf.mxu0
  %v543 = vadd.f32 0.0, %v542
  %v544 = vpop.f32.mrf.mxu0
  %545 = vmatprep.mubr.f32.mxu0 %v252
  %546 = vmatmul.mubr.f32.gmra.mxu0 %v79
  %v547 = vpop.f32.mrf.mxu0
  %v548 = vadd.f32 0.0, %v547
  %v549 = vpop.f32.mrf.mxu0
  %550 = vmatprep.mubr.f32.mxu0 %v255
  %551 = vmatmul.mubr.f32.gmra.mxu0 %v81
  %v552 = vpop.f32.mrf.mxu0
  %v553 = vadd.f32 0.0, %v552
  %v554 = vpop.f32.mrf.mxu0
  %555 = vmatprep.mubr.f32.mxu0 %v258
  %556 = vmatmul.mubr.f32.gmra.mxu0 %v83
  %v557 = vpop.f32.mrf.mxu0
  %v558 = vadd.f32 0.0, %v557
  %v559 = vpop.f32.mrf.mxu0
  %560 = vmatprep.mubr.f32.mxu0 %v261
  %561 = vmatmul.mubr.f32.gmra.mxu0 %v85
  %v562 = vpop.f32.mrf.mxu0
  %v563 = vadd.f32 0.0, %v562
  %v564 = vpop.f32.mrf.mxu0
  %565 = vmatprep.mubr.f32.mxu0 %v264
  %566 = vmatmul.mubr.f32.gmra.mxu0 %v87
  %v567 = vpop.f32.mrf.mxu0
  %v568 = vadd.f32 0.0, %v567
  %v569 = vpop.f32.mrf.mxu0
  %570 = vmatprep.mubr.f32.mxu0 %v267
  %571 = vmatmul.mubr.f32.gmra.mxu0 %v89
  %v572 = vpop.f32.mrf.mxu0
  %v573 = vadd.f32 0.0, %v572
  %v574 = vpop.f32.mrf.mxu0
  %575 = vmatprep.mubr.f32.mxu0 %v270
  %576 = vmatmul.mubr.f32.gmra.mxu0 %v91
  %v577 = vpop.f32.mrf.mxu0
  %v578 = vadd.f32 0.0, %v577
  %v579 = vpop.f32.mrf.mxu0
  %580 = vmatprep.mubr.f32.mxu0 %v273
  %581 = vmatmul.mubr.f32.gmra.mxu0 %v93
  %v582 = vpop.f32.mrf.mxu0
  %v583 = vadd.f32 0.0, %v582
  %v584 = vpop.f32.mrf.mxu0
  %585 = vmatprep.mubr.f32.mxu0 %v276
  %586 = vmatmul.mubr.f32.gmra.mxu0 %v95
  %v587 = vpop.f32.mrf.mxu0
  %v588 = vadd.f32 0.0, %v587
  %v589 = vpop.f32.mrf.mxu0
  %590 = vmatprep.mubr.f32.mxu0 %v279
  %591 = vmatmul.mubr.f32.gmra.mxu0 %v97
  %v592 = vpop.f32.mrf.mxu0
  %v593 = vadd.f32 0.0, %v592
  %v594 = vpop.f32.mrf.mxu0
  %595 = vmatprep.mubr.f32.mxu0 %v282
  %596 = vmatmul.mubr.f32.gmra.mxu0 %v99
  %v597 = vpop.f32.mrf.mxu0
  %v598 = vadd.f32 0.0, %v597
  %v599 = vpop.f32.mrf.mxu0
  %600 = vmatprep.mubr.f32.mxu0 %v285
  %601 = vmatmul.mubr.f32.gmra.mxu0 %v101
  %v602 = vpop.f32.mrf.mxu0
  %v603 = vadd.f32 0.0, %v602
  %v604 = vpop.f32.mrf.mxu0
  %605 = vmatprep.mubr.f32.mxu0 %v288
  %606 = vmatmul.mubr.f32.gmra.mxu0 %v103
  %v607 = vpop.f32.mrf.mxu0
  %v608 = vadd.f32 0.0, %v607
  %v609 = vpop.f32.mrf.mxu0
  %610 = vmatprep.mubr.f32.mxu0 %v291
  %611 = vmatmul.mubr.f32.gmra.mxu0 %v105
  %v612 = vpop.f32.mrf.mxu0
  %v613 = vadd.f32 0.0, %v612
  %v614 = vpop.f32.mrf.mxu0
  %615 = vmatprep.mubr.f32.mxu0 %v294
  %616 = vmatmul.mubr.f32.gmra.mxu0 %v107
  %v617 = vpop.f32.mrf.mxu0
  %v618 = vadd.f32 0.0, %v617
  %v619 = vpop.f32.mrf.mxu0
  %620 = vmatprep.mubr.f32.mxu0 %v297
  %621 = vmatmul.mubr.f32.gmra.mxu0 %v109
  %v622 = vpop.f32.mrf.mxu0
  %v623 = vadd.f32 0.0, %v622
  %v624 = vpop.f32.mrf.mxu0
  %625 = vmatprep.mubr.f32.mxu0 %v300
  %626 = vmatmul.mubr.f32.gmra.mxu0 %v111
  %v627 = vpop.f32.mrf.mxu0
  %v628 = vadd.f32 0.0, %v627
  %v629 = vpop.f32.mrf.mxu0
  %630 = vmatprep.mubr.f32.mxu0 %v303
  %631 = vmatmul.mubr.f32.gmra.mxu0 %v113
  %v632 = vpop.f32.mrf.mxu0
  %v633 = vadd.f32 0.0, %v632
  %v634 = vpop.f32.mrf.mxu0
  %635 = vmatprep.mubr.f32.mxu0 %v306
  %636 = vmatmul.mubr.f32.gmra.mxu0 %v115
  %v637 = vpop.f32.mrf.mxu0
  %v638 = vadd.f32 0.0, %v637
  %v639 = vpop.f32.mrf.mxu0
  %640 = vmatprep.mubr.f32.mxu0 %v309
  %641 = vmatmul.mubr.f32.gmra.mxu0 %v117
  %v642 = vpop.f32.mrf.mxu0
  %v643 = vadd.f32 0.0, %v642
  %v644 = vpop.f32.mrf.mxu0
  %645 = vmatprep.mubr.f32.mxu0 %v312
  %646 = vmatmul.mubr.f32.gmra.mxu0 %v119
  %v647 = vpop.f32.mrf.mxu0
  %v648 = vadd.f32 0.0, %v647
  %v649 = vpop.f32.mrf.mxu0
  %650 = vmatprep.mubr.f32.mxu0 %v315
  %651 = vmatmul.mubr.f32.gmra.mxu0 %v121
  %v652 = vpop.f32.mrf.mxu0
  %v653 = vadd.f32 0.0, %v652
  %v654 = vpop.f32.mrf.mxu0
  %655 = vmatprep.mubr.f32.mxu0 %v318
  %656 = vmatmul.mubr.f32.gmra.mxu0 %v123
  %v657 = vpop.f32.mrf.mxu0
  %v658 = vadd.f32 0.0, %v657
  %v659 = vpop.f32.mrf.mxu0
  %660 = vmatprep.mubr.f32.mxu0 %v321
  %661 = vmatmul.mubr.f32.gmra.mxu0 %v125
  %v662 = vpop.f32.mrf.mxu0
  %v663 = vadd.f32 0.0, %v662
  %v664 = vpop.f32.mrf.mxu0
  %665 = vmatprep.mubr.f32.mxu0 %v324
  %666 = vmatmul.mubr.f32.gmra.mxu0 %v127
  %v667 = vpop.f32.mrf.mxu0
  %v668 = vadd.f32 0.0, %v667
  %v669 = vpop.f32.mrf.mxu0
  %670 = vdwg.mxu0
  %v671 = vld [vmem:[%s2] sm:$0x1]
  %v673 = vlaneseq
  %v674 = vshrl.u32 %v673, 7
  %v675 = vsub.s32 0, %v674
  %v676 = vrot.slane %v671, %v675
  %v678 = vmul.f32 %v393, %v676
  %v679 = vmul.f32 %v398, %v676
  %v680 = vmul.f32 %v403, %v676
  %v681 = vmul.f32 %v408, %v676
  %v682 = vmul.f32 %v413, %v676
  %v683 = vmul.f32 %v418, %v676
  %v684 = vmul.f32 %v423, %v676
  %v685 = vmul.f32 %v428, %v676
  %v686 = vmul.f32 %v433, %v676
  %v687 = vmul.f32 %v438, %v676
  %v688 = vmul.f32 %v443, %v676
  %v689 = vmul.f32 %v448, %v676
  %v690 = vmul.f32 %v453, %v676
  %v691 = vmul.f32 %v458, %v676
  %v692 = vmul.f32 %v463, %v676
  %v693 = vmul.f32 %v468, %v676
  %v694 = vmul.f32 %v473, %v676
  %v695 = vmul.f32 %v478, %v676
  %v696 = vmul.f32 %v483, %v676
  %v697 = vmul.f32 %v488, %v676
  %v698 = vmul.f32 %v493, %v676
  %v699 = vmul.f32 %v498, %v676
  %v700 = vmul.f32 %v503, %v676
  %v701 = vmul.f32 %v508, %v676
  %v702 = vmul.f32 %v513, %v676
  %v703 = vmul.f32 %v518, %v676
  %v704 = vmul.f32 %v523, %v676
  %v705 = vmul.f32 %v528, %v676
  %v706 = vmul.f32 %v533, %v676
  %v707 = vmul.f32 %v538, %v676
  %v708 = vmul.f32 %v543, %v676
  %v709 = vmul.f32 %v548, %v676
  %v710 = vmul.f32 %v553, %v676
  %v711 = vmul.f32 %v558, %v676
  %v712 = vmul.f32 %v563, %v676
  %v713 = vmul.f32 %v568, %v676
  %v714 = vmul.f32 %v573, %v676
  %v715 = vmul.f32 %v578, %v676
  %v716 = vmul.f32 %v583, %v676
  %v717 = vmul.f32 %v588, %v676
  %v718 = vmul.f32 %v593, %v676
  %v719 = vmul.f32 %v598, %v676
  %v720 = vmul.f32 %v603, %v676
  %v721 = vmul.f32 %v608, %v676
  %v722 = vmul.f32 %v613, %v676
  %v723 = vmul.f32 %v618, %v676
  %v724 = vmul.f32 %v623, %v676
  %v725 = vmul.f32 %v628, %v676
  %v726 = vmul.f32 %v633, %v676
  %v727 = vmul.f32 %v638, %v676
  %v728 = vmul.f32 %v643, %v676
  %v729 = vmul.f32 %v648, %v676
  %v730 = vmul.f32 %v653, %v676
  %v731 = vmul.f32 %v658, %v676
  %v732 = vmul.f32 %v663, %v676
  %v733 = vmul.f32 %v668, %v676
  %v734 = vld [vmem:[%s3] sm:$0x1]
  %v736 = vlaneseq
  %v737 = vshrl.u32 %v736, 7
  %v738 = vsub.s32 0, %v737
  %v739 = vrot.slane %v734, %v738
  %v741 = vadd.f32 %v678, %v739
  %v742 = vadd.f32 %v679, %v739
  %v743 = vadd.f32 %v680, %v739
  %v744 = vadd.f32 %v681, %v739
  %v745 = vadd.f32 %v682, %v739
  %v746 = vadd.f32 %v683, %v739
  %v747 = vadd.f32 %v684, %v739
  %v748 = vadd.f32 %v685, %v739
  %v749 = vadd.f32 %v686, %v739
  %v750 = vadd.f32 %v687, %v739
  %v751 = vadd.f32 %v688, %v739
  %v752 = vadd.f32 %v689, %v739
  %v753 = vadd.f32 %v690, %v739
  %v754 = vadd.f32 %v691, %v739
  %v755 = vadd.f32 %v692, %v739
  %v756 = vadd.f32 %v693, %v739
  %v757 = vadd.f32 %v694, %v739
  %v758 = vadd.f32 %v695, %v739
  %v759 = vadd.f32 %v696, %v739
  %v760 = vadd.f32 %v697, %v739
  %v761 = vadd.f32 %v698, %v739
  %v762 = vadd.f32 %v699, %v739
  %v763 = vadd.f32 %v700, %v739
  %v764 = vadd.f32 %v701, %v739
  %v765 = vadd.f32 %v702, %v739
  %v766 = vadd.f32 %v703, %v739
  %v767 = vadd.f32 %v704, %v739
  %v768 = vadd.f32 %v705, %v739
  %v769 = vadd.f32 %v706, %v739
  %v770 = vadd.f32 %v707, %v739
  %v771 = vadd.f32 %v708, %v739
  %v772 = vadd.f32 %v709, %v739
  %v773 = vadd.f32 %v710, %v739
  %v774 = vadd.f32 %v711, %v739
  %v775 = vadd.f32 %v712, %v739
  %v776 = vadd.f32 %v713, %v739
  %v777 = vadd.f32 %v714, %v739
  %v778 = vadd.f32 %v715, %v739
  %v779 = vadd.f32 %v716, %v739
  %v780 = vadd.f32 %v717, %v739
  %v781 = vadd.f32 %v718, %v739
  %v782 = vadd.f32 %v719, %v739
  %v783 = vadd.f32 %v720, %v739
  %v784 = vadd.f32 %v721, %v739
  %v785 = vadd.f32 %v722, %v739
  %v786 = vadd.f32 %v723, %v739
  %v787 = vadd.f32 %v724, %v739
  %v788 = vadd.f32 %v725, %v739
  %v789 = vadd.f32 %v726, %v739
  %v790 = vadd.f32 %v727, %v739
  %v791 = vadd.f32 %v728, %v739
  %v792 = vadd.f32 %v729, %v739
  %v793 = vadd.f32 %v730, %v739
  %v794 = vadd.f32 %v731, %v739
  %v795 = vadd.f32 %v732, %v739
  %v796 = vadd.f32 %v733, %v739
  %vm797 = vcmask 523264
  %798 = vst.msk [vmem:[%s4] sm:$0xff] %vm797, %v741
  %799 = vst.msk [vmem:[%s4 + $0x8] sm:$0xff] %vm797, %v742
  %800 = vst.msk [vmem:[%s4 + $0x10] sm:$0xff] %vm797, %v743
  %801 = vst.msk [vmem:[%s4 + $0x18] sm:$0xff] %vm797, %v744
  %802 = vst.msk [vmem:[%s4 + $0x20] sm:$0xff] %vm797, %v745
  %803 = vst.msk [vmem:[%s4 + $0x28] sm:$0xff] %vm797, %v746
  %804 = vst.msk [vmem:[%s4 + $0x30] sm:$0xff] %vm797, %v747
  %805 = vst.msk [vmem:[%s4 + $0x38] sm:$0xff] %vm797, %v748
  %806 = vst.msk [vmem:[%s4 + $0x40] sm:$0xff] %vm797, %v749
  %807 = vst.msk [vmem:[%s4 + $0x48] sm:$0xff] %vm797, %v750
  %808 = vst.msk [vmem:[%s4 + $0x50] sm:$0xff] %vm797, %v751
  %809 = vst.msk [vmem:[%s4 + $0x58] sm:$0xff] %vm797, %v752
  %810 = vst.msk [vmem:[%s4 + $0x60] sm:$0xff] %vm797, %v753
  %811 = vst.msk [vmem:[%s4 + $0x68] sm:$0xff] %vm797, %v754
  %812 = vst.msk [vmem:[%s4 + $0x70] sm:$0xff] %vm797, %v755
  %813 = vst.msk [vmem:[%s4 + $0x78] sm:$0xff] %vm797, %v756
  %814 = vst.msk [vmem:[%s4 + $0x80] sm:$0xff] %vm797, %v757
  %815 = vst.msk [vmem:[%s4 + $0x88] sm:$0xff] %vm797, %v758
  %816 = vst.msk [vmem:[%s4 + $0x90] sm:$0xff] %vm797, %v759
  %817 = vst.msk [vmem:[%s4 + $0x98] sm:$0xff] %vm797, %v760
  %818 = vst.msk [vmem:[%s4 + $0xa0] sm:$0xff] %vm797, %v761
  %819 = vst.msk [vmem:[%s4 + $0xa8] sm:$0xff] %vm797, %v762
  %820 = vst.msk [vmem:[%s4 + $0xb0] sm:$0xff] %vm797, %v763
  %821 = vst.msk [vmem:[%s4 + $0xb8] sm:$0xff] %vm797, %v764
  %822 = vst.msk [vmem:[%s4 + $0xc0] sm:$0xff] %vm797, %v765
  %823 = vst.msk [vmem:[%s4 + $0xc8] sm:$0xff] %vm797, %v766
  %824 = vst.msk [vmem:[%s4 + $0xd0] sm:$0xff] %vm797, %v767
  %825 = vst.msk [vmem:[%s4 + $0xd8] sm:$0xff] %vm797, %v768
  %826 = vst.msk [vmem:[%s4 + $0xe0] sm:$0xff] %vm797, %v769
  %827 = vst.msk [vmem:[%s4 + $0xe8] sm:$0xff] %vm797, %v770
  %828 = vst.msk [vmem:[%s4 + $0xf0] sm:$0xff] %vm797, %v771
  %829 = vst.msk [vmem:[%s4 + $0xf8] sm:$0xff] %vm797, %v772
  %830 = vst.msk [vmem:[%s4 + $0x100] sm:$0xff] %vm797, %v773
  %831 = vst.msk [vmem:[%s4 + $0x108] sm:$0xff] %vm797, %v774
  %832 = vst.msk [vmem:[%s4 + $0x110] sm:$0xff] %vm797, %v775
  %833 = vst.msk [vmem:[%s4 + $0x118] sm:$0xff] %vm797, %v776
  %834 = vst.msk [vmem:[%s4 + $0x120] sm:$0xff] %vm797, %v777
  %835 = vst.msk [vmem:[%s4 + $0x128] sm:$0xff] %vm797, %v778
  %836 = vst.msk [vmem:[%s4 + $0x130] sm:$0xff] %vm797, %v779
  %837 = vst.msk [vmem:[%s4 + $0x138] sm:$0xff] %vm797, %v780
  %838 = vst.msk [vmem:[%s4 + $0x140] sm:$0xff] %vm797, %v781
  %839 = vst.msk [vmem:[%s4 + $0x148] sm:$0xff] %vm797, %v782
  %840 = vst.msk [vmem:[%s4 + $0x150] sm:$0xff] %vm797, %v783
  %841 = vst.msk [vmem:[%s4 + $0x158] sm:$0xff] %vm797, %v784
  %842 = vst.msk [vmem:[%s4 + $0x160] sm:$0xff] %vm797, %v785
  %843 = vst.msk [vmem:[%s4 + $0x168] sm:$0xff] %vm797, %v786
  %844 = vst.msk [vmem:[%s4 + $0x170] sm:$0xff] %vm797, %v787
  %845 = vst.msk [vmem:[%s4 + $0x178] sm:$0xff] %vm797, %v788
  %846 = vst.msk [vmem:[%s4 + $0x180] sm:$0xff] %vm797, %v789
  %847 = vst.msk [vmem:[%s4 + $0x188] sm:$0xff] %vm797, %v790
  %848 = vst.msk [vmem:[%s4 + $0x190] sm:$0xff] %vm797, %v791
  %849 = vst.msk [vmem:[%s4 + $0x198] sm:$0xff] %vm797, %v792
  %850 = vst.msk [vmem:[%s4 + $0x1a0] sm:$0xff] %vm797, %v793
  %851 = vst.msk [vmem:[%s4 + $0x1a8] sm:$0xff] %vm797, %v794
  %852 = vst.msk [vmem:[%s4 + $0x1b0] sm:$0xff] %vm797, %v795
  %853 = vst.msk [vmem:[%s4 + $0x1b8] sm:$0xff] %vm797, %v796
  // Predicated region
  $region18: #{mask_decoder_forward.10} parent=0 // pred_check
    _
  $region19: #{mask_decoder_forward.10} parent=0 // pred_check_branch
    %855 = sbr.rel (0) target = $region21
  $region20: #{mask_decoder_forward.10} parent=0 // pred_region
    _
  $region21: #{mask_decoder_forward.10} parent=0 // pred_fallthru
    _
  // Predicated region
  $region22: #{mask_decoder_forward.10} parent=0 // pred_check
    _
  $region23: #{mask_decoder_forward.10} parent=0 // pred_check_branch
    %857 = sbr.rel (0) target = $region25
  $region24: #{mask_decoder_forward.10} parent=0 // pred_region
    _
  $region25: #{mask_decoder_forward.10} parent=0 // pred_fallthru
    _

// kernel: mask_decoder_forward.11
$region0: #{mask_decoder_forward.11}
  #allocation0 [shape = 'u32[]', space=smem, size = 0x4, offset = 0x4, fixed_abs, tag = 'smem constant byte address 0x4 - core index']
  #allocation1 [shape = 'u32[144,128]{1,0:T(1,128)}', space=vmem, size = 0x12000, scoped, tag = 'internal scratch']
  %s0 = inlined_call_operand.vmem [shape: f32[128,224], index: 0, kind: input, shape index: {}]
  %s1 = inlined_call_operand.vmem [shape: f32[224,64], index: 1, kind: input, shape index: {}]
  %s2 = inlined_call_operand.vmem [shape: f32[1,64], index: 2, kind: input, shape index: {}]
  %s3 = inlined_call_operand.vmem [shape: f32[1,64], index: 3, kind: input, shape index: {}]
  %s4 = inlined_call_operand.vmem [shape: f32[128,64], index: 4, kind: output, shape index: {}]
  %s5 = sld [smem:[#allocation0]]
  $region26: #{mask_decoder_forward.11} parent=0
    _
  %s7 = ssub.s32 1, %s5
  %s8 = scalar_select 0, %s7, %s5
  // Predicated region
  $region2: #{mask_decoder_forward.11} parent=0 // pred_check
    _
  $region3: #{mask_decoder_forward.11} parent=0 // pred_check_branch
    %10 = sbr.rel (0) target = $region5
  $region4: #{mask_decoder_forward.11} parent=0 // pred_region
    _
  $region5: #{mask_decoder_forward.11} parent=0 // pred_fallthru
    _
  // Predicated region
  $region6: #{mask_decoder_forward.11} parent=0 // pred_check
    _
  $region7: #{mask_decoder_forward.11} parent=0 // pred_check_branch
    %12 = sbr.rel (0) target = $region9
  $region8: #{mask_decoder_forward.11} parent=0 // pred_region
    _
  $region9: #{mask_decoder_forward.11} parent=0 // pred_fallthru
    _
  // Predicated region
  $region10: #{mask_decoder_forward.11} parent=0 // pred_check
    _
  $region11: #{mask_decoder_forward.11} parent=0 // pred_check_branch
    %14 = sbr.rel (0) target = $region13
  $region12: #{mask_decoder_forward.11} parent=0 // pred_region
    _
  $region13: #{mask_decoder_forward.11} parent=0 // pred_fallthru
    _
  // Predicated region
  $region14: #{mask_decoder_forward.11} parent=0 // pred_check
    _
  $region15: #{mask_decoder_forward.11} parent=0 // pred_check_branch
    %16 = sbr.rel (0) target = $region17
  $region16: #{mask_decoder_forward.11} parent=0 // pred_region
    _
  $region17: #{mask_decoder_forward.11} parent=0 // pred_fallthru
    _
  %v17 = vld [vmem:[%s0] sm:$0xff]
  %v18 = vld [vmem:[%s0 + $0x8] sm:$0xff]
  %v19 = vld [vmem:[%s0 + $0x10] sm:$0xff]
  %v20 = vld [vmem:[%s0 + $0x18] sm:$0xff]
  %v21 = vld [vmem:[%s0 + $0x20] sm:$0xff]
  %v22 = vld [vmem:[%s0 + $0x28] sm:$0xff]
  %v23 = vld [vmem:[%s0 + $0x30] sm:$0xff]
  %v24 = vld [vmem:[%s0 + $0x38] sm:$0xff]
  %v25 = vld [vmem:[%s0 + $0x40] sm:$0xff]
  %v26 = vld [vmem:[%s0 + $0x48] sm:$0xff]
  %v27 = vld [vmem:[%s0 + $0x50] sm:$0xff]
  %v28 = vld [vmem:[%s0 + $0x58] sm:$0xff]
  %v29 = vld [vmem:[%s0 + $0x60] sm:$0xff]
  %v30 = vld [vmem:[%s0 + $0x68] sm:$0xff]
  %v31 = vld [vmem:[%s0 + $0x70] sm:$0xff]
  %v32 = vld [vmem:[%s0 + $0x78] sm:$0xff]
  %v33 = vld [vmem:[%s0 + $0x80] sm:$0xff]
  %v34 = vld [vmem:[%s0 + $0x88] sm:$0xff]
  %v35 = vld [vmem:[%s0 + $0x90] sm:$0xff]
  %v36 = vld [vmem:[%s0 + $0x98] sm:$0xff]
  %v37 = vld [vmem:[%s0 + $0xa0] sm:$0xff]
  %v38 = vld [vmem:[%s0 + $0xa8] sm:$0xff]
  %v39 = vld [vmem:[%s0 + $0xb0] sm:$0xff]
  %v40 = vld [vmem:[%s0 + $0xb8] sm:$0xff]
  %v41 = vld [vmem:[%s0 + $0xc0] sm:$0xff]
  %v42 = vld [vmem:[%s0 + $0xc8] sm:$0xff]
  %v43 = vld [vmem:[%s0 + $0xd0] sm:$0xff]
  %v44 = vld [vmem:[%s0 + $0xd8] sm:$0xff]
  %v45 = vld [vmem:[%s0 + $0xe0] sm:$0xff]
  %v46 = vld [vmem:[%s0 + $0xe8] sm:$0xff]
  %v47 = vld [vmem:[%s0 + $0xf0] sm:$0xff]
  %v48 = vld [vmem:[%s0 + $0xf8] sm:$0xff]
  %v49 = vld [vmem:[%s1] sm:$0xff]
  %v50 = vld [vmem:[%s1 + $0x8] sm:$0xff]
  %v51 = vld [vmem:[%s1 + $0x10] sm:$0xff]
  %v52 = vld [vmem:[%s1 + $0x18] sm:$0xff]
  %v53 = vld [vmem:[%s1 + $0x20] sm:$0xff]
  %v54 = vld [vmem:[%s1 + $0x28] sm:$0xff]
  %v55 = vld [vmem:[%s1 + $0x30] sm:$0xff]
  %v56 = vld [vmem:[%s1 + $0x38] sm:$0xff]
  %v57 = vld [vmem:[%s1 + $0x40] sm:$0xff]
  %v58 = vld [vmem:[%s1 + $0x48] sm:$0xff]
  %v59 = vld [vmem:[%s1 + $0x50] sm:$0xff]
  %v60 = vld [vmem:[%s1 + $0x58] sm:$0xff]
  %v61 = vld [vmem:[%s1 + $0x60] sm:$0xff]
  %v62 = vld [vmem:[%s1 + $0x68] sm:$0xff]
  %v63 = vld [vmem:[%s1 + $0x70] sm:$0xff]
  %v64 = vld [vmem:[%s1 + $0x78] sm:$0xff]
  %v65 = vld [vmem:[%s1 + $0x80] sm:$0xff]
  %v66 = vld [vmem:[%s1 + $0x88] sm:$0xff]
  %v67 = vld [vmem:[%s1 + $0x90] sm:$0xff]
  %v68 = vld [vmem:[%s1 + $0x98] sm:$0xff]
  %v69 = vld [vmem:[%s1 + $0xa0] sm:$0xff]
  %v70 = vld [vmem:[%s1 + $0xa8] sm:$0xff]
  %v71 = vld [vmem:[%s1 + $0xb0] sm:$0xff]
  %v72 = vld [vmem:[%s1 + $0xb8] sm:$0xff]
  %v73 = vld [vmem:[%s1 + $0xc0] sm:$0xff]
  %v74 = vld [vmem:[%s1 + $0xc8] sm:$0xff]
  %v75 = vld [vmem:[%s1 + $0xd0] sm:$0xff]
  %v76 = vld [vmem:[%s1 + $0xd8] sm:$0xff]
  %vm77 = vcmask 785408
  %v79 = vsel %vm77, %v18, 0
  %v82 = vsel %vm77, %v20, 0
  %v85 = vsel %vm77, %v22, 0
  %v88 = vsel %vm77, %v24, 0
  %v91 = vsel %vm77, %v26, 0
  %v94 = vsel %vm77, %v28, 0
  %v97 = vsel %vm77, %v30, 0
  %v100 = vsel %vm77, %v32, 0
  %v103 = vsel %vm77, %v34, 0
  %v106 = vsel %vm77, %v36, 0
  %v109 = vsel %vm77, %v38, 0
  %v112 = vsel %vm77, %v40, 0
  %v115 = vsel %vm77, %v42, 0
  %v118 = vsel %vm77, %v44, 0
  %v121 = vsel %vm77, %v46, 0
  %v124 = vsel %vm77, %v48, 0
  %126 = vmatprep.subr.mxu0 0.0
  %127 = vmatpush1.msra.mxu0 %v64
  %128 = vmatprep.subr.mxu0 0.0
  %129 = vmatpush1.msra.mxu0 %v63
  %130 = vmatprep.subr.mxu0 0.0
  %131 = vmatpush1.msra.mxu0 %v62
  %132 = vmatprep.subr.mxu0 0.0
  %133 = vmatpush1.msra.mxu0 %v61
  %134 = vmatprep.subr.mxu0 0.0
  %135 = vmatpush1.msra.mxu0 %v60
  %136 = vmatprep.subr.mxu0 0.0
  %137 = vmatpush1.msra.mxu0 %v59
  %138 = vmatprep.subr.mxu0 0.0
  %139 = vmatpush1.msra.mxu0 %v58
  %140 = vmatprep.subr.mxu0 0.0
  %141 = vmatpush1.msra.mxu0 %v57
  %142 = vmatprep.subr.mxu0 0.0
  %143 = vmatpush1.msra.mxu0 %v56
  %144 = vmatprep.subr.mxu0 0.0
  %145 = vmatpush1.msra.mxu0 %v55
  %146 = vmatprep.subr.mxu0 0.0
  %147 = vmatpush1.msra.mxu0 %v54
  %148 = vmatprep.subr.mxu0 0.0
  %149 = vmatpush1.msra.mxu0 %v53
  %150 = vmatprep.subr.mxu0 0.0
  %151 = vmatpush1.msra.mxu0 %v52
  %152 = vmatprep.subr.mxu0 0.0
  %153 = vmatpush1.msra.mxu0 %v51
  %154 = vmatprep.subr.mxu0 0.0
  %155 = vmatpush1.msra.mxu0 %v50
  %156 = vmatprep.subr.mxu0 0.0
  %157 = vmatpush1.msra.mxu0 %v49
  %158 = vmatprep.subr.mxu0 0.0
  %159 = vmatpush2.msra.mxu0 0.0
  %160 = vmatprep.subr.mxu0 0.0
  %161 = vmatpush2.msra.mxu0 0.0
  %162 = vmatprep.subr.mxu0 0.0
  %163 = vmatpush2.msra.mxu0 0.0
  %164 = vmatprep.subr.mxu0 0.0
  %165 = vmatpush2.msra.mxu0 0.0
  %166 = vmatprep.subr.mxu0 0.0
  %167 = vmatpush2.msra.mxu0 %v76
  %168 = vmatprep.subr.mxu0 0.0
  %169 = vmatpush2.msra.mxu0 %v75
  %170 = vmatprep.subr.mxu0 0.0
  %171 = vmatpush2.msra.mxu0 %v74
  %172 = vmatprep.subr.mxu0 0.0
  %173 = vmatpush2.msra.mxu0 %v73
  %174 = vmatprep.subr.mxu0 0.0
  %175 = vmatpush2.msra.mxu0 %v72
  %176 = vmatprep.subr.mxu0 0.0
  %177 = vmatpush2.msra.mxu0 %v71
  %178 = vmatprep.subr.mxu0 0.0
  %179 = vmatpush2.msra.mxu0 %v70
  %180 = vmatprep.subr.mxu0 0.0
  %181 = vmatpush2.msra.mxu0 %v69
  %182 = vmatprep.subr.mxu0 0.0
  %183 = vmatpush2.msra.mxu0 %v68
  %184 = vmatprep.subr.mxu0 0.0
  %185 = vmatpush2.msra.mxu0 %v67
  %186 = vmatprep.subr.mxu0 0.0
  %187 = vmatpush2.msra.mxu0 %v66
  %188 = vmatprep.subr.mxu0 0.0
  %189 = vmatpush2.msra.mxu0 %v65
  %190 = vmatprep.mubr.f32.mxu0 %v79
  %191 = vmatmul.mubr.f32.gmra.mxu0 %v17
  %v192 = vpop.f32.mrf.mxu0
  %v193 = vadd.f32 0.0, %v192
  %v194 = vpop.f32.mrf.mxu0
  %195 = vmatprep.mubr.f32.mxu0 %v82
  %196 = vmatmul.mubr.f32.gmra.mxu0 %v19
  %v197 = vpop.f32.mrf.mxu0
  %v198 = vadd.f32 0.0, %v197
  %v199 = vpop.f32.mrf.mxu0
  %200 = vmatprep.mubr.f32.mxu0 %v85
  %201 = vmatmul.mubr.f32.gmra.mxu0 %v21
  %v202 = vpop.f32.mrf.mxu0
  %v203 = vadd.f32 0.0, %v202
  %v204 = vpop.f32.mrf.mxu0
  %205 = vmatprep.mubr.f32.mxu0 %v88
  %206 = vmatmul.mubr.f32.gmra.mxu0 %v23
  %v207 = vpop.f32.mrf.mxu0
  %v208 = vadd.f32 0.0, %v207
  %v209 = vpop.f32.mrf.mxu0
  %210 = vmatprep.mubr.f32.mxu0 %v91
  %211 = vmatmul.mubr.f32.gmra.mxu0 %v25
  %v212 = vpop.f32.mrf.mxu0
  %v213 = vadd.f32 0.0, %v212
  %v214 = vpop.f32.mrf.mxu0
  %215 = vmatprep.mubr.f32.mxu0 %v94
  %216 = vmatmul.mubr.f32.gmra.mxu0 %v27
  %v217 = vpop.f32.mrf.mxu0
  %v218 = vadd.f32 0.0, %v217
  %v219 = vpop.f32.mrf.mxu0
  %220 = vmatprep.mubr.f32.mxu0 %v97
  %221 = vmatmul.mubr.f32.gmra.mxu0 %v29
  %v222 = vpop.f32.mrf.mxu0
  %v223 = vadd.f32 0.0, %v222
  %v224 = vpop.f32.mrf.mxu0
  %225 = vmatprep.mubr.f32.mxu0 %v100
  %226 = vmatmul.mubr.f32.gmra.mxu0 %v31
  %v227 = vpop.f32.mrf.mxu0
  %v228 = vadd.f32 0.0, %v227
  %v229 = vpop.f32.mrf.mxu0
  %230 = vmatprep.mubr.f32.mxu0 %v103
  %231 = vmatmul.mubr.f32.gmra.mxu0 %v33
  %v232 = vpop.f32.mrf.mxu0
  %v233 = vadd.f32 0.0, %v232
  %v234 = vpop.f32.mrf.mxu0
  %235 = vmatprep.mubr.f32.mxu0 %v106
  %236 = vmatmul.mubr.f32.gmra.mxu0 %v35
  %v237 = vpop.f32.mrf.mxu0
  %v238 = vadd.f32 0.0, %v237
  %v239 = vpop.f32.mrf.mxu0
  %240 = vmatprep.mubr.f32.mxu0 %v109
  %241 = vmatmul.mubr.f32.gmra.mxu0 %v37
  %v242 = vpop.f32.mrf.mxu0
  %v243 = vadd.f32 0.0, %v242
  %v244 = vpop.f32.mrf.mxu0
  %245 = vmatprep.mubr.f32.mxu0 %v112
  %246 = vmatmul.mubr.f32.gmra.mxu0 %v39
  %v247 = vpop.f32.mrf.mxu0
  %v248 = vadd.f32 0.0, %v247
  %v249 = vpop.f32.mrf.mxu0
  %250 = vmatprep.mubr.f32.mxu0 %v115
  %251 = vmatmul.mubr.f32.gmra.mxu0 %v41
  %v252 = vpop.f32.mrf.mxu0
  %v253 = vadd.f32 0.0, %v252
  %v254 = vpop.f32.mrf.mxu0
  %255 = vmatprep.mubr.f32.mxu0 %v118
  %256 = vmatmul.mubr.f32.gmra.mxu0 %v43
  %v257 = vpop.f32.mrf.mxu0
  %v258 = vadd.f32 0.0, %v257
  %v259 = vpop.f32.mrf.mxu0
  %260 = vmatprep.mubr.f32.mxu0 %v121
  %261 = vmatmul.mubr.f32.gmra.mxu0 %v45
  %v262 = vpop.f32.mrf.mxu0
  %v263 = vadd.f32 0.0, %v262
  %v264 = vpop.f32.mrf.mxu0
  %265 = vmatprep.mubr.f32.mxu0 %v124
  %266 = vmatmul.mubr.f32.gmra.mxu0 %v47
  %v267 = vpop.f32.mrf.mxu0
  %v268 = vadd.f32 0.0, %v267
  %v269 = vpop.f32.mrf.mxu0
  %270 = vdwg.mxu0
  %v271 = vld [vmem:[%s2] sm:$0x1]
  %v273 = vlaneseq
  %v274 = vshrl.u32 %v273, 7
  %v275 = vsub.s32 0, %v274
  %v276 = vrot.slane %v271, %v275
  %v278 = vmul.f32 %v193, %v276
  %v279 = vmul.f32 %v198, %v276
  %v280 = vmul.f32 %v203, %v276
  %v281 = vmul.f32 %v208, %v276
  %v282 = vmul.f32 %v213, %v276
  %v283 = vmul.f32 %v218, %v276
  %v284 = vmul.f32 %v223, %v276
  %v285 = vmul.f32 %v228, %v276
  %v286 = vmul.f32 %v233, %v276
  %v287 = vmul.f32 %v238, %v276
  %v288 = vmul.f32 %v243, %v276
  %v289 = vmul.f32 %v248, %v276
  %v290 = vmul.f32 %v253, %v276
  %v291 = vmul.f32 %v258, %v276
  %v292 = vmul.f32 %v263, %v276
  %v293 = vmul.f32 %v268, %v276
  %v294 = vld [vmem:[%s3] sm:$0x1]
  %v296 = vlaneseq
  %v297 = vshrl.u32 %v296, 7
  %v298 = vsub.s32 0, %v297
  %v299 = vrot.slane %v294, %v298
  %v301 = vadd.f32 %v278, %v299
  %v302 = vadd.f32 %v279, %v299
  %v303 = vadd.f32 %v280, %v299
  %v304 = vadd.f32 %v281, %v299
  %v305 = vadd.f32 %v282, %v299
  %v306 = vadd.f32 %v283, %v299
  %v307 = vadd.f32 %v284, %v299
  %v308 = vadd.f32 %v285, %v299
  %v309 = vadd.f32 %v286, %v299
  %v310 = vadd.f32 %v287, %v299
  %v311 = vadd.f32 %v288, %v299
  %v312 = vadd.f32 %v289, %v299
  %v313 = vadd.f32 %v290, %v299
  %v314 = vadd.f32 %v291, %v299
  %v315 = vadd.f32 %v292, %v299
  %v316 = vadd.f32 %v293, %v299
  %vm317 = vcmask 523264
  %318 = vst.msk [vmem:[%s4] sm:$0xff] %vm317, %v301
  %319 = vst.msk [vmem:[%s4 + $0x8] sm:$0xff] %vm317, %v302
  %320 = vst.msk [vmem:[%s4 + $0x10] sm:$0xff] %vm317, %v303
  %321 = vst.msk [vmem:[%s4 + $0x18] sm:$0xff] %vm317, %v304
  %322 = vst.msk [vmem:[%s4 + $0x20] sm:$0xff] %vm317, %v305
  %323 = vst.msk [vmem:[%s4 + $0x28] sm:$0xff] %vm317, %v306
  %324 = vst.msk [vmem:[%s4 + $0x30] sm:$0xff] %vm317, %v307
  %325 = vst.msk [vmem:[%s4 + $0x38] sm:$0xff] %vm317, %v308
  %326 = vst.msk [vmem:[%s4 + $0x40] sm:$0xff] %vm317, %v309
  %327 = vst.msk [vmem:[%s4 + $0x48] sm:$0xff] %vm317, %v310
  %328 = vst.msk [vmem:[%s4 + $0x50] sm:$0xff] %vm317, %v311
  %329 = vst.msk [vmem:[%s4 + $0x58] sm:$0xff] %vm317, %v312
  %330 = vst.msk [vmem:[%s4 + $0x60] sm:$0xff] %vm317, %v313
  %331 = vst.msk [vmem:[%s4 + $0x68] sm:$0xff] %vm317, %v314
  %332 = vst.msk [vmem:[%s4 + $0x70] sm:$0xff] %vm317, %v315
  %333 = vst.msk [vmem:[%s4 + $0x78] sm:$0xff] %vm317, %v316
  // Predicated region
  $region18: #{mask_decoder_forward.11} parent=0 // pred_check
    _
  $region19: #{mask_decoder_forward.11} parent=0 // pred_check_branch
    %335 = sbr.rel (0) target = $region21
  $region20: #{mask_decoder_forward.11} parent=0 // pred_region
    _
  $region21: #{mask_decoder_forward.11} parent=0 // pred_fallthru
    _
  // Predicated region
  $region22: #{mask_decoder_forward.11} parent=0 // pred_check
    _
  $region23: #{mask_decoder_forward.11} parent=0 // pred_check_branch
    %337 = sbr.rel (0) target = $region25
  $region24: #{mask_decoder_forward.11} parent=0 // pred_region
    _
  $region25: #{mask_decoder_forward.11} parent=0 // pred_fallthru
    _

</llo_original>
